<compile_context>
chip_gen: v7x
topology: tpu7x:2x2x1
jax: 0.10.0
libtpu: 0.0.40
codegen_flags: <defaults>
</compile_context>

<pallas_src>
import functools

import jax
import jax.numpy as jnp
from jax.experimental import pallas as pl
from jax.experimental.pallas import tpu as pltpu


def _elu(x):
    # ELU(alpha=1.0); clamp the exp argument so the discarded branch is finite.
    return jnp.where(x > 0, x, jnp.exp(jnp.minimum(x, 0.0)) - 1.0)


# ---------------------------------------------------------------------------
# Fused kernel: LSTM(last 3 steps) + ELU + LayerNorm + Linear + ELU(ELU)
#               + 1x1 conv stack (1->8, 5x 8->8, 8->1)
# ---------------------------------------------------------------------------
def heatmap_decoder_kernel(x_ref, wih_ref, whh_ref, b_ref, gamma_ref, beta_ref,
                           w1_ref, b1_ref, c0w_ref, c0b_ref, cmw_ref, cmb_ref,
                           cfw_ref, cfb_ref, out_ref):
    B = out_ref.shape[0]
    H = whh_ref.shape[1]
    T = x_ref.shape[0] // B          # time-major: rows are (t0b0..t0bB-1, t1b0, ...)

    # ---- LSTM: hoisted input projection (all timesteps in one matmul/gate) --
    x2 = x_ref[...]                                          # (T*B, F)
    pre = [jnp.dot(x2, wih_ref[g], preferred_element_type=jnp.float32) + b_ref[g]
           for g in range(4)]                                # 4 x (T*B, H)
    whh = [whh_ref[g] for g in range(4)]                     # 4 x (H, H)

    h = jnp.zeros((B, H), jnp.float32)
    c = jnp.zeros((B, H), jnp.float32)
    for t in range(T):                                       # T = 3, static unroll
        r = t * B
        i_g = jax.nn.sigmoid(
            pre[0][r:r + B] + jnp.dot(h, whh[0], preferred_element_type=jnp.float32))
        f_g = jax.nn.sigmoid(
            pre[1][r:r + B] + jnp.dot(h, whh[1], preferred_element_type=jnp.float32))
        g_g = jnp.tanh(
            pre[2][r:r + B] + jnp.dot(h, whh[2], preferred_element_type=jnp.float32))
        o_g = jax.nn.sigmoid(
            pre[3][r:r + B] + jnp.dot(h, whh[3], preferred_element_type=jnp.float32))
        c = f_g * c + i_g * g_g
        h = o_g * jnp.tanh(c)

    # ---- ELU -> LayerNorm(latent_dim) -> Linear -> ELU(ELU) -----------------
    z = _elu(h)
    mu = jnp.mean(z, axis=-1, keepdims=True)
    var = jnp.mean((z - mu) ** 2, axis=-1, keepdims=True)
    zn = (z - mu) * jax.lax.rsqrt(var + 1e-5)
    zn = zn * gamma_ref[...] + beta_ref[...]

    y = jnp.dot(zn, w1_ref[...], preferred_element_type=jnp.float32) + b1_ref[...]
    y = _elu(_elu(y))                                        # (B, hm*hm), lane-dense

    # ---- 1x1 conv stack: unrolled VPU scalar-broadcast FMAs -----------------
    # conv0: 1 -> 8 channels (channels kept as a Python list of (B, hm*hm) maps)
    hc = [_elu(c0w_ref[co] * y + c0b_ref[co]) for co in range(8)]

    # 5 x (8 -> 8) convs, each followed by ELU
    for k in range(5):
        new_hc = []
        for co in range(8):
            acc = hc[0] * cmw_ref[(k * 8 + co) * 8 + 0]
            for ci in range(1, 8):
                acc = acc + hc[ci] * cmw_ref[(k * 8 + co) * 8 + ci]
            new_hc.append(_elu(acc + cmb_ref[k * 8 + co]))
        hc = new_hc

    # final conv: 8 -> 1, no activation
    out = hc[0] * cfw_ref[0]
    for ci in range(1, 8):
        out = out + hc[ci] * cfw_ref[ci]
    out_ref[...] = out + cfb_ref[0]


# ---------------------------------------------------------------------------
# Wrapper
# ---------------------------------------------------------------------------
@functools.partial(jax.jit, static_argnames=("hm_size",))
def heatmap_decoder_forward(x, params, hm_size):
    """x: (batch, seq_len, feature_dim) float32. Returns (batch, hm, hm)."""
    B, _, F = x.shape
    T = 3
    P = hm_size * hm_size

    # last-3-timestep context, time-major, flattened to (T*B, F) in the wrapper
    # so the kernel's hoisted projection is a single contiguous matmul per gate.
    x_ctx = jnp.transpose(x[:, -T:, :], (1, 0, 2)).reshape(T * B, F)
    x_ctx = x_ctx.astype(jnp.float32)

    vmem = pltpu.MemorySpace.VMEM
    smem = pltpu.MemorySpace.SMEM
    in_specs = ([pl.BlockSpec(memory_space=vmem)] * 8 +
                [pl.BlockSpec(memory_space=smem)] * 6)

    out = pl.pallas_call(
        heatmap_decoder_kernel,
        out_shape=jax.ShapeDtypeStruct((B, P), jnp.float32),
        in_specs=in_specs,
        out_specs=pl.BlockSpec(memory_space=vmem),
        compiler_params=pltpu.CompilerParams(vmem_limit_bytes=32 * 1024 * 1024),
    )(x_ctx,
      params["w_ih"], params["w_hh"], params["b_lstm"],
      params["ln_gamma"], params["ln_beta"], params["w1"], params["b1"],
      params["conv0_w"], params["conv0_b"],
      params["convmid_w"], params["convmid_b"],
      params["convf_w"], params["convf_b"])

    # (B, hm*hm) -> (B, 1, hm, hm) -> squeeze (matches torch .squeeze())
    return jnp.squeeze(out.reshape(B, 1, hm_size, hm_size))


def init_params(key, feature_dim, latent_dim, hm_size):
    ks = jax.random.split(key, 12)
    s = 0.1
    H = latent_dim
    return {
        # LSTM, per-gate stacked (gate order i,f,g,o); bias = b_ih + b_hh folded
        "w_ih": s * jax.random.normal(ks[0], (4, feature_dim, H), jnp.float32),
        "w_hh": s * jax.random.normal(ks[1], (4, H, H), jnp.float32),
        "b_lstm": s * jax.random.normal(ks[2], (4, 1, H), jnp.float32),
        # LayerNorm(latent_dim)
        "ln_gamma": jnp.ones((1, H), jnp.float32),
        "ln_beta": jnp.zeros((1, H), jnp.float32),
        # Linear(latent_dim, hm*hm)
        "w1": s * jax.random.normal(ks[3], (H, hm_size * hm_size), jnp.float32),
        "b1": s * jax.random.normal(ks[4], (1, hm_size * hm_size), jnp.float32),
        # Conv2d(1, 8, k=1): (out=8,)
        "conv0_w": s * jax.random.normal(ks[5], (8,), jnp.float32),
        "conv0_b": s * jax.random.normal(ks[6], (8,), jnp.float32),
        # 5x Conv2d(8, 8, k=1): flattened (5*8*8,) row-major [k, out, in]
        "convmid_w": s * jax.random.normal(ks[7], (5 * 8 * 8,), jnp.float32),
        "convmid_b": s * jax.random.normal(ks[8], (5 * 8,), jnp.float32),
        # final Conv2d(8, 1, k=1): (in=8,)
        "convf_w": s * jax.random.normal(ks[9], (8,), jnp.float32),
        "convf_b": s * jax.random.normal(ks[10], (1,), jnp.float32),
    }


if __name__ == "__main__":
    # small shapes consistent with the module's forward
    batch, seq_len, feature_dim = 2, 8, 16
    latent_dim, hm_size = 32, 16

    key = jax.random.PRNGKey(0)
    k_x, k_p = jax.random.split(key)
    x = jax.random.normal(k_x, (batch, seq_len, feature_dim), jnp.float32)
    params = init_params(k_p, feature_dim, latent_dim, hm_size)

    out = heatmap_decoder_forward(x, params, hm_size)
    out = jax.block_until_ready(out)

    assert out.shape == (batch, hm_size, hm_size), out.shape
    assert jnp.all(jnp.isfinite(out))
    print("KERNEL_OK")
</pallas_src>

<mosaic_0001>
module attributes {stable_mosaic.version = 11 : i64} {
  func.func @heatmap_decoder_kernel(%arg0: memref<6x16xf32, #tpu.memory_space<vmem>>, %arg1: memref<4x16x32xf32, #tpu.memory_space<vmem>>, %arg2: memref<4x32x32xf32, #tpu.memory_space<vmem>>, %arg3: memref<4x1x32xf32, #tpu.memory_space<vmem>>, %arg4: memref<1x32xf32, #tpu.memory_space<vmem>>, %arg5: memref<1x32xf32, #tpu.memory_space<vmem>>, %arg6: memref<32x256xf32, #tpu.memory_space<vmem>>, %arg7: memref<1x256xf32, #tpu.memory_space<vmem>>, %arg8: memref<8xf32, #tpu.memory_space<smem>>, %arg9: memref<8xf32, #tpu.memory_space<smem>>, %arg10: memref<320xf32, #tpu.memory_space<smem>>, %arg11: memref<40xf32, #tpu.memory_space<smem>>, %arg12: memref<8xf32, #tpu.memory_space<smem>>, %arg13: memref<1xf32, #tpu.memory_space<smem>>, %arg14: memref<2x256xf32, #tpu.memory_space<vmem>>) attributes {dimension_semantics = [], scalar_prefetch = 0 : i64, scratch_operands = 0 : i64, tpu.core_type = #tpu.core_type<tc>} {
    %c0 = arith.constant 0 : index
    %c0_0 = arith.constant 0 : index
    %0 = vector.load %arg0[%c0, %c0_0] : memref<6x16xf32, #tpu.memory_space<vmem>>, vector<6x16xf32>
    %c0_1 = arith.constant 0 : index
    %c0_2 = arith.constant 0 : index
    %c0_3 = arith.constant 0 : index
    %1 = vector.load %arg1[%c0_1, %c0_2, %c0_3] : memref<4x16x32xf32, #tpu.memory_space<vmem>>, vector<1x16x32xf32>
    %2 = vector.shape_cast %1 : vector<1x16x32xf32> to vector<16x32xf32>
    %cst = arith.constant dense<0.000000e+00> : vector<6x32xf32>
    %3 = tpu.matmul %0, %2, %cst {dimension_numbers = #tpu.dot_dimension_numbers<[1], [0], [0], [1], [0, 0, 1, 1], [], []>} : vector<6x16xf32>, vector<16x32xf32>, vector<6x32xf32> -> vector<6x32xf32>
    %c0_4 = arith.constant 0 : index
    %c0_5 = arith.constant 0 : index
    %c0_6 = arith.constant 0 : index
    %4 = vector.load %arg3[%c0_4, %c0_5, %c0_6] : memref<4x1x32xf32, #tpu.memory_space<vmem>>, vector<1x1x32xf32>
    %5 = vector.shape_cast %4 : vector<1x1x32xf32> to vector<1x32xf32>
    %6 = vector.broadcast %5 : vector<1x32xf32> to vector<6x32xf32>
    %7 = arith.addf %3, %6 : vector<6x32xf32>
    %c1 = arith.constant 1 : index
    %c0_7 = arith.constant 0 : index
    %c0_8 = arith.constant 0 : index
    %8 = vector.load %arg1[%c1, %c0_7, %c0_8] : memref<4x16x32xf32, #tpu.memory_space<vmem>>, vector<1x16x32xf32>
    %9 = vector.shape_cast %8 : vector<1x16x32xf32> to vector<16x32xf32>
    %cst_9 = arith.constant dense<0.000000e+00> : vector<6x32xf32>
    %10 = tpu.matmul %0, %9, %cst_9 {dimension_numbers = #tpu.dot_dimension_numbers<[1], [0], [0], [1], [0, 0, 1, 1], [], []>} : vector<6x16xf32>, vector<16x32xf32>, vector<6x32xf32> -> vector<6x32xf32>
    %c1_10 = arith.constant 1 : index
    %c0_11 = arith.constant 0 : index
    %c0_12 = arith.constant 0 : index
    %11 = vector.load %arg3[%c1_10, %c0_11, %c0_12] : memref<4x1x32xf32, #tpu.memory_space<vmem>>, vector<1x1x32xf32>
    %12 = vector.shape_cast %11 : vector<1x1x32xf32> to vector<1x32xf32>
    %13 = vector.broadcast %12 : vector<1x32xf32> to vector<6x32xf32>
    %14 = arith.addf %10, %13 : vector<6x32xf32>
    %c2 = arith.constant 2 : index
    %c0_13 = arith.constant 0 : index
    %c0_14 = arith.constant 0 : index
    %15 = vector.load %arg1[%c2, %c0_13, %c0_14] : memref<4x16x32xf32, #tpu.memory_space<vmem>>, vector<1x16x32xf32>
    %16 = vector.shape_cast %15 : vector<1x16x32xf32> to vector<16x32xf32>
    %cst_15 = arith.constant dense<0.000000e+00> : vector<6x32xf32>
    %17 = tpu.matmul %0, %16, %cst_15 {dimension_numbers = #tpu.dot_dimension_numbers<[1], [0], [0], [1], [0, 0, 1, 1], [], []>} : vector<6x16xf32>, vector<16x32xf32>, vector<6x32xf32> -> vector<6x32xf32>
    %c2_16 = arith.constant 2 : index
    %c0_17 = arith.constant 0 : index
    %c0_18 = arith.constant 0 : index
    %18 = vector.load %arg3[%c2_16, %c0_17, %c0_18] : memref<4x1x32xf32, #tpu.memory_space<vmem>>, vector<1x1x32xf32>
    %19 = vector.shape_cast %18 : vector<1x1x32xf32> to vector<1x32xf32>
    %20 = vector.broadcast %19 : vector<1x32xf32> to vector<6x32xf32>
    %21 = arith.addf %17, %20 : vector<6x32xf32>
    %c3 = arith.constant 3 : index
    %c0_19 = arith.constant 0 : index
    %c0_20 = arith.constant 0 : index
    %22 = vector.load %arg1[%c3, %c0_19, %c0_20] : memref<4x16x32xf32, #tpu.memory_space<vmem>>, vector<1x16x32xf32>
    %23 = vector.shape_cast %22 : vector<1x16x32xf32> to vector<16x32xf32>
    %cst_21 = arith.constant dense<0.000000e+00> : vector<6x32xf32>
    %24 = tpu.matmul %0, %23, %cst_21 {dimension_numbers = #tpu.dot_dimension_numbers<[1], [0], [0], [1], [0, 0, 1, 1], [], []>} : vector<6x16xf32>, vector<16x32xf32>, vector<6x32xf32> -> vector<6x32xf32>
    %c3_22 = arith.constant 3 : index
    %c0_23 = arith.constant 0 : index
    %c0_24 = arith.constant 0 : index
    %25 = vector.load %arg3[%c3_22, %c0_23, %c0_24] : memref<4x1x32xf32, #tpu.memory_space<vmem>>, vector<1x1x32xf32>
    %26 = vector.shape_cast %25 : vector<1x1x32xf32> to vector<1x32xf32>
    %27 = vector.broadcast %26 : vector<1x32xf32> to vector<6x32xf32>
    %28 = arith.addf %24, %27 : vector<6x32xf32>
    %c0_25 = arith.constant 0 : index
    %c0_26 = arith.constant 0 : index
    %c0_27 = arith.constant 0 : index
    %29 = vector.load %arg2[%c0_25, %c0_26, %c0_27] : memref<4x32x32xf32, #tpu.memory_space<vmem>>, vector<1x32x32xf32>
    %30 = vector.shape_cast %29 : vector<1x32x32xf32> to vector<32x32xf32>
    %c1_28 = arith.constant 1 : index
    %c0_29 = arith.constant 0 : index
    %c0_30 = arith.constant 0 : index
    %31 = vector.load %arg2[%c1_28, %c0_29, %c0_30] : memref<4x32x32xf32, #tpu.memory_space<vmem>>, vector<1x32x32xf32>
    %32 = vector.shape_cast %31 : vector<1x32x32xf32> to vector<32x32xf32>
    %c2_31 = arith.constant 2 : index
    %c0_32 = arith.constant 0 : index
    %c0_33 = arith.constant 0 : index
    %33 = vector.load %arg2[%c2_31, %c0_32, %c0_33] : memref<4x32x32xf32, #tpu.memory_space<vmem>>, vector<1x32x32xf32>
    %34 = vector.shape_cast %33 : vector<1x32x32xf32> to vector<32x32xf32>
    %c3_34 = arith.constant 3 : index
    %c0_35 = arith.constant 0 : index
    %c0_36 = arith.constant 0 : index
    %35 = vector.load %arg2[%c3_34, %c0_35, %c0_36] : memref<4x32x32xf32, #tpu.memory_space<vmem>>, vector<1x32x32xf32>
    %36 = vector.shape_cast %35 : vector<1x32x32xf32> to vector<32x32xf32>
    %cst_37 = arith.constant 0.000000e+00 : f32
    %37 = vector.broadcast %cst_37 : f32 to vector<2x32xf32>
    %cst_38 = arith.constant 0.000000e+00 : f32
    %38 = vector.broadcast %cst_38 : f32 to vector<2x32xf32>
    %39 = vector.extract_strided_slice %7 {offsets = [0, 0], sizes = [2, 32], strides = [1, 1]} : vector<6x32xf32> to vector<2x32xf32>
    %cst_39 = arith.constant dense<0.000000e+00> : vector<2x32xf32>
    %40 = tpu.matmul %37, %30, %cst_39 {dimension_numbers = #tpu.dot_dimension_numbers<[1], [0], [0], [1], [0, 0, 1, 1], [], []>} : vector<2x32xf32>, vector<32x32xf32>, vector<2x32xf32> -> vector<2x32xf32>
    %41 = arith.addf %39, %40 : vector<2x32xf32>
    %42 = arith.negf %41 : vector<2x32xf32>
    %43 = math.exp %42 : vector<2x32xf32>
    %cst_40 = arith.constant 1.000000e+00 : f32
    %44 = vector.broadcast %cst_40 : f32 to vector<2x32xf32>
    %45 = arith.addf %44, %43 : vector<2x32xf32>
    %46 = arith.divf %44, %45 : vector<2x32xf32>
    %47 = vector.extract_strided_slice %14 {offsets = [0, 0], sizes = [2, 32], strides = [1, 1]} : vector<6x32xf32> to vector<2x32xf32>
    %cst_41 = arith.constant dense<0.000000e+00> : vector<2x32xf32>
    %48 = tpu.matmul %37, %32, %cst_41 {dimension_numbers = #tpu.dot_dimension_numbers<[1], [0], [0], [1], [0, 0, 1, 1], [], []>} : vector<2x32xf32>, vector<32x32xf32>, vector<2x32xf32> -> vector<2x32xf32>
    %49 = arith.addf %47, %48 : vector<2x32xf32>
    %50 = arith.negf %49 : vector<2x32xf32>
    %51 = math.exp %50 : vector<2x32xf32>
    %cst_42 = arith.constant 1.000000e+00 : f32
    %52 = vector.broadcast %cst_42 : f32 to vector<2x32xf32>
    %53 = arith.addf %52, %51 : vector<2x32xf32>
    %54 = arith.divf %52, %53 : vector<2x32xf32>
    %55 = vector.extract_strided_slice %21 {offsets = [0, 0], sizes = [2, 32], strides = [1, 1]} : vector<6x32xf32> to vector<2x32xf32>
    %cst_43 = arith.constant dense<0.000000e+00> : vector<2x32xf32>
    %56 = tpu.matmul %37, %34, %cst_43 {dimension_numbers = #tpu.dot_dimension_numbers<[1], [0], [0], [1], [0, 0, 1, 1], [], []>} : vector<2x32xf32>, vector<32x32xf32>, vector<2x32xf32> -> vector<2x32xf32>
    %57 = arith.addf %55, %56 : vector<2x32xf32>
    %58 = math.tanh %57 : vector<2x32xf32>
    %59 = vector.extract_strided_slice %28 {offsets = [0, 0], sizes = [2, 32], strides = [1, 1]} : vector<6x32xf32> to vector<2x32xf32>
    %cst_44 = arith.constant dense<0.000000e+00> : vector<2x32xf32>
    %60 = tpu.matmul %37, %36, %cst_44 {dimension_numbers = #tpu.dot_dimension_numbers<[1], [0], [0], [1], [0, 0, 1, 1], [], []>} : vector<2x32xf32>, vector<32x32xf32>, vector<2x32xf32> -> vector<2x32xf32>
    %61 = arith.addf %59, %60 : vector<2x32xf32>
    %62 = arith.negf %61 : vector<2x32xf32>
    %63 = math.exp %62 : vector<2x32xf32>
    %cst_45 = arith.constant 1.000000e+00 : f32
    %64 = vector.broadcast %cst_45 : f32 to vector<2x32xf32>
    %65 = arith.addf %64, %63 : vector<2x32xf32>
    %66 = arith.divf %64, %65 : vector<2x32xf32>
    %67 = arith.mulf %54, %38 : vector<2x32xf32>
    %68 = arith.mulf %46, %58 : vector<2x32xf32>
    %69 = arith.addf %67, %68 : vector<2x32xf32>
    %70 = math.tanh %69 : vector<2x32xf32>
    %71 = arith.mulf %66, %70 : vector<2x32xf32>
    %72 = vector.extract_strided_slice %7 {offsets = [2, 0], sizes = [2, 32], strides = [1, 1]} : vector<6x32xf32> to vector<2x32xf32>
    %cst_46 = arith.constant dense<0.000000e+00> : vector<2x32xf32>
    %73 = tpu.matmul %71, %30, %cst_46 {dimension_numbers = #tpu.dot_dimension_numbers<[1], [0], [0], [1], [0, 0, 1, 1], [], []>} : vector<2x32xf32>, vector<32x32xf32>, vector<2x32xf32> -> vector<2x32xf32>
    %74 = arith.addf %72, %73 : vector<2x32xf32>
    %75 = arith.negf %74 : vector<2x32xf32>
    %76 = math.exp %75 : vector<2x32xf32>
    %cst_47 = arith.constant 1.000000e+00 : f32
    %77 = vector.broadcast %cst_47 : f32 to vector<2x32xf32>
    %78 = arith.addf %77, %76 : vector<2x32xf32>
    %79 = arith.divf %77, %78 : vector<2x32xf32>
    %80 = vector.extract_strided_slice %14 {offsets = [2, 0], sizes = [2, 32], strides = [1, 1]} : vector<6x32xf32> to vector<2x32xf32>
    %cst_48 = arith.constant dense<0.000000e+00> : vector<2x32xf32>
    %81 = tpu.matmul %71, %32, %cst_48 {dimension_numbers = #tpu.dot_dimension_numbers<[1], [0], [0], [1], [0, 0, 1, 1], [], []>} : vector<2x32xf32>, vector<32x32xf32>, vector<2x32xf32> -> vector<2x32xf32>
    %82 = arith.addf %80, %81 : vector<2x32xf32>
    %83 = arith.negf %82 : vector<2x32xf32>
    %84 = math.exp %83 : vector<2x32xf32>
    %cst_49 = arith.constant 1.000000e+00 : f32
    %85 = vector.broadcast %cst_49 : f32 to vector<2x32xf32>
    %86 = arith.addf %85, %84 : vector<2x32xf32>
    %87 = arith.divf %85, %86 : vector<2x32xf32>
    %88 = vector.extract_strided_slice %21 {offsets = [2, 0], sizes = [2, 32], strides = [1, 1]} : vector<6x32xf32> to vector<2x32xf32>
    %cst_50 = arith.constant dense<0.000000e+00> : vector<2x32xf32>
    %89 = tpu.matmul %71, %34, %cst_50 {dimension_numbers = #tpu.dot_dimension_numbers<[1], [0], [0], [1], [0, 0, 1, 1], [], []>} : vector<2x32xf32>, vector<32x32xf32>, vector<2x32xf32> -> vector<2x32xf32>
    %90 = arith.addf %88, %89 : vector<2x32xf32>
    %91 = math.tanh %90 : vector<2x32xf32>
    %92 = vector.extract_strided_slice %28 {offsets = [2, 0], sizes = [2, 32], strides = [1, 1]} : vector<6x32xf32> to vector<2x32xf32>
    %cst_51 = arith.constant dense<0.000000e+00> : vector<2x32xf32>
    %93 = tpu.matmul %71, %36, %cst_51 {dimension_numbers = #tpu.dot_dimension_numbers<[1], [0], [0], [1], [0, 0, 1, 1], [], []>} : vector<2x32xf32>, vector<32x32xf32>, vector<2x32xf32> -> vector<2x32xf32>
    %94 = arith.addf %92, %93 : vector<2x32xf32>
    %95 = arith.negf %94 : vector<2x32xf32>
    %96 = math.exp %95 : vector<2x32xf32>
    %cst_52 = arith.constant 1.000000e+00 : f32
    %97 = vector.broadcast %cst_52 : f32 to vector<2x32xf32>
    %98 = arith.addf %97, %96 : vector<2x32xf32>
    %99 = arith.divf %97, %98 : vector<2x32xf32>
    %100 = arith.mulf %87, %69 : vector<2x32xf32>
    %101 = arith.mulf %79, %91 : vector<2x32xf32>
    %102 = arith.addf %100, %101 : vector<2x32xf32>
    %103 = math.tanh %102 : vector<2x32xf32>
    %104 = arith.mulf %99, %103 : vector<2x32xf32>
    %105 = vector.extract_strided_slice %7 {offsets = [4, 0], sizes = [2, 32], strides = [1, 1]} : vector<6x32xf32> to vector<2x32xf32>
    %cst_53 = arith.constant dense<0.000000e+00> : vector<2x32xf32>
    %106 = tpu.matmul %104, %30, %cst_53 {dimension_numbers = #tpu.dot_dimension_numbers<[1], [0], [0], [1], [0, 0, 1, 1], [], []>} : vector<2x32xf32>, vector<32x32xf32>, vector<2x32xf32> -> vector<2x32xf32>
    %107 = arith.addf %105, %106 : vector<2x32xf32>
    %108 = arith.negf %107 : vector<2x32xf32>
    %109 = math.exp %108 : vector<2x32xf32>
    %cst_54 = arith.constant 1.000000e+00 : f32
    %110 = vector.broadcast %cst_54 : f32 to vector<2x32xf32>
    %111 = arith.addf %110, %109 : vector<2x32xf32>
    %112 = arith.divf %110, %111 : vector<2x32xf32>
    %113 = vector.extract_strided_slice %14 {offsets = [4, 0], sizes = [2, 32], strides = [1, 1]} : vector<6x32xf32> to vector<2x32xf32>
    %cst_55 = arith.constant dense<0.000000e+00> : vector<2x32xf32>
    %114 = tpu.matmul %104, %32, %cst_55 {dimension_numbers = #tpu.dot_dimension_numbers<[1], [0], [0], [1], [0, 0, 1, 1], [], []>} : vector<2x32xf32>, vector<32x32xf32>, vector<2x32xf32> -> vector<2x32xf32>
    %115 = arith.addf %113, %114 : vector<2x32xf32>
    %116 = arith.negf %115 : vector<2x32xf32>
    %117 = math.exp %116 : vector<2x32xf32>
    %cst_56 = arith.constant 1.000000e+00 : f32
    %118 = vector.broadcast %cst_56 : f32 to vector<2x32xf32>
    %119 = arith.addf %118, %117 : vector<2x32xf32>
    %120 = arith.divf %118, %119 : vector<2x32xf32>
    %121 = vector.extract_strided_slice %21 {offsets = [4, 0], sizes = [2, 32], strides = [1, 1]} : vector<6x32xf32> to vector<2x32xf32>
    %cst_57 = arith.constant dense<0.000000e+00> : vector<2x32xf32>
    %122 = tpu.matmul %104, %34, %cst_57 {dimension_numbers = #tpu.dot_dimension_numbers<[1], [0], [0], [1], [0, 0, 1, 1], [], []>} : vector<2x32xf32>, vector<32x32xf32>, vector<2x32xf32> -> vector<2x32xf32>
    %123 = arith.addf %121, %122 : vector<2x32xf32>
    %124 = math.tanh %123 : vector<2x32xf32>
    %125 = vector.extract_strided_slice %28 {offsets = [4, 0], sizes = [2, 32], strides = [1, 1]} : vector<6x32xf32> to vector<2x32xf32>
    %cst_58 = arith.constant dense<0.000000e+00> : vector<2x32xf32>
    %126 = tpu.matmul %104, %36, %cst_58 {dimension_numbers = #tpu.dot_dimension_numbers<[1], [0], [0], [1], [0, 0, 1, 1], [], []>} : vector<2x32xf32>, vector<32x32xf32>, vector<2x32xf32> -> vector<2x32xf32>
    %127 = arith.addf %125, %126 : vector<2x32xf32>
    %128 = arith.negf %127 : vector<2x32xf32>
    %129 = math.exp %128 : vector<2x32xf32>
    %cst_59 = arith.constant 1.000000e+00 : f32
    %130 = vector.broadcast %cst_59 : f32 to vector<2x32xf32>
    %131 = arith.addf %130, %129 : vector<2x32xf32>
    %132 = arith.divf %130, %131 : vector<2x32xf32>
    %133 = arith.mulf %120, %102 : vector<2x32xf32>
    %134 = arith.mulf %112, %124 : vector<2x32xf32>
    %135 = arith.addf %133, %134 : vector<2x32xf32>
    %136 = math.tanh %135 : vector<2x32xf32>
    %137 = arith.mulf %132, %136 : vector<2x32xf32>
    %cst_60 = arith.constant 0.000000e+00 : f32
    %138 = vector.broadcast %cst_60 : f32 to vector<2x32xf32>
    %139 = arith.cmpf ogt, %137, %138 : vector<2x32xf32>
    %cst_61 = arith.constant 0.000000e+00 : f32
    %140 = vector.broadcast %cst_61 : f32 to vector<2x32xf32>
    %141 = arith.minimumf %137, %140 : vector<2x32xf32>
    %142 = math.exp %141 : vector<2x32xf32>
    %cst_62 = arith.constant 1.000000e+00 : f32
    %143 = vector.broadcast %cst_62 : f32 to vector<2x32xf32>
    %144 = arith.subf %142, %143 : vector<2x32xf32>
    %145 = arith.select %139, %137, %144 : vector<2x32xi1>, vector<2x32xf32>
    %cst_63 = arith.constant dense<0.000000e+00> : vector<2xf32>
    %146 = vector.multi_reduction <add>, %145, %cst_63 [1] : vector<2x32xf32> to vector<2xf32>
    %147 = vector.shape_cast %146 : vector<2xf32> to vector<2x1xf32>
    %cst_64 = arith.constant 3.200000e+01 : f32
    %148 = vector.broadcast %cst_64 : f32 to vector<2x1xf32>
    %149 = arith.divf %147, %148 : vector<2x1xf32>
    %150 = vector.broadcast %149 : vector<2x1xf32> to vector<2x32xf32>
    %151 = arith.subf %145, %150 : vector<2x32xf32>
    %152 = arith.mulf %151, %151 : vector<2x32xf32>
    %cst_65 = arith.constant dense<0.000000e+00> : vector<2xf32>
    %153 = vector.multi_reduction <add>, %152, %cst_65 [1] : vector<2x32xf32> to vector<2xf32>
    %154 = vector.shape_cast %153 : vector<2xf32> to vector<2x1xf32>
    %cst_66 = arith.constant 3.200000e+01 : f32
    %155 = vector.broadcast %cst_66 : f32 to vector<2x1xf32>
    %156 = arith.divf %154, %155 : vector<2x1xf32>
    %157 = vector.broadcast %149 : vector<2x1xf32> to vector<2x32xf32>
    %158 = arith.subf %145, %157 : vector<2x32xf32>
    %cst_67 = arith.constant 9.99999974E-6 : f32
    %159 = vector.broadcast %cst_67 : f32 to vector<2x1xf32>
    %160 = arith.addf %156, %159 : vector<2x1xf32>
    %161 = math.rsqrt %160 : vector<2x1xf32>
    %162 = vector.broadcast %161 : vector<2x1xf32> to vector<2x32xf32>
    %163 = arith.mulf %158, %162 : vector<2x32xf32>
    %c0_68 = arith.constant 0 : index
    %c0_69 = arith.constant 0 : index
    %164 = vector.load %arg4[%c0_68, %c0_69] : memref<1x32xf32, #tpu.memory_space<vmem>>, vector<1x32xf32>
    %165 = vector.broadcast %164 : vector<1x32xf32> to vector<2x32xf32>
    %166 = arith.mulf %163, %165 : vector<2x32xf32>
    %c0_70 = arith.constant 0 : index
    %c0_71 = arith.constant 0 : index
    %167 = vector.load %arg5[%c0_70, %c0_71] : memref<1x32xf32, #tpu.memory_space<vmem>>, vector<1x32xf32>
    %168 = vector.broadcast %167 : vector<1x32xf32> to vector<2x32xf32>
    %169 = arith.addf %166, %168 : vector<2x32xf32>
    %c0_72 = arith.constant 0 : index
    %c0_73 = arith.constant 0 : index
    %170 = vector.load %arg6[%c0_72, %c0_73] : memref<32x256xf32, #tpu.memory_space<vmem>>, vector<32x256xf32>
    %cst_74 = arith.constant dense<0.000000e+00> : vector<2x256xf32>
    %171 = tpu.matmul %169, %170, %cst_74 {dimension_numbers = #tpu.dot_dimension_numbers<[1], [0], [0], [1], [0, 0, 1, 1], [], []>} : vector<2x32xf32>, vector<32x256xf32>, vector<2x256xf32> -> vector<2x256xf32>
    %c0_75 = arith.constant 0 : index
    %c0_76 = arith.constant 0 : index
    %172 = vector.load %arg7[%c0_75, %c0_76] : memref<1x256xf32, #tpu.memory_space<vmem>>, vector<1x256xf32>
    %173 = vector.broadcast %172 : vector<1x256xf32> to vector<2x256xf32>
    %174 = arith.addf %171, %173 : vector<2x256xf32>
    %cst_77 = arith.constant 0.000000e+00 : f32
    %175 = vector.broadcast %cst_77 : f32 to vector<2x256xf32>
    %176 = arith.cmpf ogt, %174, %175 : vector<2x256xf32>
    %cst_78 = arith.constant 0.000000e+00 : f32
    %177 = vector.broadcast %cst_78 : f32 to vector<2x256xf32>
    %178 = arith.minimumf %174, %177 : vector<2x256xf32>
    %179 = math.exp %178 : vector<2x256xf32>
    %cst_79 = arith.constant 1.000000e+00 : f32
    %180 = vector.broadcast %cst_79 : f32 to vector<2x256xf32>
    %181 = arith.subf %179, %180 : vector<2x256xf32>
    %182 = arith.select %176, %174, %181 : vector<2x256xi1>, vector<2x256xf32>
    %cst_80 = arith.constant 0.000000e+00 : f32
    %183 = vector.broadcast %cst_80 : f32 to vector<2x256xf32>
    %184 = arith.cmpf ogt, %182, %183 : vector<2x256xf32>
    %cst_81 = arith.constant 0.000000e+00 : f32
    %185 = vector.broadcast %cst_81 : f32 to vector<2x256xf32>
    %186 = arith.minimumf %182, %185 : vector<2x256xf32>
    %187 = math.exp %186 : vector<2x256xf32>
    %cst_82 = arith.constant 1.000000e+00 : f32
    %188 = vector.broadcast %cst_82 : f32 to vector<2x256xf32>
    %189 = arith.subf %187, %188 : vector<2x256xf32>
    %190 = arith.select %184, %182, %189 : vector<2x256xi1>, vector<2x256xf32>
    %c0_83 = arith.constant 0 : index
    %191 = memref.load %arg8[%c0_83] : memref<8xf32, #tpu.memory_space<smem>>
    %192 = vector.broadcast %191 : f32 to vector<2x256xf32>
    %193 = arith.mulf %192, %190 : vector<2x256xf32>
    %c0_84 = arith.constant 0 : index
    %194 = memref.load %arg9[%c0_84] : memref<8xf32, #tpu.memory_space<smem>>
    %195 = vector.broadcast %194 : f32 to vector<2x256xf32>
    %196 = arith.addf %193, %195 : vector<2x256xf32>
    %cst_85 = arith.constant 0.000000e+00 : f32
    %197 = vector.broadcast %cst_85 : f32 to vector<2x256xf32>
    %198 = arith.cmpf ogt, %196, %197 : vector<2x256xf32>
    %cst_86 = arith.constant 0.000000e+00 : f32
    %199 = vector.broadcast %cst_86 : f32 to vector<2x256xf32>
    %200 = arith.minimumf %196, %199 : vector<2x256xf32>
    %201 = math.exp %200 : vector<2x256xf32>
    %cst_87 = arith.constant 1.000000e+00 : f32
    %202 = vector.broadcast %cst_87 : f32 to vector<2x256xf32>
    %203 = arith.subf %201, %202 : vector<2x256xf32>
    %204 = arith.select %198, %196, %203 : vector<2x256xi1>, vector<2x256xf32>
    %c1_88 = arith.constant 1 : index
    %205 = memref.load %arg8[%c1_88] : memref<8xf32, #tpu.memory_space<smem>>
    %206 = vector.broadcast %205 : f32 to vector<2x256xf32>
    %207 = arith.mulf %206, %190 : vector<2x256xf32>
    %c1_89 = arith.constant 1 : index
    %208 = memref.load %arg9[%c1_89] : memref<8xf32, #tpu.memory_space<smem>>
    %209 = vector.broadcast %208 : f32 to vector<2x256xf32>
    %210 = arith.addf %207, %209 : vector<2x256xf32>
    %cst_90 = arith.constant 0.000000e+00 : f32
    %211 = vector.broadcast %cst_90 : f32 to vector<2x256xf32>
    %212 = arith.cmpf ogt, %210, %211 : vector<2x256xf32>
    %cst_91 = arith.constant 0.000000e+00 : f32
    %213 = vector.broadcast %cst_91 : f32 to vector<2x256xf32>
    %214 = arith.minimumf %210, %213 : vector<2x256xf32>
    %215 = math.exp %214 : vector<2x256xf32>
    %cst_92 = arith.constant 1.000000e+00 : f32
    %216 = vector.broadcast %cst_92 : f32 to vector<2x256xf32>
    %217 = arith.subf %215, %216 : vector<2x256xf32>
    %218 = arith.select %212, %210, %217 : vector<2x256xi1>, vector<2x256xf32>
    %c2_93 = arith.constant 2 : index
    %219 = memref.load %arg8[%c2_93] : memref<8xf32, #tpu.memory_space<smem>>
    %220 = vector.broadcast %219 : f32 to vector<2x256xf32>
    %221 = arith.mulf %220, %190 : vector<2x256xf32>
    %c2_94 = arith.constant 2 : index
    %222 = memref.load %arg9[%c2_94] : memref<8xf32, #tpu.memory_space<smem>>
    %223 = vector.broadcast %222 : f32 to vector<2x256xf32>
    %224 = arith.addf %221, %223 : vector<2x256xf32>
    %cst_95 = arith.constant 0.000000e+00 : f32
    %225 = vector.broadcast %cst_95 : f32 to vector<2x256xf32>
    %226 = arith.cmpf ogt, %224, %225 : vector<2x256xf32>
    %cst_96 = arith.constant 0.000000e+00 : f32
    %227 = vector.broadcast %cst_96 : f32 to vector<2x256xf32>
    %228 = arith.minimumf %224, %227 : vector<2x256xf32>
    %229 = math.exp %228 : vector<2x256xf32>
    %cst_97 = arith.constant 1.000000e+00 : f32
    %230 = vector.broadcast %cst_97 : f32 to vector<2x256xf32>
    %231 = arith.subf %229, %230 : vector<2x256xf32>
    %232 = arith.select %226, %224, %231 : vector<2x256xi1>, vector<2x256xf32>
    %c3_98 = arith.constant 3 : index
    %233 = memref.load %arg8[%c3_98] : memref<8xf32, #tpu.memory_space<smem>>
    %234 = vector.broadcast %233 : f32 to vector<2x256xf32>
    %235 = arith.mulf %234, %190 : vector<2x256xf32>
    %c3_99 = arith.constant 3 : index
    %236 = memref.load %arg9[%c3_99] : memref<8xf32, #tpu.memory_space<smem>>
    %237 = vector.broadcast %236 : f32 to vector<2x256xf32>
    %238 = arith.addf %235, %237 : vector<2x256xf32>
    %cst_100 = arith.constant 0.000000e+00 : f32
    %239 = vector.broadcast %cst_100 : f32 to vector<2x256xf32>
    %240 = arith.cmpf ogt, %238, %239 : vector<2x256xf32>
    %cst_101 = arith.constant 0.000000e+00 : f32
    %241 = vector.broadcast %cst_101 : f32 to vector<2x256xf32>
    %242 = arith.minimumf %238, %241 : vector<2x256xf32>
    %243 = math.exp %242 : vector<2x256xf32>
    %cst_102 = arith.constant 1.000000e+00 : f32
    %244 = vector.broadcast %cst_102 : f32 to vector<2x256xf32>
    %245 = arith.subf %243, %244 : vector<2x256xf32>
    %246 = arith.select %240, %238, %245 : vector<2x256xi1>, vector<2x256xf32>
    %c4 = arith.constant 4 : index
    %247 = memref.load %arg8[%c4] : memref<8xf32, #tpu.memory_space<smem>>
    %248 = vector.broadcast %247 : f32 to vector<2x256xf32>
    %249 = arith.mulf %248, %190 : vector<2x256xf32>
    %c4_103 = arith.constant 4 : index
    %250 = memref.load %arg9[%c4_103] : memref<8xf32, #tpu.memory_space<smem>>
    %251 = vector.broadcast %250 : f32 to vector<2x256xf32>
    %252 = arith.addf %249, %251 : vector<2x256xf32>
    %cst_104 = arith.constant 0.000000e+00 : f32
    %253 = vector.broadcast %cst_104 : f32 to vector<2x256xf32>
    %254 = arith.cmpf ogt, %252, %253 : vector<2x256xf32>
    %cst_105 = arith.constant 0.000000e+00 : f32
    %255 = vector.broadcast %cst_105 : f32 to vector<2x256xf32>
    %256 = arith.minimumf %252, %255 : vector<2x256xf32>
    %257 = math.exp %256 : vector<2x256xf32>
    %cst_106 = arith.constant 1.000000e+00 : f32
    %258 = vector.broadcast %cst_106 : f32 to vector<2x256xf32>
    %259 = arith.subf %257, %258 : vector<2x256xf32>
    %260 = arith.select %254, %252, %259 : vector<2x256xi1>, vector<2x256xf32>
    %c5 = arith.constant 5 : index
    %261 = memref.load %arg8[%c5] : memref<8xf32, #tpu.memory_space<smem>>
    %262 = vector.broadcast %261 : f32 to vector<2x256xf32>
    %263 = arith.mulf %262, %190 : vector<2x256xf32>
    %c5_107 = arith.constant 5 : index
    %264 = memref.load %arg9[%c5_107] : memref<8xf32, #tpu.memory_space<smem>>
    %265 = vector.broadcast %264 : f32 to vector<2x256xf32>
    %266 = arith.addf %263, %265 : vector<2x256xf32>
    %cst_108 = arith.constant 0.000000e+00 : f32
    %267 = vector.broadcast %cst_108 : f32 to vector<2x256xf32>
    %268 = arith.cmpf ogt, %266, %267 : vector<2x256xf32>
    %cst_109 = arith.constant 0.000000e+00 : f32
    %269 = vector.broadcast %cst_109 : f32 to vector<2x256xf32>
    %270 = arith.minimumf %266, %269 : vector<2x256xf32>
    %271 = math.exp %270 : vector<2x256xf32>
    %cst_110 = arith.constant 1.000000e+00 : f32
    %272 = vector.broadcast %cst_110 : f32 to vector<2x256xf32>
    %273 = arith.subf %271, %272 : vector<2x256xf32>
    %274 = arith.select %268, %266, %273 : vector<2x256xi1>, vector<2x256xf32>
    %c6 = arith.constant 6 : index
    %275 = memref.load %arg8[%c6] : memref<8xf32, #tpu.memory_space<smem>>
    %276 = vector.broadcast %275 : f32 to vector<2x256xf32>
    %277 = arith.mulf %276, %190 : vector<2x256xf32>
    %c6_111 = arith.constant 6 : index
    %278 = memref.load %arg9[%c6_111] : memref<8xf32, #tpu.memory_space<smem>>
    %279 = vector.broadcast %278 : f32 to vector<2x256xf32>
    %280 = arith.addf %277, %279 : vector<2x256xf32>
    %cst_112 = arith.constant 0.000000e+00 : f32
    %281 = vector.broadcast %cst_112 : f32 to vector<2x256xf32>
    %282 = arith.cmpf ogt, %280, %281 : vector<2x256xf32>
    %cst_113 = arith.constant 0.000000e+00 : f32
    %283 = vector.broadcast %cst_113 : f32 to vector<2x256xf32>
    %284 = arith.minimumf %280, %283 : vector<2x256xf32>
    %285 = math.exp %284 : vector<2x256xf32>
    %cst_114 = arith.constant 1.000000e+00 : f32
    %286 = vector.broadcast %cst_114 : f32 to vector<2x256xf32>
    %287 = arith.subf %285, %286 : vector<2x256xf32>
    %288 = arith.select %282, %280, %287 : vector<2x256xi1>, vector<2x256xf32>
    %c7 = arith.constant 7 : index
    %289 = memref.load %arg8[%c7] : memref<8xf32, #tpu.memory_space<smem>>
    %290 = vector.broadcast %289 : f32 to vector<2x256xf32>
    %291 = arith.mulf %290, %190 : vector<2x256xf32>
    %c7_115 = arith.constant 7 : index
    %292 = memref.load %arg9[%c7_115] : memref<8xf32, #tpu.memory_space<smem>>
    %293 = vector.broadcast %292 : f32 to vector<2x256xf32>
    %294 = arith.addf %291, %293 : vector<2x256xf32>
    %cst_116 = arith.constant 0.000000e+00 : f32
    %295 = vector.broadcast %cst_116 : f32 to vector<2x256xf32>
    %296 = arith.cmpf ogt, %294, %295 : vector<2x256xf32>
    %cst_117 = arith.constant 0.000000e+00 : f32
    %297 = vector.broadcast %cst_117 : f32 to vector<2x256xf32>
    %298 = arith.minimumf %294, %297 : vector<2x256xf32>
    %299 = math.exp %298 : vector<2x256xf32>
    %cst_118 = arith.constant 1.000000e+00 : f32
    %300 = vector.broadcast %cst_118 : f32 to vector<2x256xf32>
    %301 = arith.subf %299, %300 : vector<2x256xf32>
    %302 = arith.select %296, %294, %301 : vector<2x256xi1>, vector<2x256xf32>
    %c0_119 = arith.constant 0 : index
    %303 = memref.load %arg10[%c0_119] : memref<320xf32, #tpu.memory_space<smem>>
    %304 = vector.broadcast %303 : f32 to vector<2x256xf32>
    %305 = arith.mulf %204, %304 : vector<2x256xf32>
    %c1_120 = arith.constant 1 : index
    %306 = memref.load %arg10[%c1_120] : memref<320xf32, #tpu.memory_space<smem>>
    %307 = vector.broadcast %306 : f32 to vector<2x256xf32>
    %308 = arith.mulf %218, %307 : vector<2x256xf32>
    %309 = arith.addf %305, %308 : vector<2x256xf32>
    %c2_121 = arith.constant 2 : index
    %310 = memref.load %arg10[%c2_121] : memref<320xf32, #tpu.memory_space<smem>>
    %311 = vector.broadcast %310 : f32 to vector<2x256xf32>
    %312 = arith.mulf %232, %311 : vector<2x256xf32>
    %313 = arith.addf %309, %312 : vector<2x256xf32>
    %c3_122 = arith.constant 3 : index
    %314 = memref.load %arg10[%c3_122] : memref<320xf32, #tpu.memory_space<smem>>
    %315 = vector.broadcast %314 : f32 to vector<2x256xf32>
    %316 = arith.mulf %246, %315 : vector<2x256xf32>
    %317 = arith.addf %313, %316 : vector<2x256xf32>
    %c4_123 = arith.constant 4 : index
    %318 = memref.load %arg10[%c4_123] : memref<320xf32, #tpu.memory_space<smem>>
    %319 = vector.broadcast %318 : f32 to vector<2x256xf32>
    %320 = arith.mulf %260, %319 : vector<2x256xf32>
    %321 = arith.addf %317, %320 : vector<2x256xf32>
    %c5_124 = arith.constant 5 : index
    %322 = memref.load %arg10[%c5_124] : memref<320xf32, #tpu.memory_space<smem>>
    %323 = vector.broadcast %322 : f32 to vector<2x256xf32>
    %324 = arith.mulf %274, %323 : vector<2x256xf32>
    %325 = arith.addf %321, %324 : vector<2x256xf32>
    %c6_125 = arith.constant 6 : index
    %326 = memref.load %arg10[%c6_125] : memref<320xf32, #tpu.memory_space<smem>>
    %327 = vector.broadcast %326 : f32 to vector<2x256xf32>
    %328 = arith.mulf %288, %327 : vector<2x256xf32>
    %329 = arith.addf %325, %328 : vector<2x256xf32>
    %c7_126 = arith.constant 7 : index
    %330 = memref.load %arg10[%c7_126] : memref<320xf32, #tpu.memory_space<smem>>
    %331 = vector.broadcast %330 : f32 to vector<2x256xf32>
    %332 = arith.mulf %302, %331 : vector<2x256xf32>
    %333 = arith.addf %329, %332 : vector<2x256xf32>
    %c0_127 = arith.constant 0 : index
    %334 = memref.load %arg11[%c0_127] : memref<40xf32, #tpu.memory_space<smem>>
    %335 = vector.broadcast %334 : f32 to vector<2x256xf32>
    %336 = arith.addf %333, %335 : vector<2x256xf32>
    %cst_128 = arith.constant 0.000000e+00 : f32
    %337 = vector.broadcast %cst_128 : f32 to vector<2x256xf32>
    %338 = arith.cmpf ogt, %336, %337 : vector<2x256xf32>
    %cst_129 = arith.constant 0.000000e+00 : f32
    %339 = vector.broadcast %cst_129 : f32 to vector<2x256xf32>
    %340 = arith.minimumf %336, %339 : vector<2x256xf32>
    %341 = math.exp %340 : vector<2x256xf32>
    %cst_130 = arith.constant 1.000000e+00 : f32
    %342 = vector.broadcast %cst_130 : f32 to vector<2x256xf32>
    %343 = arith.subf %341, %342 : vector<2x256xf32>
    %344 = arith.select %338, %336, %343 : vector<2x256xi1>, vector<2x256xf32>
    %c8 = arith.constant 8 : index
    %345 = memref.load %arg10[%c8] : memref<320xf32, #tpu.memory_space<smem>>
    %346 = vector.broadcast %345 : f32 to vector<2x256xf32>
    %347 = arith.mulf %204, %346 : vector<2x256xf32>
    %c9 = arith.constant 9 : index
    %348 = memref.load %arg10[%c9] : memref<320xf32, #tpu.memory_space<smem>>
    %349 = vector.broadcast %348 : f32 to vector<2x256xf32>
    %350 = arith.mulf %218, %349 : vector<2x256xf32>
    %351 = arith.addf %347, %350 : vector<2x256xf32>
    %c10 = arith.constant 10 : index
    %352 = memref.load %arg10[%c10] : memref<320xf32, #tpu.memory_space<smem>>
    %353 = vector.broadcast %352 : f32 to vector<2x256xf32>
    %354 = arith.mulf %232, %353 : vector<2x256xf32>
    %355 = arith.addf %351, %354 : vector<2x256xf32>
    %c11 = arith.constant 11 : index
    %356 = memref.load %arg10[%c11] : memref<320xf32, #tpu.memory_space<smem>>
    %357 = vector.broadcast %356 : f32 to vector<2x256xf32>
    %358 = arith.mulf %246, %357 : vector<2x256xf32>
    %359 = arith.addf %355, %358 : vector<2x256xf32>
    %c12 = arith.constant 12 : index
    %360 = memref.load %arg10[%c12] : memref<320xf32, #tpu.memory_space<smem>>
    %361 = vector.broadcast %360 : f32 to vector<2x256xf32>
    %362 = arith.mulf %260, %361 : vector<2x256xf32>
    %363 = arith.addf %359, %362 : vector<2x256xf32>
    %c13 = arith.constant 13 : index
    %364 = memref.load %arg10[%c13] : memref<320xf32, #tpu.memory_space<smem>>
    %365 = vector.broadcast %364 : f32 to vector<2x256xf32>
    %366 = arith.mulf %274, %365 : vector<2x256xf32>
    %367 = arith.addf %363, %366 : vector<2x256xf32>
    %c14 = arith.constant 14 : index
    %368 = memref.load %arg10[%c14] : memref<320xf32, #tpu.memory_space<smem>>
    %369 = vector.broadcast %368 : f32 to vector<2x256xf32>
    %370 = arith.mulf %288, %369 : vector<2x256xf32>
    %371 = arith.addf %367, %370 : vector<2x256xf32>
    %c15 = arith.constant 15 : index
    %372 = memref.load %arg10[%c15] : memref<320xf32, #tpu.memory_space<smem>>
    %373 = vector.broadcast %372 : f32 to vector<2x256xf32>
    %374 = arith.mulf %302, %373 : vector<2x256xf32>
    %375 = arith.addf %371, %374 : vector<2x256xf32>
    %c1_131 = arith.constant 1 : index
    %376 = memref.load %arg11[%c1_131] : memref<40xf32, #tpu.memory_space<smem>>
    %377 = vector.broadcast %376 : f32 to vector<2x256xf32>
    %378 = arith.addf %375, %377 : vector<2x256xf32>
    %cst_132 = arith.constant 0.000000e+00 : f32
    %379 = vector.broadcast %cst_132 : f32 to vector<2x256xf32>
    %380 = arith.cmpf ogt, %378, %379 : vector<2x256xf32>
    %cst_133 = arith.constant 0.000000e+00 : f32
    %381 = vector.broadcast %cst_133 : f32 to vector<2x256xf32>
    %382 = arith.minimumf %378, %381 : vector<2x256xf32>
    %383 = math.exp %382 : vector<2x256xf32>
    %cst_134 = arith.constant 1.000000e+00 : f32
    %384 = vector.broadcast %cst_134 : f32 to vector<2x256xf32>
    %385 = arith.subf %383, %384 : vector<2x256xf32>
    %386 = arith.select %380, %378, %385 : vector<2x256xi1>, vector<2x256xf32>
    %c16 = arith.constant 16 : index
    %387 = memref.load %arg10[%c16] : memref<320xf32, #tpu.memory_space<smem>>
    %388 = vector.broadcast %387 : f32 to vector<2x256xf32>
    %389 = arith.mulf %204, %388 : vector<2x256xf32>
    %c17 = arith.constant 17 : index
    %390 = memref.load %arg10[%c17] : memref<320xf32, #tpu.memory_space<smem>>
    %391 = vector.broadcast %390 : f32 to vector<2x256xf32>
    %392 = arith.mulf %218, %391 : vector<2x256xf32>
    %393 = arith.addf %389, %392 : vector<2x256xf32>
    %c18 = arith.constant 18 : index
    %394 = memref.load %arg10[%c18] : memref<320xf32, #tpu.memory_space<smem>>
    %395 = vector.broadcast %394 : f32 to vector<2x256xf32>
    %396 = arith.mulf %232, %395 : vector<2x256xf32>
    %397 = arith.addf %393, %396 : vector<2x256xf32>
    %c19 = arith.constant 19 : index
    %398 = memref.load %arg10[%c19] : memref<320xf32, #tpu.memory_space<smem>>
    %399 = vector.broadcast %398 : f32 to vector<2x256xf32>
    %400 = arith.mulf %246, %399 : vector<2x256xf32>
    %401 = arith.addf %397, %400 : vector<2x256xf32>
    %c20 = arith.constant 20 : index
    %402 = memref.load %arg10[%c20] : memref<320xf32, #tpu.memory_space<smem>>
    %403 = vector.broadcast %402 : f32 to vector<2x256xf32>
    %404 = arith.mulf %260, %403 : vector<2x256xf32>
    %405 = arith.addf %401, %404 : vector<2x256xf32>
    %c21 = arith.constant 21 : index
    %406 = memref.load %arg10[%c21] : memref<320xf32, #tpu.memory_space<smem>>
    %407 = vector.broadcast %406 : f32 to vector<2x256xf32>
    %408 = arith.mulf %274, %407 : vector<2x256xf32>
    %409 = arith.addf %405, %408 : vector<2x256xf32>
    %c22 = arith.constant 22 : index
    %410 = memref.load %arg10[%c22] : memref<320xf32, #tpu.memory_space<smem>>
    %411 = vector.broadcast %410 : f32 to vector<2x256xf32>
    %412 = arith.mulf %288, %411 : vector<2x256xf32>
    %413 = arith.addf %409, %412 : vector<2x256xf32>
    %c23 = arith.constant 23 : index
    %414 = memref.load %arg10[%c23] : memref<320xf32, #tpu.memory_space<smem>>
    %415 = vector.broadcast %414 : f32 to vector<2x256xf32>
    %416 = arith.mulf %302, %415 : vector<2x256xf32>
    %417 = arith.addf %413, %416 : vector<2x256xf32>
    %c2_135 = arith.constant 2 : index
    %418 = memref.load %arg11[%c2_135] : memref<40xf32, #tpu.memory_space<smem>>
    %419 = vector.broadcast %418 : f32 to vector<2x256xf32>
    %420 = arith.addf %417, %419 : vector<2x256xf32>
    %cst_136 = arith.constant 0.000000e+00 : f32
    %421 = vector.broadcast %cst_136 : f32 to vector<2x256xf32>
    %422 = arith.cmpf ogt, %420, %421 : vector<2x256xf32>
    %cst_137 = arith.constant 0.000000e+00 : f32
    %423 = vector.broadcast %cst_137 : f32 to vector<2x256xf32>
    %424 = arith.minimumf %420, %423 : vector<2x256xf32>
    %425 = math.exp %424 : vector<2x256xf32>
    %cst_138 = arith.constant 1.000000e+00 : f32
    %426 = vector.broadcast %cst_138 : f32 to vector<2x256xf32>
    %427 = arith.subf %425, %426 : vector<2x256xf32>
    %428 = arith.select %422, %420, %427 : vector<2x256xi1>, vector<2x256xf32>
    %c24 = arith.constant 24 : index
    %429 = memref.load %arg10[%c24] : memref<320xf32, #tpu.memory_space<smem>>
    %430 = vector.broadcast %429 : f32 to vector<2x256xf32>
    %431 = arith.mulf %204, %430 : vector<2x256xf32>
    %c25 = arith.constant 25 : index
    %432 = memref.load %arg10[%c25] : memref<320xf32, #tpu.memory_space<smem>>
    %433 = vector.broadcast %432 : f32 to vector<2x256xf32>
    %434 = arith.mulf %218, %433 : vector<2x256xf32>
    %435 = arith.addf %431, %434 : vector<2x256xf32>
    %c26 = arith.constant 26 : index
    %436 = memref.load %arg10[%c26] : memref<320xf32, #tpu.memory_space<smem>>
    %437 = vector.broadcast %436 : f32 to vector<2x256xf32>
    %438 = arith.mulf %232, %437 : vector<2x256xf32>
    %439 = arith.addf %435, %438 : vector<2x256xf32>
    %c27 = arith.constant 27 : index
    %440 = memref.load %arg10[%c27] : memref<320xf32, #tpu.memory_space<smem>>
    %441 = vector.broadcast %440 : f32 to vector<2x256xf32>
    %442 = arith.mulf %246, %441 : vector<2x256xf32>
    %443 = arith.addf %439, %442 : vector<2x256xf32>
    %c28 = arith.constant 28 : index
    %444 = memref.load %arg10[%c28] : memref<320xf32, #tpu.memory_space<smem>>
    %445 = vector.broadcast %444 : f32 to vector<2x256xf32>
    %446 = arith.mulf %260, %445 : vector<2x256xf32>
    %447 = arith.addf %443, %446 : vector<2x256xf32>
    %c29 = arith.constant 29 : index
    %448 = memref.load %arg10[%c29] : memref<320xf32, #tpu.memory_space<smem>>
    %449 = vector.broadcast %448 : f32 to vector<2x256xf32>
    %450 = arith.mulf %274, %449 : vector<2x256xf32>
    %451 = arith.addf %447, %450 : vector<2x256xf32>
    %c30 = arith.constant 30 : index
    %452 = memref.load %arg10[%c30] : memref<320xf32, #tpu.memory_space<smem>>
    %453 = vector.broadcast %452 : f32 to vector<2x256xf32>
    %454 = arith.mulf %288, %453 : vector<2x256xf32>
    %455 = arith.addf %451, %454 : vector<2x256xf32>
    %c31 = arith.constant 31 : index
    %456 = memref.load %arg10[%c31] : memref<320xf32, #tpu.memory_space<smem>>
    %457 = vector.broadcast %456 : f32 to vector<2x256xf32>
    %458 = arith.mulf %302, %457 : vector<2x256xf32>
    %459 = arith.addf %455, %458 : vector<2x256xf32>
    %c3_139 = arith.constant 3 : index
    %460 = memref.load %arg11[%c3_139] : memref<40xf32, #tpu.memory_space<smem>>
    %461 = vector.broadcast %460 : f32 to vector<2x256xf32>
    %462 = arith.addf %459, %461 : vector<2x256xf32>
    %cst_140 = arith.constant 0.000000e+00 : f32
    %463 = vector.broadcast %cst_140 : f32 to vector<2x256xf32>
    %464 = arith.cmpf ogt, %462, %463 : vector<2x256xf32>
    %cst_141 = arith.constant 0.000000e+00 : f32
    %465 = vector.broadcast %cst_141 : f32 to vector<2x256xf32>
    %466 = arith.minimumf %462, %465 : vector<2x256xf32>
    %467 = math.exp %466 : vector<2x256xf32>
    %cst_142 = arith.constant 1.000000e+00 : f32
    %468 = vector.broadcast %cst_142 : f32 to vector<2x256xf32>
    %469 = arith.subf %467, %468 : vector<2x256xf32>
    %470 = arith.select %464, %462, %469 : vector<2x256xi1>, vector<2x256xf32>
    %c32 = arith.constant 32 : index
    %471 = memref.load %arg10[%c32] : memref<320xf32, #tpu.memory_space<smem>>
    %472 = vector.broadcast %471 : f32 to vector<2x256xf32>
    %473 = arith.mulf %204, %472 : vector<2x256xf32>
    %c33 = arith.constant 33 : index
    %474 = memref.load %arg10[%c33] : memref<320xf32, #tpu.memory_space<smem>>
    %475 = vector.broadcast %474 : f32 to vector<2x256xf32>
    %476 = arith.mulf %218, %475 : vector<2x256xf32>
    %477 = arith.addf %473, %476 : vector<2x256xf32>
    %c34 = arith.constant 34 : index
    %478 = memref.load %arg10[%c34] : memref<320xf32, #tpu.memory_space<smem>>
    %479 = vector.broadcast %478 : f32 to vector<2x256xf32>
    %480 = arith.mulf %232, %479 : vector<2x256xf32>
    %481 = arith.addf %477, %480 : vector<2x256xf32>
    %c35 = arith.constant 35 : index
    %482 = memref.load %arg10[%c35] : memref<320xf32, #tpu.memory_space<smem>>
    %483 = vector.broadcast %482 : f32 to vector<2x256xf32>
    %484 = arith.mulf %246, %483 : vector<2x256xf32>
    %485 = arith.addf %481, %484 : vector<2x256xf32>
    %c36 = arith.constant 36 : index
    %486 = memref.load %arg10[%c36] : memref<320xf32, #tpu.memory_space<smem>>
    %487 = vector.broadcast %486 : f32 to vector<2x256xf32>
    %488 = arith.mulf %260, %487 : vector<2x256xf32>
    %489 = arith.addf %485, %488 : vector<2x256xf32>
    %c37 = arith.constant 37 : index
    %490 = memref.load %arg10[%c37] : memref<320xf32, #tpu.memory_space<smem>>
    %491 = vector.broadcast %490 : f32 to vector<2x256xf32>
    %492 = arith.mulf %274, %491 : vector<2x256xf32>
    %493 = arith.addf %489, %492 : vector<2x256xf32>
    %c38 = arith.constant 38 : index
    %494 = memref.load %arg10[%c38] : memref<320xf32, #tpu.memory_space<smem>>
    %495 = vector.broadcast %494 : f32 to vector<2x256xf32>
    %496 = arith.mulf %288, %495 : vector<2x256xf32>
    %497 = arith.addf %493, %496 : vector<2x256xf32>
    %c39 = arith.constant 39 : index
    %498 = memref.load %arg10[%c39] : memref<320xf32, #tpu.memory_space<smem>>
    %499 = vector.broadcast %498 : f32 to vector<2x256xf32>
    %500 = arith.mulf %302, %499 : vector<2x256xf32>
    %501 = arith.addf %497, %500 : vector<2x256xf32>
    %c4_143 = arith.constant 4 : index
    %502 = memref.load %arg11[%c4_143] : memref<40xf32, #tpu.memory_space<smem>>
    %503 = vector.broadcast %502 : f32 to vector<2x256xf32>
    %504 = arith.addf %501, %503 : vector<2x256xf32>
    %cst_144 = arith.constant 0.000000e+00 : f32
    %505 = vector.broadcast %cst_144 : f32 to vector<2x256xf32>
    %506 = arith.cmpf ogt, %504, %505 : vector<2x256xf32>
    %cst_145 = arith.constant 0.000000e+00 : f32
    %507 = vector.broadcast %cst_145 : f32 to vector<2x256xf32>
    %508 = arith.minimumf %504, %507 : vector<2x256xf32>
    %509 = math.exp %508 : vector<2x256xf32>
    %cst_146 = arith.constant 1.000000e+00 : f32
    %510 = vector.broadcast %cst_146 : f32 to vector<2x256xf32>
    %511 = arith.subf %509, %510 : vector<2x256xf32>
    %512 = arith.select %506, %504, %511 : vector<2x256xi1>, vector<2x256xf32>
    %c40 = arith.constant 40 : index
    %513 = memref.load %arg10[%c40] : memref<320xf32, #tpu.memory_space<smem>>
    %514 = vector.broadcast %513 : f32 to vector<2x256xf32>
    %515 = arith.mulf %204, %514 : vector<2x256xf32>
    %c41 = arith.constant 41 : index
    %516 = memref.load %arg10[%c41] : memref<320xf32, #tpu.memory_space<smem>>
    %517 = vector.broadcast %516 : f32 to vector<2x256xf32>
    %518 = arith.mulf %218, %517 : vector<2x256xf32>
    %519 = arith.addf %515, %518 : vector<2x256xf32>
    %c42 = arith.constant 42 : index
    %520 = memref.load %arg10[%c42] : memref<320xf32, #tpu.memory_space<smem>>
    %521 = vector.broadcast %520 : f32 to vector<2x256xf32>
    %522 = arith.mulf %232, %521 : vector<2x256xf32>
    %523 = arith.addf %519, %522 : vector<2x256xf32>
    %c43 = arith.constant 43 : index
    %524 = memref.load %arg10[%c43] : memref<320xf32, #tpu.memory_space<smem>>
    %525 = vector.broadcast %524 : f32 to vector<2x256xf32>
    %526 = arith.mulf %246, %525 : vector<2x256xf32>
    %527 = arith.addf %523, %526 : vector<2x256xf32>
    %c44 = arith.constant 44 : index
    %528 = memref.load %arg10[%c44] : memref<320xf32, #tpu.memory_space<smem>>
    %529 = vector.broadcast %528 : f32 to vector<2x256xf32>
    %530 = arith.mulf %260, %529 : vector<2x256xf32>
    %531 = arith.addf %527, %530 : vector<2x256xf32>
    %c45 = arith.constant 45 : index
    %532 = memref.load %arg10[%c45] : memref<320xf32, #tpu.memory_space<smem>>
    %533 = vector.broadcast %532 : f32 to vector<2x256xf32>
    %534 = arith.mulf %274, %533 : vector<2x256xf32>
    %535 = arith.addf %531, %534 : vector<2x256xf32>
    %c46 = arith.constant 46 : index
    %536 = memref.load %arg10[%c46] : memref<320xf32, #tpu.memory_space<smem>>
    %537 = vector.broadcast %536 : f32 to vector<2x256xf32>
    %538 = arith.mulf %288, %537 : vector<2x256xf32>
    %539 = arith.addf %535, %538 : vector<2x256xf32>
    %c47 = arith.constant 47 : index
    %540 = memref.load %arg10[%c47] : memref<320xf32, #tpu.memory_space<smem>>
    %541 = vector.broadcast %540 : f32 to vector<2x256xf32>
    %542 = arith.mulf %302, %541 : vector<2x256xf32>
    %543 = arith.addf %539, %542 : vector<2x256xf32>
    %c5_147 = arith.constant 5 : index
    %544 = memref.load %arg11[%c5_147] : memref<40xf32, #tpu.memory_space<smem>>
    %545 = vector.broadcast %544 : f32 to vector<2x256xf32>
    %546 = arith.addf %543, %545 : vector<2x256xf32>
    %cst_148 = arith.constant 0.000000e+00 : f32
    %547 = vector.broadcast %cst_148 : f32 to vector<2x256xf32>
    %548 = arith.cmpf ogt, %546, %547 : vector<2x256xf32>
    %cst_149 = arith.constant 0.000000e+00 : f32
    %549 = vector.broadcast %cst_149 : f32 to vector<2x256xf32>
    %550 = arith.minimumf %546, %549 : vector<2x256xf32>
    %551 = math.exp %550 : vector<2x256xf32>
    %cst_150 = arith.constant 1.000000e+00 : f32
    %552 = vector.broadcast %cst_150 : f32 to vector<2x256xf32>
    %553 = arith.subf %551, %552 : vector<2x256xf32>
    %554 = arith.select %548, %546, %553 : vector<2x256xi1>, vector<2x256xf32>
    %c48 = arith.constant 48 : index
    %555 = memref.load %arg10[%c48] : memref<320xf32, #tpu.memory_space<smem>>
    %556 = vector.broadcast %555 : f32 to vector<2x256xf32>
    %557 = arith.mulf %204, %556 : vector<2x256xf32>
    %c49 = arith.constant 49 : index
    %558 = memref.load %arg10[%c49] : memref<320xf32, #tpu.memory_space<smem>>
    %559 = vector.broadcast %558 : f32 to vector<2x256xf32>
    %560 = arith.mulf %218, %559 : vector<2x256xf32>
    %561 = arith.addf %557, %560 : vector<2x256xf32>
    %c50 = arith.constant 50 : index
    %562 = memref.load %arg10[%c50] : memref<320xf32, #tpu.memory_space<smem>>
    %563 = vector.broadcast %562 : f32 to vector<2x256xf32>
    %564 = arith.mulf %232, %563 : vector<2x256xf32>
    %565 = arith.addf %561, %564 : vector<2x256xf32>
    %c51 = arith.constant 51 : index
    %566 = memref.load %arg10[%c51] : memref<320xf32, #tpu.memory_space<smem>>
    %567 = vector.broadcast %566 : f32 to vector<2x256xf32>
    %568 = arith.mulf %246, %567 : vector<2x256xf32>
    %569 = arith.addf %565, %568 : vector<2x256xf32>
    %c52 = arith.constant 52 : index
    %570 = memref.load %arg10[%c52] : memref<320xf32, #tpu.memory_space<smem>>
    %571 = vector.broadcast %570 : f32 to vector<2x256xf32>
    %572 = arith.mulf %260, %571 : vector<2x256xf32>
    %573 = arith.addf %569, %572 : vector<2x256xf32>
    %c53 = arith.constant 53 : index
    %574 = memref.load %arg10[%c53] : memref<320xf32, #tpu.memory_space<smem>>
    %575 = vector.broadcast %574 : f32 to vector<2x256xf32>
    %576 = arith.mulf %274, %575 : vector<2x256xf32>
    %577 = arith.addf %573, %576 : vector<2x256xf32>
    %c54 = arith.constant 54 : index
    %578 = memref.load %arg10[%c54] : memref<320xf32, #tpu.memory_space<smem>>
    %579 = vector.broadcast %578 : f32 to vector<2x256xf32>
    %580 = arith.mulf %288, %579 : vector<2x256xf32>
    %581 = arith.addf %577, %580 : vector<2x256xf32>
    %c55 = arith.constant 55 : index
    %582 = memref.load %arg10[%c55] : memref<320xf32, #tpu.memory_space<smem>>
    %583 = vector.broadcast %582 : f32 to vector<2x256xf32>
    %584 = arith.mulf %302, %583 : vector<2x256xf32>
    %585 = arith.addf %581, %584 : vector<2x256xf32>
    %c6_151 = arith.constant 6 : index
    %586 = memref.load %arg11[%c6_151] : memref<40xf32, #tpu.memory_space<smem>>
    %587 = vector.broadcast %586 : f32 to vector<2x256xf32>
    %588 = arith.addf %585, %587 : vector<2x256xf32>
    %cst_152 = arith.constant 0.000000e+00 : f32
    %589 = vector.broadcast %cst_152 : f32 to vector<2x256xf32>
    %590 = arith.cmpf ogt, %588, %589 : vector<2x256xf32>
    %cst_153 = arith.constant 0.000000e+00 : f32
    %591 = vector.broadcast %cst_153 : f32 to vector<2x256xf32>
    %592 = arith.minimumf %588, %591 : vector<2x256xf32>
    %593 = math.exp %592 : vector<2x256xf32>
    %cst_154 = arith.constant 1.000000e+00 : f32
    %594 = vector.broadcast %cst_154 : f32 to vector<2x256xf32>
    %595 = arith.subf %593, %594 : vector<2x256xf32>
    %596 = arith.select %590, %588, %595 : vector<2x256xi1>, vector<2x256xf32>
    %c56 = arith.constant 56 : index
    %597 = memref.load %arg10[%c56] : memref<320xf32, #tpu.memory_space<smem>>
    %598 = vector.broadcast %597 : f32 to vector<2x256xf32>
    %599 = arith.mulf %204, %598 : vector<2x256xf32>
    %c57 = arith.constant 57 : index
    %600 = memref.load %arg10[%c57] : memref<320xf32, #tpu.memory_space<smem>>
    %601 = vector.broadcast %600 : f32 to vector<2x256xf32>
    %602 = arith.mulf %218, %601 : vector<2x256xf32>
    %603 = arith.addf %599, %602 : vector<2x256xf32>
    %c58 = arith.constant 58 : index
    %604 = memref.load %arg10[%c58] : memref<320xf32, #tpu.memory_space<smem>>
    %605 = vector.broadcast %604 : f32 to vector<2x256xf32>
    %606 = arith.mulf %232, %605 : vector<2x256xf32>
    %607 = arith.addf %603, %606 : vector<2x256xf32>
    %c59 = arith.constant 59 : index
    %608 = memref.load %arg10[%c59] : memref<320xf32, #tpu.memory_space<smem>>
    %609 = vector.broadcast %608 : f32 to vector<2x256xf32>
    %610 = arith.mulf %246, %609 : vector<2x256xf32>
    %611 = arith.addf %607, %610 : vector<2x256xf32>
    %c60 = arith.constant 60 : index
    %612 = memref.load %arg10[%c60] : memref<320xf32, #tpu.memory_space<smem>>
    %613 = vector.broadcast %612 : f32 to vector<2x256xf32>
    %614 = arith.mulf %260, %613 : vector<2x256xf32>
    %615 = arith.addf %611, %614 : vector<2x256xf32>
    %c61 = arith.constant 61 : index
    %616 = memref.load %arg10[%c61] : memref<320xf32, #tpu.memory_space<smem>>
    %617 = vector.broadcast %616 : f32 to vector<2x256xf32>
    %618 = arith.mulf %274, %617 : vector<2x256xf32>
    %619 = arith.addf %615, %618 : vector<2x256xf32>
    %c62 = arith.constant 62 : index
    %620 = memref.load %arg10[%c62] : memref<320xf32, #tpu.memory_space<smem>>
    %621 = vector.broadcast %620 : f32 to vector<2x256xf32>
    %622 = arith.mulf %288, %621 : vector<2x256xf32>
    %623 = arith.addf %619, %622 : vector<2x256xf32>
    %c63 = arith.constant 63 : index
    %624 = memref.load %arg10[%c63] : memref<320xf32, #tpu.memory_space<smem>>
    %625 = vector.broadcast %624 : f32 to vector<2x256xf32>
    %626 = arith.mulf %302, %625 : vector<2x256xf32>
    %627 = arith.addf %623, %626 : vector<2x256xf32>
    %c7_155 = arith.constant 7 : index
    %628 = memref.load %arg11[%c7_155] : memref<40xf32, #tpu.memory_space<smem>>
    %629 = vector.broadcast %628 : f32 to vector<2x256xf32>
    %630 = arith.addf %627, %629 : vector<2x256xf32>
    %cst_156 = arith.constant 0.000000e+00 : f32
    %631 = vector.broadcast %cst_156 : f32 to vector<2x256xf32>
    %632 = arith.cmpf ogt, %630, %631 : vector<2x256xf32>
    %cst_157 = arith.constant 0.000000e+00 : f32
    %633 = vector.broadcast %cst_157 : f32 to vector<2x256xf32>
    %634 = arith.minimumf %630, %633 : vector<2x256xf32>
    %635 = math.exp %634 : vector<2x256xf32>
    %cst_158 = arith.constant 1.000000e+00 : f32
    %636 = vector.broadcast %cst_158 : f32 to vector<2x256xf32>
    %637 = arith.subf %635, %636 : vector<2x256xf32>
    %638 = arith.select %632, %630, %637 : vector<2x256xi1>, vector<2x256xf32>
    %c64 = arith.constant 64 : index
    %639 = memref.load %arg10[%c64] : memref<320xf32, #tpu.memory_space<smem>>
    %640 = vector.broadcast %639 : f32 to vector<2x256xf32>
    %641 = arith.mulf %344, %640 : vector<2x256xf32>
    %c65 = arith.constant 65 : index
    %642 = memref.load %arg10[%c65] : memref<320xf32, #tpu.memory_space<smem>>
    %643 = vector.broadcast %642 : f32 to vector<2x256xf32>
    %644 = arith.mulf %386, %643 : vector<2x256xf32>
    %645 = arith.addf %641, %644 : vector<2x256xf32>
    %c66 = arith.constant 66 : index
    %646 = memref.load %arg10[%c66] : memref<320xf32, #tpu.memory_space<smem>>
    %647 = vector.broadcast %646 : f32 to vector<2x256xf32>
    %648 = arith.mulf %428, %647 : vector<2x256xf32>
    %649 = arith.addf %645, %648 : vector<2x256xf32>
    %c67 = arith.constant 67 : index
    %650 = memref.load %arg10[%c67] : memref<320xf32, #tpu.memory_space<smem>>
    %651 = vector.broadcast %650 : f32 to vector<2x256xf32>
    %652 = arith.mulf %470, %651 : vector<2x256xf32>
    %653 = arith.addf %649, %652 : vector<2x256xf32>
    %c68 = arith.constant 68 : index
    %654 = memref.load %arg10[%c68] : memref<320xf32, #tpu.memory_space<smem>>
    %655 = vector.broadcast %654 : f32 to vector<2x256xf32>
    %656 = arith.mulf %512, %655 : vector<2x256xf32>
    %657 = arith.addf %653, %656 : vector<2x256xf32>
    %c69 = arith.constant 69 : index
    %658 = memref.load %arg10[%c69] : memref<320xf32, #tpu.memory_space<smem>>
    %659 = vector.broadcast %658 : f32 to vector<2x256xf32>
    %660 = arith.mulf %554, %659 : vector<2x256xf32>
    %661 = arith.addf %657, %660 : vector<2x256xf32>
    %c70 = arith.constant 70 : index
    %662 = memref.load %arg10[%c70] : memref<320xf32, #tpu.memory_space<smem>>
    %663 = vector.broadcast %662 : f32 to vector<2x256xf32>
    %664 = arith.mulf %596, %663 : vector<2x256xf32>
    %665 = arith.addf %661, %664 : vector<2x256xf32>
    %c71 = arith.constant 71 : index
    %666 = memref.load %arg10[%c71] : memref<320xf32, #tpu.memory_space<smem>>
    %667 = vector.broadcast %666 : f32 to vector<2x256xf32>
    %668 = arith.mulf %638, %667 : vector<2x256xf32>
    %669 = arith.addf %665, %668 : vector<2x256xf32>
    %c8_159 = arith.constant 8 : index
    %670 = memref.load %arg11[%c8_159] : memref<40xf32, #tpu.memory_space<smem>>
    %671 = vector.broadcast %670 : f32 to vector<2x256xf32>
    %672 = arith.addf %669, %671 : vector<2x256xf32>
    %cst_160 = arith.constant 0.000000e+00 : f32
    %673 = vector.broadcast %cst_160 : f32 to vector<2x256xf32>
    %674 = arith.cmpf ogt, %672, %673 : vector<2x256xf32>
    %cst_161 = arith.constant 0.000000e+00 : f32
    %675 = vector.broadcast %cst_161 : f32 to vector<2x256xf32>
    %676 = arith.minimumf %672, %675 : vector<2x256xf32>
    %677 = math.exp %676 : vector<2x256xf32>
    %cst_162 = arith.constant 1.000000e+00 : f32
    %678 = vector.broadcast %cst_162 : f32 to vector<2x256xf32>
    %679 = arith.subf %677, %678 : vector<2x256xf32>
    %680 = arith.select %674, %672, %679 : vector<2x256xi1>, vector<2x256xf32>
    %c72 = arith.constant 72 : index
    %681 = memref.load %arg10[%c72] : memref<320xf32, #tpu.memory_space<smem>>
    %682 = vector.broadcast %681 : f32 to vector<2x256xf32>
    %683 = arith.mulf %344, %682 : vector<2x256xf32>
    %c73 = arith.constant 73 : index
    %684 = memref.load %arg10[%c73] : memref<320xf32, #tpu.memory_space<smem>>
    %685 = vector.broadcast %684 : f32 to vector<2x256xf32>
    %686 = arith.mulf %386, %685 : vector<2x256xf32>
    %687 = arith.addf %683, %686 : vector<2x256xf32>
    %c74 = arith.constant 74 : index
    %688 = memref.load %arg10[%c74] : memref<320xf32, #tpu.memory_space<smem>>
    %689 = vector.broadcast %688 : f32 to vector<2x256xf32>
    %690 = arith.mulf %428, %689 : vector<2x256xf32>
    %691 = arith.addf %687, %690 : vector<2x256xf32>
    %c75 = arith.constant 75 : index
    %692 = memref.load %arg10[%c75] : memref<320xf32, #tpu.memory_space<smem>>
    %693 = vector.broadcast %692 : f32 to vector<2x256xf32>
    %694 = arith.mulf %470, %693 : vector<2x256xf32>
    %695 = arith.addf %691, %694 : vector<2x256xf32>
    %c76 = arith.constant 76 : index
    %696 = memref.load %arg10[%c76] : memref<320xf32, #tpu.memory_space<smem>>
    %697 = vector.broadcast %696 : f32 to vector<2x256xf32>
    %698 = arith.mulf %512, %697 : vector<2x256xf32>
    %699 = arith.addf %695, %698 : vector<2x256xf32>
    %c77 = arith.constant 77 : index
    %700 = memref.load %arg10[%c77] : memref<320xf32, #tpu.memory_space<smem>>
    %701 = vector.broadcast %700 : f32 to vector<2x256xf32>
    %702 = arith.mulf %554, %701 : vector<2x256xf32>
    %703 = arith.addf %699, %702 : vector<2x256xf32>
    %c78 = arith.constant 78 : index
    %704 = memref.load %arg10[%c78] : memref<320xf32, #tpu.memory_space<smem>>
    %705 = vector.broadcast %704 : f32 to vector<2x256xf32>
    %706 = arith.mulf %596, %705 : vector<2x256xf32>
    %707 = arith.addf %703, %706 : vector<2x256xf32>
    %c79 = arith.constant 79 : index
    %708 = memref.load %arg10[%c79] : memref<320xf32, #tpu.memory_space<smem>>
    %709 = vector.broadcast %708 : f32 to vector<2x256xf32>
    %710 = arith.mulf %638, %709 : vector<2x256xf32>
    %711 = arith.addf %707, %710 : vector<2x256xf32>
    %c9_163 = arith.constant 9 : index
    %712 = memref.load %arg11[%c9_163] : memref<40xf32, #tpu.memory_space<smem>>
    %713 = vector.broadcast %712 : f32 to vector<2x256xf32>
    %714 = arith.addf %711, %713 : vector<2x256xf32>
    %cst_164 = arith.constant 0.000000e+00 : f32
    %715 = vector.broadcast %cst_164 : f32 to vector<2x256xf32>
    %716 = arith.cmpf ogt, %714, %715 : vector<2x256xf32>
    %cst_165 = arith.constant 0.000000e+00 : f32
    %717 = vector.broadcast %cst_165 : f32 to vector<2x256xf32>
    %718 = arith.minimumf %714, %717 : vector<2x256xf32>
    %719 = math.exp %718 : vector<2x256xf32>
    %cst_166 = arith.constant 1.000000e+00 : f32
    %720 = vector.broadcast %cst_166 : f32 to vector<2x256xf32>
    %721 = arith.subf %719, %720 : vector<2x256xf32>
    %722 = arith.select %716, %714, %721 : vector<2x256xi1>, vector<2x256xf32>
    %c80 = arith.constant 80 : index
    %723 = memref.load %arg10[%c80] : memref<320xf32, #tpu.memory_space<smem>>
    %724 = vector.broadcast %723 : f32 to vector<2x256xf32>
    %725 = arith.mulf %344, %724 : vector<2x256xf32>
    %c81 = arith.constant 81 : index
    %726 = memref.load %arg10[%c81] : memref<320xf32, #tpu.memory_space<smem>>
    %727 = vector.broadcast %726 : f32 to vector<2x256xf32>
    %728 = arith.mulf %386, %727 : vector<2x256xf32>
    %729 = arith.addf %725, %728 : vector<2x256xf32>
    %c82 = arith.constant 82 : index
    %730 = memref.load %arg10[%c82] : memref<320xf32, #tpu.memory_space<smem>>
    %731 = vector.broadcast %730 : f32 to vector<2x256xf32>
    %732 = arith.mulf %428, %731 : vector<2x256xf32>
    %733 = arith.addf %729, %732 : vector<2x256xf32>
    %c83 = arith.constant 83 : index
    %734 = memref.load %arg10[%c83] : memref<320xf32, #tpu.memory_space<smem>>
    %735 = vector.broadcast %734 : f32 to vector<2x256xf32>
    %736 = arith.mulf %470, %735 : vector<2x256xf32>
    %737 = arith.addf %733, %736 : vector<2x256xf32>
    %c84 = arith.constant 84 : index
    %738 = memref.load %arg10[%c84] : memref<320xf32, #tpu.memory_space<smem>>
    %739 = vector.broadcast %738 : f32 to vector<2x256xf32>
    %740 = arith.mulf %512, %739 : vector<2x256xf32>
    %741 = arith.addf %737, %740 : vector<2x256xf32>
    %c85 = arith.constant 85 : index
    %742 = memref.load %arg10[%c85] : memref<320xf32, #tpu.memory_space<smem>>
    %743 = vector.broadcast %742 : f32 to vector<2x256xf32>
    %744 = arith.mulf %554, %743 : vector<2x256xf32>
    %745 = arith.addf %741, %744 : vector<2x256xf32>
    %c86 = arith.constant 86 : index
    %746 = memref.load %arg10[%c86] : memref<320xf32, #tpu.memory_space<smem>>
    %747 = vector.broadcast %746 : f32 to vector<2x256xf32>
    %748 = arith.mulf %596, %747 : vector<2x256xf32>
    %749 = arith.addf %745, %748 : vector<2x256xf32>
    %c87 = arith.constant 87 : index
    %750 = memref.load %arg10[%c87] : memref<320xf32, #tpu.memory_space<smem>>
    %751 = vector.broadcast %750 : f32 to vector<2x256xf32>
    %752 = arith.mulf %638, %751 : vector<2x256xf32>
    %753 = arith.addf %749, %752 : vector<2x256xf32>
    %c10_167 = arith.constant 10 : index
    %754 = memref.load %arg11[%c10_167] : memref<40xf32, #tpu.memory_space<smem>>
    %755 = vector.broadcast %754 : f32 to vector<2x256xf32>
    %756 = arith.addf %753, %755 : vector<2x256xf32>
    %cst_168 = arith.constant 0.000000e+00 : f32
    %757 = vector.broadcast %cst_168 : f32 to vector<2x256xf32>
    %758 = arith.cmpf ogt, %756, %757 : vector<2x256xf32>
    %cst_169 = arith.constant 0.000000e+00 : f32
    %759 = vector.broadcast %cst_169 : f32 to vector<2x256xf32>
    %760 = arith.minimumf %756, %759 : vector<2x256xf32>
    %761 = math.exp %760 : vector<2x256xf32>
    %cst_170 = arith.constant 1.000000e+00 : f32
    %762 = vector.broadcast %cst_170 : f32 to vector<2x256xf32>
    %763 = arith.subf %761, %762 : vector<2x256xf32>
    %764 = arith.select %758, %756, %763 : vector<2x256xi1>, vector<2x256xf32>
    %c88 = arith.constant 88 : index
    %765 = memref.load %arg10[%c88] : memref<320xf32, #tpu.memory_space<smem>>
    %766 = vector.broadcast %765 : f32 to vector<2x256xf32>
    %767 = arith.mulf %344, %766 : vector<2x256xf32>
    %c89 = arith.constant 89 : index
    %768 = memref.load %arg10[%c89] : memref<320xf32, #tpu.memory_space<smem>>
    %769 = vector.broadcast %768 : f32 to vector<2x256xf32>
    %770 = arith.mulf %386, %769 : vector<2x256xf32>
    %771 = arith.addf %767, %770 : vector<2x256xf32>
    %c90 = arith.constant 90 : index
    %772 = memref.load %arg10[%c90] : memref<320xf32, #tpu.memory_space<smem>>
    %773 = vector.broadcast %772 : f32 to vector<2x256xf32>
    %774 = arith.mulf %428, %773 : vector<2x256xf32>
    %775 = arith.addf %771, %774 : vector<2x256xf32>
    %c91 = arith.constant 91 : index
    %776 = memref.load %arg10[%c91] : memref<320xf32, #tpu.memory_space<smem>>
    %777 = vector.broadcast %776 : f32 to vector<2x256xf32>
    %778 = arith.mulf %470, %777 : vector<2x256xf32>
    %779 = arith.addf %775, %778 : vector<2x256xf32>
    %c92 = arith.constant 92 : index
    %780 = memref.load %arg10[%c92] : memref<320xf32, #tpu.memory_space<smem>>
    %781 = vector.broadcast %780 : f32 to vector<2x256xf32>
    %782 = arith.mulf %512, %781 : vector<2x256xf32>
    %783 = arith.addf %779, %782 : vector<2x256xf32>
    %c93 = arith.constant 93 : index
    %784 = memref.load %arg10[%c93] : memref<320xf32, #tpu.memory_space<smem>>
    %785 = vector.broadcast %784 : f32 to vector<2x256xf32>
    %786 = arith.mulf %554, %785 : vector<2x256xf32>
    %787 = arith.addf %783, %786 : vector<2x256xf32>
    %c94 = arith.constant 94 : index
    %788 = memref.load %arg10[%c94] : memref<320xf32, #tpu.memory_space<smem>>
    %789 = vector.broadcast %788 : f32 to vector<2x256xf32>
    %790 = arith.mulf %596, %789 : vector<2x256xf32>
    %791 = arith.addf %787, %790 : vector<2x256xf32>
    %c95 = arith.constant 95 : index
    %792 = memref.load %arg10[%c95] : memref<320xf32, #tpu.memory_space<smem>>
    %793 = vector.broadcast %792 : f32 to vector<2x256xf32>
    %794 = arith.mulf %638, %793 : vector<2x256xf32>
    %795 = arith.addf %791, %794 : vector<2x256xf32>
    %c11_171 = arith.constant 11 : index
    %796 = memref.load %arg11[%c11_171] : memref<40xf32, #tpu.memory_space<smem>>
    %797 = vector.broadcast %796 : f32 to vector<2x256xf32>
    %798 = arith.addf %795, %797 : vector<2x256xf32>
    %cst_172 = arith.constant 0.000000e+00 : f32
    %799 = vector.broadcast %cst_172 : f32 to vector<2x256xf32>
    %800 = arith.cmpf ogt, %798, %799 : vector<2x256xf32>
    %cst_173 = arith.constant 0.000000e+00 : f32
    %801 = vector.broadcast %cst_173 : f32 to vector<2x256xf32>
    %802 = arith.minimumf %798, %801 : vector<2x256xf32>
    %803 = math.exp %802 : vector<2x256xf32>
    %cst_174 = arith.constant 1.000000e+00 : f32
    %804 = vector.broadcast %cst_174 : f32 to vector<2x256xf32>
    %805 = arith.subf %803, %804 : vector<2x256xf32>
    %806 = arith.select %800, %798, %805 : vector<2x256xi1>, vector<2x256xf32>
    %c96 = arith.constant 96 : index
    %807 = memref.load %arg10[%c96] : memref<320xf32, #tpu.memory_space<smem>>
    %808 = vector.broadcast %807 : f32 to vector<2x256xf32>
    %809 = arith.mulf %344, %808 : vector<2x256xf32>
    %c97 = arith.constant 97 : index
    %810 = memref.load %arg10[%c97] : memref<320xf32, #tpu.memory_space<smem>>
    %811 = vector.broadcast %810 : f32 to vector<2x256xf32>
    %812 = arith.mulf %386, %811 : vector<2x256xf32>
    %813 = arith.addf %809, %812 : vector<2x256xf32>
    %c98 = arith.constant 98 : index
    %814 = memref.load %arg10[%c98] : memref<320xf32, #tpu.memory_space<smem>>
    %815 = vector.broadcast %814 : f32 to vector<2x256xf32>
    %816 = arith.mulf %428, %815 : vector<2x256xf32>
    %817 = arith.addf %813, %816 : vector<2x256xf32>
    %c99 = arith.constant 99 : index
    %818 = memref.load %arg10[%c99] : memref<320xf32, #tpu.memory_space<smem>>
    %819 = vector.broadcast %818 : f32 to vector<2x256xf32>
    %820 = arith.mulf %470, %819 : vector<2x256xf32>
    %821 = arith.addf %817, %820 : vector<2x256xf32>
    %c100 = arith.constant 100 : index
    %822 = memref.load %arg10[%c100] : memref<320xf32, #tpu.memory_space<smem>>
    %823 = vector.broadcast %822 : f32 to vector<2x256xf32>
    %824 = arith.mulf %512, %823 : vector<2x256xf32>
    %825 = arith.addf %821, %824 : vector<2x256xf32>
    %c101 = arith.constant 101 : index
    %826 = memref.load %arg10[%c101] : memref<320xf32, #tpu.memory_space<smem>>
    %827 = vector.broadcast %826 : f32 to vector<2x256xf32>
    %828 = arith.mulf %554, %827 : vector<2x256xf32>
    %829 = arith.addf %825, %828 : vector<2x256xf32>
    %c102 = arith.constant 102 : index
    %830 = memref.load %arg10[%c102] : memref<320xf32, #tpu.memory_space<smem>>
    %831 = vector.broadcast %830 : f32 to vector<2x256xf32>
    %832 = arith.mulf %596, %831 : vector<2x256xf32>
    %833 = arith.addf %829, %832 : vector<2x256xf32>
    %c103 = arith.constant 103 : index
    %834 = memref.load %arg10[%c103] : memref<320xf32, #tpu.memory_space<smem>>
    %835 = vector.broadcast %834 : f32 to vector<2x256xf32>
    %836 = arith.mulf %638, %835 : vector<2x256xf32>
    %837 = arith.addf %833, %836 : vector<2x256xf32>
    %c12_175 = arith.constant 12 : index
    %838 = memref.load %arg11[%c12_175] : memref<40xf32, #tpu.memory_space<smem>>
    %839 = vector.broadcast %838 : f32 to vector<2x256xf32>
    %840 = arith.addf %837, %839 : vector<2x256xf32>
    %cst_176 = arith.constant 0.000000e+00 : f32
    %841 = vector.broadcast %cst_176 : f32 to vector<2x256xf32>
    %842 = arith.cmpf ogt, %840, %841 : vector<2x256xf32>
    %cst_177 = arith.constant 0.000000e+00 : f32
    %843 = vector.broadcast %cst_177 : f32 to vector<2x256xf32>
    %844 = arith.minimumf %840, %843 : vector<2x256xf32>
    %845 = math.exp %844 : vector<2x256xf32>
    %cst_178 = arith.constant 1.000000e+00 : f32
    %846 = vector.broadcast %cst_178 : f32 to vector<2x256xf32>
    %847 = arith.subf %845, %846 : vector<2x256xf32>
    %848 = arith.select %842, %840, %847 : vector<2x256xi1>, vector<2x256xf32>
    %c104 = arith.constant 104 : index
    %849 = memref.load %arg10[%c104] : memref<320xf32, #tpu.memory_space<smem>>
    %850 = vector.broadcast %849 : f32 to vector<2x256xf32>
    %851 = arith.mulf %344, %850 : vector<2x256xf32>
    %c105 = arith.constant 105 : index
    %852 = memref.load %arg10[%c105] : memref<320xf32, #tpu.memory_space<smem>>
    %853 = vector.broadcast %852 : f32 to vector<2x256xf32>
    %854 = arith.mulf %386, %853 : vector<2x256xf32>
    %855 = arith.addf %851, %854 : vector<2x256xf32>
    %c106 = arith.constant 106 : index
    %856 = memref.load %arg10[%c106] : memref<320xf32, #tpu.memory_space<smem>>
    %857 = vector.broadcast %856 : f32 to vector<2x256xf32>
    %858 = arith.mulf %428, %857 : vector<2x256xf32>
    %859 = arith.addf %855, %858 : vector<2x256xf32>
    %c107 = arith.constant 107 : index
    %860 = memref.load %arg10[%c107] : memref<320xf32, #tpu.memory_space<smem>>
    %861 = vector.broadcast %860 : f32 to vector<2x256xf32>
    %862 = arith.mulf %470, %861 : vector<2x256xf32>
    %863 = arith.addf %859, %862 : vector<2x256xf32>
    %c108 = arith.constant 108 : index
    %864 = memref.load %arg10[%c108] : memref<320xf32, #tpu.memory_space<smem>>
    %865 = vector.broadcast %864 : f32 to vector<2x256xf32>
    %866 = arith.mulf %512, %865 : vector<2x256xf32>
    %867 = arith.addf %863, %866 : vector<2x256xf32>
    %c109 = arith.constant 109 : index
    %868 = memref.load %arg10[%c109] : memref<320xf32, #tpu.memory_space<smem>>
    %869 = vector.broadcast %868 : f32 to vector<2x256xf32>
    %870 = arith.mulf %554, %869 : vector<2x256xf32>
    %871 = arith.addf %867, %870 : vector<2x256xf32>
    %c110 = arith.constant 110 : index
    %872 = memref.load %arg10[%c110] : memref<320xf32, #tpu.memory_space<smem>>
    %873 = vector.broadcast %872 : f32 to vector<2x256xf32>
    %874 = arith.mulf %596, %873 : vector<2x256xf32>
    %875 = arith.addf %871, %874 : vector<2x256xf32>
    %c111 = arith.constant 111 : index
    %876 = memref.load %arg10[%c111] : memref<320xf32, #tpu.memory_space<smem>>
    %877 = vector.broadcast %876 : f32 to vector<2x256xf32>
    %878 = arith.mulf %638, %877 : vector<2x256xf32>
    %879 = arith.addf %875, %878 : vector<2x256xf32>
    %c13_179 = arith.constant 13 : index
    %880 = memref.load %arg11[%c13_179] : memref<40xf32, #tpu.memory_space<smem>>
    %881 = vector.broadcast %880 : f32 to vector<2x256xf32>
    %882 = arith.addf %879, %881 : vector<2x256xf32>
    %cst_180 = arith.constant 0.000000e+00 : f32
    %883 = vector.broadcast %cst_180 : f32 to vector<2x256xf32>
    %884 = arith.cmpf ogt, %882, %883 : vector<2x256xf32>
    %cst_181 = arith.constant 0.000000e+00 : f32
    %885 = vector.broadcast %cst_181 : f32 to vector<2x256xf32>
    %886 = arith.minimumf %882, %885 : vector<2x256xf32>
    %887 = math.exp %886 : vector<2x256xf32>
    %cst_182 = arith.constant 1.000000e+00 : f32
    %888 = vector.broadcast %cst_182 : f32 to vector<2x256xf32>
    %889 = arith.subf %887, %888 : vector<2x256xf32>
    %890 = arith.select %884, %882, %889 : vector<2x256xi1>, vector<2x256xf32>
    %c112 = arith.constant 112 : index
    %891 = memref.load %arg10[%c112] : memref<320xf32, #tpu.memory_space<smem>>
    %892 = vector.broadcast %891 : f32 to vector<2x256xf32>
    %893 = arith.mulf %344, %892 : vector<2x256xf32>
    %c113 = arith.constant 113 : index
    %894 = memref.load %arg10[%c113] : memref<320xf32, #tpu.memory_space<smem>>
    %895 = vector.broadcast %894 : f32 to vector<2x256xf32>
    %896 = arith.mulf %386, %895 : vector<2x256xf32>
    %897 = arith.addf %893, %896 : vector<2x256xf32>
    %c114 = arith.constant 114 : index
    %898 = memref.load %arg10[%c114] : memref<320xf32, #tpu.memory_space<smem>>
    %899 = vector.broadcast %898 : f32 to vector<2x256xf32>
    %900 = arith.mulf %428, %899 : vector<2x256xf32>
    %901 = arith.addf %897, %900 : vector<2x256xf32>
    %c115 = arith.constant 115 : index
    %902 = memref.load %arg10[%c115] : memref<320xf32, #tpu.memory_space<smem>>
    %903 = vector.broadcast %902 : f32 to vector<2x256xf32>
    %904 = arith.mulf %470, %903 : vector<2x256xf32>
    %905 = arith.addf %901, %904 : vector<2x256xf32>
    %c116 = arith.constant 116 : index
    %906 = memref.load %arg10[%c116] : memref<320xf32, #tpu.memory_space<smem>>
    %907 = vector.broadcast %906 : f32 to vector<2x256xf32>
    %908 = arith.mulf %512, %907 : vector<2x256xf32>
    %909 = arith.addf %905, %908 : vector<2x256xf32>
    %c117 = arith.constant 117 : index
    %910 = memref.load %arg10[%c117] : memref<320xf32, #tpu.memory_space<smem>>
    %911 = vector.broadcast %910 : f32 to vector<2x256xf32>
    %912 = arith.mulf %554, %911 : vector<2x256xf32>
    %913 = arith.addf %909, %912 : vector<2x256xf32>
    %c118 = arith.constant 118 : index
    %914 = memref.load %arg10[%c118] : memref<320xf32, #tpu.memory_space<smem>>
    %915 = vector.broadcast %914 : f32 to vector<2x256xf32>
    %916 = arith.mulf %596, %915 : vector<2x256xf32>
    %917 = arith.addf %913, %916 : vector<2x256xf32>
    %c119 = arith.constant 119 : index
    %918 = memref.load %arg10[%c119] : memref<320xf32, #tpu.memory_space<smem>>
    %919 = vector.broadcast %918 : f32 to vector<2x256xf32>
    %920 = arith.mulf %638, %919 : vector<2x256xf32>
    %921 = arith.addf %917, %920 : vector<2x256xf32>
    %c14_183 = arith.constant 14 : index
    %922 = memref.load %arg11[%c14_183] : memref<40xf32, #tpu.memory_space<smem>>
    %923 = vector.broadcast %922 : f32 to vector<2x256xf32>
    %924 = arith.addf %921, %923 : vector<2x256xf32>
    %cst_184 = arith.constant 0.000000e+00 : f32
    %925 = vector.broadcast %cst_184 : f32 to vector<2x256xf32>
    %926 = arith.cmpf ogt, %924, %925 : vector<2x256xf32>
    %cst_185 = arith.constant 0.000000e+00 : f32
    %927 = vector.broadcast %cst_185 : f32 to vector<2x256xf32>
    %928 = arith.minimumf %924, %927 : vector<2x256xf32>
    %929 = math.exp %928 : vector<2x256xf32>
    %cst_186 = arith.constant 1.000000e+00 : f32
    %930 = vector.broadcast %cst_186 : f32 to vector<2x256xf32>
    %931 = arith.subf %929, %930 : vector<2x256xf32>
    %932 = arith.select %926, %924, %931 : vector<2x256xi1>, vector<2x256xf32>
    %c120 = arith.constant 120 : index
    %933 = memref.load %arg10[%c120] : memref<320xf32, #tpu.memory_space<smem>>
    %934 = vector.broadcast %933 : f32 to vector<2x256xf32>
    %935 = arith.mulf %344, %934 : vector<2x256xf32>
    %c121 = arith.constant 121 : index
    %936 = memref.load %arg10[%c121] : memref<320xf32, #tpu.memory_space<smem>>
    %937 = vector.broadcast %936 : f32 to vector<2x256xf32>
    %938 = arith.mulf %386, %937 : vector<2x256xf32>
    %939 = arith.addf %935, %938 : vector<2x256xf32>
    %c122 = arith.constant 122 : index
    %940 = memref.load %arg10[%c122] : memref<320xf32, #tpu.memory_space<smem>>
    %941 = vector.broadcast %940 : f32 to vector<2x256xf32>
    %942 = arith.mulf %428, %941 : vector<2x256xf32>
    %943 = arith.addf %939, %942 : vector<2x256xf32>
    %c123 = arith.constant 123 : index
    %944 = memref.load %arg10[%c123] : memref<320xf32, #tpu.memory_space<smem>>
    %945 = vector.broadcast %944 : f32 to vector<2x256xf32>
    %946 = arith.mulf %470, %945 : vector<2x256xf32>
    %947 = arith.addf %943, %946 : vector<2x256xf32>
    %c124 = arith.constant 124 : index
    %948 = memref.load %arg10[%c124] : memref<320xf32, #tpu.memory_space<smem>>
    %949 = vector.broadcast %948 : f32 to vector<2x256xf32>
    %950 = arith.mulf %512, %949 : vector<2x256xf32>
    %951 = arith.addf %947, %950 : vector<2x256xf32>
    %c125 = arith.constant 125 : index
    %952 = memref.load %arg10[%c125] : memref<320xf32, #tpu.memory_space<smem>>
    %953 = vector.broadcast %952 : f32 to vector<2x256xf32>
    %954 = arith.mulf %554, %953 : vector<2x256xf32>
    %955 = arith.addf %951, %954 : vector<2x256xf32>
    %c126 = arith.constant 126 : index
    %956 = memref.load %arg10[%c126] : memref<320xf32, #tpu.memory_space<smem>>
    %957 = vector.broadcast %956 : f32 to vector<2x256xf32>
    %958 = arith.mulf %596, %957 : vector<2x256xf32>
    %959 = arith.addf %955, %958 : vector<2x256xf32>
    %c127 = arith.constant 127 : index
    %960 = memref.load %arg10[%c127] : memref<320xf32, #tpu.memory_space<smem>>
    %961 = vector.broadcast %960 : f32 to vector<2x256xf32>
    %962 = arith.mulf %638, %961 : vector<2x256xf32>
    %963 = arith.addf %959, %962 : vector<2x256xf32>
    %c15_187 = arith.constant 15 : index
    %964 = memref.load %arg11[%c15_187] : memref<40xf32, #tpu.memory_space<smem>>
    %965 = vector.broadcast %964 : f32 to vector<2x256xf32>
    %966 = arith.addf %963, %965 : vector<2x256xf32>
    %cst_188 = arith.constant 0.000000e+00 : f32
    %967 = vector.broadcast %cst_188 : f32 to vector<2x256xf32>
    %968 = arith.cmpf ogt, %966, %967 : vector<2x256xf32>
    %cst_189 = arith.constant 0.000000e+00 : f32
    %969 = vector.broadcast %cst_189 : f32 to vector<2x256xf32>
    %970 = arith.minimumf %966, %969 : vector<2x256xf32>
    %971 = math.exp %970 : vector<2x256xf32>
    %cst_190 = arith.constant 1.000000e+00 : f32
    %972 = vector.broadcast %cst_190 : f32 to vector<2x256xf32>
    %973 = arith.subf %971, %972 : vector<2x256xf32>
    %974 = arith.select %968, %966, %973 : vector<2x256xi1>, vector<2x256xf32>
    %c128 = arith.constant 128 : index
    %975 = memref.load %arg10[%c128] : memref<320xf32, #tpu.memory_space<smem>>
    %976 = vector.broadcast %975 : f32 to vector<2x256xf32>
    %977 = arith.mulf %680, %976 : vector<2x256xf32>
    %c129 = arith.constant 129 : index
    %978 = memref.load %arg10[%c129] : memref<320xf32, #tpu.memory_space<smem>>
    %979 = vector.broadcast %978 : f32 to vector<2x256xf32>
    %980 = arith.mulf %722, %979 : vector<2x256xf32>
    %981 = arith.addf %977, %980 : vector<2x256xf32>
    %c130 = arith.constant 130 : index
    %982 = memref.load %arg10[%c130] : memref<320xf32, #tpu.memory_space<smem>>
    %983 = vector.broadcast %982 : f32 to vector<2x256xf32>
    %984 = arith.mulf %764, %983 : vector<2x256xf32>
    %985 = arith.addf %981, %984 : vector<2x256xf32>
    %c131 = arith.constant 131 : index
    %986 = memref.load %arg10[%c131] : memref<320xf32, #tpu.memory_space<smem>>
    %987 = vector.broadcast %986 : f32 to vector<2x256xf32>
    %988 = arith.mulf %806, %987 : vector<2x256xf32>
    %989 = arith.addf %985, %988 : vector<2x256xf32>
    %c132 = arith.constant 132 : index
    %990 = memref.load %arg10[%c132] : memref<320xf32, #tpu.memory_space<smem>>
    %991 = vector.broadcast %990 : f32 to vector<2x256xf32>
    %992 = arith.mulf %848, %991 : vector<2x256xf32>
    %993 = arith.addf %989, %992 : vector<2x256xf32>
    %c133 = arith.constant 133 : index
    %994 = memref.load %arg10[%c133] : memref<320xf32, #tpu.memory_space<smem>>
    %995 = vector.broadcast %994 : f32 to vector<2x256xf32>
    %996 = arith.mulf %890, %995 : vector<2x256xf32>
    %997 = arith.addf %993, %996 : vector<2x256xf32>
    %c134 = arith.constant 134 : index
    %998 = memref.load %arg10[%c134] : memref<320xf32, #tpu.memory_space<smem>>
    %999 = vector.broadcast %998 : f32 to vector<2x256xf32>
    %1000 = arith.mulf %932, %999 : vector<2x256xf32>
    %1001 = arith.addf %997, %1000 : vector<2x256xf32>
    %c135 = arith.constant 135 : index
    %1002 = memref.load %arg10[%c135] : memref<320xf32, #tpu.memory_space<smem>>
    %1003 = vector.broadcast %1002 : f32 to vector<2x256xf32>
    %1004 = arith.mulf %974, %1003 : vector<2x256xf32>
    %1005 = arith.addf %1001, %1004 : vector<2x256xf32>
    %c16_191 = arith.constant 16 : index
    %1006 = memref.load %arg11[%c16_191] : memref<40xf32, #tpu.memory_space<smem>>
    %1007 = vector.broadcast %1006 : f32 to vector<2x256xf32>
    %1008 = arith.addf %1005, %1007 : vector<2x256xf32>
    %cst_192 = arith.constant 0.000000e+00 : f32
    %1009 = vector.broadcast %cst_192 : f32 to vector<2x256xf32>
    %1010 = arith.cmpf ogt, %1008, %1009 : vector<2x256xf32>
    %cst_193 = arith.constant 0.000000e+00 : f32
    %1011 = vector.broadcast %cst_193 : f32 to vector<2x256xf32>
    %1012 = arith.minimumf %1008, %1011 : vector<2x256xf32>
    %1013 = math.exp %1012 : vector<2x256xf32>
    %cst_194 = arith.constant 1.000000e+00 : f32
    %1014 = vector.broadcast %cst_194 : f32 to vector<2x256xf32>
    %1015 = arith.subf %1013, %1014 : vector<2x256xf32>
    %1016 = arith.select %1010, %1008, %1015 : vector<2x256xi1>, vector<2x256xf32>
    %c136 = arith.constant 136 : index
    %1017 = memref.load %arg10[%c136] : memref<320xf32, #tpu.memory_space<smem>>
    %1018 = vector.broadcast %1017 : f32 to vector<2x256xf32>
    %1019 = arith.mulf %680, %1018 : vector<2x256xf32>
    %c137 = arith.constant 137 : index
    %1020 = memref.load %arg10[%c137] : memref<320xf32, #tpu.memory_space<smem>>
    %1021 = vector.broadcast %1020 : f32 to vector<2x256xf32>
    %1022 = arith.mulf %722, %1021 : vector<2x256xf32>
    %1023 = arith.addf %1019, %1022 : vector<2x256xf32>
    %c138 = arith.constant 138 : index
    %1024 = memref.load %arg10[%c138] : memref<320xf32, #tpu.memory_space<smem>>
    %1025 = vector.broadcast %1024 : f32 to vector<2x256xf32>
    %1026 = arith.mulf %764, %1025 : vector<2x256xf32>
    %1027 = arith.addf %1023, %1026 : vector<2x256xf32>
    %c139 = arith.constant 139 : index
    %1028 = memref.load %arg10[%c139] : memref<320xf32, #tpu.memory_space<smem>>
    %1029 = vector.broadcast %1028 : f32 to vector<2x256xf32>
    %1030 = arith.mulf %806, %1029 : vector<2x256xf32>
    %1031 = arith.addf %1027, %1030 : vector<2x256xf32>
    %c140 = arith.constant 140 : index
    %1032 = memref.load %arg10[%c140] : memref<320xf32, #tpu.memory_space<smem>>
    %1033 = vector.broadcast %1032 : f32 to vector<2x256xf32>
    %1034 = arith.mulf %848, %1033 : vector<2x256xf32>
    %1035 = arith.addf %1031, %1034 : vector<2x256xf32>
    %c141 = arith.constant 141 : index
    %1036 = memref.load %arg10[%c141] : memref<320xf32, #tpu.memory_space<smem>>
    %1037 = vector.broadcast %1036 : f32 to vector<2x256xf32>
    %1038 = arith.mulf %890, %1037 : vector<2x256xf32>
    %1039 = arith.addf %1035, %1038 : vector<2x256xf32>
    %c142 = arith.constant 142 : index
    %1040 = memref.load %arg10[%c142] : memref<320xf32, #tpu.memory_space<smem>>
    %1041 = vector.broadcast %1040 : f32 to vector<2x256xf32>
    %1042 = arith.mulf %932, %1041 : vector<2x256xf32>
    %1043 = arith.addf %1039, %1042 : vector<2x256xf32>
    %c143 = arith.constant 143 : index
    %1044 = memref.load %arg10[%c143] : memref<320xf32, #tpu.memory_space<smem>>
    %1045 = vector.broadcast %1044 : f32 to vector<2x256xf32>
    %1046 = arith.mulf %974, %1045 : vector<2x256xf32>
    %1047 = arith.addf %1043, %1046 : vector<2x256xf32>
    %c17_195 = arith.constant 17 : index
    %1048 = memref.load %arg11[%c17_195] : memref<40xf32, #tpu.memory_space<smem>>
    %1049 = vector.broadcast %1048 : f32 to vector<2x256xf32>
    %1050 = arith.addf %1047, %1049 : vector<2x256xf32>
    %cst_196 = arith.constant 0.000000e+00 : f32
    %1051 = vector.broadcast %cst_196 : f32 to vector<2x256xf32>
    %1052 = arith.cmpf ogt, %1050, %1051 : vector<2x256xf32>
    %cst_197 = arith.constant 0.000000e+00 : f32
    %1053 = vector.broadcast %cst_197 : f32 to vector<2x256xf32>
    %1054 = arith.minimumf %1050, %1053 : vector<2x256xf32>
    %1055 = math.exp %1054 : vector<2x256xf32>
    %cst_198 = arith.constant 1.000000e+00 : f32
    %1056 = vector.broadcast %cst_198 : f32 to vector<2x256xf32>
    %1057 = arith.subf %1055, %1056 : vector<2x256xf32>
    %1058 = arith.select %1052, %1050, %1057 : vector<2x256xi1>, vector<2x256xf32>
    %c144 = arith.constant 144 : index
    %1059 = memref.load %arg10[%c144] : memref<320xf32, #tpu.memory_space<smem>>
    %1060 = vector.broadcast %1059 : f32 to vector<2x256xf32>
    %1061 = arith.mulf %680, %1060 : vector<2x256xf32>
    %c145 = arith.constant 145 : index
    %1062 = memref.load %arg10[%c145] : memref<320xf32, #tpu.memory_space<smem>>
    %1063 = vector.broadcast %1062 : f32 to vector<2x256xf32>
    %1064 = arith.mulf %722, %1063 : vector<2x256xf32>
    %1065 = arith.addf %1061, %1064 : vector<2x256xf32>
    %c146 = arith.constant 146 : index
    %1066 = memref.load %arg10[%c146] : memref<320xf32, #tpu.memory_space<smem>>
    %1067 = vector.broadcast %1066 : f32 to vector<2x256xf32>
    %1068 = arith.mulf %764, %1067 : vector<2x256xf32>
    %1069 = arith.addf %1065, %1068 : vector<2x256xf32>
    %c147 = arith.constant 147 : index
    %1070 = memref.load %arg10[%c147] : memref<320xf32, #tpu.memory_space<smem>>
    %1071 = vector.broadcast %1070 : f32 to vector<2x256xf32>
    %1072 = arith.mulf %806, %1071 : vector<2x256xf32>
    %1073 = arith.addf %1069, %1072 : vector<2x256xf32>
    %c148 = arith.constant 148 : index
    %1074 = memref.load %arg10[%c148] : memref<320xf32, #tpu.memory_space<smem>>
    %1075 = vector.broadcast %1074 : f32 to vector<2x256xf32>
    %1076 = arith.mulf %848, %1075 : vector<2x256xf32>
    %1077 = arith.addf %1073, %1076 : vector<2x256xf32>
    %c149 = arith.constant 149 : index
    %1078 = memref.load %arg10[%c149] : memref<320xf32, #tpu.memory_space<smem>>
    %1079 = vector.broadcast %1078 : f32 to vector<2x256xf32>
    %1080 = arith.mulf %890, %1079 : vector<2x256xf32>
    %1081 = arith.addf %1077, %1080 : vector<2x256xf32>
    %c150 = arith.constant 150 : index
    %1082 = memref.load %arg10[%c150] : memref<320xf32, #tpu.memory_space<smem>>
    %1083 = vector.broadcast %1082 : f32 to vector<2x256xf32>
    %1084 = arith.mulf %932, %1083 : vector<2x256xf32>
    %1085 = arith.addf %1081, %1084 : vector<2x256xf32>
    %c151 = arith.constant 151 : index
    %1086 = memref.load %arg10[%c151] : memref<320xf32, #tpu.memory_space<smem>>
    %1087 = vector.broadcast %1086 : f32 to vector<2x256xf32>
    %1088 = arith.mulf %974, %1087 : vector<2x256xf32>
    %1089 = arith.addf %1085, %1088 : vector<2x256xf32>
    %c18_199 = arith.constant 18 : index
    %1090 = memref.load %arg11[%c18_199] : memref<40xf32, #tpu.memory_space<smem>>
    %1091 = vector.broadcast %1090 : f32 to vector<2x256xf32>
    %1092 = arith.addf %1089, %1091 : vector<2x256xf32>
    %cst_200 = arith.constant 0.000000e+00 : f32
    %1093 = vector.broadcast %cst_200 : f32 to vector<2x256xf32>
    %1094 = arith.cmpf ogt, %1092, %1093 : vector<2x256xf32>
    %cst_201 = arith.constant 0.000000e+00 : f32
    %1095 = vector.broadcast %cst_201 : f32 to vector<2x256xf32>
    %1096 = arith.minimumf %1092, %1095 : vector<2x256xf32>
    %1097 = math.exp %1096 : vector<2x256xf32>
    %cst_202 = arith.constant 1.000000e+00 : f32
    %1098 = vector.broadcast %cst_202 : f32 to vector<2x256xf32>
    %1099 = arith.subf %1097, %1098 : vector<2x256xf32>
    %1100 = arith.select %1094, %1092, %1099 : vector<2x256xi1>, vector<2x256xf32>
    %c152 = arith.constant 152 : index
    %1101 = memref.load %arg10[%c152] : memref<320xf32, #tpu.memory_space<smem>>
    %1102 = vector.broadcast %1101 : f32 to vector<2x256xf32>
    %1103 = arith.mulf %680, %1102 : vector<2x256xf32>
    %c153 = arith.constant 153 : index
    %1104 = memref.load %arg10[%c153] : memref<320xf32, #tpu.memory_space<smem>>
    %1105 = vector.broadcast %1104 : f32 to vector<2x256xf32>
    %1106 = arith.mulf %722, %1105 : vector<2x256xf32>
    %1107 = arith.addf %1103, %1106 : vector<2x256xf32>
    %c154 = arith.constant 154 : index
    %1108 = memref.load %arg10[%c154] : memref<320xf32, #tpu.memory_space<smem>>
    %1109 = vector.broadcast %1108 : f32 to vector<2x256xf32>
    %1110 = arith.mulf %764, %1109 : vector<2x256xf32>
    %1111 = arith.addf %1107, %1110 : vector<2x256xf32>
    %c155 = arith.constant 155 : index
    %1112 = memref.load %arg10[%c155] : memref<320xf32, #tpu.memory_space<smem>>
    %1113 = vector.broadcast %1112 : f32 to vector<2x256xf32>
    %1114 = arith.mulf %806, %1113 : vector<2x256xf32>
    %1115 = arith.addf %1111, %1114 : vector<2x256xf32>
    %c156 = arith.constant 156 : index
    %1116 = memref.load %arg10[%c156] : memref<320xf32, #tpu.memory_space<smem>>
    %1117 = vector.broadcast %1116 : f32 to vector<2x256xf32>
    %1118 = arith.mulf %848, %1117 : vector<2x256xf32>
    %1119 = arith.addf %1115, %1118 : vector<2x256xf32>
    %c157 = arith.constant 157 : index
    %1120 = memref.load %arg10[%c157] : memref<320xf32, #tpu.memory_space<smem>>
    %1121 = vector.broadcast %1120 : f32 to vector<2x256xf32>
    %1122 = arith.mulf %890, %1121 : vector<2x256xf32>
    %1123 = arith.addf %1119, %1122 : vector<2x256xf32>
    %c158 = arith.constant 158 : index
    %1124 = memref.load %arg10[%c158] : memref<320xf32, #tpu.memory_space<smem>>
    %1125 = vector.broadcast %1124 : f32 to vector<2x256xf32>
    %1126 = arith.mulf %932, %1125 : vector<2x256xf32>
    %1127 = arith.addf %1123, %1126 : vector<2x256xf32>
    %c159 = arith.constant 159 : index
    %1128 = memref.load %arg10[%c159] : memref<320xf32, #tpu.memory_space<smem>>
    %1129 = vector.broadcast %1128 : f32 to vector<2x256xf32>
    %1130 = arith.mulf %974, %1129 : vector<2x256xf32>
    %1131 = arith.addf %1127, %1130 : vector<2x256xf32>
    %c19_203 = arith.constant 19 : index
    %1132 = memref.load %arg11[%c19_203] : memref<40xf32, #tpu.memory_space<smem>>
    %1133 = vector.broadcast %1132 : f32 to vector<2x256xf32>
    %1134 = arith.addf %1131, %1133 : vector<2x256xf32>
    %cst_204 = arith.constant 0.000000e+00 : f32
    %1135 = vector.broadcast %cst_204 : f32 to vector<2x256xf32>
    %1136 = arith.cmpf ogt, %1134, %1135 : vector<2x256xf32>
    %cst_205 = arith.constant 0.000000e+00 : f32
    %1137 = vector.broadcast %cst_205 : f32 to vector<2x256xf32>
    %1138 = arith.minimumf %1134, %1137 : vector<2x256xf32>
    %1139 = math.exp %1138 : vector<2x256xf32>
    %cst_206 = arith.constant 1.000000e+00 : f32
    %1140 = vector.broadcast %cst_206 : f32 to vector<2x256xf32>
    %1141 = arith.subf %1139, %1140 : vector<2x256xf32>
    %1142 = arith.select %1136, %1134, %1141 : vector<2x256xi1>, vector<2x256xf32>
    %c160 = arith.constant 160 : index
    %1143 = memref.load %arg10[%c160] : memref<320xf32, #tpu.memory_space<smem>>
    %1144 = vector.broadcast %1143 : f32 to vector<2x256xf32>
    %1145 = arith.mulf %680, %1144 : vector<2x256xf32>
    %c161 = arith.constant 161 : index
    %1146 = memref.load %arg10[%c161] : memref<320xf32, #tpu.memory_space<smem>>
    %1147 = vector.broadcast %1146 : f32 to vector<2x256xf32>
    %1148 = arith.mulf %722, %1147 : vector<2x256xf32>
    %1149 = arith.addf %1145, %1148 : vector<2x256xf32>
    %c162 = arith.constant 162 : index
    %1150 = memref.load %arg10[%c162] : memref<320xf32, #tpu.memory_space<smem>>
    %1151 = vector.broadcast %1150 : f32 to vector<2x256xf32>
    %1152 = arith.mulf %764, %1151 : vector<2x256xf32>
    %1153 = arith.addf %1149, %1152 : vector<2x256xf32>
    %c163 = arith.constant 163 : index
    %1154 = memref.load %arg10[%c163] : memref<320xf32, #tpu.memory_space<smem>>
    %1155 = vector.broadcast %1154 : f32 to vector<2x256xf32>
    %1156 = arith.mulf %806, %1155 : vector<2x256xf32>
    %1157 = arith.addf %1153, %1156 : vector<2x256xf32>
    %c164 = arith.constant 164 : index
    %1158 = memref.load %arg10[%c164] : memref<320xf32, #tpu.memory_space<smem>>
    %1159 = vector.broadcast %1158 : f32 to vector<2x256xf32>
    %1160 = arith.mulf %848, %1159 : vector<2x256xf32>
    %1161 = arith.addf %1157, %1160 : vector<2x256xf32>
    %c165 = arith.constant 165 : index
    %1162 = memref.load %arg10[%c165] : memref<320xf32, #tpu.memory_space<smem>>
    %1163 = vector.broadcast %1162 : f32 to vector<2x256xf32>
    %1164 = arith.mulf %890, %1163 : vector<2x256xf32>
    %1165 = arith.addf %1161, %1164 : vector<2x256xf32>
    %c166 = arith.constant 166 : index
    %1166 = memref.load %arg10[%c166] : memref<320xf32, #tpu.memory_space<smem>>
    %1167 = vector.broadcast %1166 : f32 to vector<2x256xf32>
    %1168 = arith.mulf %932, %1167 : vector<2x256xf32>
    %1169 = arith.addf %1165, %1168 : vector<2x256xf32>
    %c167 = arith.constant 167 : index
    %1170 = memref.load %arg10[%c167] : memref<320xf32, #tpu.memory_space<smem>>
    %1171 = vector.broadcast %1170 : f32 to vector<2x256xf32>
    %1172 = arith.mulf %974, %1171 : vector<2x256xf32>
    %1173 = arith.addf %1169, %1172 : vector<2x256xf32>
    %c20_207 = arith.constant 20 : index
    %1174 = memref.load %arg11[%c20_207] : memref<40xf32, #tpu.memory_space<smem>>
    %1175 = vector.broadcast %1174 : f32 to vector<2x256xf32>
    %1176 = arith.addf %1173, %1175 : vector<2x256xf32>
    %cst_208 = arith.constant 0.000000e+00 : f32
    %1177 = vector.broadcast %cst_208 : f32 to vector<2x256xf32>
    %1178 = arith.cmpf ogt, %1176, %1177 : vector<2x256xf32>
    %cst_209 = arith.constant 0.000000e+00 : f32
    %1179 = vector.broadcast %cst_209 : f32 to vector<2x256xf32>
    %1180 = arith.minimumf %1176, %1179 : vector<2x256xf32>
    %1181 = math.exp %1180 : vector<2x256xf32>
    %cst_210 = arith.constant 1.000000e+00 : f32
    %1182 = vector.broadcast %cst_210 : f32 to vector<2x256xf32>
    %1183 = arith.subf %1181, %1182 : vector<2x256xf32>
    %1184 = arith.select %1178, %1176, %1183 : vector<2x256xi1>, vector<2x256xf32>
    %c168 = arith.constant 168 : index
    %1185 = memref.load %arg10[%c168] : memref<320xf32, #tpu.memory_space<smem>>
    %1186 = vector.broadcast %1185 : f32 to vector<2x256xf32>
    %1187 = arith.mulf %680, %1186 : vector<2x256xf32>
    %c169 = arith.constant 169 : index
    %1188 = memref.load %arg10[%c169] : memref<320xf32, #tpu.memory_space<smem>>
    %1189 = vector.broadcast %1188 : f32 to vector<2x256xf32>
    %1190 = arith.mulf %722, %1189 : vector<2x256xf32>
    %1191 = arith.addf %1187, %1190 : vector<2x256xf32>
    %c170 = arith.constant 170 : index
    %1192 = memref.load %arg10[%c170] : memref<320xf32, #tpu.memory_space<smem>>
    %1193 = vector.broadcast %1192 : f32 to vector<2x256xf32>
    %1194 = arith.mulf %764, %1193 : vector<2x256xf32>
    %1195 = arith.addf %1191, %1194 : vector<2x256xf32>
    %c171 = arith.constant 171 : index
    %1196 = memref.load %arg10[%c171] : memref<320xf32, #tpu.memory_space<smem>>
    %1197 = vector.broadcast %1196 : f32 to vector<2x256xf32>
    %1198 = arith.mulf %806, %1197 : vector<2x256xf32>
    %1199 = arith.addf %1195, %1198 : vector<2x256xf32>
    %c172 = arith.constant 172 : index
    %1200 = memref.load %arg10[%c172] : memref<320xf32, #tpu.memory_space<smem>>
    %1201 = vector.broadcast %1200 : f32 to vector<2x256xf32>
    %1202 = arith.mulf %848, %1201 : vector<2x256xf32>
    %1203 = arith.addf %1199, %1202 : vector<2x256xf32>
    %c173 = arith.constant 173 : index
    %1204 = memref.load %arg10[%c173] : memref<320xf32, #tpu.memory_space<smem>>
    %1205 = vector.broadcast %1204 : f32 to vector<2x256xf32>
    %1206 = arith.mulf %890, %1205 : vector<2x256xf32>
    %1207 = arith.addf %1203, %1206 : vector<2x256xf32>
    %c174 = arith.constant 174 : index
    %1208 = memref.load %arg10[%c174] : memref<320xf32, #tpu.memory_space<smem>>
    %1209 = vector.broadcast %1208 : f32 to vector<2x256xf32>
    %1210 = arith.mulf %932, %1209 : vector<2x256xf32>
    %1211 = arith.addf %1207, %1210 : vector<2x256xf32>
    %c175 = arith.constant 175 : index
    %1212 = memref.load %arg10[%c175] : memref<320xf32, #tpu.memory_space<smem>>
    %1213 = vector.broadcast %1212 : f32 to vector<2x256xf32>
    %1214 = arith.mulf %974, %1213 : vector<2x256xf32>
    %1215 = arith.addf %1211, %1214 : vector<2x256xf32>
    %c21_211 = arith.constant 21 : index
    %1216 = memref.load %arg11[%c21_211] : memref<40xf32, #tpu.memory_space<smem>>
    %1217 = vector.broadcast %1216 : f32 to vector<2x256xf32>
    %1218 = arith.addf %1215, %1217 : vector<2x256xf32>
    %cst_212 = arith.constant 0.000000e+00 : f32
    %1219 = vector.broadcast %cst_212 : f32 to vector<2x256xf32>
    %1220 = arith.cmpf ogt, %1218, %1219 : vector<2x256xf32>
    %cst_213 = arith.constant 0.000000e+00 : f32
    %1221 = vector.broadcast %cst_213 : f32 to vector<2x256xf32>
    %1222 = arith.minimumf %1218, %1221 : vector<2x256xf32>
    %1223 = math.exp %1222 : vector<2x256xf32>
    %cst_214 = arith.constant 1.000000e+00 : f32
    %1224 = vector.broadcast %cst_214 : f32 to vector<2x256xf32>
    %1225 = arith.subf %1223, %1224 : vector<2x256xf32>
    %1226 = arith.select %1220, %1218, %1225 : vector<2x256xi1>, vector<2x256xf32>
    %c176 = arith.constant 176 : index
    %1227 = memref.load %arg10[%c176] : memref<320xf32, #tpu.memory_space<smem>>
    %1228 = vector.broadcast %1227 : f32 to vector<2x256xf32>
    %1229 = arith.mulf %680, %1228 : vector<2x256xf32>
    %c177 = arith.constant 177 : index
    %1230 = memref.load %arg10[%c177] : memref<320xf32, #tpu.memory_space<smem>>
    %1231 = vector.broadcast %1230 : f32 to vector<2x256xf32>
    %1232 = arith.mulf %722, %1231 : vector<2x256xf32>
    %1233 = arith.addf %1229, %1232 : vector<2x256xf32>
    %c178 = arith.constant 178 : index
    %1234 = memref.load %arg10[%c178] : memref<320xf32, #tpu.memory_space<smem>>
    %1235 = vector.broadcast %1234 : f32 to vector<2x256xf32>
    %1236 = arith.mulf %764, %1235 : vector<2x256xf32>
    %1237 = arith.addf %1233, %1236 : vector<2x256xf32>
    %c179 = arith.constant 179 : index
    %1238 = memref.load %arg10[%c179] : memref<320xf32, #tpu.memory_space<smem>>
    %1239 = vector.broadcast %1238 : f32 to vector<2x256xf32>
    %1240 = arith.mulf %806, %1239 : vector<2x256xf32>
    %1241 = arith.addf %1237, %1240 : vector<2x256xf32>
    %c180 = arith.constant 180 : index
    %1242 = memref.load %arg10[%c180] : memref<320xf32, #tpu.memory_space<smem>>
    %1243 = vector.broadcast %1242 : f32 to vector<2x256xf32>
    %1244 = arith.mulf %848, %1243 : vector<2x256xf32>
    %1245 = arith.addf %1241, %1244 : vector<2x256xf32>
    %c181 = arith.constant 181 : index
    %1246 = memref.load %arg10[%c181] : memref<320xf32, #tpu.memory_space<smem>>
    %1247 = vector.broadcast %1246 : f32 to vector<2x256xf32>
    %1248 = arith.mulf %890, %1247 : vector<2x256xf32>
    %1249 = arith.addf %1245, %1248 : vector<2x256xf32>
    %c182 = arith.constant 182 : index
    %1250 = memref.load %arg10[%c182] : memref<320xf32, #tpu.memory_space<smem>>
    %1251 = vector.broadcast %1250 : f32 to vector<2x256xf32>
    %1252 = arith.mulf %932, %1251 : vector<2x256xf32>
    %1253 = arith.addf %1249, %1252 : vector<2x256xf32>
    %c183 = arith.constant 183 : index
    %1254 = memref.load %arg10[%c183] : memref<320xf32, #tpu.memory_space<smem>>
    %1255 = vector.broadcast %1254 : f32 to vector<2x256xf32>
    %1256 = arith.mulf %974, %1255 : vector<2x256xf32>
    %1257 = arith.addf %1253, %1256 : vector<2x256xf32>
    %c22_215 = arith.constant 22 : index
    %1258 = memref.load %arg11[%c22_215] : memref<40xf32, #tpu.memory_space<smem>>
    %1259 = vector.broadcast %1258 : f32 to vector<2x256xf32>
    %1260 = arith.addf %1257, %1259 : vector<2x256xf32>
    %cst_216 = arith.constant 0.000000e+00 : f32
    %1261 = vector.broadcast %cst_216 : f32 to vector<2x256xf32>
    %1262 = arith.cmpf ogt, %1260, %1261 : vector<2x256xf32>
    %cst_217 = arith.constant 0.000000e+00 : f32
    %1263 = vector.broadcast %cst_217 : f32 to vector<2x256xf32>
    %1264 = arith.minimumf %1260, %1263 : vector<2x256xf32>
    %1265 = math.exp %1264 : vector<2x256xf32>
    %cst_218 = arith.constant 1.000000e+00 : f32
    %1266 = vector.broadcast %cst_218 : f32 to vector<2x256xf32>
    %1267 = arith.subf %1265, %1266 : vector<2x256xf32>
    %1268 = arith.select %1262, %1260, %1267 : vector<2x256xi1>, vector<2x256xf32>
    %c184 = arith.constant 184 : index
    %1269 = memref.load %arg10[%c184] : memref<320xf32, #tpu.memory_space<smem>>
    %1270 = vector.broadcast %1269 : f32 to vector<2x256xf32>
    %1271 = arith.mulf %680, %1270 : vector<2x256xf32>
    %c185 = arith.constant 185 : index
    %1272 = memref.load %arg10[%c185] : memref<320xf32, #tpu.memory_space<smem>>
    %1273 = vector.broadcast %1272 : f32 to vector<2x256xf32>
    %1274 = arith.mulf %722, %1273 : vector<2x256xf32>
    %1275 = arith.addf %1271, %1274 : vector<2x256xf32>
    %c186 = arith.constant 186 : index
    %1276 = memref.load %arg10[%c186] : memref<320xf32, #tpu.memory_space<smem>>
    %1277 = vector.broadcast %1276 : f32 to vector<2x256xf32>
    %1278 = arith.mulf %764, %1277 : vector<2x256xf32>
    %1279 = arith.addf %1275, %1278 : vector<2x256xf32>
    %c187 = arith.constant 187 : index
    %1280 = memref.load %arg10[%c187] : memref<320xf32, #tpu.memory_space<smem>>
    %1281 = vector.broadcast %1280 : f32 to vector<2x256xf32>
    %1282 = arith.mulf %806, %1281 : vector<2x256xf32>
    %1283 = arith.addf %1279, %1282 : vector<2x256xf32>
    %c188 = arith.constant 188 : index
    %1284 = memref.load %arg10[%c188] : memref<320xf32, #tpu.memory_space<smem>>
    %1285 = vector.broadcast %1284 : f32 to vector<2x256xf32>
    %1286 = arith.mulf %848, %1285 : vector<2x256xf32>
    %1287 = arith.addf %1283, %1286 : vector<2x256xf32>
    %c189 = arith.constant 189 : index
    %1288 = memref.load %arg10[%c189] : memref<320xf32, #tpu.memory_space<smem>>
    %1289 = vector.broadcast %1288 : f32 to vector<2x256xf32>
    %1290 = arith.mulf %890, %1289 : vector<2x256xf32>
    %1291 = arith.addf %1287, %1290 : vector<2x256xf32>
    %c190 = arith.constant 190 : index
    %1292 = memref.load %arg10[%c190] : memref<320xf32, #tpu.memory_space<smem>>
    %1293 = vector.broadcast %1292 : f32 to vector<2x256xf32>
    %1294 = arith.mulf %932, %1293 : vector<2x256xf32>
    %1295 = arith.addf %1291, %1294 : vector<2x256xf32>
    %c191 = arith.constant 191 : index
    %1296 = memref.load %arg10[%c191] : memref<320xf32, #tpu.memory_space<smem>>
    %1297 = vector.broadcast %1296 : f32 to vector<2x256xf32>
    %1298 = arith.mulf %974, %1297 : vector<2x256xf32>
    %1299 = arith.addf %1295, %1298 : vector<2x256xf32>
    %c23_219 = arith.constant 23 : index
    %1300 = memref.load %arg11[%c23_219] : memref<40xf32, #tpu.memory_space<smem>>
    %1301 = vector.broadcast %1300 : f32 to vector<2x256xf32>
    %1302 = arith.addf %1299, %1301 : vector<2x256xf32>
    %cst_220 = arith.constant 0.000000e+00 : f32
    %1303 = vector.broadcast %cst_220 : f32 to vector<2x256xf32>
    %1304 = arith.cmpf ogt, %1302, %1303 : vector<2x256xf32>
    %cst_221 = arith.constant 0.000000e+00 : f32
    %1305 = vector.broadcast %cst_221 : f32 to vector<2x256xf32>
    %1306 = arith.minimumf %1302, %1305 : vector<2x256xf32>
    %1307 = math.exp %1306 : vector<2x256xf32>
    %cst_222 = arith.constant 1.000000e+00 : f32
    %1308 = vector.broadcast %cst_222 : f32 to vector<2x256xf32>
    %1309 = arith.subf %1307, %1308 : vector<2x256xf32>
    %1310 = arith.select %1304, %1302, %1309 : vector<2x256xi1>, vector<2x256xf32>
    %c192 = arith.constant 192 : index
    %1311 = memref.load %arg10[%c192] : memref<320xf32, #tpu.memory_space<smem>>
    %1312 = vector.broadcast %1311 : f32 to vector<2x256xf32>
    %1313 = arith.mulf %1016, %1312 : vector<2x256xf32>
    %c193 = arith.constant 193 : index
    %1314 = memref.load %arg10[%c193] : memref<320xf32, #tpu.memory_space<smem>>
    %1315 = vector.broadcast %1314 : f32 to vector<2x256xf32>
    %1316 = arith.mulf %1058, %1315 : vector<2x256xf32>
    %1317 = arith.addf %1313, %1316 : vector<2x256xf32>
    %c194 = arith.constant 194 : index
    %1318 = memref.load %arg10[%c194] : memref<320xf32, #tpu.memory_space<smem>>
    %1319 = vector.broadcast %1318 : f32 to vector<2x256xf32>
    %1320 = arith.mulf %1100, %1319 : vector<2x256xf32>
    %1321 = arith.addf %1317, %1320 : vector<2x256xf32>
    %c195 = arith.constant 195 : index
    %1322 = memref.load %arg10[%c195] : memref<320xf32, #tpu.memory_space<smem>>
    %1323 = vector.broadcast %1322 : f32 to vector<2x256xf32>
    %1324 = arith.mulf %1142, %1323 : vector<2x256xf32>
    %1325 = arith.addf %1321, %1324 : vector<2x256xf32>
    %c196 = arith.constant 196 : index
    %1326 = memref.load %arg10[%c196] : memref<320xf32, #tpu.memory_space<smem>>
    %1327 = vector.broadcast %1326 : f32 to vector<2x256xf32>
    %1328 = arith.mulf %1184, %1327 : vector<2x256xf32>
    %1329 = arith.addf %1325, %1328 : vector<2x256xf32>
    %c197 = arith.constant 197 : index
    %1330 = memref.load %arg10[%c197] : memref<320xf32, #tpu.memory_space<smem>>
    %1331 = vector.broadcast %1330 : f32 to vector<2x256xf32>
    %1332 = arith.mulf %1226, %1331 : vector<2x256xf32>
    %1333 = arith.addf %1329, %1332 : vector<2x256xf32>
    %c198 = arith.constant 198 : index
    %1334 = memref.load %arg10[%c198] : memref<320xf32, #tpu.memory_space<smem>>
    %1335 = vector.broadcast %1334 : f32 to vector<2x256xf32>
    %1336 = arith.mulf %1268, %1335 : vector<2x256xf32>
    %1337 = arith.addf %1333, %1336 : vector<2x256xf32>
    %c199 = arith.constant 199 : index
    %1338 = memref.load %arg10[%c199] : memref<320xf32, #tpu.memory_space<smem>>
    %1339 = vector.broadcast %1338 : f32 to vector<2x256xf32>
    %1340 = arith.mulf %1310, %1339 : vector<2x256xf32>
    %1341 = arith.addf %1337, %1340 : vector<2x256xf32>
    %c24_223 = arith.constant 24 : index
    %1342 = memref.load %arg11[%c24_223] : memref<40xf32, #tpu.memory_space<smem>>
    %1343 = vector.broadcast %1342 : f32 to vector<2x256xf32>
    %1344 = arith.addf %1341, %1343 : vector<2x256xf32>
    %cst_224 = arith.constant 0.000000e+00 : f32
    %1345 = vector.broadcast %cst_224 : f32 to vector<2x256xf32>
    %1346 = arith.cmpf ogt, %1344, %1345 : vector<2x256xf32>
    %cst_225 = arith.constant 0.000000e+00 : f32
    %1347 = vector.broadcast %cst_225 : f32 to vector<2x256xf32>
    %1348 = arith.minimumf %1344, %1347 : vector<2x256xf32>
    %1349 = math.exp %1348 : vector<2x256xf32>
    %cst_226 = arith.constant 1.000000e+00 : f32
    %1350 = vector.broadcast %cst_226 : f32 to vector<2x256xf32>
    %1351 = arith.subf %1349, %1350 : vector<2x256xf32>
    %1352 = arith.select %1346, %1344, %1351 : vector<2x256xi1>, vector<2x256xf32>
    %c200 = arith.constant 200 : index
    %1353 = memref.load %arg10[%c200] : memref<320xf32, #tpu.memory_space<smem>>
    %1354 = vector.broadcast %1353 : f32 to vector<2x256xf32>
    %1355 = arith.mulf %1016, %1354 : vector<2x256xf32>
    %c201 = arith.constant 201 : index
    %1356 = memref.load %arg10[%c201] : memref<320xf32, #tpu.memory_space<smem>>
    %1357 = vector.broadcast %1356 : f32 to vector<2x256xf32>
    %1358 = arith.mulf %1058, %1357 : vector<2x256xf32>
    %1359 = arith.addf %1355, %1358 : vector<2x256xf32>
    %c202 = arith.constant 202 : index
    %1360 = memref.load %arg10[%c202] : memref<320xf32, #tpu.memory_space<smem>>
    %1361 = vector.broadcast %1360 : f32 to vector<2x256xf32>
    %1362 = arith.mulf %1100, %1361 : vector<2x256xf32>
    %1363 = arith.addf %1359, %1362 : vector<2x256xf32>
    %c203 = arith.constant 203 : index
    %1364 = memref.load %arg10[%c203] : memref<320xf32, #tpu.memory_space<smem>>
    %1365 = vector.broadcast %1364 : f32 to vector<2x256xf32>
    %1366 = arith.mulf %1142, %1365 : vector<2x256xf32>
    %1367 = arith.addf %1363, %1366 : vector<2x256xf32>
    %c204 = arith.constant 204 : index
    %1368 = memref.load %arg10[%c204] : memref<320xf32, #tpu.memory_space<smem>>
    %1369 = vector.broadcast %1368 : f32 to vector<2x256xf32>
    %1370 = arith.mulf %1184, %1369 : vector<2x256xf32>
    %1371 = arith.addf %1367, %1370 : vector<2x256xf32>
    %c205 = arith.constant 205 : index
    %1372 = memref.load %arg10[%c205] : memref<320xf32, #tpu.memory_space<smem>>
    %1373 = vector.broadcast %1372 : f32 to vector<2x256xf32>
    %1374 = arith.mulf %1226, %1373 : vector<2x256xf32>
    %1375 = arith.addf %1371, %1374 : vector<2x256xf32>
    %c206 = arith.constant 206 : index
    %1376 = memref.load %arg10[%c206] : memref<320xf32, #tpu.memory_space<smem>>
    %1377 = vector.broadcast %1376 : f32 to vector<2x256xf32>
    %1378 = arith.mulf %1268, %1377 : vector<2x256xf32>
    %1379 = arith.addf %1375, %1378 : vector<2x256xf32>
    %c207 = arith.constant 207 : index
    %1380 = memref.load %arg10[%c207] : memref<320xf32, #tpu.memory_space<smem>>
    %1381 = vector.broadcast %1380 : f32 to vector<2x256xf32>
    %1382 = arith.mulf %1310, %1381 : vector<2x256xf32>
    %1383 = arith.addf %1379, %1382 : vector<2x256xf32>
    %c25_227 = arith.constant 25 : index
    %1384 = memref.load %arg11[%c25_227] : memref<40xf32, #tpu.memory_space<smem>>
    %1385 = vector.broadcast %1384 : f32 to vector<2x256xf32>
    %1386 = arith.addf %1383, %1385 : vector<2x256xf32>
    %cst_228 = arith.constant 0.000000e+00 : f32
    %1387 = vector.broadcast %cst_228 : f32 to vector<2x256xf32>
    %1388 = arith.cmpf ogt, %1386, %1387 : vector<2x256xf32>
    %cst_229 = arith.constant 0.000000e+00 : f32
    %1389 = vector.broadcast %cst_229 : f32 to vector<2x256xf32>
    %1390 = arith.minimumf %1386, %1389 : vector<2x256xf32>
    %1391 = math.exp %1390 : vector<2x256xf32>
    %cst_230 = arith.constant 1.000000e+00 : f32
    %1392 = vector.broadcast %cst_230 : f32 to vector<2x256xf32>
    %1393 = arith.subf %1391, %1392 : vector<2x256xf32>
    %1394 = arith.select %1388, %1386, %1393 : vector<2x256xi1>, vector<2x256xf32>
    %c208 = arith.constant 208 : index
    %1395 = memref.load %arg10[%c208] : memref<320xf32, #tpu.memory_space<smem>>
    %1396 = vector.broadcast %1395 : f32 to vector<2x256xf32>
    %1397 = arith.mulf %1016, %1396 : vector<2x256xf32>
    %c209 = arith.constant 209 : index
    %1398 = memref.load %arg10[%c209] : memref<320xf32, #tpu.memory_space<smem>>
    %1399 = vector.broadcast %1398 : f32 to vector<2x256xf32>
    %1400 = arith.mulf %1058, %1399 : vector<2x256xf32>
    %1401 = arith.addf %1397, %1400 : vector<2x256xf32>
    %c210 = arith.constant 210 : index
    %1402 = memref.load %arg10[%c210] : memref<320xf32, #tpu.memory_space<smem>>
    %1403 = vector.broadcast %1402 : f32 to vector<2x256xf32>
    %1404 = arith.mulf %1100, %1403 : vector<2x256xf32>
    %1405 = arith.addf %1401, %1404 : vector<2x256xf32>
    %c211 = arith.constant 211 : index
    %1406 = memref.load %arg10[%c211] : memref<320xf32, #tpu.memory_space<smem>>
    %1407 = vector.broadcast %1406 : f32 to vector<2x256xf32>
    %1408 = arith.mulf %1142, %1407 : vector<2x256xf32>
    %1409 = arith.addf %1405, %1408 : vector<2x256xf32>
    %c212 = arith.constant 212 : index
    %1410 = memref.load %arg10[%c212] : memref<320xf32, #tpu.memory_space<smem>>
    %1411 = vector.broadcast %1410 : f32 to vector<2x256xf32>
    %1412 = arith.mulf %1184, %1411 : vector<2x256xf32>
    %1413 = arith.addf %1409, %1412 : vector<2x256xf32>
    %c213 = arith.constant 213 : index
    %1414 = memref.load %arg10[%c213] : memref<320xf32, #tpu.memory_space<smem>>
    %1415 = vector.broadcast %1414 : f32 to vector<2x256xf32>
    %1416 = arith.mulf %1226, %1415 : vector<2x256xf32>
    %1417 = arith.addf %1413, %1416 : vector<2x256xf32>
    %c214 = arith.constant 214 : index
    %1418 = memref.load %arg10[%c214] : memref<320xf32, #tpu.memory_space<smem>>
    %1419 = vector.broadcast %1418 : f32 to vector<2x256xf32>
    %1420 = arith.mulf %1268, %1419 : vector<2x256xf32>
    %1421 = arith.addf %1417, %1420 : vector<2x256xf32>
    %c215 = arith.constant 215 : index
    %1422 = memref.load %arg10[%c215] : memref<320xf32, #tpu.memory_space<smem>>
    %1423 = vector.broadcast %1422 : f32 to vector<2x256xf32>
    %1424 = arith.mulf %1310, %1423 : vector<2x256xf32>
    %1425 = arith.addf %1421, %1424 : vector<2x256xf32>
    %c26_231 = arith.constant 26 : index
    %1426 = memref.load %arg11[%c26_231] : memref<40xf32, #tpu.memory_space<smem>>
    %1427 = vector.broadcast %1426 : f32 to vector<2x256xf32>
    %1428 = arith.addf %1425, %1427 : vector<2x256xf32>
    %cst_232 = arith.constant 0.000000e+00 : f32
    %1429 = vector.broadcast %cst_232 : f32 to vector<2x256xf32>
    %1430 = arith.cmpf ogt, %1428, %1429 : vector<2x256xf32>
    %cst_233 = arith.constant 0.000000e+00 : f32
    %1431 = vector.broadcast %cst_233 : f32 to vector<2x256xf32>
    %1432 = arith.minimumf %1428, %1431 : vector<2x256xf32>
    %1433 = math.exp %1432 : vector<2x256xf32>
    %cst_234 = arith.constant 1.000000e+00 : f32
    %1434 = vector.broadcast %cst_234 : f32 to vector<2x256xf32>
    %1435 = arith.subf %1433, %1434 : vector<2x256xf32>
    %1436 = arith.select %1430, %1428, %1435 : vector<2x256xi1>, vector<2x256xf32>
    %c216 = arith.constant 216 : index
    %1437 = memref.load %arg10[%c216] : memref<320xf32, #tpu.memory_space<smem>>
    %1438 = vector.broadcast %1437 : f32 to vector<2x256xf32>
    %1439 = arith.mulf %1016, %1438 : vector<2x256xf32>
    %c217 = arith.constant 217 : index
    %1440 = memref.load %arg10[%c217] : memref<320xf32, #tpu.memory_space<smem>>
    %1441 = vector.broadcast %1440 : f32 to vector<2x256xf32>
    %1442 = arith.mulf %1058, %1441 : vector<2x256xf32>
    %1443 = arith.addf %1439, %1442 : vector<2x256xf32>
    %c218 = arith.constant 218 : index
    %1444 = memref.load %arg10[%c218] : memref<320xf32, #tpu.memory_space<smem>>
    %1445 = vector.broadcast %1444 : f32 to vector<2x256xf32>
    %1446 = arith.mulf %1100, %1445 : vector<2x256xf32>
    %1447 = arith.addf %1443, %1446 : vector<2x256xf32>
    %c219 = arith.constant 219 : index
    %1448 = memref.load %arg10[%c219] : memref<320xf32, #tpu.memory_space<smem>>
    %1449 = vector.broadcast %1448 : f32 to vector<2x256xf32>
    %1450 = arith.mulf %1142, %1449 : vector<2x256xf32>
    %1451 = arith.addf %1447, %1450 : vector<2x256xf32>
    %c220 = arith.constant 220 : index
    %1452 = memref.load %arg10[%c220] : memref<320xf32, #tpu.memory_space<smem>>
    %1453 = vector.broadcast %1452 : f32 to vector<2x256xf32>
    %1454 = arith.mulf %1184, %1453 : vector<2x256xf32>
    %1455 = arith.addf %1451, %1454 : vector<2x256xf32>
    %c221 = arith.constant 221 : index
    %1456 = memref.load %arg10[%c221] : memref<320xf32, #tpu.memory_space<smem>>
    %1457 = vector.broadcast %1456 : f32 to vector<2x256xf32>
    %1458 = arith.mulf %1226, %1457 : vector<2x256xf32>
    %1459 = arith.addf %1455, %1458 : vector<2x256xf32>
    %c222 = arith.constant 222 : index
    %1460 = memref.load %arg10[%c222] : memref<320xf32, #tpu.memory_space<smem>>
    %1461 = vector.broadcast %1460 : f32 to vector<2x256xf32>
    %1462 = arith.mulf %1268, %1461 : vector<2x256xf32>
    %1463 = arith.addf %1459, %1462 : vector<2x256xf32>
    %c223 = arith.constant 223 : index
    %1464 = memref.load %arg10[%c223] : memref<320xf32, #tpu.memory_space<smem>>
    %1465 = vector.broadcast %1464 : f32 to vector<2x256xf32>
    %1466 = arith.mulf %1310, %1465 : vector<2x256xf32>
    %1467 = arith.addf %1463, %1466 : vector<2x256xf32>
    %c27_235 = arith.constant 27 : index
    %1468 = memref.load %arg11[%c27_235] : memref<40xf32, #tpu.memory_space<smem>>
    %1469 = vector.broadcast %1468 : f32 to vector<2x256xf32>
    %1470 = arith.addf %1467, %1469 : vector<2x256xf32>
    %cst_236 = arith.constant 0.000000e+00 : f32
    %1471 = vector.broadcast %cst_236 : f32 to vector<2x256xf32>
    %1472 = arith.cmpf ogt, %1470, %1471 : vector<2x256xf32>
    %cst_237 = arith.constant 0.000000e+00 : f32
    %1473 = vector.broadcast %cst_237 : f32 to vector<2x256xf32>
    %1474 = arith.minimumf %1470, %1473 : vector<2x256xf32>
    %1475 = math.exp %1474 : vector<2x256xf32>
    %cst_238 = arith.constant 1.000000e+00 : f32
    %1476 = vector.broadcast %cst_238 : f32 to vector<2x256xf32>
    %1477 = arith.subf %1475, %1476 : vector<2x256xf32>
    %1478 = arith.select %1472, %1470, %1477 : vector<2x256xi1>, vector<2x256xf32>
    %c224 = arith.constant 224 : index
    %1479 = memref.load %arg10[%c224] : memref<320xf32, #tpu.memory_space<smem>>
    %1480 = vector.broadcast %1479 : f32 to vector<2x256xf32>
    %1481 = arith.mulf %1016, %1480 : vector<2x256xf32>
    %c225 = arith.constant 225 : index
    %1482 = memref.load %arg10[%c225] : memref<320xf32, #tpu.memory_space<smem>>
    %1483 = vector.broadcast %1482 : f32 to vector<2x256xf32>
    %1484 = arith.mulf %1058, %1483 : vector<2x256xf32>
    %1485 = arith.addf %1481, %1484 : vector<2x256xf32>
    %c226 = arith.constant 226 : index
    %1486 = memref.load %arg10[%c226] : memref<320xf32, #tpu.memory_space<smem>>
    %1487 = vector.broadcast %1486 : f32 to vector<2x256xf32>
    %1488 = arith.mulf %1100, %1487 : vector<2x256xf32>
    %1489 = arith.addf %1485, %1488 : vector<2x256xf32>
    %c227 = arith.constant 227 : index
    %1490 = memref.load %arg10[%c227] : memref<320xf32, #tpu.memory_space<smem>>
    %1491 = vector.broadcast %1490 : f32 to vector<2x256xf32>
    %1492 = arith.mulf %1142, %1491 : vector<2x256xf32>
    %1493 = arith.addf %1489, %1492 : vector<2x256xf32>
    %c228 = arith.constant 228 : index
    %1494 = memref.load %arg10[%c228] : memref<320xf32, #tpu.memory_space<smem>>
    %1495 = vector.broadcast %1494 : f32 to vector<2x256xf32>
    %1496 = arith.mulf %1184, %1495 : vector<2x256xf32>
    %1497 = arith.addf %1493, %1496 : vector<2x256xf32>
    %c229 = arith.constant 229 : index
    %1498 = memref.load %arg10[%c229] : memref<320xf32, #tpu.memory_space<smem>>
    %1499 = vector.broadcast %1498 : f32 to vector<2x256xf32>
    %1500 = arith.mulf %1226, %1499 : vector<2x256xf32>
    %1501 = arith.addf %1497, %1500 : vector<2x256xf32>
    %c230 = arith.constant 230 : index
    %1502 = memref.load %arg10[%c230] : memref<320xf32, #tpu.memory_space<smem>>
    %1503 = vector.broadcast %1502 : f32 to vector<2x256xf32>
    %1504 = arith.mulf %1268, %1503 : vector<2x256xf32>
    %1505 = arith.addf %1501, %1504 : vector<2x256xf32>
    %c231 = arith.constant 231 : index
    %1506 = memref.load %arg10[%c231] : memref<320xf32, #tpu.memory_space<smem>>
    %1507 = vector.broadcast %1506 : f32 to vector<2x256xf32>
    %1508 = arith.mulf %1310, %1507 : vector<2x256xf32>
    %1509 = arith.addf %1505, %1508 : vector<2x256xf32>
    %c28_239 = arith.constant 28 : index
    %1510 = memref.load %arg11[%c28_239] : memref<40xf32, #tpu.memory_space<smem>>
    %1511 = vector.broadcast %1510 : f32 to vector<2x256xf32>
    %1512 = arith.addf %1509, %1511 : vector<2x256xf32>
    %cst_240 = arith.constant 0.000000e+00 : f32
    %1513 = vector.broadcast %cst_240 : f32 to vector<2x256xf32>
    %1514 = arith.cmpf ogt, %1512, %1513 : vector<2x256xf32>
    %cst_241 = arith.constant 0.000000e+00 : f32
    %1515 = vector.broadcast %cst_241 : f32 to vector<2x256xf32>
    %1516 = arith.minimumf %1512, %1515 : vector<2x256xf32>
    %1517 = math.exp %1516 : vector<2x256xf32>
    %cst_242 = arith.constant 1.000000e+00 : f32
    %1518 = vector.broadcast %cst_242 : f32 to vector<2x256xf32>
    %1519 = arith.subf %1517, %1518 : vector<2x256xf32>
    %1520 = arith.select %1514, %1512, %1519 : vector<2x256xi1>, vector<2x256xf32>
    %c232 = arith.constant 232 : index
    %1521 = memref.load %arg10[%c232] : memref<320xf32, #tpu.memory_space<smem>>
    %1522 = vector.broadcast %1521 : f32 to vector<2x256xf32>
    %1523 = arith.mulf %1016, %1522 : vector<2x256xf32>
    %c233 = arith.constant 233 : index
    %1524 = memref.load %arg10[%c233] : memref<320xf32, #tpu.memory_space<smem>>
    %1525 = vector.broadcast %1524 : f32 to vector<2x256xf32>
    %1526 = arith.mulf %1058, %1525 : vector<2x256xf32>
    %1527 = arith.addf %1523, %1526 : vector<2x256xf32>
    %c234 = arith.constant 234 : index
    %1528 = memref.load %arg10[%c234] : memref<320xf32, #tpu.memory_space<smem>>
    %1529 = vector.broadcast %1528 : f32 to vector<2x256xf32>
    %1530 = arith.mulf %1100, %1529 : vector<2x256xf32>
    %1531 = arith.addf %1527, %1530 : vector<2x256xf32>
    %c235 = arith.constant 235 : index
    %1532 = memref.load %arg10[%c235] : memref<320xf32, #tpu.memory_space<smem>>
    %1533 = vector.broadcast %1532 : f32 to vector<2x256xf32>
    %1534 = arith.mulf %1142, %1533 : vector<2x256xf32>
    %1535 = arith.addf %1531, %1534 : vector<2x256xf32>
    %c236 = arith.constant 236 : index
    %1536 = memref.load %arg10[%c236] : memref<320xf32, #tpu.memory_space<smem>>
    %1537 = vector.broadcast %1536 : f32 to vector<2x256xf32>
    %1538 = arith.mulf %1184, %1537 : vector<2x256xf32>
    %1539 = arith.addf %1535, %1538 : vector<2x256xf32>
    %c237 = arith.constant 237 : index
    %1540 = memref.load %arg10[%c237] : memref<320xf32, #tpu.memory_space<smem>>
    %1541 = vector.broadcast %1540 : f32 to vector<2x256xf32>
    %1542 = arith.mulf %1226, %1541 : vector<2x256xf32>
    %1543 = arith.addf %1539, %1542 : vector<2x256xf32>
    %c238 = arith.constant 238 : index
    %1544 = memref.load %arg10[%c238] : memref<320xf32, #tpu.memory_space<smem>>
    %1545 = vector.broadcast %1544 : f32 to vector<2x256xf32>
    %1546 = arith.mulf %1268, %1545 : vector<2x256xf32>
    %1547 = arith.addf %1543, %1546 : vector<2x256xf32>
    %c239 = arith.constant 239 : index
    %1548 = memref.load %arg10[%c239] : memref<320xf32, #tpu.memory_space<smem>>
    %1549 = vector.broadcast %1548 : f32 to vector<2x256xf32>
    %1550 = arith.mulf %1310, %1549 : vector<2x256xf32>
    %1551 = arith.addf %1547, %1550 : vector<2x256xf32>
    %c29_243 = arith.constant 29 : index
    %1552 = memref.load %arg11[%c29_243] : memref<40xf32, #tpu.memory_space<smem>>
    %1553 = vector.broadcast %1552 : f32 to vector<2x256xf32>
    %1554 = arith.addf %1551, %1553 : vector<2x256xf32>
    %cst_244 = arith.constant 0.000000e+00 : f32
    %1555 = vector.broadcast %cst_244 : f32 to vector<2x256xf32>
    %1556 = arith.cmpf ogt, %1554, %1555 : vector<2x256xf32>
    %cst_245 = arith.constant 0.000000e+00 : f32
    %1557 = vector.broadcast %cst_245 : f32 to vector<2x256xf32>
    %1558 = arith.minimumf %1554, %1557 : vector<2x256xf32>
    %1559 = math.exp %1558 : vector<2x256xf32>
    %cst_246 = arith.constant 1.000000e+00 : f32
    %1560 = vector.broadcast %cst_246 : f32 to vector<2x256xf32>
    %1561 = arith.subf %1559, %1560 : vector<2x256xf32>
    %1562 = arith.select %1556, %1554, %1561 : vector<2x256xi1>, vector<2x256xf32>
    %c240 = arith.constant 240 : index
    %1563 = memref.load %arg10[%c240] : memref<320xf32, #tpu.memory_space<smem>>
    %1564 = vector.broadcast %1563 : f32 to vector<2x256xf32>
    %1565 = arith.mulf %1016, %1564 : vector<2x256xf32>
    %c241 = arith.constant 241 : index
    %1566 = memref.load %arg10[%c241] : memref<320xf32, #tpu.memory_space<smem>>
    %1567 = vector.broadcast %1566 : f32 to vector<2x256xf32>
    %1568 = arith.mulf %1058, %1567 : vector<2x256xf32>
    %1569 = arith.addf %1565, %1568 : vector<2x256xf32>
    %c242 = arith.constant 242 : index
    %1570 = memref.load %arg10[%c242] : memref<320xf32, #tpu.memory_space<smem>>
    %1571 = vector.broadcast %1570 : f32 to vector<2x256xf32>
    %1572 = arith.mulf %1100, %1571 : vector<2x256xf32>
    %1573 = arith.addf %1569, %1572 : vector<2x256xf32>
    %c243 = arith.constant 243 : index
    %1574 = memref.load %arg10[%c243] : memref<320xf32, #tpu.memory_space<smem>>
    %1575 = vector.broadcast %1574 : f32 to vector<2x256xf32>
    %1576 = arith.mulf %1142, %1575 : vector<2x256xf32>
    %1577 = arith.addf %1573, %1576 : vector<2x256xf32>
    %c244 = arith.constant 244 : index
    %1578 = memref.load %arg10[%c244] : memref<320xf32, #tpu.memory_space<smem>>
    %1579 = vector.broadcast %1578 : f32 to vector<2x256xf32>
    %1580 = arith.mulf %1184, %1579 : vector<2x256xf32>
    %1581 = arith.addf %1577, %1580 : vector<2x256xf32>
    %c245 = arith.constant 245 : index
    %1582 = memref.load %arg10[%c245] : memref<320xf32, #tpu.memory_space<smem>>
    %1583 = vector.broadcast %1582 : f32 to vector<2x256xf32>
    %1584 = arith.mulf %1226, %1583 : vector<2x256xf32>
    %1585 = arith.addf %1581, %1584 : vector<2x256xf32>
    %c246 = arith.constant 246 : index
    %1586 = memref.load %arg10[%c246] : memref<320xf32, #tpu.memory_space<smem>>
    %1587 = vector.broadcast %1586 : f32 to vector<2x256xf32>
    %1588 = arith.mulf %1268, %1587 : vector<2x256xf32>
    %1589 = arith.addf %1585, %1588 : vector<2x256xf32>
    %c247 = arith.constant 247 : index
    %1590 = memref.load %arg10[%c247] : memref<320xf32, #tpu.memory_space<smem>>
    %1591 = vector.broadcast %1590 : f32 to vector<2x256xf32>
    %1592 = arith.mulf %1310, %1591 : vector<2x256xf32>
    %1593 = arith.addf %1589, %1592 : vector<2x256xf32>
    %c30_247 = arith.constant 30 : index
    %1594 = memref.load %arg11[%c30_247] : memref<40xf32, #tpu.memory_space<smem>>
    %1595 = vector.broadcast %1594 : f32 to vector<2x256xf32>
    %1596 = arith.addf %1593, %1595 : vector<2x256xf32>
    %cst_248 = arith.constant 0.000000e+00 : f32
    %1597 = vector.broadcast %cst_248 : f32 to vector<2x256xf32>
    %1598 = arith.cmpf ogt, %1596, %1597 : vector<2x256xf32>
    %cst_249 = arith.constant 0.000000e+00 : f32
    %1599 = vector.broadcast %cst_249 : f32 to vector<2x256xf32>
    %1600 = arith.minimumf %1596, %1599 : vector<2x256xf32>
    %1601 = math.exp %1600 : vector<2x256xf32>
    %cst_250 = arith.constant 1.000000e+00 : f32
    %1602 = vector.broadcast %cst_250 : f32 to vector<2x256xf32>
    %1603 = arith.subf %1601, %1602 : vector<2x256xf32>
    %1604 = arith.select %1598, %1596, %1603 : vector<2x256xi1>, vector<2x256xf32>
    %c248 = arith.constant 248 : index
    %1605 = memref.load %arg10[%c248] : memref<320xf32, #tpu.memory_space<smem>>
    %1606 = vector.broadcast %1605 : f32 to vector<2x256xf32>
    %1607 = arith.mulf %1016, %1606 : vector<2x256xf32>
    %c249 = arith.constant 249 : index
    %1608 = memref.load %arg10[%c249] : memref<320xf32, #tpu.memory_space<smem>>
    %1609 = vector.broadcast %1608 : f32 to vector<2x256xf32>
    %1610 = arith.mulf %1058, %1609 : vector<2x256xf32>
    %1611 = arith.addf %1607, %1610 : vector<2x256xf32>
    %c250 = arith.constant 250 : index
    %1612 = memref.load %arg10[%c250] : memref<320xf32, #tpu.memory_space<smem>>
    %1613 = vector.broadcast %1612 : f32 to vector<2x256xf32>
    %1614 = arith.mulf %1100, %1613 : vector<2x256xf32>
    %1615 = arith.addf %1611, %1614 : vector<2x256xf32>
    %c251 = arith.constant 251 : index
    %1616 = memref.load %arg10[%c251] : memref<320xf32, #tpu.memory_space<smem>>
    %1617 = vector.broadcast %1616 : f32 to vector<2x256xf32>
    %1618 = arith.mulf %1142, %1617 : vector<2x256xf32>
    %1619 = arith.addf %1615, %1618 : vector<2x256xf32>
    %c252 = arith.constant 252 : index
    %1620 = memref.load %arg10[%c252] : memref<320xf32, #tpu.memory_space<smem>>
    %1621 = vector.broadcast %1620 : f32 to vector<2x256xf32>
    %1622 = arith.mulf %1184, %1621 : vector<2x256xf32>
    %1623 = arith.addf %1619, %1622 : vector<2x256xf32>
    %c253 = arith.constant 253 : index
    %1624 = memref.load %arg10[%c253] : memref<320xf32, #tpu.memory_space<smem>>
    %1625 = vector.broadcast %1624 : f32 to vector<2x256xf32>
    %1626 = arith.mulf %1226, %1625 : vector<2x256xf32>
    %1627 = arith.addf %1623, %1626 : vector<2x256xf32>
    %c254 = arith.constant 254 : index
    %1628 = memref.load %arg10[%c254] : memref<320xf32, #tpu.memory_space<smem>>
    %1629 = vector.broadcast %1628 : f32 to vector<2x256xf32>
    %1630 = arith.mulf %1268, %1629 : vector<2x256xf32>
    %1631 = arith.addf %1627, %1630 : vector<2x256xf32>
    %c255 = arith.constant 255 : index
    %1632 = memref.load %arg10[%c255] : memref<320xf32, #tpu.memory_space<smem>>
    %1633 = vector.broadcast %1632 : f32 to vector<2x256xf32>
    %1634 = arith.mulf %1310, %1633 : vector<2x256xf32>
    %1635 = arith.addf %1631, %1634 : vector<2x256xf32>
    %c31_251 = arith.constant 31 : index
    %1636 = memref.load %arg11[%c31_251] : memref<40xf32, #tpu.memory_space<smem>>
    %1637 = vector.broadcast %1636 : f32 to vector<2x256xf32>
    %1638 = arith.addf %1635, %1637 : vector<2x256xf32>
    %cst_252 = arith.constant 0.000000e+00 : f32
    %1639 = vector.broadcast %cst_252 : f32 to vector<2x256xf32>
    %1640 = arith.cmpf ogt, %1638, %1639 : vector<2x256xf32>
    %cst_253 = arith.constant 0.000000e+00 : f32
    %1641 = vector.broadcast %cst_253 : f32 to vector<2x256xf32>
    %1642 = arith.minimumf %1638, %1641 : vector<2x256xf32>
    %1643 = math.exp %1642 : vector<2x256xf32>
    %cst_254 = arith.constant 1.000000e+00 : f32
    %1644 = vector.broadcast %cst_254 : f32 to vector<2x256xf32>
    %1645 = arith.subf %1643, %1644 : vector<2x256xf32>
    %1646 = arith.select %1640, %1638, %1645 : vector<2x256xi1>, vector<2x256xf32>
    %c256 = arith.constant 256 : index
    %1647 = memref.load %arg10[%c256] : memref<320xf32, #tpu.memory_space<smem>>
    %1648 = vector.broadcast %1647 : f32 to vector<2x256xf32>
    %1649 = arith.mulf %1352, %1648 : vector<2x256xf32>
    %c257 = arith.constant 257 : index
    %1650 = memref.load %arg10[%c257] : memref<320xf32, #tpu.memory_space<smem>>
    %1651 = vector.broadcast %1650 : f32 to vector<2x256xf32>
    %1652 = arith.mulf %1394, %1651 : vector<2x256xf32>
    %1653 = arith.addf %1649, %1652 : vector<2x256xf32>
    %c258 = arith.constant 258 : index
    %1654 = memref.load %arg10[%c258] : memref<320xf32, #tpu.memory_space<smem>>
    %1655 = vector.broadcast %1654 : f32 to vector<2x256xf32>
    %1656 = arith.mulf %1436, %1655 : vector<2x256xf32>
    %1657 = arith.addf %1653, %1656 : vector<2x256xf32>
    %c259 = arith.constant 259 : index
    %1658 = memref.load %arg10[%c259] : memref<320xf32, #tpu.memory_space<smem>>
    %1659 = vector.broadcast %1658 : f32 to vector<2x256xf32>
    %1660 = arith.mulf %1478, %1659 : vector<2x256xf32>
    %1661 = arith.addf %1657, %1660 : vector<2x256xf32>
    %c260 = arith.constant 260 : index
    %1662 = memref.load %arg10[%c260] : memref<320xf32, #tpu.memory_space<smem>>
    %1663 = vector.broadcast %1662 : f32 to vector<2x256xf32>
    %1664 = arith.mulf %1520, %1663 : vector<2x256xf32>
    %1665 = arith.addf %1661, %1664 : vector<2x256xf32>
    %c261 = arith.constant 261 : index
    %1666 = memref.load %arg10[%c261] : memref<320xf32, #tpu.memory_space<smem>>
    %1667 = vector.broadcast %1666 : f32 to vector<2x256xf32>
    %1668 = arith.mulf %1562, %1667 : vector<2x256xf32>
    %1669 = arith.addf %1665, %1668 : vector<2x256xf32>
    %c262 = arith.constant 262 : index
    %1670 = memref.load %arg10[%c262] : memref<320xf32, #tpu.memory_space<smem>>
    %1671 = vector.broadcast %1670 : f32 to vector<2x256xf32>
    %1672 = arith.mulf %1604, %1671 : vector<2x256xf32>
    %1673 = arith.addf %1669, %1672 : vector<2x256xf32>
    %c263 = arith.constant 263 : index
    %1674 = memref.load %arg10[%c263] : memref<320xf32, #tpu.memory_space<smem>>
    %1675 = vector.broadcast %1674 : f32 to vector<2x256xf32>
    %1676 = arith.mulf %1646, %1675 : vector<2x256xf32>
    %1677 = arith.addf %1673, %1676 : vector<2x256xf32>
    %c32_255 = arith.constant 32 : index
    %1678 = memref.load %arg11[%c32_255] : memref<40xf32, #tpu.memory_space<smem>>
    %1679 = vector.broadcast %1678 : f32 to vector<2x256xf32>
    %1680 = arith.addf %1677, %1679 : vector<2x256xf32>
    %cst_256 = arith.constant 0.000000e+00 : f32
    %1681 = vector.broadcast %cst_256 : f32 to vector<2x256xf32>
    %1682 = arith.cmpf ogt, %1680, %1681 : vector<2x256xf32>
    %cst_257 = arith.constant 0.000000e+00 : f32
    %1683 = vector.broadcast %cst_257 : f32 to vector<2x256xf32>
    %1684 = arith.minimumf %1680, %1683 : vector<2x256xf32>
    %1685 = math.exp %1684 : vector<2x256xf32>
    %cst_258 = arith.constant 1.000000e+00 : f32
    %1686 = vector.broadcast %cst_258 : f32 to vector<2x256xf32>
    %1687 = arith.subf %1685, %1686 : vector<2x256xf32>
    %1688 = arith.select %1682, %1680, %1687 : vector<2x256xi1>, vector<2x256xf32>
    %c264 = arith.constant 264 : index
    %1689 = memref.load %arg10[%c264] : memref<320xf32, #tpu.memory_space<smem>>
    %1690 = vector.broadcast %1689 : f32 to vector<2x256xf32>
    %1691 = arith.mulf %1352, %1690 : vector<2x256xf32>
    %c265 = arith.constant 265 : index
    %1692 = memref.load %arg10[%c265] : memref<320xf32, #tpu.memory_space<smem>>
    %1693 = vector.broadcast %1692 : f32 to vector<2x256xf32>
    %1694 = arith.mulf %1394, %1693 : vector<2x256xf32>
    %1695 = arith.addf %1691, %1694 : vector<2x256xf32>
    %c266 = arith.constant 266 : index
    %1696 = memref.load %arg10[%c266] : memref<320xf32, #tpu.memory_space<smem>>
    %1697 = vector.broadcast %1696 : f32 to vector<2x256xf32>
    %1698 = arith.mulf %1436, %1697 : vector<2x256xf32>
    %1699 = arith.addf %1695, %1698 : vector<2x256xf32>
    %c267 = arith.constant 267 : index
    %1700 = memref.load %arg10[%c267] : memref<320xf32, #tpu.memory_space<smem>>
    %1701 = vector.broadcast %1700 : f32 to vector<2x256xf32>
    %1702 = arith.mulf %1478, %1701 : vector<2x256xf32>
    %1703 = arith.addf %1699, %1702 : vector<2x256xf32>
    %c268 = arith.constant 268 : index
    %1704 = memref.load %arg10[%c268] : memref<320xf32, #tpu.memory_space<smem>>
    %1705 = vector.broadcast %1704 : f32 to vector<2x256xf32>
    %1706 = arith.mulf %1520, %1705 : vector<2x256xf32>
    %1707 = arith.addf %1703, %1706 : vector<2x256xf32>
    %c269 = arith.constant 269 : index
    %1708 = memref.load %arg10[%c269] : memref<320xf32, #tpu.memory_space<smem>>
    %1709 = vector.broadcast %1708 : f32 to vector<2x256xf32>
    %1710 = arith.mulf %1562, %1709 : vector<2x256xf32>
    %1711 = arith.addf %1707, %1710 : vector<2x256xf32>
    %c270 = arith.constant 270 : index
    %1712 = memref.load %arg10[%c270] : memref<320xf32, #tpu.memory_space<smem>>
    %1713 = vector.broadcast %1712 : f32 to vector<2x256xf32>
    %1714 = arith.mulf %1604, %1713 : vector<2x256xf32>
    %1715 = arith.addf %1711, %1714 : vector<2x256xf32>
    %c271 = arith.constant 271 : index
    %1716 = memref.load %arg10[%c271] : memref<320xf32, #tpu.memory_space<smem>>
    %1717 = vector.broadcast %1716 : f32 to vector<2x256xf32>
    %1718 = arith.mulf %1646, %1717 : vector<2x256xf32>
    %1719 = arith.addf %1715, %1718 : vector<2x256xf32>
    %c33_259 = arith.constant 33 : index
    %1720 = memref.load %arg11[%c33_259] : memref<40xf32, #tpu.memory_space<smem>>
    %1721 = vector.broadcast %1720 : f32 to vector<2x256xf32>
    %1722 = arith.addf %1719, %1721 : vector<2x256xf32>
    %cst_260 = arith.constant 0.000000e+00 : f32
    %1723 = vector.broadcast %cst_260 : f32 to vector<2x256xf32>
    %1724 = arith.cmpf ogt, %1722, %1723 : vector<2x256xf32>
    %cst_261 = arith.constant 0.000000e+00 : f32
    %1725 = vector.broadcast %cst_261 : f32 to vector<2x256xf32>
    %1726 = arith.minimumf %1722, %1725 : vector<2x256xf32>
    %1727 = math.exp %1726 : vector<2x256xf32>
    %cst_262 = arith.constant 1.000000e+00 : f32
    %1728 = vector.broadcast %cst_262 : f32 to vector<2x256xf32>
    %1729 = arith.subf %1727, %1728 : vector<2x256xf32>
    %1730 = arith.select %1724, %1722, %1729 : vector<2x256xi1>, vector<2x256xf32>
    %c272 = arith.constant 272 : index
    %1731 = memref.load %arg10[%c272] : memref<320xf32, #tpu.memory_space<smem>>
    %1732 = vector.broadcast %1731 : f32 to vector<2x256xf32>
    %1733 = arith.mulf %1352, %1732 : vector<2x256xf32>
    %c273 = arith.constant 273 : index
    %1734 = memref.load %arg10[%c273] : memref<320xf32, #tpu.memory_space<smem>>
    %1735 = vector.broadcast %1734 : f32 to vector<2x256xf32>
    %1736 = arith.mulf %1394, %1735 : vector<2x256xf32>
    %1737 = arith.addf %1733, %1736 : vector<2x256xf32>
    %c274 = arith.constant 274 : index
    %1738 = memref.load %arg10[%c274] : memref<320xf32, #tpu.memory_space<smem>>
    %1739 = vector.broadcast %1738 : f32 to vector<2x256xf32>
    %1740 = arith.mulf %1436, %1739 : vector<2x256xf32>
    %1741 = arith.addf %1737, %1740 : vector<2x256xf32>
    %c275 = arith.constant 275 : index
    %1742 = memref.load %arg10[%c275] : memref<320xf32, #tpu.memory_space<smem>>
    %1743 = vector.broadcast %1742 : f32 to vector<2x256xf32>
    %1744 = arith.mulf %1478, %1743 : vector<2x256xf32>
    %1745 = arith.addf %1741, %1744 : vector<2x256xf32>
    %c276 = arith.constant 276 : index
    %1746 = memref.load %arg10[%c276] : memref<320xf32, #tpu.memory_space<smem>>
    %1747 = vector.broadcast %1746 : f32 to vector<2x256xf32>
    %1748 = arith.mulf %1520, %1747 : vector<2x256xf32>
    %1749 = arith.addf %1745, %1748 : vector<2x256xf32>
    %c277 = arith.constant 277 : index
    %1750 = memref.load %arg10[%c277] : memref<320xf32, #tpu.memory_space<smem>>
    %1751 = vector.broadcast %1750 : f32 to vector<2x256xf32>
    %1752 = arith.mulf %1562, %1751 : vector<2x256xf32>
    %1753 = arith.addf %1749, %1752 : vector<2x256xf32>
    %c278 = arith.constant 278 : index
    %1754 = memref.load %arg10[%c278] : memref<320xf32, #tpu.memory_space<smem>>
    %1755 = vector.broadcast %1754 : f32 to vector<2x256xf32>
    %1756 = arith.mulf %1604, %1755 : vector<2x256xf32>
    %1757 = arith.addf %1753, %1756 : vector<2x256xf32>
    %c279 = arith.constant 279 : index
    %1758 = memref.load %arg10[%c279] : memref<320xf32, #tpu.memory_space<smem>>
    %1759 = vector.broadcast %1758 : f32 to vector<2x256xf32>
    %1760 = arith.mulf %1646, %1759 : vector<2x256xf32>
    %1761 = arith.addf %1757, %1760 : vector<2x256xf32>
    %c34_263 = arith.constant 34 : index
    %1762 = memref.load %arg11[%c34_263] : memref<40xf32, #tpu.memory_space<smem>>
    %1763 = vector.broadcast %1762 : f32 to vector<2x256xf32>
    %1764 = arith.addf %1761, %1763 : vector<2x256xf32>
    %cst_264 = arith.constant 0.000000e+00 : f32
    %1765 = vector.broadcast %cst_264 : f32 to vector<2x256xf32>
    %1766 = arith.cmpf ogt, %1764, %1765 : vector<2x256xf32>
    %cst_265 = arith.constant 0.000000e+00 : f32
    %1767 = vector.broadcast %cst_265 : f32 to vector<2x256xf32>
    %1768 = arith.minimumf %1764, %1767 : vector<2x256xf32>
    %1769 = math.exp %1768 : vector<2x256xf32>
    %cst_266 = arith.constant 1.000000e+00 : f32
    %1770 = vector.broadcast %cst_266 : f32 to vector<2x256xf32>
    %1771 = arith.subf %1769, %1770 : vector<2x256xf32>
    %1772 = arith.select %1766, %1764, %1771 : vector<2x256xi1>, vector<2x256xf32>
    %c280 = arith.constant 280 : index
    %1773 = memref.load %arg10[%c280] : memref<320xf32, #tpu.memory_space<smem>>
    %1774 = vector.broadcast %1773 : f32 to vector<2x256xf32>
    %1775 = arith.mulf %1352, %1774 : vector<2x256xf32>
    %c281 = arith.constant 281 : index
    %1776 = memref.load %arg10[%c281] : memref<320xf32, #tpu.memory_space<smem>>
    %1777 = vector.broadcast %1776 : f32 to vector<2x256xf32>
    %1778 = arith.mulf %1394, %1777 : vector<2x256xf32>
    %1779 = arith.addf %1775, %1778 : vector<2x256xf32>
    %c282 = arith.constant 282 : index
    %1780 = memref.load %arg10[%c282] : memref<320xf32, #tpu.memory_space<smem>>
    %1781 = vector.broadcast %1780 : f32 to vector<2x256xf32>
    %1782 = arith.mulf %1436, %1781 : vector<2x256xf32>
    %1783 = arith.addf %1779, %1782 : vector<2x256xf32>
    %c283 = arith.constant 283 : index
    %1784 = memref.load %arg10[%c283] : memref<320xf32, #tpu.memory_space<smem>>
    %1785 = vector.broadcast %1784 : f32 to vector<2x256xf32>
    %1786 = arith.mulf %1478, %1785 : vector<2x256xf32>
    %1787 = arith.addf %1783, %1786 : vector<2x256xf32>
    %c284 = arith.constant 284 : index
    %1788 = memref.load %arg10[%c284] : memref<320xf32, #tpu.memory_space<smem>>
    %1789 = vector.broadcast %1788 : f32 to vector<2x256xf32>
    %1790 = arith.mulf %1520, %1789 : vector<2x256xf32>
    %1791 = arith.addf %1787, %1790 : vector<2x256xf32>
    %c285 = arith.constant 285 : index
    %1792 = memref.load %arg10[%c285] : memref<320xf32, #tpu.memory_space<smem>>
    %1793 = vector.broadcast %1792 : f32 to vector<2x256xf32>
    %1794 = arith.mulf %1562, %1793 : vector<2x256xf32>
    %1795 = arith.addf %1791, %1794 : vector<2x256xf32>
    %c286 = arith.constant 286 : index
    %1796 = memref.load %arg10[%c286] : memref<320xf32, #tpu.memory_space<smem>>
    %1797 = vector.broadcast %1796 : f32 to vector<2x256xf32>
    %1798 = arith.mulf %1604, %1797 : vector<2x256xf32>
    %1799 = arith.addf %1795, %1798 : vector<2x256xf32>
    %c287 = arith.constant 287 : index
    %1800 = memref.load %arg10[%c287] : memref<320xf32, #tpu.memory_space<smem>>
    %1801 = vector.broadcast %1800 : f32 to vector<2x256xf32>
    %1802 = arith.mulf %1646, %1801 : vector<2x256xf32>
    %1803 = arith.addf %1799, %1802 : vector<2x256xf32>
    %c35_267 = arith.constant 35 : index
    %1804 = memref.load %arg11[%c35_267] : memref<40xf32, #tpu.memory_space<smem>>
    %1805 = vector.broadcast %1804 : f32 to vector<2x256xf32>
    %1806 = arith.addf %1803, %1805 : vector<2x256xf32>
    %cst_268 = arith.constant 0.000000e+00 : f32
    %1807 = vector.broadcast %cst_268 : f32 to vector<2x256xf32>
    %1808 = arith.cmpf ogt, %1806, %1807 : vector<2x256xf32>
    %cst_269 = arith.constant 0.000000e+00 : f32
    %1809 = vector.broadcast %cst_269 : f32 to vector<2x256xf32>
    %1810 = arith.minimumf %1806, %1809 : vector<2x256xf32>
    %1811 = math.exp %1810 : vector<2x256xf32>
    %cst_270 = arith.constant 1.000000e+00 : f32
    %1812 = vector.broadcast %cst_270 : f32 to vector<2x256xf32>
    %1813 = arith.subf %1811, %1812 : vector<2x256xf32>
    %1814 = arith.select %1808, %1806, %1813 : vector<2x256xi1>, vector<2x256xf32>
    %c288 = arith.constant 288 : index
    %1815 = memref.load %arg10[%c288] : memref<320xf32, #tpu.memory_space<smem>>
    %1816 = vector.broadcast %1815 : f32 to vector<2x256xf32>
    %1817 = arith.mulf %1352, %1816 : vector<2x256xf32>
    %c289 = arith.constant 289 : index
    %1818 = memref.load %arg10[%c289] : memref<320xf32, #tpu.memory_space<smem>>
    %1819 = vector.broadcast %1818 : f32 to vector<2x256xf32>
    %1820 = arith.mulf %1394, %1819 : vector<2x256xf32>
    %1821 = arith.addf %1817, %1820 : vector<2x256xf32>
    %c290 = arith.constant 290 : index
    %1822 = memref.load %arg10[%c290] : memref<320xf32, #tpu.memory_space<smem>>
    %1823 = vector.broadcast %1822 : f32 to vector<2x256xf32>
    %1824 = arith.mulf %1436, %1823 : vector<2x256xf32>
    %1825 = arith.addf %1821, %1824 : vector<2x256xf32>
    %c291 = arith.constant 291 : index
    %1826 = memref.load %arg10[%c291] : memref<320xf32, #tpu.memory_space<smem>>
    %1827 = vector.broadcast %1826 : f32 to vector<2x256xf32>
    %1828 = arith.mulf %1478, %1827 : vector<2x256xf32>
    %1829 = arith.addf %1825, %1828 : vector<2x256xf32>
    %c292 = arith.constant 292 : index
    %1830 = memref.load %arg10[%c292] : memref<320xf32, #tpu.memory_space<smem>>
    %1831 = vector.broadcast %1830 : f32 to vector<2x256xf32>
    %1832 = arith.mulf %1520, %1831 : vector<2x256xf32>
    %1833 = arith.addf %1829, %1832 : vector<2x256xf32>
    %c293 = arith.constant 293 : index
    %1834 = memref.load %arg10[%c293] : memref<320xf32, #tpu.memory_space<smem>>
    %1835 = vector.broadcast %1834 : f32 to vector<2x256xf32>
    %1836 = arith.mulf %1562, %1835 : vector<2x256xf32>
    %1837 = arith.addf %1833, %1836 : vector<2x256xf32>
    %c294 = arith.constant 294 : index
    %1838 = memref.load %arg10[%c294] : memref<320xf32, #tpu.memory_space<smem>>
    %1839 = vector.broadcast %1838 : f32 to vector<2x256xf32>
    %1840 = arith.mulf %1604, %1839 : vector<2x256xf32>
    %1841 = arith.addf %1837, %1840 : vector<2x256xf32>
    %c295 = arith.constant 295 : index
    %1842 = memref.load %arg10[%c295] : memref<320xf32, #tpu.memory_space<smem>>
    %1843 = vector.broadcast %1842 : f32 to vector<2x256xf32>
    %1844 = arith.mulf %1646, %1843 : vector<2x256xf32>
    %1845 = arith.addf %1841, %1844 : vector<2x256xf32>
    %c36_271 = arith.constant 36 : index
    %1846 = memref.load %arg11[%c36_271] : memref<40xf32, #tpu.memory_space<smem>>
    %1847 = vector.broadcast %1846 : f32 to vector<2x256xf32>
    %1848 = arith.addf %1845, %1847 : vector<2x256xf32>
    %cst_272 = arith.constant 0.000000e+00 : f32
    %1849 = vector.broadcast %cst_272 : f32 to vector<2x256xf32>
    %1850 = arith.cmpf ogt, %1848, %1849 : vector<2x256xf32>
    %cst_273 = arith.constant 0.000000e+00 : f32
    %1851 = vector.broadcast %cst_273 : f32 to vector<2x256xf32>
    %1852 = arith.minimumf %1848, %1851 : vector<2x256xf32>
    %1853 = math.exp %1852 : vector<2x256xf32>
    %cst_274 = arith.constant 1.000000e+00 : f32
    %1854 = vector.broadcast %cst_274 : f32 to vector<2x256xf32>
    %1855 = arith.subf %1853, %1854 : vector<2x256xf32>
    %1856 = arith.select %1850, %1848, %1855 : vector<2x256xi1>, vector<2x256xf32>
    %c296 = arith.constant 296 : index
    %1857 = memref.load %arg10[%c296] : memref<320xf32, #tpu.memory_space<smem>>
    %1858 = vector.broadcast %1857 : f32 to vector<2x256xf32>
    %1859 = arith.mulf %1352, %1858 : vector<2x256xf32>
    %c297 = arith.constant 297 : index
    %1860 = memref.load %arg10[%c297] : memref<320xf32, #tpu.memory_space<smem>>
    %1861 = vector.broadcast %1860 : f32 to vector<2x256xf32>
    %1862 = arith.mulf %1394, %1861 : vector<2x256xf32>
    %1863 = arith.addf %1859, %1862 : vector<2x256xf32>
    %c298 = arith.constant 298 : index
    %1864 = memref.load %arg10[%c298] : memref<320xf32, #tpu.memory_space<smem>>
    %1865 = vector.broadcast %1864 : f32 to vector<2x256xf32>
    %1866 = arith.mulf %1436, %1865 : vector<2x256xf32>
    %1867 = arith.addf %1863, %1866 : vector<2x256xf32>
    %c299 = arith.constant 299 : index
    %1868 = memref.load %arg10[%c299] : memref<320xf32, #tpu.memory_space<smem>>
    %1869 = vector.broadcast %1868 : f32 to vector<2x256xf32>
    %1870 = arith.mulf %1478, %1869 : vector<2x256xf32>
    %1871 = arith.addf %1867, %1870 : vector<2x256xf32>
    %c300 = arith.constant 300 : index
    %1872 = memref.load %arg10[%c300] : memref<320xf32, #tpu.memory_space<smem>>
    %1873 = vector.broadcast %1872 : f32 to vector<2x256xf32>
    %1874 = arith.mulf %1520, %1873 : vector<2x256xf32>
    %1875 = arith.addf %1871, %1874 : vector<2x256xf32>
    %c301 = arith.constant 301 : index
    %1876 = memref.load %arg10[%c301] : memref<320xf32, #tpu.memory_space<smem>>
    %1877 = vector.broadcast %1876 : f32 to vector<2x256xf32>
    %1878 = arith.mulf %1562, %1877 : vector<2x256xf32>
    %1879 = arith.addf %1875, %1878 : vector<2x256xf32>
    %c302 = arith.constant 302 : index
    %1880 = memref.load %arg10[%c302] : memref<320xf32, #tpu.memory_space<smem>>
    %1881 = vector.broadcast %1880 : f32 to vector<2x256xf32>
    %1882 = arith.mulf %1604, %1881 : vector<2x256xf32>
    %1883 = arith.addf %1879, %1882 : vector<2x256xf32>
    %c303 = arith.constant 303 : index
    %1884 = memref.load %arg10[%c303] : memref<320xf32, #tpu.memory_space<smem>>
    %1885 = vector.broadcast %1884 : f32 to vector<2x256xf32>
    %1886 = arith.mulf %1646, %1885 : vector<2x256xf32>
    %1887 = arith.addf %1883, %1886 : vector<2x256xf32>
    %c37_275 = arith.constant 37 : index
    %1888 = memref.load %arg11[%c37_275] : memref<40xf32, #tpu.memory_space<smem>>
    %1889 = vector.broadcast %1888 : f32 to vector<2x256xf32>
    %1890 = arith.addf %1887, %1889 : vector<2x256xf32>
    %cst_276 = arith.constant 0.000000e+00 : f32
    %1891 = vector.broadcast %cst_276 : f32 to vector<2x256xf32>
    %1892 = arith.cmpf ogt, %1890, %1891 : vector<2x256xf32>
    %cst_277 = arith.constant 0.000000e+00 : f32
    %1893 = vector.broadcast %cst_277 : f32 to vector<2x256xf32>
    %1894 = arith.minimumf %1890, %1893 : vector<2x256xf32>
    %1895 = math.exp %1894 : vector<2x256xf32>
    %cst_278 = arith.constant 1.000000e+00 : f32
    %1896 = vector.broadcast %cst_278 : f32 to vector<2x256xf32>
    %1897 = arith.subf %1895, %1896 : vector<2x256xf32>
    %1898 = arith.select %1892, %1890, %1897 : vector<2x256xi1>, vector<2x256xf32>
    %c304 = arith.constant 304 : index
    %1899 = memref.load %arg10[%c304] : memref<320xf32, #tpu.memory_space<smem>>
    %1900 = vector.broadcast %1899 : f32 to vector<2x256xf32>
    %1901 = arith.mulf %1352, %1900 : vector<2x256xf32>
    %c305 = arith.constant 305 : index
    %1902 = memref.load %arg10[%c305] : memref<320xf32, #tpu.memory_space<smem>>
    %1903 = vector.broadcast %1902 : f32 to vector<2x256xf32>
    %1904 = arith.mulf %1394, %1903 : vector<2x256xf32>
    %1905 = arith.addf %1901, %1904 : vector<2x256xf32>
    %c306 = arith.constant 306 : index
    %1906 = memref.load %arg10[%c306] : memref<320xf32, #tpu.memory_space<smem>>
    %1907 = vector.broadcast %1906 : f32 to vector<2x256xf32>
    %1908 = arith.mulf %1436, %1907 : vector<2x256xf32>
    %1909 = arith.addf %1905, %1908 : vector<2x256xf32>
    %c307 = arith.constant 307 : index
    %1910 = memref.load %arg10[%c307] : memref<320xf32, #tpu.memory_space<smem>>
    %1911 = vector.broadcast %1910 : f32 to vector<2x256xf32>
    %1912 = arith.mulf %1478, %1911 : vector<2x256xf32>
    %1913 = arith.addf %1909, %1912 : vector<2x256xf32>
    %c308 = arith.constant 308 : index
    %1914 = memref.load %arg10[%c308] : memref<320xf32, #tpu.memory_space<smem>>
    %1915 = vector.broadcast %1914 : f32 to vector<2x256xf32>
    %1916 = arith.mulf %1520, %1915 : vector<2x256xf32>
    %1917 = arith.addf %1913, %1916 : vector<2x256xf32>
    %c309 = arith.constant 309 : index
    %1918 = memref.load %arg10[%c309] : memref<320xf32, #tpu.memory_space<smem>>
    %1919 = vector.broadcast %1918 : f32 to vector<2x256xf32>
    %1920 = arith.mulf %1562, %1919 : vector<2x256xf32>
    %1921 = arith.addf %1917, %1920 : vector<2x256xf32>
    %c310 = arith.constant 310 : index
    %1922 = memref.load %arg10[%c310] : memref<320xf32, #tpu.memory_space<smem>>
    %1923 = vector.broadcast %1922 : f32 to vector<2x256xf32>
    %1924 = arith.mulf %1604, %1923 : vector<2x256xf32>
    %1925 = arith.addf %1921, %1924 : vector<2x256xf32>
    %c311 = arith.constant 311 : index
    %1926 = memref.load %arg10[%c311] : memref<320xf32, #tpu.memory_space<smem>>
    %1927 = vector.broadcast %1926 : f32 to vector<2x256xf32>
    %1928 = arith.mulf %1646, %1927 : vector<2x256xf32>
    %1929 = arith.addf %1925, %1928 : vector<2x256xf32>
    %c38_279 = arith.constant 38 : index
    %1930 = memref.load %arg11[%c38_279] : memref<40xf32, #tpu.memory_space<smem>>
    %1931 = vector.broadcast %1930 : f32 to vector<2x256xf32>
    %1932 = arith.addf %1929, %1931 : vector<2x256xf32>
    %cst_280 = arith.constant 0.000000e+00 : f32
    %1933 = vector.broadcast %cst_280 : f32 to vector<2x256xf32>
    %1934 = arith.cmpf ogt, %1932, %1933 : vector<2x256xf32>
    %cst_281 = arith.constant 0.000000e+00 : f32
    %1935 = vector.broadcast %cst_281 : f32 to vector<2x256xf32>
    %1936 = arith.minimumf %1932, %1935 : vector<2x256xf32>
    %1937 = math.exp %1936 : vector<2x256xf32>
    %cst_282 = arith.constant 1.000000e+00 : f32
    %1938 = vector.broadcast %cst_282 : f32 to vector<2x256xf32>
    %1939 = arith.subf %1937, %1938 : vector<2x256xf32>
    %1940 = arith.select %1934, %1932, %1939 : vector<2x256xi1>, vector<2x256xf32>
    %c312 = arith.constant 312 : index
    %1941 = memref.load %arg10[%c312] : memref<320xf32, #tpu.memory_space<smem>>
    %1942 = vector.broadcast %1941 : f32 to vector<2x256xf32>
    %1943 = arith.mulf %1352, %1942 : vector<2x256xf32>
    %c313 = arith.constant 313 : index
    %1944 = memref.load %arg10[%c313] : memref<320xf32, #tpu.memory_space<smem>>
    %1945 = vector.broadcast %1944 : f32 to vector<2x256xf32>
    %1946 = arith.mulf %1394, %1945 : vector<2x256xf32>
    %1947 = arith.addf %1943, %1946 : vector<2x256xf32>
    %c314 = arith.constant 314 : index
    %1948 = memref.load %arg10[%c314] : memref<320xf32, #tpu.memory_space<smem>>
    %1949 = vector.broadcast %1948 : f32 to vector<2x256xf32>
    %1950 = arith.mulf %1436, %1949 : vector<2x256xf32>
    %1951 = arith.addf %1947, %1950 : vector<2x256xf32>
    %c315 = arith.constant 315 : index
    %1952 = memref.load %arg10[%c315] : memref<320xf32, #tpu.memory_space<smem>>
    %1953 = vector.broadcast %1952 : f32 to vector<2x256xf32>
    %1954 = arith.mulf %1478, %1953 : vector<2x256xf32>
    %1955 = arith.addf %1951, %1954 : vector<2x256xf32>
    %c316 = arith.constant 316 : index
    %1956 = memref.load %arg10[%c316] : memref<320xf32, #tpu.memory_space<smem>>
    %1957 = vector.broadcast %1956 : f32 to vector<2x256xf32>
    %1958 = arith.mulf %1520, %1957 : vector<2x256xf32>
    %1959 = arith.addf %1955, %1958 : vector<2x256xf32>
    %c317 = arith.constant 317 : index
    %1960 = memref.load %arg10[%c317] : memref<320xf32, #tpu.memory_space<smem>>
    %1961 = vector.broadcast %1960 : f32 to vector<2x256xf32>
    %1962 = arith.mulf %1562, %1961 : vector<2x256xf32>
    %1963 = arith.addf %1959, %1962 : vector<2x256xf32>
    %c318 = arith.constant 318 : index
    %1964 = memref.load %arg10[%c318] : memref<320xf32, #tpu.memory_space<smem>>
    %1965 = vector.broadcast %1964 : f32 to vector<2x256xf32>
    %1966 = arith.mulf %1604, %1965 : vector<2x256xf32>
    %1967 = arith.addf %1963, %1966 : vector<2x256xf32>
    %c319 = arith.constant 319 : index
    %1968 = memref.load %arg10[%c319] : memref<320xf32, #tpu.memory_space<smem>>
    %1969 = vector.broadcast %1968 : f32 to vector<2x256xf32>
    %1970 = arith.mulf %1646, %1969 : vector<2x256xf32>
    %1971 = arith.addf %1967, %1970 : vector<2x256xf32>
    %c39_283 = arith.constant 39 : index
    %1972 = memref.load %arg11[%c39_283] : memref<40xf32, #tpu.memory_space<smem>>
    %1973 = vector.broadcast %1972 : f32 to vector<2x256xf32>
    %1974 = arith.addf %1971, %1973 : vector<2x256xf32>
    %cst_284 = arith.constant 0.000000e+00 : f32
    %1975 = vector.broadcast %cst_284 : f32 to vector<2x256xf32>
    %1976 = arith.cmpf ogt, %1974, %1975 : vector<2x256xf32>
    %cst_285 = arith.constant 0.000000e+00 : f32
    %1977 = vector.broadcast %cst_285 : f32 to vector<2x256xf32>
    %1978 = arith.minimumf %1974, %1977 : vector<2x256xf32>
    %1979 = math.exp %1978 : vector<2x256xf32>
    %cst_286 = arith.constant 1.000000e+00 : f32
    %1980 = vector.broadcast %cst_286 : f32 to vector<2x256xf32>
    %1981 = arith.subf %1979, %1980 : vector<2x256xf32>
    %1982 = arith.select %1976, %1974, %1981 : vector<2x256xi1>, vector<2x256xf32>
    %c0_287 = arith.constant 0 : index
    %1983 = memref.load %arg12[%c0_287] : memref<8xf32, #tpu.memory_space<smem>>
    %1984 = vector.broadcast %1983 : f32 to vector<2x256xf32>
    %1985 = arith.mulf %1688, %1984 : vector<2x256xf32>
    %c1_288 = arith.constant 1 : index
    %1986 = memref.load %arg12[%c1_288] : memref<8xf32, #tpu.memory_space<smem>>
    %1987 = vector.broadcast %1986 : f32 to vector<2x256xf32>
    %1988 = arith.mulf %1730, %1987 : vector<2x256xf32>
    %1989 = arith.addf %1985, %1988 : vector<2x256xf32>
    %c2_289 = arith.constant 2 : index
    %1990 = memref.load %arg12[%c2_289] : memref<8xf32, #tpu.memory_space<smem>>
    %1991 = vector.broadcast %1990 : f32 to vector<2x256xf32>
    %1992 = arith.mulf %1772, %1991 : vector<2x256xf32>
    %1993 = arith.addf %1989, %1992 : vector<2x256xf32>
    %c3_290 = arith.constant 3 : index
    %1994 = memref.load %arg12[%c3_290] : memref<8xf32, #tpu.memory_space<smem>>
    %1995 = vector.broadcast %1994 : f32 to vector<2x256xf32>
    %1996 = arith.mulf %1814, %1995 : vector<2x256xf32>
    %1997 = arith.addf %1993, %1996 : vector<2x256xf32>
    %c4_291 = arith.constant 4 : index
    %1998 = memref.load %arg12[%c4_291] : memref<8xf32, #tpu.memory_space<smem>>
    %1999 = vector.broadcast %1998 : f32 to vector<2x256xf32>
    %2000 = arith.mulf %1856, %1999 : vector<2x256xf32>
    %2001 = arith.addf %1997, %2000 : vector<2x256xf32>
    %c5_292 = arith.constant 5 : index
    %2002 = memref.load %arg12[%c5_292] : memref<8xf32, #tpu.memory_space<smem>>
    %2003 = vector.broadcast %2002 : f32 to vector<2x256xf32>
    %2004 = arith.mulf %1898, %2003 : vector<2x256xf32>
    %2005 = arith.addf %2001, %2004 : vector<2x256xf32>
    %c6_293 = arith.constant 6 : index
    %2006 = memref.load %arg12[%c6_293] : memref<8xf32, #tpu.memory_space<smem>>
    %2007 = vector.broadcast %2006 : f32 to vector<2x256xf32>
    %2008 = arith.mulf %1940, %2007 : vector<2x256xf32>
    %2009 = arith.addf %2005, %2008 : vector<2x256xf32>
    %c7_294 = arith.constant 7 : index
    %2010 = memref.load %arg12[%c7_294] : memref<8xf32, #tpu.memory_space<smem>>
    %2011 = vector.broadcast %2010 : f32 to vector<2x256xf32>
    %2012 = arith.mulf %1982, %2011 : vector<2x256xf32>
    %2013 = arith.addf %2009, %2012 : vector<2x256xf32>
    %c0_295 = arith.constant 0 : index
    %2014 = memref.load %arg13[%c0_295] : memref<1xf32, #tpu.memory_space<smem>>
    %2015 = vector.broadcast %2014 : f32 to vector<2x256xf32>
    %2016 = arith.addf %2013, %2015 : vector<2x256xf32>
    %c0_296 = arith.constant 0 : index
    %c0_297 = arith.constant 0 : index
    %2017 = vector.load %arg14[%c0_296, %c0_297] : memref<2x256xf32, #tpu.memory_space<vmem>>, vector<2x256xf32>
    tpu.vector_store %arg14[%c0_296, %c0_297], %2016 {strides = array<i32>} : memref<2x256xf32, #tpu.memory_space<vmem>>, vector<2x256xf32>,
    return
  }
}

</mosaic_0001>

<llo_original>
// kernel: heatmap_decoder_forward.1
$region0: #{heatmap_decoder_forward.1}
  #allocation0 [shape = 'u32[]', space=smem, size = 0x4, offset = 0x4, fixed_abs, tag = 'smem constant byte address 0x4 - core index']
  #allocation1 [shape = 'u32[144,128]{1,0:T(1,128)}', space=vmem, size = 0x12000, scoped, tag = 'internal scratch']
  #allocation2 [shape = 'f32[1]{0:T(128)S(6)}', space=smem, size = 0x200, scoped, tag = 'scoped memory for heatmap_decoder_forward.1']
  %s0 = inlined_call_operand.vmem [shape: f32[6,16], index: 0, kind: input, shape index: {}]
  %s1 = inlined_call_operand.vmem [shape: f32[4,16,32], index: 1, kind: input, shape index: {}]
  %s2 = inlined_call_operand.hbm [shape: f32[4,32,32], index: 2, kind: input, shape index: {}]
  %s3 = inlined_call_operand.vmem [shape: f32[4,1,32], index: 3, kind: input, shape index: {}]
  %s4 = inlined_call_operand.vmem [shape: f32[1,32], index: 4, kind: input, shape index: {}]
  %s5 = inlined_call_operand.vmem [shape: f32[1,32], index: 5, kind: input, shape index: {}]
  %s6 = inlined_call_operand.hbm [shape: f32[32,256], index: 6, kind: input, shape index: {}]
  %s7 = inlined_call_operand.vmem [shape: f32[1,256], index: 7, kind: input, shape index: {}]
  %s8 = inlined_call_operand.vmem [shape: f32[8], index: 8, kind: input, shape index: {}]
  %s9 = inlined_call_operand.vmem [shape: f32[8], index: 9, kind: input, shape index: {}]
  %s10 = inlined_call_operand.vmem [shape: f32[320], index: 10, kind: input, shape index: {}]
  %s11 = inlined_call_operand.vmem [shape: f32[40], index: 11, kind: input, shape index: {}]
  %s12 = inlined_call_operand.vmem [shape: f32[8], index: 12, kind: input, shape index: {}]
  %s13 = inlined_call_operand.<no memory space> [shape: f32[1], index: 13, kind: input, shape index: {}]
  %s14 = inlined_call_operand.vmem [shape: f32[2,256], index: 14, kind: output, shape index: {}]
  %s15 = sld [smem:[#allocation0]]
  $region94: #{heatmap_decoder_forward.1} parent=0
    _
  %s17 = ssub.s32 1, %s15
  %s18 = scalar_select 0, %s17, %s15
  %19 = sst [smem:[#allocation2]] %s13
  $region1: #{heatmap_decoder_forward.1} parent=0
    #allocation3 [shape = 'u8[65536]{0}', space=vmem, size = 0x10000, scoped, tag = 'input window, operand 2, single buffered']
    #allocation4 [shape = 's32[1]{0}', space=sflag, size = 0x4, scoped, tag = 'scoped memory for heatmap_decoder_forward.1']
    #allocation5 [shape = 's32[1]{0}', space=sflag, size = 0x4, scoped, tag = 'scoped memory for heatmap_decoder_forward.1']
    #allocation6 [shape = 'u8[32768]{0}', space=vmem, size = 0x8000, scoped, tag = 'input window, operand 6, single buffered']
    #allocation7 [shape = 's32[1]{0}', space=sflag, size = 0x4, scoped, tag = 'scoped memory for heatmap_decoder_forward.1']
    #allocation8 [shape = 'u8[512]{0}', space=smem, size = 0x200, scoped, tag = 'input window, operand 8, single buffered']
    #allocation9 [shape = 'u8[512]{0}', space=smem, size = 0x200, scoped, tag = 'input window, operand 9, single buffered']
    #allocation10 [shape = 's32[1]{0}', space=sflag, size = 0x4, scoped, tag = 'scoped memory for heatmap_decoder_forward.1']
    #allocation11 [shape = 'u8[1536]{0}', space=smem, size = 0x600, scoped, tag = 'input window, operand 10, single buffered']
    #allocation12 [shape = 'u8[512]{0}', space=smem, size = 0x200, scoped, tag = 'input window, operand 11, single buffered']
    #allocation13 [shape = 's32[1]{0}', space=sflag, size = 0x4, scoped, tag = 'scoped memory for heatmap_decoder_forward.1']
    #allocation14 [shape = 'u8[512]{0}', space=smem, size = 0x200, scoped, tag = 'input window, operand 12, single buffered']
    %20 = vsyncpa [#allocation4], 0
    %21 = vsyncpa [#allocation7], 0
    %22 = vsyncpa [#allocation5], 0
    %23 = vsyncpa [#allocation10], 0
    %24 = vsyncpa [#allocation13], 0
    // Predicated region
    $region2: #{heatmap_decoder_forward.1} parent=1 // pred_check
      _
    $region3: #{heatmap_decoder_forward.1} parent=1 // pred_check_branch
      %26 = sbr.rel (0) target = $region5
    $region4: #{heatmap_decoder_forward.1} parent=1 // pred_region
      _
    $region5: #{heatmap_decoder_forward.1} parent=1 // pred_fallthru
      _
    // Predicated region
    $region6: #{heatmap_decoder_forward.1} parent=1 // pred_check
      _
    $region7: #{heatmap_decoder_forward.1} parent=1 // pred_check_branch
      %28 = sbr.rel (0) target = $region9
    $region8: #{heatmap_decoder_forward.1} parent=1 // pred_region
      _
    $region9: #{heatmap_decoder_forward.1} parent=1 // pred_fallthru
      _
    // Predicated region
    $region10: #{heatmap_decoder_forward.1} parent=1 // pred_check
      _
    $region11: #{heatmap_decoder_forward.1} parent=1 // pred_check_branch
      %30 = sbr.rel (0) target = $region13
    $region12: #{heatmap_decoder_forward.1} parent=1 // pred_region
      %s32 = ssub.s32 2048, 2048
      %33 = vsyncadd [#allocation4], %s32
      %s34 = sshll.u32 [#allocation3], 4
      %s35 = int_to_ptr.vmem [resolvable:$true] %s34
      %40 = dma.hbm_to_vmem [thread:$0]  %s2, 2048, %s35, [#allocation4], 128, 128, 8
    $region13: #{heatmap_decoder_forward.1} parent=1 // pred_fallthru
      _
    // Predicated region
    $region14: #{heatmap_decoder_forward.1} parent=1 // pred_check
      _
    $region15: #{heatmap_decoder_forward.1} parent=1 // pred_check_branch
      %42 = sbr.rel (0) target = $region17
    $region16: #{heatmap_decoder_forward.1} parent=1 // pred_region
      _
    $region17: #{heatmap_decoder_forward.1} parent=1 // pred_fallthru
      _
    // Predicated region
    $region18: #{heatmap_decoder_forward.1} parent=1 // pred_check
      _
    $region19: #{heatmap_decoder_forward.1} parent=1 // pred_check_branch
      %44 = sbr.rel (0) target = $region21
    $region20: #{heatmap_decoder_forward.1} parent=1 // pred_region
      _
    $region21: #{heatmap_decoder_forward.1} parent=1 // pred_fallthru
      _
    // Predicated region
    $region22: #{heatmap_decoder_forward.1} parent=1 // pred_check
      _
    $region23: #{heatmap_decoder_forward.1} parent=1 // pred_check_branch
      %46 = sbr.rel (0) target = $region25
    $region24: #{heatmap_decoder_forward.1} parent=1 // pred_region
      _
    $region25: #{heatmap_decoder_forward.1} parent=1 // pred_fallthru
      _
    // Predicated region
    $region26: #{heatmap_decoder_forward.1} parent=1 // pred_check
      _
    $region27: #{heatmap_decoder_forward.1} parent=1 // pred_check_branch
      %48 = sbr.rel (0) target = $region29
    $region28: #{heatmap_decoder_forward.1} parent=1 // pred_region
      %s50 = ssub.s32 1024, 1024
      %51 = vsyncadd [#allocation7], %s50
      %s52 = sshll.u32 [#allocation6], 4
      %s53 = int_to_ptr.vmem [resolvable:$true] %s52
      %58 = dma.hbm_to_vmem [thread:$0]  %s6, 1024, %s53, [#allocation7], 256, 256, 16
    $region29: #{heatmap_decoder_forward.1} parent=1 // pred_fallthru
      _
    // Predicated region
    $region30: #{heatmap_decoder_forward.1} parent=1 // pred_check
      _
    $region31: #{heatmap_decoder_forward.1} parent=1 // pred_check_branch
      %60 = sbr.rel (0) target = $region33
    $region32: #{heatmap_decoder_forward.1} parent=1 // pred_region
      _
    $region33: #{heatmap_decoder_forward.1} parent=1 // pred_fallthru
      _
    // Predicated region
    $region34: #{heatmap_decoder_forward.1} parent=1 // pred_check
      _
    $region35: #{heatmap_decoder_forward.1} parent=1 // pred_check_branch
      %62 = sbr.rel (0) target = $region37
    $region36: #{heatmap_decoder_forward.1} parent=1 // pred_region
      %s64 = ssub.s32 16, 16
      %65 = vsyncadd [#allocation5], %s64
      %s67 = sshll.u32 %s8, 4
      %s68 = int_to_ptr.vmem [resolvable:$true] %s67
      %70 = dma.vmem_to_smem %s68, 16, [#allocation8], [#allocation5]
    $region37: #{heatmap_decoder_forward.1} parent=1 // pred_fallthru
      _
    // Predicated region
    $region38: #{heatmap_decoder_forward.1} parent=1 // pred_check
      _
    $region39: #{heatmap_decoder_forward.1} parent=1 // pred_check_branch
      %72 = sbr.rel (0) target = $region41
    $region40: #{heatmap_decoder_forward.1} parent=1 // pred_region
      %s74 = ssub.s32 16, 16
      %75 = vsyncadd [#allocation10], %s74
      %s77 = sshll.u32 %s9, 4
      %s78 = int_to_ptr.vmem [resolvable:$true] %s77
      %80 = dma.vmem_to_smem %s78, 16, [#allocation9], [#allocation10]
    $region41: #{heatmap_decoder_forward.1} parent=1 // pred_fallthru
      _
    // Predicated region
    $region42: #{heatmap_decoder_forward.1} parent=1 // pred_check
      _
    $region43: #{heatmap_decoder_forward.1} parent=1 // pred_check_branch
      %82 = sbr.rel (0) target = $region45
    $region44: #{heatmap_decoder_forward.1} parent=1 // pred_region
      %s84 = ssub.s32 48, 48
      %85 = vsyncadd [#allocation10], %s84
      %s87 = sshll.u32 %s10, 4
      %s88 = int_to_ptr.vmem [resolvable:$true] %s87
      %90 = dma.vmem_to_smem %s88, 48, [#allocation11], [#allocation10]
    $region45: #{heatmap_decoder_forward.1} parent=1 // pred_fallthru
      _
    // Predicated region
    $region46: #{heatmap_decoder_forward.1} parent=1 // pred_check
      _
    $region47: #{heatmap_decoder_forward.1} parent=1 // pred_check_branch
      %92 = sbr.rel (0) target = $region49
    $region48: #{heatmap_decoder_forward.1} parent=1 // pred_region
      %s94 = ssub.s32 16, 16
      %95 = vsyncadd [#allocation13], %s94
      %s97 = sshll.u32 %s11, 4
      %s98 = int_to_ptr.vmem [resolvable:$true] %s97
      %100 = dma.vmem_to_smem %s98, 16, [#allocation12], [#allocation13]
    $region49: #{heatmap_decoder_forward.1} parent=1 // pred_fallthru
      _
    // Predicated region
    $region50: #{heatmap_decoder_forward.1} parent=1 // pred_check
      _
    $region51: #{heatmap_decoder_forward.1} parent=1 // pred_check_branch
      %102 = sbr.rel (0) target = $region53
    $region52: #{heatmap_decoder_forward.1} parent=1 // pred_region
      %s104 = ssub.s32 16, 16
      %105 = vsyncadd [#allocation13], %s104
      %s107 = sshll.u32 %s12, 4
      %s108 = int_to_ptr.vmem [resolvable:$true] %s107
      %110 = dma.vmem_to_smem %s108, 16, [#allocation14], [#allocation13]
    $region53: #{heatmap_decoder_forward.1} parent=1 // pred_fallthru
      _
    // Predicated region
    $region54: #{heatmap_decoder_forward.1} parent=1 // pred_check
      _
    $region55: #{heatmap_decoder_forward.1} parent=1 // pred_check_branch
      %112 = sbr.rel (0) target = $region57
    $region56: #{heatmap_decoder_forward.1} parent=1 // pred_region
      _
    $region57: #{heatmap_decoder_forward.1} parent=1 // pred_fallthru
      _
    // Predicated region
    $region58: #{heatmap_decoder_forward.1} parent=1 // pred_check
      _
    $region59: #{heatmap_decoder_forward.1} parent=1 // pred_check_branch
      %114 = sbr.rel (0) target = $region61
    $region60: #{heatmap_decoder_forward.1} parent=1 // pred_region
      %115 = dma.done [#allocation4], 2048
    $region61: #{heatmap_decoder_forward.1} parent=1 // pred_fallthru
      _
    // Predicated region
    $region62: #{heatmap_decoder_forward.1} parent=1 // pred_check
      _
    $region63: #{heatmap_decoder_forward.1} parent=1 // pred_check_branch
      %117 = sbr.rel (0) target = $region65
    $region64: #{heatmap_decoder_forward.1} parent=1 // pred_region
      %118 = dma.done [#allocation7], 1024
    $region65: #{heatmap_decoder_forward.1} parent=1 // pred_fallthru
      _
    // Predicated region
    $region66: #{heatmap_decoder_forward.1} parent=1 // pred_check
      _
    $region67: #{heatmap_decoder_forward.1} parent=1 // pred_check_branch
      %120 = sbr.rel (0) target = $region69
    $region68: #{heatmap_decoder_forward.1} parent=1 // pred_region
      %121 = dma.done [#allocation5], 16
    $region69: #{heatmap_decoder_forward.1} parent=1 // pred_fallthru
      _
    // Predicated region
    $region70: #{heatmap_decoder_forward.1} parent=1 // pred_check
      _
    $region71: #{heatmap_decoder_forward.1} parent=1 // pred_check_branch
      %123 = sbr.rel (0) target = $region73
    $region72: #{heatmap_decoder_forward.1} parent=1 // pred_region
      %124 = dma.done [#allocation10], 16
    $region73: #{heatmap_decoder_forward.1} parent=1 // pred_fallthru
      _
    // Predicated region
    $region74: #{heatmap_decoder_forward.1} parent=1 // pred_check
      _
    $region75: #{heatmap_decoder_forward.1} parent=1 // pred_check_branch
      %126 = sbr.rel (0) target = $region77
    $region76: #{heatmap_decoder_forward.1} parent=1 // pred_region
      %127 = dma.done [#allocation10], 48
    $region77: #{heatmap_decoder_forward.1} parent=1 // pred_fallthru
      _
    // Predicated region
    $region78: #{heatmap_decoder_forward.1} parent=1 // pred_check
      _
    $region79: #{heatmap_decoder_forward.1} parent=1 // pred_check_branch
      %129 = sbr.rel (0) target = $region81
    $region80: #{heatmap_decoder_forward.1} parent=1 // pred_region
      %130 = dma.done [#allocation13], 16
    $region81: #{heatmap_decoder_forward.1} parent=1 // pred_fallthru
      _
    // Predicated region
    $region82: #{heatmap_decoder_forward.1} parent=1 // pred_check
      _
    $region83: #{heatmap_decoder_forward.1} parent=1 // pred_check_branch
      %132 = sbr.rel (0) target = $region85
    $region84: #{heatmap_decoder_forward.1} parent=1 // pred_region
      %133 = dma.done [#allocation13], 16
    $region85: #{heatmap_decoder_forward.1} parent=1 // pred_fallthru
      _
    %134 = sfence
    %v135 = vld [vmem:[%s0] sm:$0x3f]
    %v136 = vld [vmem:[%s1] sm:$0xff]
    %v137 = vld [vmem:[%s1 + $0x8] sm:$0xff]
    %v138 = vld [vmem:[%s3] sm:$0x1]
    %v140 = vlaneseq
    %v141 = vshrl.u32 %v140, 7
    %v142 = vsub.s32 0, %v141
    %v143 = vrot.slane %v138, %v142
    %vm145 = vcmask 130048
    %v147 = vsel %vm145, %v135, 0
    %149 = vmatprep.subr.mxu0 0.0
    %150 = vmatpush1.msra.mxu0 %v136
    %151 = vmatprep.subr.mxu0 0.0
    %152 = vmatpush1.msra.mxu0 %v137
    %153 = vmatprep.subr.mxu0 0.0
    %154 = vmatpush1.msra.mxu0 0.0
    %155 = vmatprep.subr.mxu0 0.0
    %156 = vmatpush1.msra.mxu0 0.0
    %157 = vmatprep.subr.mxu0 0.0
    %158 = vmatpush1.msra.mxu0 0.0
    %159 = vmatprep.subr.mxu0 0.0
    %160 = vmatpush1.msra.mxu0 0.0
    %161 = vmatprep.subr.mxu0 0.0
    %162 = vmatpush1.msra.mxu0 0.0
    %163 = vmatprep.subr.mxu0 0.0
    %164 = vmatpush1.msra.mxu0 0.0
    %165 = vmatprep.subr.mxu0 0.0
    %166 = vmatpush1.msra.mxu0 0.0
    %167 = vmatprep.subr.mxu0 0.0
    %168 = vmatpush1.msra.mxu0 0.0
    %169 = vmatprep.subr.mxu0 0.0
    %170 = vmatpush1.msra.mxu0 0.0
    %171 = vmatprep.subr.mxu0 0.0
    %172 = vmatpush1.msra.mxu0 0.0
    %173 = vmatprep.subr.mxu0 0.0
    %174 = vmatpush1.msra.mxu0 0.0
    %175 = vmatprep.subr.mxu0 0.0
    %176 = vmatpush1.msra.mxu0 0.0
    %177 = vmatprep.subr.mxu0 0.0
    %178 = vmatpush1.msra.mxu0 0.0
    %179 = vmatprep.subr.mxu0 0.0
    %180 = vmatpush1.msra.mxu0 0.0
    %181 = vmatprep.subr.mxu0 0.0
    %182 = vmatpush1.msra.mxu0 0.0
    %183 = vmatprep.subr.mxu0 0.0
    %184 = vmatpush1.msra.mxu0 0.0
    %185 = vmatprep.subr.mxu0 0.0
    %186 = vmatpush1.msra.mxu0 0.0
    %187 = vmatprep.subr.mxu0 0.0
    %188 = vmatpush1.msra.mxu0 0.0
    %189 = vmatprep.subr.mxu0 0.0
    %190 = vmatpush1.msra.mxu0 0.0
    %191 = vmatprep.subr.mxu0 0.0
    %192 = vmatpush1.msra.mxu0 0.0
    %193 = vmatprep.subr.mxu0 0.0
    %194 = vmatpush1.msra.mxu0 0.0
    %195 = vmatprep.subr.mxu0 0.0
    %196 = vmatpush1.msra.mxu0 0.0
    %197 = vmatprep.subr.mxu0 0.0
    %198 = vmatpush1.msra.mxu0 0.0
    %199 = vmatprep.subr.mxu0 0.0
    %200 = vmatpush1.msra.mxu0 0.0
    %201 = vmatprep.subr.mxu0 0.0
    %202 = vmatpush1.msra.mxu0 0.0
    %203 = vmatprep.subr.mxu0 0.0
    %204 = vmatpush1.msra.mxu0 0.0
    %205 = vmatprep.subr.mxu0 0.0
    %206 = vmatpush1.msra.mxu0 0.0
    %207 = vmatprep.subr.mxu0 0.0
    %208 = vmatpush1.msra.mxu0 0.0
    %209 = vmatprep.subr.mxu0 0.0
    %210 = vmatpush1.msra.mxu0 0.0
    %211 = vmatprep.subr.mxu0 0.0
    %212 = vmatpush1.msra.mxu0 0.0
    %213 = vmatprep.mubr.f32.mxu0 0.0
    %214 = vmatmul.mubr.f32.gmra.mrb[0].mxu0 %v147
    %v215 = vpop.f32.mrb[0].mxu0
    %v216 = vadd.f32 %v143, %v215
    %v217 = vpop.f32.mrb[0].mxu0
    %218 = vdwg.mxu0
    %s219 = scalar_lea.vmem %s1, 16
    %v220 = vld [vmem:[%s219] sm:$0xff]
    %v221 = vld [vmem:[%s219 + $0x8] sm:$0xff]
    %s222 = scalar_lea.vmem %s3, 1
    %v223 = vld [vmem:[%s222] sm:$0x1]
    %v225 = vlaneseq
    %v226 = vshrl.u32 %v225, 7
    %v227 = vsub.s32 0, %v226
    %v228 = vrot.slane %v223, %v227
    %230 = vmatprep.subr.mxu0 0.0
    %231 = vmatpush1.msra.mxu0 %v220
    %232 = vmatprep.subr.mxu0 0.0
    %233 = vmatpush1.msra.mxu0 %v221
    %234 = vmatprep.subr.mxu0 0.0
    %235 = vmatpush1.msra.mxu0 0.0
    %236 = vmatprep.subr.mxu0 0.0
    %237 = vmatpush1.msra.mxu0 0.0
    %238 = vmatprep.subr.mxu0 0.0
    %239 = vmatpush1.msra.mxu0 0.0
    %240 = vmatprep.subr.mxu0 0.0
    %241 = vmatpush1.msra.mxu0 0.0
    %242 = vmatprep.subr.mxu0 0.0
    %243 = vmatpush1.msra.mxu0 0.0
    %244 = vmatprep.subr.mxu0 0.0
    %245 = vmatpush1.msra.mxu0 0.0
    %246 = vmatprep.subr.mxu0 0.0
    %247 = vmatpush1.msra.mxu0 0.0
    %248 = vmatprep.subr.mxu0 0.0
    %249 = vmatpush1.msra.mxu0 0.0
    %250 = vmatprep.subr.mxu0 0.0
    %251 = vmatpush1.msra.mxu0 0.0
    %252 = vmatprep.subr.mxu0 0.0
    %253 = vmatpush1.msra.mxu0 0.0
    %254 = vmatprep.subr.mxu0 0.0
    %255 = vmatpush1.msra.mxu0 0.0
    %256 = vmatprep.subr.mxu0 0.0
    %257 = vmatpush1.msra.mxu0 0.0
    %258 = vmatprep.subr.mxu0 0.0
    %259 = vmatpush1.msra.mxu0 0.0
    %260 = vmatprep.subr.mxu0 0.0
    %261 = vmatpush1.msra.mxu0 0.0
    %262 = vmatprep.subr.mxu0 0.0
    %263 = vmatpush1.msra.mxu0 0.0
    %264 = vmatprep.subr.mxu0 0.0
    %265 = vmatpush1.msra.mxu0 0.0
    %266 = vmatprep.subr.mxu0 0.0
    %267 = vmatpush1.msra.mxu0 0.0
    %268 = vmatprep.subr.mxu0 0.0
    %269 = vmatpush1.msra.mxu0 0.0
    %270 = vmatprep.subr.mxu0 0.0
    %271 = vmatpush1.msra.mxu0 0.0
    %272 = vmatprep.subr.mxu0 0.0
    %273 = vmatpush1.msra.mxu0 0.0
    %274 = vmatprep.subr.mxu0 0.0
    %275 = vmatpush1.msra.mxu0 0.0
    %276 = vmatprep.subr.mxu0 0.0
    %277 = vmatpush1.msra.mxu0 0.0
    %278 = vmatprep.subr.mxu0 0.0
    %279 = vmatpush1.msra.mxu0 0.0
    %280 = vmatprep.subr.mxu0 0.0
    %281 = vmatpush1.msra.mxu0 0.0
    %282 = vmatprep.subr.mxu0 0.0
    %283 = vmatpush1.msra.mxu0 0.0
    %284 = vmatprep.subr.mxu0 0.0
    %285 = vmatpush1.msra.mxu0 0.0
    %286 = vmatprep.subr.mxu0 0.0
    %287 = vmatpush1.msra.mxu0 0.0
    %288 = vmatprep.subr.mxu0 0.0
    %289 = vmatpush1.msra.mxu0 0.0
    %290 = vmatprep.subr.mxu0 0.0
    %291 = vmatpush1.msra.mxu0 0.0
    %292 = vmatprep.subr.mxu0 0.0
    %293 = vmatpush1.msra.mxu0 0.0
    %294 = vmatprep.mubr.f32.mxu0 0.0
    %295 = vmatmul.mubr.f32.gmra.mrb[0].mxu0 %v147
    %v296 = vpop.f32.mrb[0].mxu0
    %v297 = vadd.f32 %v228, %v296
    %v298 = vpop.f32.mrb[0].mxu0
    %299 = vdwg.mxu0
    %s300 = scalar_lea.vmem %s1, 32
    %v301 = vld [vmem:[%s300] sm:$0xff]
    %v302 = vld [vmem:[%s300 + $0x8] sm:$0xff]
    %s303 = scalar_lea.vmem %s3, 2
    %v304 = vld [vmem:[%s303] sm:$0x1]
    %v306 = vlaneseq
    %v307 = vshrl.u32 %v306, 7
    %v308 = vsub.s32 0, %v307
    %v309 = vrot.slane %v304, %v308
    %311 = vmatprep.subr.mxu0 0.0
    %312 = vmatpush1.msra.mxu0 %v301
    %313 = vmatprep.subr.mxu0 0.0
    %314 = vmatpush1.msra.mxu0 %v302
    %315 = vmatprep.subr.mxu0 0.0
    %316 = vmatpush1.msra.mxu0 0.0
    %317 = vmatprep.subr.mxu0 0.0
    %318 = vmatpush1.msra.mxu0 0.0
    %319 = vmatprep.subr.mxu0 0.0
    %320 = vmatpush1.msra.mxu0 0.0
    %321 = vmatprep.subr.mxu0 0.0
    %322 = vmatpush1.msra.mxu0 0.0
    %323 = vmatprep.subr.mxu0 0.0
    %324 = vmatpush1.msra.mxu0 0.0
    %325 = vmatprep.subr.mxu0 0.0
    %326 = vmatpush1.msra.mxu0 0.0
    %327 = vmatprep.subr.mxu0 0.0
    %328 = vmatpush1.msra.mxu0 0.0
    %329 = vmatprep.subr.mxu0 0.0
    %330 = vmatpush1.msra.mxu0 0.0
    %331 = vmatprep.subr.mxu0 0.0
    %332 = vmatpush1.msra.mxu0 0.0
    %333 = vmatprep.subr.mxu0 0.0
    %334 = vmatpush1.msra.mxu0 0.0
    %335 = vmatprep.subr.mxu0 0.0
    %336 = vmatpush1.msra.mxu0 0.0
    %337 = vmatprep.subr.mxu0 0.0
    %338 = vmatpush1.msra.mxu0 0.0
    %339 = vmatprep.subr.mxu0 0.0
    %340 = vmatpush1.msra.mxu0 0.0
    %341 = vmatprep.subr.mxu0 0.0
    %342 = vmatpush1.msra.mxu0 0.0
    %343 = vmatprep.subr.mxu0 0.0
    %344 = vmatpush1.msra.mxu0 0.0
    %345 = vmatprep.subr.mxu0 0.0
    %346 = vmatpush1.msra.mxu0 0.0
    %347 = vmatprep.subr.mxu0 0.0
    %348 = vmatpush1.msra.mxu0 0.0
    %349 = vmatprep.subr.mxu0 0.0
    %350 = vmatpush1.msra.mxu0 0.0
    %351 = vmatprep.subr.mxu0 0.0
    %352 = vmatpush1.msra.mxu0 0.0
    %353 = vmatprep.subr.mxu0 0.0
    %354 = vmatpush1.msra.mxu0 0.0
    %355 = vmatprep.subr.mxu0 0.0
    %356 = vmatpush1.msra.mxu0 0.0
    %357 = vmatprep.subr.mxu0 0.0
    %358 = vmatpush1.msra.mxu0 0.0
    %359 = vmatprep.subr.mxu0 0.0
    %360 = vmatpush1.msra.mxu0 0.0
    %361 = vmatprep.subr.mxu0 0.0
    %362 = vmatpush1.msra.mxu0 0.0
    %363 = vmatprep.subr.mxu0 0.0
    %364 = vmatpush1.msra.mxu0 0.0
    %365 = vmatprep.subr.mxu0 0.0
    %366 = vmatpush1.msra.mxu0 0.0
    %367 = vmatprep.subr.mxu0 0.0
    %368 = vmatpush1.msra.mxu0 0.0
    %369 = vmatprep.subr.mxu0 0.0
    %370 = vmatpush1.msra.mxu0 0.0
    %371 = vmatprep.subr.mxu0 0.0
    %372 = vmatpush1.msra.mxu0 0.0
    %373 = vmatprep.subr.mxu0 0.0
    %374 = vmatpush1.msra.mxu0 0.0
    %375 = vmatprep.mubr.f32.mxu0 0.0
    %376 = vmatmul.mubr.f32.gmra.mrb[0].mxu0 %v147
    %v377 = vpop.f32.mrb[0].mxu0
    %v378 = vadd.f32 %v309, %v377
    %v379 = vpop.f32.mrb[0].mxu0
    %380 = vdwg.mxu0
    %s381 = scalar_lea.vmem %s1, 48
    %v382 = vld [vmem:[%s381] sm:$0xff]
    %v383 = vld [vmem:[%s381 + $0x8] sm:$0xff]
    %s384 = scalar_lea.vmem %s3, 3
    %v385 = vld [vmem:[%s384] sm:$0x1]
    %v387 = vlaneseq
    %v388 = vshrl.u32 %v387, 7
    %v389 = vsub.s32 0, %v388
    %v390 = vrot.slane %v385, %v389
    %392 = vmatprep.subr.mxu0 0.0
    %393 = vmatpush1.msra.mxu0 %v382
    %394 = vmatprep.subr.mxu0 0.0
    %395 = vmatpush1.msra.mxu0 %v383
    %396 = vmatprep.subr.mxu0 0.0
    %397 = vmatpush1.msra.mxu0 0.0
    %398 = vmatprep.subr.mxu0 0.0
    %399 = vmatpush1.msra.mxu0 0.0
    %400 = vmatprep.subr.mxu0 0.0
    %401 = vmatpush1.msra.mxu0 0.0
    %402 = vmatprep.subr.mxu0 0.0
    %403 = vmatpush1.msra.mxu0 0.0
    %404 = vmatprep.subr.mxu0 0.0
    %405 = vmatpush1.msra.mxu0 0.0
    %406 = vmatprep.subr.mxu0 0.0
    %407 = vmatpush1.msra.mxu0 0.0
    %408 = vmatprep.subr.mxu0 0.0
    %409 = vmatpush1.msra.mxu0 0.0
    %410 = vmatprep.subr.mxu0 0.0
    %411 = vmatpush1.msra.mxu0 0.0
    %412 = vmatprep.subr.mxu0 0.0
    %413 = vmatpush1.msra.mxu0 0.0
    %414 = vmatprep.subr.mxu0 0.0
    %415 = vmatpush1.msra.mxu0 0.0
    %416 = vmatprep.subr.mxu0 0.0
    %417 = vmatpush1.msra.mxu0 0.0
    %418 = vmatprep.subr.mxu0 0.0
    %419 = vmatpush1.msra.mxu0 0.0
    %420 = vmatprep.subr.mxu0 0.0
    %421 = vmatpush1.msra.mxu0 0.0
    %422 = vmatprep.subr.mxu0 0.0
    %423 = vmatpush1.msra.mxu0 0.0
    %424 = vmatprep.subr.mxu0 0.0
    %425 = vmatpush1.msra.mxu0 0.0
    %426 = vmatprep.subr.mxu0 0.0
    %427 = vmatpush1.msra.mxu0 0.0
    %428 = vmatprep.subr.mxu0 0.0
    %429 = vmatpush1.msra.mxu0 0.0
    %430 = vmatprep.subr.mxu0 0.0
    %431 = vmatpush1.msra.mxu0 0.0
    %432 = vmatprep.subr.mxu0 0.0
    %433 = vmatpush1.msra.mxu0 0.0
    %434 = vmatprep.subr.mxu0 0.0
    %435 = vmatpush1.msra.mxu0 0.0
    %436 = vmatprep.subr.mxu0 0.0
    %437 = vmatpush1.msra.mxu0 0.0
    %438 = vmatprep.subr.mxu0 0.0
    %439 = vmatpush1.msra.mxu0 0.0
    %440 = vmatprep.subr.mxu0 0.0
    %441 = vmatpush1.msra.mxu0 0.0
    %442 = vmatprep.subr.mxu0 0.0
    %443 = vmatpush1.msra.mxu0 0.0
    %444 = vmatprep.subr.mxu0 0.0
    %445 = vmatpush1.msra.mxu0 0.0
    %446 = vmatprep.subr.mxu0 0.0
    %447 = vmatpush1.msra.mxu0 0.0
    %448 = vmatprep.subr.mxu0 0.0
    %449 = vmatpush1.msra.mxu0 0.0
    %450 = vmatprep.subr.mxu0 0.0
    %451 = vmatpush1.msra.mxu0 0.0
    %452 = vmatprep.subr.mxu0 0.0
    %453 = vmatpush1.msra.mxu0 0.0
    %454 = vmatprep.subr.mxu0 0.0
    %455 = vmatpush1.msra.mxu0 0.0
    %456 = vmatprep.mubr.f32.mxu0 0.0
    %457 = vmatmul.mubr.f32.gmra.mrb[0].mxu0 %v147
    %v458 = vpop.f32.mrb[0].mxu0
    %v459 = vadd.f32 %v390, %v458
    %v460 = vpop.f32.mrb[0].mxu0
    %461 = vdwg.mxu0
    %v462 = vld [vmem:[#allocation3] sm:$0xff]
    %v463 = vld [vmem:[#allocation3 + $0x8] sm:$0xff]
    %v464 = vld [vmem:[#allocation3 + $0x10] sm:$0xff]
    %v465 = vld [vmem:[#allocation3 + $0x18] sm:$0xff]
    %s466 = scalar_lea.vmem [#allocation3], 32
    %v467 = vld [vmem:[%s466] sm:$0xff]
    %v468 = vld [vmem:[%s466 + $0x8] sm:$0xff]
    %v469 = vld [vmem:[%s466 + $0x10] sm:$0xff]
    %v470 = vld [vmem:[%s466 + $0x18] sm:$0xff]
    %s471 = scalar_lea.vmem [#allocation3], 64
    %v472 = vld [vmem:[%s471] sm:$0xff]
    %v473 = vld [vmem:[%s471 + $0x8] sm:$0xff]
    %v474 = vld [vmem:[%s471 + $0x10] sm:$0xff]
    %v475 = vld [vmem:[%s471 + $0x18] sm:$0xff]
    %s476 = scalar_lea.vmem [#allocation3], 96
    %v477 = vld [vmem:[%s476] sm:$0xff]
    %v478 = vld [vmem:[%s476 + $0x8] sm:$0xff]
    %v479 = vld [vmem:[%s476 + $0x10] sm:$0xff]
    %v480 = vld [vmem:[%s476 + $0x18] sm:$0xff]
    %vm481 = vcmask 261120
    %v483 = vsel %vm481, 0.0, 0
    %485 = vmatprep.subr.mxu0 0.0
    %486 = vmatpush1.msra.mxu0 %v462
    %487 = vmatprep.subr.mxu0 0.0
    %488 = vmatpush1.msra.mxu0 %v463
    %489 = vmatprep.subr.mxu0 0.0
    %490 = vmatpush1.msra.mxu0 %v464
    %491 = vmatprep.subr.mxu0 0.0
    %492 = vmatpush1.msra.mxu0 %v465
    %493 = vmatprep.subr.mxu0 0.0
    %494 = vmatpush1.msra.mxu0 0.0
    %495 = vmatprep.subr.mxu0 0.0
    %496 = vmatpush1.msra.mxu0 0.0
    %497 = vmatprep.subr.mxu0 0.0
    %498 = vmatpush1.msra.mxu0 0.0
    %499 = vmatprep.subr.mxu0 0.0
    %500 = vmatpush1.msra.mxu0 0.0
    %501 = vmatprep.subr.mxu0 0.0
    %502 = vmatpush1.msra.mxu0 0.0
    %503 = vmatprep.subr.mxu0 0.0
    %504 = vmatpush1.msra.mxu0 0.0
    %505 = vmatprep.subr.mxu0 0.0
    %506 = vmatpush1.msra.mxu0 0.0
    %507 = vmatprep.subr.mxu0 0.0
    %508 = vmatpush1.msra.mxu0 0.0
    %509 = vmatprep.subr.mxu0 0.0
    %510 = vmatpush1.msra.mxu0 0.0
    %511 = vmatprep.subr.mxu0 0.0
    %512 = vmatpush1.msra.mxu0 0.0
    %513 = vmatprep.subr.mxu0 0.0
    %514 = vmatpush1.msra.mxu0 0.0
    %515 = vmatprep.subr.mxu0 0.0
    %516 = vmatpush1.msra.mxu0 0.0
    %517 = vmatprep.subr.mxu0 0.0
    %518 = vmatpush1.msra.mxu0 0.0
    %519 = vmatprep.subr.mxu0 0.0
    %520 = vmatpush1.msra.mxu0 0.0
    %521 = vmatprep.subr.mxu0 0.0
    %522 = vmatpush1.msra.mxu0 0.0
    %523 = vmatprep.subr.mxu0 0.0
    %524 = vmatpush1.msra.mxu0 0.0
    %525 = vmatprep.subr.mxu0 0.0
    %526 = vmatpush1.msra.mxu0 0.0
    %527 = vmatprep.subr.mxu0 0.0
    %528 = vmatpush1.msra.mxu0 0.0
    %529 = vmatprep.subr.mxu0 0.0
    %530 = vmatpush1.msra.mxu0 0.0
    %531 = vmatprep.subr.mxu0 0.0
    %532 = vmatpush1.msra.mxu0 0.0
    %533 = vmatprep.subr.mxu0 0.0
    %534 = vmatpush1.msra.mxu0 0.0
    %535 = vmatprep.subr.mxu0 0.0
    %536 = vmatpush1.msra.mxu0 0.0
    %537 = vmatprep.subr.mxu0 0.0
    %538 = vmatpush1.msra.mxu0 0.0
    %539 = vmatprep.subr.mxu0 0.0
    %540 = vmatpush1.msra.mxu0 0.0
    %541 = vmatprep.subr.mxu0 0.0
    %542 = vmatpush1.msra.mxu0 0.0
    %543 = vmatprep.subr.mxu0 0.0
    %544 = vmatpush1.msra.mxu0 0.0
    %545 = vmatprep.subr.mxu0 0.0
    %546 = vmatpush1.msra.mxu0 0.0
    %547 = vmatprep.subr.mxu0 0.0
    %548 = vmatpush1.msra.mxu0 0.0
    %549 = vmatprep.mubr.f32.mxu0 0.0
    %550 = vmatmul.mubr.f32.gmra.mrb[0].mxu0 %v483
    %v551 = vpop.f32.mrb[0].mxu0
    %v552 = vadd.f32 0.0, %v551
    %v553 = vpop.f32.mrb[0].mxu0
    %554 = vdwg.mxu0
    %v555 = vadd.f32 %v216, %v552
    %v556 = vxor.u32 %v555, 2147483648
    %v557 = vmul.f32 %v556, 1.442695
    %v558 = vpow.pop %v557
    %v559 = vadd.f32 %v558, 1.0
    %v560 = vrcp.pop %v559
    %v561 = vmul.f32 1.0, %v560
    %562 = vmatprep.subr.mxu0 0.0
    %563 = vmatpush1.msra.mxu0 %v467
    %564 = vmatprep.subr.mxu0 0.0
    %565 = vmatpush1.msra.mxu0 %v468
    %566 = vmatprep.subr.mxu0 0.0
    %567 = vmatpush1.msra.mxu0 %v469
    %568 = vmatprep.subr.mxu0 0.0
    %569 = vmatpush1.msra.mxu0 %v470
    %570 = vmatprep.subr.mxu0 0.0
    %571 = vmatpush1.msra.mxu0 0.0
    %572 = vmatprep.subr.mxu0 0.0
    %573 = vmatpush1.msra.mxu0 0.0
    %574 = vmatprep.subr.mxu0 0.0
    %575 = vmatpush1.msra.mxu0 0.0
    %576 = vmatprep.subr.mxu0 0.0
    %577 = vmatpush1.msra.mxu0 0.0
    %578 = vmatprep.subr.mxu0 0.0
    %579 = vmatpush1.msra.mxu0 0.0
    %580 = vmatprep.subr.mxu0 0.0
    %581 = vmatpush1.msra.mxu0 0.0
    %582 = vmatprep.subr.mxu0 0.0
    %583 = vmatpush1.msra.mxu0 0.0
    %584 = vmatprep.subr.mxu0 0.0
    %585 = vmatpush1.msra.mxu0 0.0
    %586 = vmatprep.subr.mxu0 0.0
    %587 = vmatpush1.msra.mxu0 0.0
    %588 = vmatprep.subr.mxu0 0.0
    %589 = vmatpush1.msra.mxu0 0.0
    %590 = vmatprep.subr.mxu0 0.0
    %591 = vmatpush1.msra.mxu0 0.0
    %592 = vmatprep.subr.mxu0 0.0
    %593 = vmatpush1.msra.mxu0 0.0
    %594 = vmatprep.subr.mxu0 0.0
    %595 = vmatpush1.msra.mxu0 0.0
    %596 = vmatprep.subr.mxu0 0.0
    %597 = vmatpush1.msra.mxu0 0.0
    %598 = vmatprep.subr.mxu0 0.0
    %599 = vmatpush1.msra.mxu0 0.0
    %600 = vmatprep.subr.mxu0 0.0
    %601 = vmatpush1.msra.mxu0 0.0
    %602 = vmatprep.subr.mxu0 0.0
    %603 = vmatpush1.msra.mxu0 0.0
    %604 = vmatprep.subr.mxu0 0.0
    %605 = vmatpush1.msra.mxu0 0.0
    %606 = vmatprep.subr.mxu0 0.0
    %607 = vmatpush1.msra.mxu0 0.0
    %608 = vmatprep.subr.mxu0 0.0
    %609 = vmatpush1.msra.mxu0 0.0
    %610 = vmatprep.subr.mxu0 0.0
    %611 = vmatpush1.msra.mxu0 0.0
    %612 = vmatprep.subr.mxu0 0.0
    %613 = vmatpush1.msra.mxu0 0.0
    %614 = vmatprep.subr.mxu0 0.0
    %615 = vmatpush1.msra.mxu0 0.0
    %616 = vmatprep.subr.mxu0 0.0
    %617 = vmatpush1.msra.mxu0 0.0
    %618 = vmatprep.subr.mxu0 0.0
    %619 = vmatpush1.msra.mxu0 0.0
    %620 = vmatprep.subr.mxu0 0.0
    %621 = vmatpush1.msra.mxu0 0.0
    %622 = vmatprep.subr.mxu0 0.0
    %623 = vmatpush1.msra.mxu0 0.0
    %624 = vmatprep.subr.mxu0 0.0
    %625 = vmatpush1.msra.mxu0 0.0
    %626 = vmatprep.mubr.f32.mxu0 0.0
    %627 = vmatmul.mubr.f32.gmra.mrb[0].mxu0 %v483
    %v628 = vpop.f32.mrb[0].mxu0
    %v629 = vadd.f32 0.0, %v628
    %v630 = vpop.f32.mrb[0].mxu0
    %631 = vdwg.mxu0
    %v632 = vadd.f32 %v297, %v629
    %v633 = vxor.u32 %v632, 2147483648
    %v634 = vmul.f32 %v633, 1.442695
    %v635 = vpow.pop %v634
    %v636 = vadd.f32 %v635, 1.0
    %v637 = vrcp.pop %v636
    %v638 = vmul.f32 1.0, %v637
    %639 = vmatprep.subr.mxu0 0.0
    %640 = vmatpush1.msra.mxu0 %v472
    %641 = vmatprep.subr.mxu0 0.0
    %642 = vmatpush1.msra.mxu0 %v473
    %643 = vmatprep.subr.mxu0 0.0
    %644 = vmatpush1.msra.mxu0 %v474
    %645 = vmatprep.subr.mxu0 0.0
    %646 = vmatpush1.msra.mxu0 %v475
    %647 = vmatprep.subr.mxu0 0.0
    %648 = vmatpush1.msra.mxu0 0.0
    %649 = vmatprep.subr.mxu0 0.0
    %650 = vmatpush1.msra.mxu0 0.0
    %651 = vmatprep.subr.mxu0 0.0
    %652 = vmatpush1.msra.mxu0 0.0
    %653 = vmatprep.subr.mxu0 0.0
    %654 = vmatpush1.msra.mxu0 0.0
    %655 = vmatprep.subr.mxu0 0.0
    %656 = vmatpush1.msra.mxu0 0.0
    %657 = vmatprep.subr.mxu0 0.0
    %658 = vmatpush1.msra.mxu0 0.0
    %659 = vmatprep.subr.mxu0 0.0
    %660 = vmatpush1.msra.mxu0 0.0
    %661 = vmatprep.subr.mxu0 0.0
    %662 = vmatpush1.msra.mxu0 0.0
    %663 = vmatprep.subr.mxu0 0.0
    %664 = vmatpush1.msra.mxu0 0.0
    %665 = vmatprep.subr.mxu0 0.0
    %666 = vmatpush1.msra.mxu0 0.0
    %667 = vmatprep.subr.mxu0 0.0
    %668 = vmatpush1.msra.mxu0 0.0
    %669 = vmatprep.subr.mxu0 0.0
    %670 = vmatpush1.msra.mxu0 0.0
    %671 = vmatprep.subr.mxu0 0.0
    %672 = vmatpush1.msra.mxu0 0.0
    %673 = vmatprep.subr.mxu0 0.0
    %674 = vmatpush1.msra.mxu0 0.0
    %675 = vmatprep.subr.mxu0 0.0
    %676 = vmatpush1.msra.mxu0 0.0
    %677 = vmatprep.subr.mxu0 0.0
    %678 = vmatpush1.msra.mxu0 0.0
    %679 = vmatprep.subr.mxu0 0.0
    %680 = vmatpush1.msra.mxu0 0.0
    %681 = vmatprep.subr.mxu0 0.0
    %682 = vmatpush1.msra.mxu0 0.0
    %683 = vmatprep.subr.mxu0 0.0
    %684 = vmatpush1.msra.mxu0 0.0
    %685 = vmatprep.subr.mxu0 0.0
    %686 = vmatpush1.msra.mxu0 0.0
    %687 = vmatprep.subr.mxu0 0.0
    %688 = vmatpush1.msra.mxu0 0.0
    %689 = vmatprep.subr.mxu0 0.0
    %690 = vmatpush1.msra.mxu0 0.0
    %691 = vmatprep.subr.mxu0 0.0
    %692 = vmatpush1.msra.mxu0 0.0
    %693 = vmatprep.subr.mxu0 0.0
    %694 = vmatpush1.msra.mxu0 0.0
    %695 = vmatprep.subr.mxu0 0.0
    %696 = vmatpush1.msra.mxu0 0.0
    %697 = vmatprep.subr.mxu0 0.0
    %698 = vmatpush1.msra.mxu0 0.0
    %699 = vmatprep.subr.mxu0 0.0
    %700 = vmatpush1.msra.mxu0 0.0
    %701 = vmatprep.subr.mxu0 0.0
    %702 = vmatpush1.msra.mxu0 0.0
    %703 = vmatprep.mubr.f32.mxu0 0.0
    %704 = vmatmul.mubr.f32.gmra.mrb[0].mxu0 %v483
    %v705 = vpop.f32.mrb[0].mxu0
    %v706 = vadd.f32 0.0, %v705
    %v707 = vpop.f32.mrb[0].mxu0
    %708 = vdwg.mxu0
    %v709 = vadd.f32 %v378, %v706
    %v710 = vtanh.pop %v709
    %711 = vmatprep.subr.mxu0 0.0
    %712 = vmatpush1.msra.mxu0 %v477
    %713 = vmatprep.subr.mxu0 0.0
    %714 = vmatpush1.msra.mxu0 %v478
    %715 = vmatprep.subr.mxu0 0.0
    %716 = vmatpush1.msra.mxu0 %v479
    %717 = vmatprep.subr.mxu0 0.0
    %718 = vmatpush1.msra.mxu0 %v480
    %719 = vmatprep.subr.mxu0 0.0
    %720 = vmatpush1.msra.mxu0 0.0
    %721 = vmatprep.subr.mxu0 0.0
    %722 = vmatpush1.msra.mxu0 0.0
    %723 = vmatprep.subr.mxu0 0.0
    %724 = vmatpush1.msra.mxu0 0.0
    %725 = vmatprep.subr.mxu0 0.0
    %726 = vmatpush1.msra.mxu0 0.0
    %727 = vmatprep.subr.mxu0 0.0
    %728 = vmatpush1.msra.mxu0 0.0
    %729 = vmatprep.subr.mxu0 0.0
    %730 = vmatpush1.msra.mxu0 0.0
    %731 = vmatprep.subr.mxu0 0.0
    %732 = vmatpush1.msra.mxu0 0.0
    %733 = vmatprep.subr.mxu0 0.0
    %734 = vmatpush1.msra.mxu0 0.0
    %735 = vmatprep.subr.mxu0 0.0
    %736 = vmatpush1.msra.mxu0 0.0
    %737 = vmatprep.subr.mxu0 0.0
    %738 = vmatpush1.msra.mxu0 0.0
    %739 = vmatprep.subr.mxu0 0.0
    %740 = vmatpush1.msra.mxu0 0.0
    %741 = vmatprep.subr.mxu0 0.0
    %742 = vmatpush1.msra.mxu0 0.0
    %743 = vmatprep.subr.mxu0 0.0
    %744 = vmatpush1.msra.mxu0 0.0
    %745 = vmatprep.subr.mxu0 0.0
    %746 = vmatpush1.msra.mxu0 0.0
    %747 = vmatprep.subr.mxu0 0.0
    %748 = vmatpush1.msra.mxu0 0.0
    %749 = vmatprep.subr.mxu0 0.0
    %750 = vmatpush1.msra.mxu0 0.0
    %751 = vmatprep.subr.mxu0 0.0
    %752 = vmatpush1.msra.mxu0 0.0
    %753 = vmatprep.subr.mxu0 0.0
    %754 = vmatpush1.msra.mxu0 0.0
    %755 = vmatprep.subr.mxu0 0.0
    %756 = vmatpush1.msra.mxu0 0.0
    %757 = vmatprep.subr.mxu0 0.0
    %758 = vmatpush1.msra.mxu0 0.0
    %759 = vmatprep.subr.mxu0 0.0
    %760 = vmatpush1.msra.mxu0 0.0
    %761 = vmatprep.subr.mxu0 0.0
    %762 = vmatpush1.msra.mxu0 0.0
    %763 = vmatprep.subr.mxu0 0.0
    %764 = vmatpush1.msra.mxu0 0.0
    %765 = vmatprep.subr.mxu0 0.0
    %766 = vmatpush1.msra.mxu0 0.0
    %767 = vmatprep.subr.mxu0 0.0
    %768 = vmatpush1.msra.mxu0 0.0
    %769 = vmatprep.subr.mxu0 0.0
    %770 = vmatpush1.msra.mxu0 0.0
    %771 = vmatprep.subr.mxu0 0.0
    %772 = vmatpush1.msra.mxu0 0.0
    %773 = vmatprep.subr.mxu0 0.0
    %774 = vmatpush1.msra.mxu0 0.0
    %775 = vmatprep.mubr.f32.mxu0 0.0
    %776 = vmatmul.mubr.f32.gmra.mrb[0].mxu0 %v483
    %v777 = vpop.f32.mrb[0].mxu0
    %v778 = vadd.f32 0.0, %v777
    %v779 = vpop.f32.mrb[0].mxu0
    %780 = vdwg.mxu0
    %v781 = vadd.f32 %v459, %v778
    %v782 = vxor.u32 %v781, 2147483648
    %v783 = vmul.f32 %v782, 1.442695
    %v784 = vpow.pop %v783
    %v785 = vadd.f32 %v784, 1.0
    %v786 = vrcp.pop %v785
    %v787 = vmul.f32 1.0, %v786
    %v788 = vmul.f32 %v638, 0.0
    %v789 = vmul.f32 %v561, %v710
    %v790 = vadd.f32 %v788, %v789
    %v791 = vtanh.pop %v790
    %v792 = vmul.f32 %v787, %v791
    %v794 = vsel %vm481, %v792, 0
    %796 = vmatprep.subr.mxu0 0.0
    %797 = vmatpush1.msra.mxu0 %v462
    %798 = vmatprep.subr.mxu0 0.0
    %799 = vmatpush1.msra.mxu0 %v463
    %800 = vmatprep.subr.mxu0 0.0
    %801 = vmatpush1.msra.mxu0 %v464
    %802 = vmatprep.subr.mxu0 0.0
    %803 = vmatpush1.msra.mxu0 %v465
    %804 = vmatprep.subr.mxu0 0.0
    %805 = vmatpush1.msra.mxu0 0.0
    %806 = vmatprep.subr.mxu0 0.0
    %807 = vmatpush1.msra.mxu0 0.0
    %808 = vmatprep.subr.mxu0 0.0
    %809 = vmatpush1.msra.mxu0 0.0
    %810 = vmatprep.subr.mxu0 0.0
    %811 = vmatpush1.msra.mxu0 0.0
    %812 = vmatprep.subr.mxu0 0.0
    %813 = vmatpush1.msra.mxu0 0.0
    %814 = vmatprep.subr.mxu0 0.0
    %815 = vmatpush1.msra.mxu0 0.0
    %816 = vmatprep.subr.mxu0 0.0
    %817 = vmatpush1.msra.mxu0 0.0
    %818 = vmatprep.subr.mxu0 0.0
    %819 = vmatpush1.msra.mxu0 0.0
    %820 = vmatprep.subr.mxu0 0.0
    %821 = vmatpush1.msra.mxu0 0.0
    %822 = vmatprep.subr.mxu0 0.0
    %823 = vmatpush1.msra.mxu0 0.0
    %824 = vmatprep.subr.mxu0 0.0
    %825 = vmatpush1.msra.mxu0 0.0
    %826 = vmatprep.subr.mxu0 0.0
    %827 = vmatpush1.msra.mxu0 0.0
    %828 = vmatprep.subr.mxu0 0.0
    %829 = vmatpush1.msra.mxu0 0.0
    %830 = vmatprep.subr.mxu0 0.0
    %831 = vmatpush1.msra.mxu0 0.0
    %832 = vmatprep.subr.mxu0 0.0
    %833 = vmatpush1.msra.mxu0 0.0
    %834 = vmatprep.subr.mxu0 0.0
    %835 = vmatpush1.msra.mxu0 0.0
    %836 = vmatprep.subr.mxu0 0.0
    %837 = vmatpush1.msra.mxu0 0.0
    %838 = vmatprep.subr.mxu0 0.0
    %839 = vmatpush1.msra.mxu0 0.0
    %840 = vmatprep.subr.mxu0 0.0
    %841 = vmatpush1.msra.mxu0 0.0
    %842 = vmatprep.subr.mxu0 0.0
    %843 = vmatpush1.msra.mxu0 0.0
    %844 = vmatprep.subr.mxu0 0.0
    %845 = vmatpush1.msra.mxu0 0.0
    %846 = vmatprep.subr.mxu0 0.0
    %847 = vmatpush1.msra.mxu0 0.0
    %848 = vmatprep.subr.mxu0 0.0
    %849 = vmatpush1.msra.mxu0 0.0
    %850 = vmatprep.subr.mxu0 0.0
    %851 = vmatpush1.msra.mxu0 0.0
    %852 = vmatprep.subr.mxu0 0.0
    %853 = vmatpush1.msra.mxu0 0.0
    %854 = vmatprep.subr.mxu0 0.0
    %855 = vmatpush1.msra.mxu0 0.0
    %856 = vmatprep.subr.mxu0 0.0
    %857 = vmatpush1.msra.mxu0 0.0
    %858 = vmatprep.subr.mxu0 0.0
    %859 = vmatpush1.msra.mxu0 0.0
    %860 = vmatprep.mubr.f32.mxu0 0.0
    %861 = vmatmul.mubr.f32.gmra.mrb[0].mxu0 %v794
    %v862 = vpop.f32.mrb[0].mxu0
    %v863 = vadd.f32 0.0, %v862
    %v864 = vpop.f32.mrb[0].mxu0
    %865 = vdwg.mxu0
    %v867 = vrot.slane %v863, 6
    %v869 = vadd.f32 %v216, %v867
    %v870 = vxor.u32 %v869, 2147483648
    %v871 = vmul.f32 %v870, 1.442695
    %v872 = vpow.pop %v871
    %v873 = vadd.f32 %v872, 1.0
    %v874 = vrcp.pop %v873
    %v875 = vmul.f32 1.0, %v874
    %876 = vmatprep.subr.mxu0 0.0
    %877 = vmatpush1.msra.mxu0 %v467
    %878 = vmatprep.subr.mxu0 0.0
    %879 = vmatpush1.msra.mxu0 %v468
    %880 = vmatprep.subr.mxu0 0.0
    %881 = vmatpush1.msra.mxu0 %v469
    %882 = vmatprep.subr.mxu0 0.0
    %883 = vmatpush1.msra.mxu0 %v470
    %884 = vmatprep.subr.mxu0 0.0
    %885 = vmatpush1.msra.mxu0 0.0
    %886 = vmatprep.subr.mxu0 0.0
    %887 = vmatpush1.msra.mxu0 0.0
    %888 = vmatprep.subr.mxu0 0.0
    %889 = vmatpush1.msra.mxu0 0.0
    %890 = vmatprep.subr.mxu0 0.0
    %891 = vmatpush1.msra.mxu0 0.0
    %892 = vmatprep.subr.mxu0 0.0
    %893 = vmatpush1.msra.mxu0 0.0
    %894 = vmatprep.subr.mxu0 0.0
    %895 = vmatpush1.msra.mxu0 0.0
    %896 = vmatprep.subr.mxu0 0.0
    %897 = vmatpush1.msra.mxu0 0.0
    %898 = vmatprep.subr.mxu0 0.0
    %899 = vmatpush1.msra.mxu0 0.0
    %900 = vmatprep.subr.mxu0 0.0
    %901 = vmatpush1.msra.mxu0 0.0
    %902 = vmatprep.subr.mxu0 0.0
    %903 = vmatpush1.msra.mxu0 0.0
    %904 = vmatprep.subr.mxu0 0.0
    %905 = vmatpush1.msra.mxu0 0.0
    %906 = vmatprep.subr.mxu0 0.0
    %907 = vmatpush1.msra.mxu0 0.0
    %908 = vmatprep.subr.mxu0 0.0
    %909 = vmatpush1.msra.mxu0 0.0
    %910 = vmatprep.subr.mxu0 0.0
    %911 = vmatpush1.msra.mxu0 0.0
    %912 = vmatprep.subr.mxu0 0.0
    %913 = vmatpush1.msra.mxu0 0.0
    %914 = vmatprep.subr.mxu0 0.0
    %915 = vmatpush1.msra.mxu0 0.0
    %916 = vmatprep.subr.mxu0 0.0
    %917 = vmatpush1.msra.mxu0 0.0
    %918 = vmatprep.subr.mxu0 0.0
    %919 = vmatpush1.msra.mxu0 0.0
    %920 = vmatprep.subr.mxu0 0.0
    %921 = vmatpush1.msra.mxu0 0.0
    %922 = vmatprep.subr.mxu0 0.0
    %923 = vmatpush1.msra.mxu0 0.0
    %924 = vmatprep.subr.mxu0 0.0
    %925 = vmatpush1.msra.mxu0 0.0
    %926 = vmatprep.subr.mxu0 0.0
    %927 = vmatpush1.msra.mxu0 0.0
    %928 = vmatprep.subr.mxu0 0.0
    %929 = vmatpush1.msra.mxu0 0.0
    %930 = vmatprep.subr.mxu0 0.0
    %931 = vmatpush1.msra.mxu0 0.0
    %932 = vmatprep.subr.mxu0 0.0
    %933 = vmatpush1.msra.mxu0 0.0
    %934 = vmatprep.subr.mxu0 0.0
    %935 = vmatpush1.msra.mxu0 0.0
    %936 = vmatprep.subr.mxu0 0.0
    %937 = vmatpush1.msra.mxu0 0.0
    %938 = vmatprep.subr.mxu0 0.0
    %939 = vmatpush1.msra.mxu0 0.0
    %940 = vmatprep.mubr.f32.mxu0 0.0
    %941 = vmatmul.mubr.f32.gmra.mrb[0].mxu0 %v794
    %v942 = vpop.f32.mrb[0].mxu0
    %v943 = vadd.f32 0.0, %v942
    %v944 = vpop.f32.mrb[0].mxu0
    %945 = vdwg.mxu0
    %v947 = vrot.slane %v943, 6
    %v949 = vadd.f32 %v297, %v947
    %v950 = vxor.u32 %v949, 2147483648
    %v951 = vmul.f32 %v950, 1.442695
    %v952 = vpow.pop %v951
    %v953 = vadd.f32 %v952, 1.0
    %v954 = vrcp.pop %v953
    %v955 = vmul.f32 1.0, %v954
    %956 = vmatprep.subr.mxu0 0.0
    %957 = vmatpush1.msra.mxu0 %v472
    %958 = vmatprep.subr.mxu0 0.0
    %959 = vmatpush1.msra.mxu0 %v473
    %960 = vmatprep.subr.mxu0 0.0
    %961 = vmatpush1.msra.mxu0 %v474
    %962 = vmatprep.subr.mxu0 0.0
    %963 = vmatpush1.msra.mxu0 %v475
    %964 = vmatprep.subr.mxu0 0.0
    %965 = vmatpush1.msra.mxu0 0.0
    %966 = vmatprep.subr.mxu0 0.0
    %967 = vmatpush1.msra.mxu0 0.0
    %968 = vmatprep.subr.mxu0 0.0
    %969 = vmatpush1.msra.mxu0 0.0
    %970 = vmatprep.subr.mxu0 0.0
    %971 = vmatpush1.msra.mxu0 0.0
    %972 = vmatprep.subr.mxu0 0.0
    %973 = vmatpush1.msra.mxu0 0.0
    %974 = vmatprep.subr.mxu0 0.0
    %975 = vmatpush1.msra.mxu0 0.0
    %976 = vmatprep.subr.mxu0 0.0
    %977 = vmatpush1.msra.mxu0 0.0
    %978 = vmatprep.subr.mxu0 0.0
    %979 = vmatpush1.msra.mxu0 0.0
    %980 = vmatprep.subr.mxu0 0.0
    %981 = vmatpush1.msra.mxu0 0.0
    %982 = vmatprep.subr.mxu0 0.0
    %983 = vmatpush1.msra.mxu0 0.0
    %984 = vmatprep.subr.mxu0 0.0
    %985 = vmatpush1.msra.mxu0 0.0
    %986 = vmatprep.subr.mxu0 0.0
    %987 = vmatpush1.msra.mxu0 0.0
    %988 = vmatprep.subr.mxu0 0.0
    %989 = vmatpush1.msra.mxu0 0.0
    %990 = vmatprep.subr.mxu0 0.0
    %991 = vmatpush1.msra.mxu0 0.0
    %992 = vmatprep.subr.mxu0 0.0
    %993 = vmatpush1.msra.mxu0 0.0
    %994 = vmatprep.subr.mxu0 0.0
    %995 = vmatpush1.msra.mxu0 0.0
    %996 = vmatprep.subr.mxu0 0.0
    %997 = vmatpush1.msra.mxu0 0.0
    %998 = vmatprep.subr.mxu0 0.0
    %999 = vmatpush1.msra.mxu0 0.0
    %1000 = vmatprep.subr.mxu0 0.0
    %1001 = vmatpush1.msra.mxu0 0.0
    %1002 = vmatprep.subr.mxu0 0.0
    %1003 = vmatpush1.msra.mxu0 0.0
    %1004 = vmatprep.subr.mxu0 0.0
    %1005 = vmatpush1.msra.mxu0 0.0
    %1006 = vmatprep.subr.mxu0 0.0
    %1007 = vmatpush1.msra.mxu0 0.0
    %1008 = vmatprep.subr.mxu0 0.0
    %1009 = vmatpush1.msra.mxu0 0.0
    %1010 = vmatprep.subr.mxu0 0.0
    %1011 = vmatpush1.msra.mxu0 0.0
    %1012 = vmatprep.subr.mxu0 0.0
    %1013 = vmatpush1.msra.mxu0 0.0
    %1014 = vmatprep.subr.mxu0 0.0
    %1015 = vmatpush1.msra.mxu0 0.0
    %1016 = vmatprep.subr.mxu0 0.0
    %1017 = vmatpush1.msra.mxu0 0.0
    %1018 = vmatprep.subr.mxu0 0.0
    %1019 = vmatpush1.msra.mxu0 0.0
    %1020 = vmatprep.mubr.f32.mxu0 0.0
    %1021 = vmatmul.mubr.f32.gmra.mrb[0].mxu0 %v794
    %v1022 = vpop.f32.mrb[0].mxu0
    %v1023 = vadd.f32 0.0, %v1022
    %v1024 = vpop.f32.mrb[0].mxu0
    %1025 = vdwg.mxu0
    %v1027 = vrot.slane %v1023, 6
    %v1029 = vadd.f32 %v378, %v1027
    %v1030 = vtanh.pop %v1029
    %1031 = vmatprep.subr.mxu0 0.0
    %1032 = vmatpush1.msra.mxu0 %v477
    %1033 = vmatprep.subr.mxu0 0.0
    %1034 = vmatpush1.msra.mxu0 %v478
    %1035 = vmatprep.subr.mxu0 0.0
    %1036 = vmatpush1.msra.mxu0 %v479
    %1037 = vmatprep.subr.mxu0 0.0
    %1038 = vmatpush1.msra.mxu0 %v480
    %1039 = vmatprep.subr.mxu0 0.0
    %1040 = vmatpush1.msra.mxu0 0.0
    %1041 = vmatprep.subr.mxu0 0.0
    %1042 = vmatpush1.msra.mxu0 0.0
    %1043 = vmatprep.subr.mxu0 0.0
    %1044 = vmatpush1.msra.mxu0 0.0
    %1045 = vmatprep.subr.mxu0 0.0
    %1046 = vmatpush1.msra.mxu0 0.0
    %1047 = vmatprep.subr.mxu0 0.0
    %1048 = vmatpush1.msra.mxu0 0.0
    %1049 = vmatprep.subr.mxu0 0.0
    %1050 = vmatpush1.msra.mxu0 0.0
    %1051 = vmatprep.subr.mxu0 0.0
    %1052 = vmatpush1.msra.mxu0 0.0
    %1053 = vmatprep.subr.mxu0 0.0
    %1054 = vmatpush1.msra.mxu0 0.0
    %1055 = vmatprep.subr.mxu0 0.0
    %1056 = vmatpush1.msra.mxu0 0.0
    %1057 = vmatprep.subr.mxu0 0.0
    %1058 = vmatpush1.msra.mxu0 0.0
    %1059 = vmatprep.subr.mxu0 0.0
    %1060 = vmatpush1.msra.mxu0 0.0
    %1061 = vmatprep.subr.mxu0 0.0
    %1062 = vmatpush1.msra.mxu0 0.0
    %1063 = vmatprep.subr.mxu0 0.0
    %1064 = vmatpush1.msra.mxu0 0.0
    %1065 = vmatprep.subr.mxu0 0.0
    %1066 = vmatpush1.msra.mxu0 0.0
    %1067 = vmatprep.subr.mxu0 0.0
    %1068 = vmatpush1.msra.mxu0 0.0
    %1069 = vmatprep.subr.mxu0 0.0
    %1070 = vmatpush1.msra.mxu0 0.0
    %1071 = vmatprep.subr.mxu0 0.0
    %1072 = vmatpush1.msra.mxu0 0.0
    %1073 = vmatprep.subr.mxu0 0.0
    %1074 = vmatpush1.msra.mxu0 0.0
    %1075 = vmatprep.subr.mxu0 0.0
    %1076 = vmatpush1.msra.mxu0 0.0
    %1077 = vmatprep.subr.mxu0 0.0
    %1078 = vmatpush1.msra.mxu0 0.0
    %1079 = vmatprep.subr.mxu0 0.0
    %1080 = vmatpush1.msra.mxu0 0.0
    %1081 = vmatprep.subr.mxu0 0.0
    %1082 = vmatpush1.msra.mxu0 0.0
    %1083 = vmatprep.subr.mxu0 0.0
    %1084 = vmatpush1.msra.mxu0 0.0
    %1085 = vmatprep.subr.mxu0 0.0
    %1086 = vmatpush1.msra.mxu0 0.0
    %1087 = vmatprep.subr.mxu0 0.0
    %1088 = vmatpush1.msra.mxu0 0.0
    %1089 = vmatprep.subr.mxu0 0.0
    %1090 = vmatpush1.msra.mxu0 0.0
    %1091 = vmatprep.subr.mxu0 0.0
    %1092 = vmatpush1.msra.mxu0 0.0
    %1093 = vmatprep.subr.mxu0 0.0
    %1094 = vmatpush1.msra.mxu0 0.0
    %1095 = vmatprep.mubr.f32.mxu0 0.0
    %1096 = vmatmul.mubr.f32.gmra.mrb[0].mxu0 %v794
    %v1097 = vpop.f32.mrb[0].mxu0
    %v1098 = vadd.f32 0.0, %v1097
    %v1099 = vpop.f32.mrb[0].mxu0
    %1100 = vdwg.mxu0
    %v1102 = vrot.slane %v1098, 6
    %v1104 = vadd.f32 %v459, %v1102
    %v1105 = vxor.u32 %v1104, 2147483648
    %v1106 = vmul.f32 %v1105, 1.442695
    %v1107 = vpow.pop %v1106
    %v1108 = vadd.f32 %v1107, 1.0
    %v1109 = vrcp.pop %v1108
    %v1110 = vmul.f32 1.0, %v1109
    %v1112 = vrot.slane %v790, 6
    %v1114 = vmul.f32 %v955, %v1112
    %v1115 = vmul.f32 %v875, %v1030
    %v1116 = vadd.f32 %v1114, %v1115
    %v1117 = vtanh.pop %v1116
    %v1118 = vmul.f32 %v1110, %v1117
    %v1120 = vrot.slane %v1118, 2
    %v1121 = vsel %vm481, %v1120, 0
    %1123 = vmatprep.subr.mxu0 0.0
    %1124 = vmatpush1.msra.mxu0 %v462
    %1125 = vmatprep.subr.mxu0 0.0
    %1126 = vmatpush1.msra.mxu0 %v463
    %1127 = vmatprep.subr.mxu0 0.0
    %1128 = vmatpush1.msra.mxu0 %v464
    %1129 = vmatprep.subr.mxu0 0.0
    %1130 = vmatpush1.msra.mxu0 %v465
    %1131 = vmatprep.subr.mxu0 0.0
    %1132 = vmatpush1.msra.mxu0 0.0
    %1133 = vmatprep.subr.mxu0 0.0
    %1134 = vmatpush1.msra.mxu0 0.0
    %1135 = vmatprep.subr.mxu0 0.0
    %1136 = vmatpush1.msra.mxu0 0.0
    %1137 = vmatprep.subr.mxu0 0.0
    %1138 = vmatpush1.msra.mxu0 0.0
    %1139 = vmatprep.subr.mxu0 0.0
    %1140 = vmatpush1.msra.mxu0 0.0
    %1141 = vmatprep.subr.mxu0 0.0
    %1142 = vmatpush1.msra.mxu0 0.0
    %1143 = vmatprep.subr.mxu0 0.0
    %1144 = vmatpush1.msra.mxu0 0.0
    %1145 = vmatprep.subr.mxu0 0.0
    %1146 = vmatpush1.msra.mxu0 0.0
    %1147 = vmatprep.subr.mxu0 0.0
    %1148 = vmatpush1.msra.mxu0 0.0
    %1149 = vmatprep.subr.mxu0 0.0
    %1150 = vmatpush1.msra.mxu0 0.0
    %1151 = vmatprep.subr.mxu0 0.0
    %1152 = vmatpush1.msra.mxu0 0.0
    %1153 = vmatprep.subr.mxu0 0.0
    %1154 = vmatpush1.msra.mxu0 0.0
    %1155 = vmatprep.subr.mxu0 0.0
    %1156 = vmatpush1.msra.mxu0 0.0
    %1157 = vmatprep.subr.mxu0 0.0
    %1158 = vmatpush1.msra.mxu0 0.0
    %1159 = vmatprep.subr.mxu0 0.0
    %1160 = vmatpush1.msra.mxu0 0.0
    %1161 = vmatprep.subr.mxu0 0.0
    %1162 = vmatpush1.msra.mxu0 0.0
    %1163 = vmatprep.subr.mxu0 0.0
    %1164 = vmatpush1.msra.mxu0 0.0
    %1165 = vmatprep.subr.mxu0 0.0
    %1166 = vmatpush1.msra.mxu0 0.0
    %1167 = vmatprep.subr.mxu0 0.0
    %1168 = vmatpush1.msra.mxu0 0.0
    %1169 = vmatprep.subr.mxu0 0.0
    %1170 = vmatpush1.msra.mxu0 0.0
    %1171 = vmatprep.subr.mxu0 0.0
    %1172 = vmatpush1.msra.mxu0 0.0
    %1173 = vmatprep.subr.mxu0 0.0
    %1174 = vmatpush1.msra.mxu0 0.0
    %1175 = vmatprep.subr.mxu0 0.0
    %1176 = vmatpush1.msra.mxu0 0.0
    %1177 = vmatprep.subr.mxu0 0.0
    %1178 = vmatpush1.msra.mxu0 0.0
    %1179 = vmatprep.subr.mxu0 0.0
    %1180 = vmatpush1.msra.mxu0 0.0
    %1181 = vmatprep.subr.mxu0 0.0
    %1182 = vmatpush1.msra.mxu0 0.0
    %1183 = vmatprep.subr.mxu0 0.0
    %1184 = vmatpush1.msra.mxu0 0.0
    %1185 = vmatprep.subr.mxu0 0.0
    %1186 = vmatpush1.msra.mxu0 0.0
    %1187 = vmatprep.mubr.f32.mxu0 0.0
    %1188 = vmatmul.mubr.f32.gmra.mrb[0].mxu0 %v1121
    %v1189 = vpop.f32.mrb[0].mxu0
    %v1190 = vadd.f32 0.0, %v1189
    %v1191 = vpop.f32.mrb[0].mxu0
    %1192 = vdwg.mxu0
    %v1194 = vrot.slane %v1190, 4
    %v1196 = vadd.f32 %v216, %v1194
    %v1197 = vxor.u32 %v1196, 2147483648
    %v1198 = vmul.f32 %v1197, 1.442695
    %v1199 = vpow.pop %v1198
    %v1200 = vadd.f32 %v1199, 1.0
    %v1201 = vrcp.pop %v1200
    %v1202 = vmul.f32 1.0, %v1201
    %1203 = vmatprep.subr.mxu0 0.0
    %1204 = vmatpush1.msra.mxu0 %v467
    %1205 = vmatprep.subr.mxu0 0.0
    %1206 = vmatpush1.msra.mxu0 %v468
    %1207 = vmatprep.subr.mxu0 0.0
    %1208 = vmatpush1.msra.mxu0 %v469
    %1209 = vmatprep.subr.mxu0 0.0
    %1210 = vmatpush1.msra.mxu0 %v470
    %1211 = vmatprep.subr.mxu0 0.0
    %1212 = vmatpush1.msra.mxu0 0.0
    %1213 = vmatprep.subr.mxu0 0.0
    %1214 = vmatpush1.msra.mxu0 0.0
    %1215 = vmatprep.subr.mxu0 0.0
    %1216 = vmatpush1.msra.mxu0 0.0
    %1217 = vmatprep.subr.mxu0 0.0
    %1218 = vmatpush1.msra.mxu0 0.0
    %1219 = vmatprep.subr.mxu0 0.0
    %1220 = vmatpush1.msra.mxu0 0.0
    %1221 = vmatprep.subr.mxu0 0.0
    %1222 = vmatpush1.msra.mxu0 0.0
    %1223 = vmatprep.subr.mxu0 0.0
    %1224 = vmatpush1.msra.mxu0 0.0
    %1225 = vmatprep.subr.mxu0 0.0
    %1226 = vmatpush1.msra.mxu0 0.0
    %1227 = vmatprep.subr.mxu0 0.0
    %1228 = vmatpush1.msra.mxu0 0.0
    %1229 = vmatprep.subr.mxu0 0.0
    %1230 = vmatpush1.msra.mxu0 0.0
    %1231 = vmatprep.subr.mxu0 0.0
    %1232 = vmatpush1.msra.mxu0 0.0
    %1233 = vmatprep.subr.mxu0 0.0
    %1234 = vmatpush1.msra.mxu0 0.0
    %1235 = vmatprep.subr.mxu0 0.0
    %1236 = vmatpush1.msra.mxu0 0.0
    %1237 = vmatprep.subr.mxu0 0.0
    %1238 = vmatpush1.msra.mxu0 0.0
    %1239 = vmatprep.subr.mxu0 0.0
    %1240 = vmatpush1.msra.mxu0 0.0
    %1241 = vmatprep.subr.mxu0 0.0
    %1242 = vmatpush1.msra.mxu0 0.0
    %1243 = vmatprep.subr.mxu0 0.0
    %1244 = vmatpush1.msra.mxu0 0.0
    %1245 = vmatprep.subr.mxu0 0.0
    %1246 = vmatpush1.msra.mxu0 0.0
    %1247 = vmatprep.subr.mxu0 0.0
    %1248 = vmatpush1.msra.mxu0 0.0
    %1249 = vmatprep.subr.mxu0 0.0
    %1250 = vmatpush1.msra.mxu0 0.0
    %1251 = vmatprep.subr.mxu0 0.0
    %1252 = vmatpush1.msra.mxu0 0.0
    %1253 = vmatprep.subr.mxu0 0.0
    %1254 = vmatpush1.msra.mxu0 0.0
    %1255 = vmatprep.subr.mxu0 0.0
    %1256 = vmatpush1.msra.mxu0 0.0
    %1257 = vmatprep.subr.mxu0 0.0
    %1258 = vmatpush1.msra.mxu0 0.0
    %1259 = vmatprep.subr.mxu0 0.0
    %1260 = vmatpush1.msra.mxu0 0.0
    %1261 = vmatprep.subr.mxu0 0.0
    %1262 = vmatpush1.msra.mxu0 0.0
    %1263 = vmatprep.subr.mxu0 0.0
    %1264 = vmatpush1.msra.mxu0 0.0
    %1265 = vmatprep.subr.mxu0 0.0
    %1266 = vmatpush1.msra.mxu0 0.0
    %1267 = vmatprep.mubr.f32.mxu0 0.0
    %1268 = vmatmul.mubr.f32.gmra.mrb[0].mxu0 %v1121
    %v1269 = vpop.f32.mrb[0].mxu0
    %v1270 = vadd.f32 0.0, %v1269
    %v1271 = vpop.f32.mrb[0].mxu0
    %1272 = vdwg.mxu0
    %v1274 = vrot.slane %v1270, 4
    %v1276 = vadd.f32 %v297, %v1274
    %v1277 = vxor.u32 %v1276, 2147483648
    %v1278 = vmul.f32 %v1277, 1.442695
    %v1279 = vpow.pop %v1278
    %v1280 = vadd.f32 %v1279, 1.0
    %v1281 = vrcp.pop %v1280
    %v1282 = vmul.f32 1.0, %v1281
    %1283 = vmatprep.subr.mxu0 0.0
    %1284 = vmatpush1.msra.mxu0 %v472
    %1285 = vmatprep.subr.mxu0 0.0
    %1286 = vmatpush1.msra.mxu0 %v473
    %1287 = vmatprep.subr.mxu0 0.0
    %1288 = vmatpush1.msra.mxu0 %v474
    %1289 = vmatprep.subr.mxu0 0.0
    %1290 = vmatpush1.msra.mxu0 %v475
    %1291 = vmatprep.subr.mxu0 0.0
    %1292 = vmatpush1.msra.mxu0 0.0
    %1293 = vmatprep.subr.mxu0 0.0
    %1294 = vmatpush1.msra.mxu0 0.0
    %1295 = vmatprep.subr.mxu0 0.0
    %1296 = vmatpush1.msra.mxu0 0.0
    %1297 = vmatprep.subr.mxu0 0.0
    %1298 = vmatpush1.msra.mxu0 0.0
    %1299 = vmatprep.subr.mxu0 0.0
    %1300 = vmatpush1.msra.mxu0 0.0
    %1301 = vmatprep.subr.mxu0 0.0
    %1302 = vmatpush1.msra.mxu0 0.0
    %1303 = vmatprep.subr.mxu0 0.0
    %1304 = vmatpush1.msra.mxu0 0.0
    %1305 = vmatprep.subr.mxu0 0.0
    %1306 = vmatpush1.msra.mxu0 0.0
    %1307 = vmatprep.subr.mxu0 0.0
    %1308 = vmatpush1.msra.mxu0 0.0
    %1309 = vmatprep.subr.mxu0 0.0
    %1310 = vmatpush1.msra.mxu0 0.0
    %1311 = vmatprep.subr.mxu0 0.0
    %1312 = vmatpush1.msra.mxu0 0.0
    %1313 = vmatprep.subr.mxu0 0.0
    %1314 = vmatpush1.msra.mxu0 0.0
    %1315 = vmatprep.subr.mxu0 0.0
    %1316 = vmatpush1.msra.mxu0 0.0
    %1317 = vmatprep.subr.mxu0 0.0
    %1318 = vmatpush1.msra.mxu0 0.0
    %1319 = vmatprep.subr.mxu0 0.0
    %1320 = vmatpush1.msra.mxu0 0.0
    %1321 = vmatprep.subr.mxu0 0.0
    %1322 = vmatpush1.msra.mxu0 0.0
    %1323 = vmatprep.subr.mxu0 0.0
    %1324 = vmatpush1.msra.mxu0 0.0
    %1325 = vmatprep.subr.mxu0 0.0
    %1326 = vmatpush1.msra.mxu0 0.0
    %1327 = vmatprep.subr.mxu0 0.0
    %1328 = vmatpush1.msra.mxu0 0.0
    %1329 = vmatprep.subr.mxu0 0.0
    %1330 = vmatpush1.msra.mxu0 0.0
    %1331 = vmatprep.subr.mxu0 0.0
    %1332 = vmatpush1.msra.mxu0 0.0
    %1333 = vmatprep.subr.mxu0 0.0
    %1334 = vmatpush1.msra.mxu0 0.0
    %1335 = vmatprep.subr.mxu0 0.0
    %1336 = vmatpush1.msra.mxu0 0.0
    %1337 = vmatprep.subr.mxu0 0.0
    %1338 = vmatpush1.msra.mxu0 0.0
    %1339 = vmatprep.subr.mxu0 0.0
    %1340 = vmatpush1.msra.mxu0 0.0
    %1341 = vmatprep.subr.mxu0 0.0
    %1342 = vmatpush1.msra.mxu0 0.0
    %1343 = vmatprep.subr.mxu0 0.0
    %1344 = vmatpush1.msra.mxu0 0.0
    %1345 = vmatprep.subr.mxu0 0.0
    %1346 = vmatpush1.msra.mxu0 0.0
    %1347 = vmatprep.mubr.f32.mxu0 0.0
    %1348 = vmatmul.mubr.f32.gmra.mrb[0].mxu0 %v1121
    %v1349 = vpop.f32.mrb[0].mxu0
    %v1350 = vadd.f32 0.0, %v1349
    %v1351 = vpop.f32.mrb[0].mxu0
    %1352 = vdwg.mxu0
    %v1354 = vrot.slane %v1350, 4
    %v1356 = vadd.f32 %v378, %v1354
    %v1357 = vtanh.pop %v1356
    %1358 = vmatprep.subr.mxu0 0.0
    %1359 = vmatpush1.msra.mxu0 %v477
    %1360 = vmatprep.subr.mxu0 0.0
    %1361 = vmatpush1.msra.mxu0 %v478
    %1362 = vmatprep.subr.mxu0 0.0
    %1363 = vmatpush1.msra.mxu0 %v479
    %1364 = vmatprep.subr.mxu0 0.0
    %1365 = vmatpush1.msra.mxu0 %v480
    %1366 = vmatprep.subr.mxu0 0.0
    %1367 = vmatpush1.msra.mxu0 0.0
    %1368 = vmatprep.subr.mxu0 0.0
    %1369 = vmatpush1.msra.mxu0 0.0
    %1370 = vmatprep.subr.mxu0 0.0
    %1371 = vmatpush1.msra.mxu0 0.0
    %1372 = vmatprep.subr.mxu0 0.0
    %1373 = vmatpush1.msra.mxu0 0.0
    %1374 = vmatprep.subr.mxu0 0.0
    %1375 = vmatpush1.msra.mxu0 0.0
    %1376 = vmatprep.subr.mxu0 0.0
    %1377 = vmatpush1.msra.mxu0 0.0
    %1378 = vmatprep.subr.mxu0 0.0
    %1379 = vmatpush1.msra.mxu0 0.0
    %1380 = vmatprep.subr.mxu0 0.0
    %1381 = vmatpush1.msra.mxu0 0.0
    %1382 = vmatprep.subr.mxu0 0.0
    %1383 = vmatpush1.msra.mxu0 0.0
    %1384 = vmatprep.subr.mxu0 0.0
    %1385 = vmatpush1.msra.mxu0 0.0
    %1386 = vmatprep.subr.mxu0 0.0
    %1387 = vmatpush1.msra.mxu0 0.0
    %1388 = vmatprep.subr.mxu0 0.0
    %1389 = vmatpush1.msra.mxu0 0.0
    %1390 = vmatprep.subr.mxu0 0.0
    %1391 = vmatpush1.msra.mxu0 0.0
    %1392 = vmatprep.subr.mxu0 0.0
    %1393 = vmatpush1.msra.mxu0 0.0
    %1394 = vmatprep.subr.mxu0 0.0
    %1395 = vmatpush1.msra.mxu0 0.0
    %1396 = vmatprep.subr.mxu0 0.0
    %1397 = vmatpush1.msra.mxu0 0.0
    %1398 = vmatprep.subr.mxu0 0.0
    %1399 = vmatpush1.msra.mxu0 0.0
    %1400 = vmatprep.subr.mxu0 0.0
    %1401 = vmatpush1.msra.mxu0 0.0
    %1402 = vmatprep.subr.mxu0 0.0
    %1403 = vmatpush1.msra.mxu0 0.0
    %1404 = vmatprep.subr.mxu0 0.0
    %1405 = vmatpush1.msra.mxu0 0.0
    %1406 = vmatprep.subr.mxu0 0.0
    %1407 = vmatpush1.msra.mxu0 0.0
    %1408 = vmatprep.subr.mxu0 0.0
    %1409 = vmatpush1.msra.mxu0 0.0
    %1410 = vmatprep.subr.mxu0 0.0
    %1411 = vmatpush1.msra.mxu0 0.0
    %1412 = vmatprep.subr.mxu0 0.0
    %1413 = vmatpush1.msra.mxu0 0.0
    %1414 = vmatprep.subr.mxu0 0.0
    %1415 = vmatpush1.msra.mxu0 0.0
    %1416 = vmatprep.subr.mxu0 0.0
    %1417 = vmatpush1.msra.mxu0 0.0
    %1418 = vmatprep.subr.mxu0 0.0
    %1419 = vmatpush1.msra.mxu0 0.0
    %1420 = vmatprep.subr.mxu0 0.0
    %1421 = vmatpush1.msra.mxu0 0.0
    %1422 = vmatprep.mubr.f32.mxu0 0.0
    %1423 = vmatmul.mubr.f32.gmra.mrb[0].mxu0 %v1121
    %v1424 = vpop.f32.mrb[0].mxu0
    %v1425 = vadd.f32 0.0, %v1424
    %v1426 = vpop.f32.mrb[0].mxu0
    %1427 = vdwg.mxu0
    %v1429 = vrot.slane %v1425, 4
    %v1431 = vadd.f32 %v459, %v1429
    %v1432 = vxor.u32 %v1431, 2147483648
    %v1433 = vmul.f32 %v1432, 1.442695
    %v1434 = vpow.pop %v1433
    %v1435 = vadd.f32 %v1434, 1.0
    %v1436 = vrcp.pop %v1435
    %v1437 = vmul.f32 1.0, %v1436
    %v1439 = vrot.slane %v1116, 6
    %v1441 = vmul.f32 %v1282, %v1439
    %v1442 = vmul.f32 %v1202, %v1357
    %v1443 = vadd.f32 %v1441, %v1442
    %v1444 = vtanh.pop %v1443
    %v1445 = vmul.f32 %v1437, %v1444
    %vm1446 = vcmp.gt.f32.partialorder %v1445, 0.0
    %v1447 = vmin.f32 %v1445, 0.0
    %v1448 = vmul.f32 %v1447, 1.442695
    %v1449 = vpow.pop %v1448
    %v1450 = vsub.f32 %v1449, 1.0
    %v1451 = vsel %vm1446, %v1445, %v1450
    %vm1452 = vcmask 259076
    %v1453 = vsel %vm1452, %v1451, 0.0
    %1454 = vadd.xlane.f32.xlu0 %v1453
    %v1455 = vpop.xlane.xlu0 %1454
    %v1456 = vrcp.pop 32.0
    %v1457 = vmul.f32 %v1455, %v1456
    %v1458 = vsub.f32 %v1451, %v1457
    %v1459 = vmul.f32 %v1458, %v1458
    %v1460 = vsel %vm1452, %v1459, 0.0
    %1461 = vadd.xlane.f32.xlu0 %v1460
    %v1462 = vpop.xlane.xlu0 %1461
    %v1463 = vmul.f32 %v1462, %v1456
    %v1464 = vadd.f32 %v1463, 1e-05
    %v1465 = vrsqrt.pop %v1464
    %v1466 = vmul.f32 %v1458, %v1465
    %v1467 = vld [vmem:[%s4] sm:$0x1]
    %v1469 = vlaneseq
    %v1470 = vshrl.u32 %v1469, 7
    %v1471 = vsub.s32 0, %v1470
    %v1472 = vrot.slane %v1467, %v1471
    %v1474 = vmul.f32 %v1466, %v1472
    %v1475 = vld [vmem:[%s5] sm:$0x1]
    %v1477 = vlaneseq
    %v1478 = vshrl.u32 %v1477, 7
    %v1479 = vsub.s32 0, %v1478
    %v1480 = vrot.slane %v1475, %v1479
    %v1482 = vadd.f32 %v1474, %v1480
    %v1483 = vld [vmem:[#allocation6] sm:$0xff]
    %v1484 = vld [vmem:[#allocation6 + $0x8] sm:$0xff]
    %v1485 = vld [vmem:[#allocation6 + $0x10] sm:$0xff]
    %v1486 = vld [vmem:[#allocation6 + $0x18] sm:$0xff]
    %v1487 = vld [vmem:[#allocation6 + $0x20] sm:$0xff]
    %v1488 = vld [vmem:[#allocation6 + $0x28] sm:$0xff]
    %v1489 = vld [vmem:[#allocation6 + $0x30] sm:$0xff]
    %v1490 = vld [vmem:[#allocation6 + $0x38] sm:$0xff]
    %v1491 = vld [vmem:[%s7] sm:$0x3]
    %v1493 = vlaneseq
    %v1494 = vshrl.u32 %v1493, 7
    %v1495 = vsub.s32 0, %v1494
    %v1496 = vrot.slane %v1491, %v1495
    %v1497 = vlaneseq
    %v1498 = vshrl.u32 %v1497, 7
    %v1499 = vsub.s32 1, %v1498
    %v1500 = vrot.slane %v1491, %v1499
    %v1504 = vrot.slane %v1482, 4
    %v1505 = vsel %vm481, %v1504, 0
    %1507 = vmatprep.subr.mxu0 %v1484
    %1508 = vmatpush1.msra.mxu0 %v1483
    %1509 = vmatprep.subr.mxu0 %v1486
    %1510 = vmatpush1.msra.mxu0 %v1485
    %1511 = vmatprep.subr.mxu0 %v1488
    %1512 = vmatpush1.msra.mxu0 %v1487
    %1513 = vmatprep.subr.mxu0 %v1490
    %1514 = vmatpush1.msra.mxu0 %v1489
    %1515 = vmatprep.subr.mxu0 0.0
    %1516 = vmatpush1.msra.mxu0 0.0
    %1517 = vmatprep.subr.mxu0 0.0
    %1518 = vmatpush1.msra.mxu0 0.0
    %1519 = vmatprep.subr.mxu0 0.0
    %1520 = vmatpush1.msra.mxu0 0.0
    %1521 = vmatprep.subr.mxu0 0.0
    %1522 = vmatpush1.msra.mxu0 0.0
    %1523 = vmatprep.subr.mxu0 0.0
    %1524 = vmatpush1.msra.mxu0 0.0
    %1525 = vmatprep.subr.mxu0 0.0
    %1526 = vmatpush1.msra.mxu0 0.0
    %1527 = vmatprep.subr.mxu0 0.0
    %1528 = vmatpush1.msra.mxu0 0.0
    %1529 = vmatprep.subr.mxu0 0.0
    %1530 = vmatpush1.msra.mxu0 0.0
    %1531 = vmatprep.subr.mxu0 0.0
    %1532 = vmatpush1.msra.mxu0 0.0
    %1533 = vmatprep.subr.mxu0 0.0
    %1534 = vmatpush1.msra.mxu0 0.0
    %1535 = vmatprep.subr.mxu0 0.0
    %1536 = vmatpush1.msra.mxu0 0.0
    %1537 = vmatprep.subr.mxu0 0.0
    %1538 = vmatpush1.msra.mxu0 0.0
    %1539 = vmatprep.subr.mxu0 0.0
    %1540 = vmatpush1.msra.mxu0 0.0
    %1541 = vmatprep.subr.mxu0 0.0
    %1542 = vmatpush1.msra.mxu0 0.0
    %1543 = vmatprep.subr.mxu0 0.0
    %1544 = vmatpush1.msra.mxu0 0.0
    %1545 = vmatprep.subr.mxu0 0.0
    %1546 = vmatpush1.msra.mxu0 0.0
    %1547 = vmatprep.subr.mxu0 0.0
    %1548 = vmatpush1.msra.mxu0 0.0
    %1549 = vmatprep.subr.mxu0 0.0
    %1550 = vmatpush1.msra.mxu0 0.0
    %1551 = vmatprep.subr.mxu0 0.0
    %1552 = vmatpush1.msra.mxu0 0.0
    %1553 = vmatprep.subr.mxu0 0.0
    %1554 = vmatpush1.msra.mxu0 0.0
    %1555 = vmatprep.subr.mxu0 0.0
    %1556 = vmatpush1.msra.mxu0 0.0
    %1557 = vmatprep.subr.mxu0 0.0
    %1558 = vmatpush1.msra.mxu0 0.0
    %1559 = vmatprep.subr.mxu0 0.0
    %1560 = vmatpush1.msra.mxu0 0.0
    %1561 = vmatprep.subr.mxu0 0.0
    %1562 = vmatpush1.msra.mxu0 0.0
    %1563 = vmatprep.subr.mxu0 0.0
    %1564 = vmatpush1.msra.mxu0 0.0
    %1565 = vmatprep.subr.mxu0 0.0
    %1566 = vmatpush1.msra.mxu0 0.0
    %1567 = vmatprep.subr.mxu0 0.0
    %1568 = vmatpush1.msra.mxu0 0.0
    %1569 = vmatprep.subr.mxu0 0.0
    %1570 = vmatpush1.msra.mxu0 0.0
    %1571 = vmatprep.mubr.f32.mxu0 0.0
    %1572 = vmatmul.mubr.f32.gmra.mrb[0].mxu0 %v1505
    %v1573 = vpop.f32.mrb[0].mxu0
    %v1574 = vadd.f32 %v1496, %v1573
    %v1575 = vpop.f32.mrb[0].mxu0
    %v1576 = vadd.f32 %v1500, %v1575
    %1577 = vdwg.mxu0
    %vm1578 = vcmp.gt.f32.partialorder %v1574, 0.0
    %vm1579 = vcmp.gt.f32.partialorder %v1576, 0.0
    %v1580 = vmin.f32 %v1574, 0.0
    %v1581 = vmin.f32 %v1576, 0.0
    %v1582 = vmul.f32 %v1580, 1.442695
    %v1583 = vpow.pop %v1582
    %v1584 = vmul.f32 %v1581, 1.442695
    %v1585 = vpow.pop %v1584
    %v1586 = vsub.f32 %v1583, 1.0
    %v1587 = vsub.f32 %v1585, 1.0
    %v1588 = vsel %vm1578, %v1574, %v1586
    %v1589 = vsel %vm1579, %v1576, %v1587
    %vm1590 = vcmp.gt.f32.partialorder %v1588, 0.0
    %vm1591 = vcmp.gt.f32.partialorder %v1589, 0.0
    %v1592 = vmin.f32 %v1588, 0.0
    %v1593 = vmin.f32 %v1589, 0.0
    %v1594 = vmul.f32 %v1592, 1.442695
    %v1595 = vpow.pop %v1594
    %v1596 = vmul.f32 %v1593, 1.442695
    %v1597 = vpow.pop %v1596
    %v1598 = vsub.f32 %v1595, 1.0
    %v1599 = vsub.f32 %v1597, 1.0
    %v1600 = vsel %vm1590, %v1588, %v1598
    %v1601 = vsel %vm1591, %v1589, %v1599
    %s1602 = sld [smem:[#allocation8]]
    %v1603 = vstv %s1602
    %v1604 = vmul.f32 %v1603, %v1600
    %v1605 = vmul.f32 %v1603, %v1601
    %s1606 = sld [smem:[#allocation9]]
    %v1607 = vstv %s1606
    %v1608 = vadd.f32 %v1604, %v1607
    %v1609 = vadd.f32 %v1605, %v1607
    %vm1610 = vcmp.gt.f32.partialorder %v1608, 0.0
    %vm1611 = vcmp.gt.f32.partialorder %v1609, 0.0
    %v1612 = vmin.f32 %v1608, 0.0
    %v1613 = vmin.f32 %v1609, 0.0
    %v1614 = vmul.f32 %v1612, 1.442695
    %v1615 = vpow.pop %v1614
    %v1616 = vmul.f32 %v1613, 1.442695
    %v1617 = vpow.pop %v1616
    %v1618 = vsub.f32 %v1615, 1.0
    %v1619 = vsub.f32 %v1617, 1.0
    %v1620 = vsel %vm1610, %v1608, %v1618
    %v1621 = vsel %vm1611, %v1609, %v1619
    %s1622 = sld [smem:[#allocation8 + $0x1]]
    %v1623 = vstv %s1622
    %v1624 = vmul.f32 %v1623, %v1600
    %v1625 = vmul.f32 %v1623, %v1601
    %s1626 = sld [smem:[#allocation9 + $0x1]]
    %v1627 = vstv %s1626
    %v1628 = vadd.f32 %v1624, %v1627
    %v1629 = vadd.f32 %v1625, %v1627
    %vm1630 = vcmp.gt.f32.partialorder %v1628, 0.0
    %vm1631 = vcmp.gt.f32.partialorder %v1629, 0.0
    %v1632 = vmin.f32 %v1628, 0.0
    %v1633 = vmin.f32 %v1629, 0.0
    %v1634 = vmul.f32 %v1632, 1.442695
    %v1635 = vpow.pop %v1634
    %v1636 = vmul.f32 %v1633, 1.442695
    %v1637 = vpow.pop %v1636
    %v1638 = vsub.f32 %v1635, 1.0
    %v1639 = vsub.f32 %v1637, 1.0
    %v1640 = vsel %vm1630, %v1628, %v1638
    %v1641 = vsel %vm1631, %v1629, %v1639
    %s1642 = sld [smem:[#allocation8 + $0x2]]
    %v1643 = vstv %s1642
    %v1644 = vmul.f32 %v1643, %v1600
    %v1645 = vmul.f32 %v1643, %v1601
    %s1646 = sld [smem:[#allocation9 + $0x2]]
    %v1647 = vstv %s1646
    %v1648 = vadd.f32 %v1644, %v1647
    %v1649 = vadd.f32 %v1645, %v1647
    %vm1650 = vcmp.gt.f32.partialorder %v1648, 0.0
    %vm1651 = vcmp.gt.f32.partialorder %v1649, 0.0
    %v1652 = vmin.f32 %v1648, 0.0
    %v1653 = vmin.f32 %v1649, 0.0
    %v1654 = vmul.f32 %v1652, 1.442695
    %v1655 = vpow.pop %v1654
    %v1656 = vmul.f32 %v1653, 1.442695
    %v1657 = vpow.pop %v1656
    %v1658 = vsub.f32 %v1655, 1.0
    %v1659 = vsub.f32 %v1657, 1.0
    %v1660 = vsel %vm1650, %v1648, %v1658
    %v1661 = vsel %vm1651, %v1649, %v1659
    %s1662 = sld [smem:[#allocation8 + $0x3]]
    %v1663 = vstv %s1662
    %v1664 = vmul.f32 %v1663, %v1600
    %v1665 = vmul.f32 %v1663, %v1601
    %s1666 = sld [smem:[#allocation9 + $0x3]]
    %v1667 = vstv %s1666
    %v1668 = vadd.f32 %v1664, %v1667
    %v1669 = vadd.f32 %v1665, %v1667
    %vm1670 = vcmp.gt.f32.partialorder %v1668, 0.0
    %vm1671 = vcmp.gt.f32.partialorder %v1669, 0.0
    %v1672 = vmin.f32 %v1668, 0.0
    %v1673 = vmin.f32 %v1669, 0.0
    %v1674 = vmul.f32 %v1672, 1.442695
    %v1675 = vpow.pop %v1674
    %v1676 = vmul.f32 %v1673, 1.442695
    %v1677 = vpow.pop %v1676
    %v1678 = vsub.f32 %v1675, 1.0
    %v1679 = vsub.f32 %v1677, 1.0
    %v1680 = vsel %vm1670, %v1668, %v1678
    %v1681 = vsel %vm1671, %v1669, %v1679
    %s1682 = sld [smem:[#allocation8 + $0x4]]
    %v1683 = vstv %s1682
    %v1684 = vmul.f32 %v1683, %v1600
    %v1685 = vmul.f32 %v1683, %v1601
    %s1686 = sld [smem:[#allocation9 + $0x4]]
    %v1687 = vstv %s1686
    %v1688 = vadd.f32 %v1684, %v1687
    %v1689 = vadd.f32 %v1685, %v1687
    %vm1690 = vcmp.gt.f32.partialorder %v1688, 0.0
    %vm1691 = vcmp.gt.f32.partialorder %v1689, 0.0
    %v1692 = vmin.f32 %v1688, 0.0
    %v1693 = vmin.f32 %v1689, 0.0
    %v1694 = vmul.f32 %v1692, 1.442695
    %v1695 = vpow.pop %v1694
    %v1696 = vmul.f32 %v1693, 1.442695
    %v1697 = vpow.pop %v1696
    %v1698 = vsub.f32 %v1695, 1.0
    %v1699 = vsub.f32 %v1697, 1.0
    %v1700 = vsel %vm1690, %v1688, %v1698
    %v1701 = vsel %vm1691, %v1689, %v1699
    %s1702 = sld [smem:[#allocation8 + $0x5]]
    %v1703 = vstv %s1702
    %v1704 = vmul.f32 %v1703, %v1600
    %v1705 = vmul.f32 %v1703, %v1601
    %s1706 = sld [smem:[#allocation9 + $0x5]]
    %v1707 = vstv %s1706
    %v1708 = vadd.f32 %v1704, %v1707
    %v1709 = vadd.f32 %v1705, %v1707
    %vm1710 = vcmp.gt.f32.partialorder %v1708, 0.0
    %vm1711 = vcmp.gt.f32.partialorder %v1709, 0.0
    %v1712 = vmin.f32 %v1708, 0.0
    %v1713 = vmin.f32 %v1709, 0.0
    %v1714 = vmul.f32 %v1712, 1.442695
    %v1715 = vpow.pop %v1714
    %v1716 = vmul.f32 %v1713, 1.442695
    %v1717 = vpow.pop %v1716
    %v1718 = vsub.f32 %v1715, 1.0
    %v1719 = vsub.f32 %v1717, 1.0
    %v1720 = vsel %vm1710, %v1708, %v1718
    %v1721 = vsel %vm1711, %v1709, %v1719
    %s1722 = sld [smem:[#allocation8 + $0x6]]
    %v1723 = vstv %s1722
    %v1724 = vmul.f32 %v1723, %v1600
    %v1725 = vmul.f32 %v1723, %v1601
    %s1726 = sld [smem:[#allocation9 + $0x6]]
    %v1727 = vstv %s1726
    %v1728 = vadd.f32 %v1724, %v1727
    %v1729 = vadd.f32 %v1725, %v1727
    %vm1730 = vcmp.gt.f32.partialorder %v1728, 0.0
    %vm1731 = vcmp.gt.f32.partialorder %v1729, 0.0
    %v1732 = vmin.f32 %v1728, 0.0
    %v1733 = vmin.f32 %v1729, 0.0
    %v1734 = vmul.f32 %v1732, 1.442695
    %v1735 = vpow.pop %v1734
    %v1736 = vmul.f32 %v1733, 1.442695
    %v1737 = vpow.pop %v1736
    %v1738 = vsub.f32 %v1735, 1.0
    %v1739 = vsub.f32 %v1737, 1.0
    %v1740 = vsel %vm1730, %v1728, %v1738
    %v1741 = vsel %vm1731, %v1729, %v1739
    %s1742 = sld [smem:[#allocation8 + $0x7]]
    %v1743 = vstv %s1742
    %v1744 = vmul.f32 %v1743, %v1600
    %v1745 = vmul.f32 %v1743, %v1601
    %s1746 = sld [smem:[#allocation9 + $0x7]]
    %v1747 = vstv %s1746
    %v1748 = vadd.f32 %v1744, %v1747
    %v1749 = vadd.f32 %v1745, %v1747
    %vm1750 = vcmp.gt.f32.partialorder %v1748, 0.0
    %vm1751 = vcmp.gt.f32.partialorder %v1749, 0.0
    %v1752 = vmin.f32 %v1748, 0.0
    %v1753 = vmin.f32 %v1749, 0.0
    %v1754 = vmul.f32 %v1752, 1.442695
    %v1755 = vpow.pop %v1754
    %v1756 = vmul.f32 %v1753, 1.442695
    %v1757 = vpow.pop %v1756
    %v1758 = vsub.f32 %v1755, 1.0
    %v1759 = vsub.f32 %v1757, 1.0
    %v1760 = vsel %vm1750, %v1748, %v1758
    %v1761 = vsel %vm1751, %v1749, %v1759
    %s1762 = sld [smem:[#allocation11]]
    %v1763 = vstv %s1762
    %v1764 = vmul.f32 %v1620, %v1763
    %v1765 = vmul.f32 %v1621, %v1763
    %s1766 = sld [smem:[#allocation11 + $0x1]]
    %v1767 = vstv %s1766
    %v1768 = vmul.f32 %v1640, %v1767
    %v1769 = vmul.f32 %v1641, %v1767
    %v1770 = vadd.f32 %v1764, %v1768
    %v1771 = vadd.f32 %v1765, %v1769
    %s1772 = sld [smem:[#allocation11 + $0x2]]
    %v1773 = vstv %s1772
    %v1774 = vmul.f32 %v1660, %v1773
    %v1775 = vmul.f32 %v1661, %v1773
    %v1776 = vadd.f32 %v1770, %v1774
    %v1777 = vadd.f32 %v1771, %v1775
    %s1778 = sld [smem:[#allocation11 + $0x3]]
    %v1779 = vstv %s1778
    %v1780 = vmul.f32 %v1680, %v1779
    %v1781 = vmul.f32 %v1681, %v1779
    %v1782 = vadd.f32 %v1776, %v1780
    %v1783 = vadd.f32 %v1777, %v1781
    %s1784 = sld [smem:[#allocation11 + $0x4]]
    %v1785 = vstv %s1784
    %v1786 = vmul.f32 %v1700, %v1785
    %v1787 = vmul.f32 %v1701, %v1785
    %v1788 = vadd.f32 %v1782, %v1786
    %v1789 = vadd.f32 %v1783, %v1787
    %s1790 = sld [smem:[#allocation11 + $0x5]]
    %v1791 = vstv %s1790
    %v1792 = vmul.f32 %v1720, %v1791
    %v1793 = vmul.f32 %v1721, %v1791
    %v1794 = vadd.f32 %v1788, %v1792
    %v1795 = vadd.f32 %v1789, %v1793
    %s1796 = sld [smem:[#allocation11 + $0x6]]
    %v1797 = vstv %s1796
    %v1798 = vmul.f32 %v1740, %v1797
    %v1799 = vmul.f32 %v1741, %v1797
    %v1800 = vadd.f32 %v1794, %v1798
    %v1801 = vadd.f32 %v1795, %v1799
    %s1802 = sld [smem:[#allocation11 + $0x7]]
    %v1803 = vstv %s1802
    %v1804 = vmul.f32 %v1760, %v1803
    %v1805 = vmul.f32 %v1761, %v1803
    %v1806 = vadd.f32 %v1800, %v1804
    %v1807 = vadd.f32 %v1801, %v1805
    %s1808 = sld [smem:[#allocation12]]
    %v1809 = vstv %s1808
    %v1810 = vadd.f32 %v1806, %v1809
    %v1811 = vadd.f32 %v1807, %v1809
    %vm1812 = vcmp.gt.f32.partialorder %v1810, 0.0
    %vm1813 = vcmp.gt.f32.partialorder %v1811, 0.0
    %v1814 = vmin.f32 %v1810, 0.0
    %v1815 = vmin.f32 %v1811, 0.0
    %v1816 = vmul.f32 %v1814, 1.442695
    %v1817 = vpow.pop %v1816
    %v1818 = vmul.f32 %v1815, 1.442695
    %v1819 = vpow.pop %v1818
    %v1820 = vsub.f32 %v1817, 1.0
    %v1821 = vsub.f32 %v1819, 1.0
    %v1822 = vsel %vm1812, %v1810, %v1820
    %v1823 = vsel %vm1813, %v1811, %v1821
    %s1824 = sld [smem:[#allocation11 + $0x8]]
    %v1825 = vstv %s1824
    %v1826 = vmul.f32 %v1620, %v1825
    %v1827 = vmul.f32 %v1621, %v1825
    %s1828 = sld [smem:[#allocation11 + $0x9]]
    %v1829 = vstv %s1828
    %v1830 = vmul.f32 %v1640, %v1829
    %v1831 = vmul.f32 %v1641, %v1829
    %v1832 = vadd.f32 %v1826, %v1830
    %v1833 = vadd.f32 %v1827, %v1831
    %s1834 = sld [smem:[#allocation11 + $0xa]]
    %v1835 = vstv %s1834
    %v1836 = vmul.f32 %v1660, %v1835
    %v1837 = vmul.f32 %v1661, %v1835
    %v1838 = vadd.f32 %v1832, %v1836
    %v1839 = vadd.f32 %v1833, %v1837
    %s1840 = sld [smem:[#allocation11 + $0xb]]
    %v1841 = vstv %s1840
    %v1842 = vmul.f32 %v1680, %v1841
    %v1843 = vmul.f32 %v1681, %v1841
    %v1844 = vadd.f32 %v1838, %v1842
    %v1845 = vadd.f32 %v1839, %v1843
    %s1846 = sld [smem:[#allocation11 + $0xc]]
    %v1847 = vstv %s1846
    %v1848 = vmul.f32 %v1700, %v1847
    %v1849 = vmul.f32 %v1701, %v1847
    %v1850 = vadd.f32 %v1844, %v1848
    %v1851 = vadd.f32 %v1845, %v1849
    %s1852 = sld [smem:[#allocation11 + $0xd]]
    %v1853 = vstv %s1852
    %v1854 = vmul.f32 %v1720, %v1853
    %v1855 = vmul.f32 %v1721, %v1853
    %v1856 = vadd.f32 %v1850, %v1854
    %v1857 = vadd.f32 %v1851, %v1855
    %s1858 = sld [smem:[#allocation11 + $0xe]]
    %v1859 = vstv %s1858
    %v1860 = vmul.f32 %v1740, %v1859
    %v1861 = vmul.f32 %v1741, %v1859
    %v1862 = vadd.f32 %v1856, %v1860
    %v1863 = vadd.f32 %v1857, %v1861
    %s1864 = sld [smem:[#allocation11 + $0xf]]
    %v1865 = vstv %s1864
    %v1866 = vmul.f32 %v1760, %v1865
    %v1867 = vmul.f32 %v1761, %v1865
    %v1868 = vadd.f32 %v1862, %v1866
    %v1869 = vadd.f32 %v1863, %v1867
    %s1870 = sld [smem:[#allocation12 + $0x1]]
    %v1871 = vstv %s1870
    %v1872 = vadd.f32 %v1868, %v1871
    %v1873 = vadd.f32 %v1869, %v1871
    %vm1874 = vcmp.gt.f32.partialorder %v1872, 0.0
    %vm1875 = vcmp.gt.f32.partialorder %v1873, 0.0
    %v1876 = vmin.f32 %v1872, 0.0
    %v1877 = vmin.f32 %v1873, 0.0
    %v1878 = vmul.f32 %v1876, 1.442695
    %v1879 = vpow.pop %v1878
    %v1880 = vmul.f32 %v1877, 1.442695
    %v1881 = vpow.pop %v1880
    %v1882 = vsub.f32 %v1879, 1.0
    %v1883 = vsub.f32 %v1881, 1.0
    %v1884 = vsel %vm1874, %v1872, %v1882
    %v1885 = vsel %vm1875, %v1873, %v1883
    %s1886 = sld [smem:[#allocation11 + $0x10]]
    %v1887 = vstv %s1886
    %v1888 = vmul.f32 %v1620, %v1887
    %v1889 = vmul.f32 %v1621, %v1887
    %s1890 = sld [smem:[#allocation11 + $0x11]]
    %v1891 = vstv %s1890
    %v1892 = vmul.f32 %v1640, %v1891
    %v1893 = vmul.f32 %v1641, %v1891
    %v1894 = vadd.f32 %v1888, %v1892
    %v1895 = vadd.f32 %v1889, %v1893
    %s1896 = sld [smem:[#allocation11 + $0x12]]
    %v1897 = vstv %s1896
    %v1898 = vmul.f32 %v1660, %v1897
    %v1899 = vmul.f32 %v1661, %v1897
    %v1900 = vadd.f32 %v1894, %v1898
    %v1901 = vadd.f32 %v1895, %v1899
    %s1902 = sld [smem:[#allocation11 + $0x13]]
    %v1903 = vstv %s1902
    %v1904 = vmul.f32 %v1680, %v1903
    %v1905 = vmul.f32 %v1681, %v1903
    %v1906 = vadd.f32 %v1900, %v1904
    %v1907 = vadd.f32 %v1901, %v1905
    %s1908 = sld [smem:[#allocation11 + $0x14]]
    %v1909 = vstv %s1908
    %v1910 = vmul.f32 %v1700, %v1909
    %v1911 = vmul.f32 %v1701, %v1909
    %v1912 = vadd.f32 %v1906, %v1910
    %v1913 = vadd.f32 %v1907, %v1911
    %s1914 = sld [smem:[#allocation11 + $0x15]]
    %v1915 = vstv %s1914
    %v1916 = vmul.f32 %v1720, %v1915
    %v1917 = vmul.f32 %v1721, %v1915
    %v1918 = vadd.f32 %v1912, %v1916
    %v1919 = vadd.f32 %v1913, %v1917
    %s1920 = sld [smem:[#allocation11 + $0x16]]
    %v1921 = vstv %s1920
    %v1922 = vmul.f32 %v1740, %v1921
    %v1923 = vmul.f32 %v1741, %v1921
    %v1924 = vadd.f32 %v1918, %v1922
    %v1925 = vadd.f32 %v1919, %v1923
    %s1926 = sld [smem:[#allocation11 + $0x17]]
    %v1927 = vstv %s1926
    %v1928 = vmul.f32 %v1760, %v1927
    %v1929 = vmul.f32 %v1761, %v1927
    %v1930 = vadd.f32 %v1924, %v1928
    %v1931 = vadd.f32 %v1925, %v1929
    %s1932 = sld [smem:[#allocation12 + $0x2]]
    %v1933 = vstv %s1932
    %v1934 = vadd.f32 %v1930, %v1933
    %v1935 = vadd.f32 %v1931, %v1933
    %vm1936 = vcmp.gt.f32.partialorder %v1934, 0.0
    %vm1937 = vcmp.gt.f32.partialorder %v1935, 0.0
    %v1938 = vmin.f32 %v1934, 0.0
    %v1939 = vmin.f32 %v1935, 0.0
    %v1940 = vmul.f32 %v1938, 1.442695
    %v1941 = vpow.pop %v1940
    %v1942 = vmul.f32 %v1939, 1.442695
    %v1943 = vpow.pop %v1942
    %v1944 = vsub.f32 %v1941, 1.0
    %v1945 = vsub.f32 %v1943, 1.0
    %v1946 = vsel %vm1936, %v1934, %v1944
    %v1947 = vsel %vm1937, %v1935, %v1945
    %s1948 = sld [smem:[#allocation11 + $0x18]]
    %v1949 = vstv %s1948
    %v1950 = vmul.f32 %v1620, %v1949
    %v1951 = vmul.f32 %v1621, %v1949
    %s1952 = sld [smem:[#allocation11 + $0x19]]
    %v1953 = vstv %s1952
    %v1954 = vmul.f32 %v1640, %v1953
    %v1955 = vmul.f32 %v1641, %v1953
    %v1956 = vadd.f32 %v1950, %v1954
    %v1957 = vadd.f32 %v1951, %v1955
    %s1958 = sld [smem:[#allocation11 + $0x1a]]
    %v1959 = vstv %s1958
    %v1960 = vmul.f32 %v1660, %v1959
    %v1961 = vmul.f32 %v1661, %v1959
    %v1962 = vadd.f32 %v1956, %v1960
    %v1963 = vadd.f32 %v1957, %v1961
    %s1964 = sld [smem:[#allocation11 + $0x1b]]
    %v1965 = vstv %s1964
    %v1966 = vmul.f32 %v1680, %v1965
    %v1967 = vmul.f32 %v1681, %v1965
    %v1968 = vadd.f32 %v1962, %v1966
    %v1969 = vadd.f32 %v1963, %v1967
    %s1970 = sld [smem:[#allocation11 + $0x1c]]
    %v1971 = vstv %s1970
    %v1972 = vmul.f32 %v1700, %v1971
    %v1973 = vmul.f32 %v1701, %v1971
    %v1974 = vadd.f32 %v1968, %v1972
    %v1975 = vadd.f32 %v1969, %v1973
    %s1976 = sld [smem:[#allocation11 + $0x1d]]
    %v1977 = vstv %s1976
    %v1978 = vmul.f32 %v1720, %v1977
    %v1979 = vmul.f32 %v1721, %v1977
    %v1980 = vadd.f32 %v1974, %v1978
    %v1981 = vadd.f32 %v1975, %v1979
    %s1982 = sld [smem:[#allocation11 + $0x1e]]
    %v1983 = vstv %s1982
    %v1984 = vmul.f32 %v1740, %v1983
    %v1985 = vmul.f32 %v1741, %v1983
    %v1986 = vadd.f32 %v1980, %v1984
    %v1987 = vadd.f32 %v1981, %v1985
    %s1988 = sld [smem:[#allocation11 + $0x1f]]
    %v1989 = vstv %s1988
    %v1990 = vmul.f32 %v1760, %v1989
    %v1991 = vmul.f32 %v1761, %v1989
    %v1992 = vadd.f32 %v1986, %v1990
    %v1993 = vadd.f32 %v1987, %v1991
    %s1994 = sld [smem:[#allocation12 + $0x3]]
    %v1995 = vstv %s1994
    %v1996 = vadd.f32 %v1992, %v1995
    %v1997 = vadd.f32 %v1993, %v1995
    %vm1998 = vcmp.gt.f32.partialorder %v1996, 0.0
    %vm1999 = vcmp.gt.f32.partialorder %v1997, 0.0
    %v2000 = vmin.f32 %v1996, 0.0
    %v2001 = vmin.f32 %v1997, 0.0
    %v2002 = vmul.f32 %v2000, 1.442695
    %v2003 = vpow.pop %v2002
    %v2004 = vmul.f32 %v2001, 1.442695
    %v2005 = vpow.pop %v2004
    %v2006 = vsub.f32 %v2003, 1.0
    %v2007 = vsub.f32 %v2005, 1.0
    %v2008 = vsel %vm1998, %v1996, %v2006
    %v2009 = vsel %vm1999, %v1997, %v2007
    %s2010 = sld [smem:[#allocation11 + $0x20]]
    %v2011 = vstv %s2010
    %v2012 = vmul.f32 %v1620, %v2011
    %v2013 = vmul.f32 %v1621, %v2011
    %s2014 = sld [smem:[#allocation11 + $0x21]]
    %v2015 = vstv %s2014
    %v2016 = vmul.f32 %v1640, %v2015
    %v2017 = vmul.f32 %v1641, %v2015
    %v2018 = vadd.f32 %v2012, %v2016
    %v2019 = vadd.f32 %v2013, %v2017
    %s2020 = sld [smem:[#allocation11 + $0x22]]
    %v2021 = vstv %s2020
    %v2022 = vmul.f32 %v1660, %v2021
    %v2023 = vmul.f32 %v1661, %v2021
    %v2024 = vadd.f32 %v2018, %v2022
    %v2025 = vadd.f32 %v2019, %v2023
    %s2026 = sld [smem:[#allocation11 + $0x23]]
    %v2027 = vstv %s2026
    %v2028 = vmul.f32 %v1680, %v2027
    %v2029 = vmul.f32 %v1681, %v2027
    %v2030 = vadd.f32 %v2024, %v2028
    %v2031 = vadd.f32 %v2025, %v2029
    %s2032 = sld [smem:[#allocation11 + $0x24]]
    %v2033 = vstv %s2032
    %v2034 = vmul.f32 %v1700, %v2033
    %v2035 = vmul.f32 %v1701, %v2033
    %v2036 = vadd.f32 %v2030, %v2034
    %v2037 = vadd.f32 %v2031, %v2035
    %s2038 = sld [smem:[#allocation11 + $0x25]]
    %v2039 = vstv %s2038
    %v2040 = vmul.f32 %v1720, %v2039
    %v2041 = vmul.f32 %v1721, %v2039
    %v2042 = vadd.f32 %v2036, %v2040
    %v2043 = vadd.f32 %v2037, %v2041
    %s2044 = sld [smem:[#allocation11 + $0x26]]
    %v2045 = vstv %s2044
    %v2046 = vmul.f32 %v1740, %v2045
    %v2047 = vmul.f32 %v1741, %v2045
    %v2048 = vadd.f32 %v2042, %v2046
    %v2049 = vadd.f32 %v2043, %v2047
    %s2050 = sld [smem:[#allocation11 + $0x27]]
    %v2051 = vstv %s2050
    %v2052 = vmul.f32 %v1760, %v2051
    %v2053 = vmul.f32 %v1761, %v2051
    %v2054 = vadd.f32 %v2048, %v2052
    %v2055 = vadd.f32 %v2049, %v2053
    %s2056 = sld [smem:[#allocation12 + $0x4]]
    %v2057 = vstv %s2056
    %v2058 = vadd.f32 %v2054, %v2057
    %v2059 = vadd.f32 %v2055, %v2057
    %vm2060 = vcmp.gt.f32.partialorder %v2058, 0.0
    %vm2061 = vcmp.gt.f32.partialorder %v2059, 0.0
    %v2062 = vmin.f32 %v2058, 0.0
    %v2063 = vmin.f32 %v2059, 0.0
    %v2064 = vmul.f32 %v2062, 1.442695
    %v2065 = vpow.pop %v2064
    %v2066 = vmul.f32 %v2063, 1.442695
    %v2067 = vpow.pop %v2066
    %v2068 = vsub.f32 %v2065, 1.0
    %v2069 = vsub.f32 %v2067, 1.0
    %v2070 = vsel %vm2060, %v2058, %v2068
    %v2071 = vsel %vm2061, %v2059, %v2069
    %s2072 = sld [smem:[#allocation11 + $0x28]]
    %v2073 = vstv %s2072
    %v2074 = vmul.f32 %v1620, %v2073
    %v2075 = vmul.f32 %v1621, %v2073
    %s2076 = sld [smem:[#allocation11 + $0x29]]
    %v2077 = vstv %s2076
    %v2078 = vmul.f32 %v1640, %v2077
    %v2079 = vmul.f32 %v1641, %v2077
    %v2080 = vadd.f32 %v2074, %v2078
    %v2081 = vadd.f32 %v2075, %v2079
    %s2082 = sld [smem:[#allocation11 + $0x2a]]
    %v2083 = vstv %s2082
    %v2084 = vmul.f32 %v1660, %v2083
    %v2085 = vmul.f32 %v1661, %v2083
    %v2086 = vadd.f32 %v2080, %v2084
    %v2087 = vadd.f32 %v2081, %v2085
    %s2088 = sld [smem:[#allocation11 + $0x2b]]
    %v2089 = vstv %s2088
    %v2090 = vmul.f32 %v1680, %v2089
    %v2091 = vmul.f32 %v1681, %v2089
    %v2092 = vadd.f32 %v2086, %v2090
    %v2093 = vadd.f32 %v2087, %v2091
    %s2094 = sld [smem:[#allocation11 + $0x2c]]
    %v2095 = vstv %s2094
    %v2096 = vmul.f32 %v1700, %v2095
    %v2097 = vmul.f32 %v1701, %v2095
    %v2098 = vadd.f32 %v2092, %v2096
    %v2099 = vadd.f32 %v2093, %v2097
    %s2100 = sld [smem:[#allocation11 + $0x2d]]
    %v2101 = vstv %s2100
    %v2102 = vmul.f32 %v1720, %v2101
    %v2103 = vmul.f32 %v1721, %v2101
    %v2104 = vadd.f32 %v2098, %v2102
    %v2105 = vadd.f32 %v2099, %v2103
    %s2106 = sld [smem:[#allocation11 + $0x2e]]
    %v2107 = vstv %s2106
    %v2108 = vmul.f32 %v1740, %v2107
    %v2109 = vmul.f32 %v1741, %v2107
    %v2110 = vadd.f32 %v2104, %v2108
    %v2111 = vadd.f32 %v2105, %v2109
    %s2112 = sld [smem:[#allocation11 + $0x2f]]
    %v2113 = vstv %s2112
    %v2114 = vmul.f32 %v1760, %v2113
    %v2115 = vmul.f32 %v1761, %v2113
    %v2116 = vadd.f32 %v2110, %v2114
    %v2117 = vadd.f32 %v2111, %v2115
    %s2118 = sld [smem:[#allocation12 + $0x5]]
    %v2119 = vstv %s2118
    %v2120 = vadd.f32 %v2116, %v2119
    %v2121 = vadd.f32 %v2117, %v2119
    %vm2122 = vcmp.gt.f32.partialorder %v2120, 0.0
    %vm2123 = vcmp.gt.f32.partialorder %v2121, 0.0
    %v2124 = vmin.f32 %v2120, 0.0
    %v2125 = vmin.f32 %v2121, 0.0
    %v2126 = vmul.f32 %v2124, 1.442695
    %v2127 = vpow.pop %v2126
    %v2128 = vmul.f32 %v2125, 1.442695
    %v2129 = vpow.pop %v2128
    %v2130 = vsub.f32 %v2127, 1.0
    %v2131 = vsub.f32 %v2129, 1.0
    %v2132 = vsel %vm2122, %v2120, %v2130
    %v2133 = vsel %vm2123, %v2121, %v2131
    %s2134 = sld [smem:[#allocation11 + $0x30]]
    %v2135 = vstv %s2134
    %v2136 = vmul.f32 %v1620, %v2135
    %v2137 = vmul.f32 %v1621, %v2135
    %s2138 = sld [smem:[#allocation11 + $0x31]]
    %v2139 = vstv %s2138
    %v2140 = vmul.f32 %v1640, %v2139
    %v2141 = vmul.f32 %v1641, %v2139
    %v2142 = vadd.f32 %v2136, %v2140
    %v2143 = vadd.f32 %v2137, %v2141
    %s2144 = sld [smem:[#allocation11 + $0x32]]
    %v2145 = vstv %s2144
    %v2146 = vmul.f32 %v1660, %v2145
    %v2147 = vmul.f32 %v1661, %v2145
    %v2148 = vadd.f32 %v2142, %v2146
    %v2149 = vadd.f32 %v2143, %v2147
    %s2150 = sld [smem:[#allocation11 + $0x33]]
    %v2151 = vstv %s2150
    %v2152 = vmul.f32 %v1680, %v2151
    %v2153 = vmul.f32 %v1681, %v2151
    %v2154 = vadd.f32 %v2148, %v2152
    %v2155 = vadd.f32 %v2149, %v2153
    %s2156 = sld [smem:[#allocation11 + $0x34]]
    %v2157 = vstv %s2156
    %v2158 = vmul.f32 %v1700, %v2157
    %v2159 = vmul.f32 %v1701, %v2157
    %v2160 = vadd.f32 %v2154, %v2158
    %v2161 = vadd.f32 %v2155, %v2159
    %s2162 = sld [smem:[#allocation11 + $0x35]]
    %v2163 = vstv %s2162
    %v2164 = vmul.f32 %v1720, %v2163
    %v2165 = vmul.f32 %v1721, %v2163
    %v2166 = vadd.f32 %v2160, %v2164
    %v2167 = vadd.f32 %v2161, %v2165
    %s2168 = sld [smem:[#allocation11 + $0x36]]
    %v2169 = vstv %s2168
    %v2170 = vmul.f32 %v1740, %v2169
    %v2171 = vmul.f32 %v1741, %v2169
    %v2172 = vadd.f32 %v2166, %v2170
    %v2173 = vadd.f32 %v2167, %v2171
    %s2174 = sld [smem:[#allocation11 + $0x37]]
    %v2175 = vstv %s2174
    %v2176 = vmul.f32 %v1760, %v2175
    %v2177 = vmul.f32 %v1761, %v2175
    %v2178 = vadd.f32 %v2172, %v2176
    %v2179 = vadd.f32 %v2173, %v2177
    %s2180 = sld [smem:[#allocation12 + $0x6]]
    %v2181 = vstv %s2180
    %v2182 = vadd.f32 %v2178, %v2181
    %v2183 = vadd.f32 %v2179, %v2181
    %vm2184 = vcmp.gt.f32.partialorder %v2182, 0.0
    %vm2185 = vcmp.gt.f32.partialorder %v2183, 0.0
    %v2186 = vmin.f32 %v2182, 0.0
    %v2187 = vmin.f32 %v2183, 0.0
    %v2188 = vmul.f32 %v2186, 1.442695
    %v2189 = vpow.pop %v2188
    %v2190 = vmul.f32 %v2187, 1.442695
    %v2191 = vpow.pop %v2190
    %v2192 = vsub.f32 %v2189, 1.0
    %v2193 = vsub.f32 %v2191, 1.0
    %v2194 = vsel %vm2184, %v2182, %v2192
    %v2195 = vsel %vm2185, %v2183, %v2193
    %s2196 = sld [smem:[#allocation11 + $0x38]]
    %v2197 = vstv %s2196
    %v2198 = vmul.f32 %v1620, %v2197
    %v2199 = vmul.f32 %v1621, %v2197
    %s2200 = sld [smem:[#allocation11 + $0x39]]
    %v2201 = vstv %s2200
    %v2202 = vmul.f32 %v1640, %v2201
    %v2203 = vmul.f32 %v1641, %v2201
    %v2204 = vadd.f32 %v2198, %v2202
    %v2205 = vadd.f32 %v2199, %v2203
    %s2206 = sld [smem:[#allocation11 + $0x3a]]
    %v2207 = vstv %s2206
    %v2208 = vmul.f32 %v1660, %v2207
    %v2209 = vmul.f32 %v1661, %v2207
    %v2210 = vadd.f32 %v2204, %v2208
    %v2211 = vadd.f32 %v2205, %v2209
    %s2212 = sld [smem:[#allocation11 + $0x3b]]
    %v2213 = vstv %s2212
    %v2214 = vmul.f32 %v1680, %v2213
    %v2215 = vmul.f32 %v1681, %v2213
    %v2216 = vadd.f32 %v2210, %v2214
    %v2217 = vadd.f32 %v2211, %v2215
    %s2218 = sld [smem:[#allocation11 + $0x3c]]
    %v2219 = vstv %s2218
    %v2220 = vmul.f32 %v1700, %v2219
    %v2221 = vmul.f32 %v1701, %v2219
    %v2222 = vadd.f32 %v2216, %v2220
    %v2223 = vadd.f32 %v2217, %v2221
    %s2224 = sld [smem:[#allocation11 + $0x3d]]
    %v2225 = vstv %s2224
    %v2226 = vmul.f32 %v1720, %v2225
    %v2227 = vmul.f32 %v1721, %v2225
    %v2228 = vadd.f32 %v2222, %v2226
    %v2229 = vadd.f32 %v2223, %v2227
    %s2230 = sld [smem:[#allocation11 + $0x3e]]
    %v2231 = vstv %s2230
    %v2232 = vmul.f32 %v1740, %v2231
    %v2233 = vmul.f32 %v1741, %v2231
    %v2234 = vadd.f32 %v2228, %v2232
    %v2235 = vadd.f32 %v2229, %v2233
    %s2236 = sld [smem:[#allocation11 + $0x3f]]
    %v2237 = vstv %s2236
    %v2238 = vmul.f32 %v1760, %v2237
    %v2239 = vmul.f32 %v1761, %v2237
    %v2240 = vadd.f32 %v2234, %v2238
    %v2241 = vadd.f32 %v2235, %v2239
    %s2242 = sld [smem:[#allocation12 + $0x7]]
    %v2243 = vstv %s2242
    %v2244 = vadd.f32 %v2240, %v2243
    %v2245 = vadd.f32 %v2241, %v2243
    %vm2246 = vcmp.gt.f32.partialorder %v2244, 0.0
    %vm2247 = vcmp.gt.f32.partialorder %v2245, 0.0
    %v2248 = vmin.f32 %v2244, 0.0
    %v2249 = vmin.f32 %v2245, 0.0
    %v2250 = vmul.f32 %v2248, 1.442695
    %v2251 = vpow.pop %v2250
    %v2252 = vmul.f32 %v2249, 1.442695
    %v2253 = vpow.pop %v2252
    %v2254 = vsub.f32 %v2251, 1.0
    %v2255 = vsub.f32 %v2253, 1.0
    %v2256 = vsel %vm2246, %v2244, %v2254
    %v2257 = vsel %vm2247, %v2245, %v2255
    %s2258 = sld [smem:[#allocation11 + $0x40]]
    %v2259 = vstv %s2258
    %v2260 = vmul.f32 %v1822, %v2259
    %v2261 = vmul.f32 %v1823, %v2259
    %s2262 = sld [smem:[#allocation11 + $0x41]]
    %v2263 = vstv %s2262
    %v2264 = vmul.f32 %v1884, %v2263
    %v2265 = vmul.f32 %v1885, %v2263
    %v2266 = vadd.f32 %v2260, %v2264
    %v2267 = vadd.f32 %v2261, %v2265
    %s2268 = sld [smem:[#allocation11 + $0x42]]
    %v2269 = vstv %s2268
    %v2270 = vmul.f32 %v1946, %v2269
    %v2271 = vmul.f32 %v1947, %v2269
    %v2272 = vadd.f32 %v2266, %v2270
    %v2273 = vadd.f32 %v2267, %v2271
    %s2274 = sld [smem:[#allocation11 + $0x43]]
    %v2275 = vstv %s2274
    %v2276 = vmul.f32 %v2008, %v2275
    %v2277 = vmul.f32 %v2009, %v2275
    %v2278 = vadd.f32 %v2272, %v2276
    %v2279 = vadd.f32 %v2273, %v2277
    %s2280 = sld [smem:[#allocation11 + $0x44]]
    %v2281 = vstv %s2280
    %v2282 = vmul.f32 %v2070, %v2281
    %v2283 = vmul.f32 %v2071, %v2281
    %v2284 = vadd.f32 %v2278, %v2282
    %v2285 = vadd.f32 %v2279, %v2283
    %s2286 = sld [smem:[#allocation11 + $0x45]]
    %v2287 = vstv %s2286
    %v2288 = vmul.f32 %v2132, %v2287
    %v2289 = vmul.f32 %v2133, %v2287
    %v2290 = vadd.f32 %v2284, %v2288
    %v2291 = vadd.f32 %v2285, %v2289
    %s2292 = sld [smem:[#allocation11 + $0x46]]
    %v2293 = vstv %s2292
    %v2294 = vmul.f32 %v2194, %v2293
    %v2295 = vmul.f32 %v2195, %v2293
    %v2296 = vadd.f32 %v2290, %v2294
    %v2297 = vadd.f32 %v2291, %v2295
    %s2298 = sld [smem:[#allocation11 + $0x47]]
    %v2299 = vstv %s2298
    %v2300 = vmul.f32 %v2256, %v2299
    %v2301 = vmul.f32 %v2257, %v2299
    %v2302 = vadd.f32 %v2296, %v2300
    %v2303 = vadd.f32 %v2297, %v2301
    %s2304 = sld [smem:[#allocation12 + $0x8]]
    %v2305 = vstv %s2304
    %v2306 = vadd.f32 %v2302, %v2305
    %v2307 = vadd.f32 %v2303, %v2305
    %vm2308 = vcmp.gt.f32.partialorder %v2306, 0.0
    %vm2309 = vcmp.gt.f32.partialorder %v2307, 0.0
    %v2310 = vmin.f32 %v2306, 0.0
    %v2311 = vmin.f32 %v2307, 0.0
    %v2312 = vmul.f32 %v2310, 1.442695
    %v2313 = vpow.pop %v2312
    %v2314 = vmul.f32 %v2311, 1.442695
    %v2315 = vpow.pop %v2314
    %v2316 = vsub.f32 %v2313, 1.0
    %v2317 = vsub.f32 %v2315, 1.0
    %v2318 = vsel %vm2308, %v2306, %v2316
    %v2319 = vsel %vm2309, %v2307, %v2317
    %s2320 = sld [smem:[#allocation11 + $0x48]]
    %v2321 = vstv %s2320
    %v2322 = vmul.f32 %v1822, %v2321
    %v2323 = vmul.f32 %v1823, %v2321
    %s2324 = sld [smem:[#allocation11 + $0x49]]
    %v2325 = vstv %s2324
    %v2326 = vmul.f32 %v1884, %v2325
    %v2327 = vmul.f32 %v1885, %v2325
    %v2328 = vadd.f32 %v2322, %v2326
    %v2329 = vadd.f32 %v2323, %v2327
    %s2330 = sld [smem:[#allocation11 + $0x4a]]
    %v2331 = vstv %s2330
    %v2332 = vmul.f32 %v1946, %v2331
    %v2333 = vmul.f32 %v1947, %v2331
    %v2334 = vadd.f32 %v2328, %v2332
    %v2335 = vadd.f32 %v2329, %v2333
    %s2336 = sld [smem:[#allocation11 + $0x4b]]
    %v2337 = vstv %s2336
    %v2338 = vmul.f32 %v2008, %v2337
    %v2339 = vmul.f32 %v2009, %v2337
    %v2340 = vadd.f32 %v2334, %v2338
    %v2341 = vadd.f32 %v2335, %v2339
    %s2342 = sld [smem:[#allocation11 + $0x4c]]
    %v2343 = vstv %s2342
    %v2344 = vmul.f32 %v2070, %v2343
    %v2345 = vmul.f32 %v2071, %v2343
    %v2346 = vadd.f32 %v2340, %v2344
    %v2347 = vadd.f32 %v2341, %v2345
    %s2348 = sld [smem:[#allocation11 + $0x4d]]
    %v2349 = vstv %s2348
    %v2350 = vmul.f32 %v2132, %v2349
    %v2351 = vmul.f32 %v2133, %v2349
    %v2352 = vadd.f32 %v2346, %v2350
    %v2353 = vadd.f32 %v2347, %v2351
    %s2354 = sld [smem:[#allocation11 + $0x4e]]
    %v2355 = vstv %s2354
    %v2356 = vmul.f32 %v2194, %v2355
    %v2357 = vmul.f32 %v2195, %v2355
    %v2358 = vadd.f32 %v2352, %v2356
    %v2359 = vadd.f32 %v2353, %v2357
    %s2360 = sld [smem:[#allocation11 + $0x4f]]
    %v2361 = vstv %s2360
    %v2362 = vmul.f32 %v2256, %v2361
    %v2363 = vmul.f32 %v2257, %v2361
    %v2364 = vadd.f32 %v2358, %v2362
    %v2365 = vadd.f32 %v2359, %v2363
    %s2366 = sld [smem:[#allocation12 + $0x9]]
    %v2367 = vstv %s2366
    %v2368 = vadd.f32 %v2364, %v2367
    %v2369 = vadd.f32 %v2365, %v2367
    %vm2370 = vcmp.gt.f32.partialorder %v2368, 0.0
    %vm2371 = vcmp.gt.f32.partialorder %v2369, 0.0
    %v2372 = vmin.f32 %v2368, 0.0
    %v2373 = vmin.f32 %v2369, 0.0
    %v2374 = vmul.f32 %v2372, 1.442695
    %v2375 = vpow.pop %v2374
    %v2376 = vmul.f32 %v2373, 1.442695
    %v2377 = vpow.pop %v2376
    %v2378 = vsub.f32 %v2375, 1.0
    %v2379 = vsub.f32 %v2377, 1.0
    %v2380 = vsel %vm2370, %v2368, %v2378
    %v2381 = vsel %vm2371, %v2369, %v2379
    %s2382 = sld [smem:[#allocation11 + $0x50]]
    %v2383 = vstv %s2382
    %v2384 = vmul.f32 %v1822, %v2383
    %v2385 = vmul.f32 %v1823, %v2383
    %s2386 = sld [smem:[#allocation11 + $0x51]]
    %v2387 = vstv %s2386
    %v2388 = vmul.f32 %v1884, %v2387
    %v2389 = vmul.f32 %v1885, %v2387
    %v2390 = vadd.f32 %v2384, %v2388
    %v2391 = vadd.f32 %v2385, %v2389
    %s2392 = sld [smem:[#allocation11 + $0x52]]
    %v2393 = vstv %s2392
    %v2394 = vmul.f32 %v1946, %v2393
    %v2395 = vmul.f32 %v1947, %v2393
    %v2396 = vadd.f32 %v2390, %v2394
    %v2397 = vadd.f32 %v2391, %v2395
    %s2398 = sld [smem:[#allocation11 + $0x53]]
    %v2399 = vstv %s2398
    %v2400 = vmul.f32 %v2008, %v2399
    %v2401 = vmul.f32 %v2009, %v2399
    %v2402 = vadd.f32 %v2396, %v2400
    %v2403 = vadd.f32 %v2397, %v2401
    %s2404 = sld [smem:[#allocation11 + $0x54]]
    %v2405 = vstv %s2404
    %v2406 = vmul.f32 %v2070, %v2405
    %v2407 = vmul.f32 %v2071, %v2405
    %v2408 = vadd.f32 %v2402, %v2406
    %v2409 = vadd.f32 %v2403, %v2407
    %s2410 = sld [smem:[#allocation11 + $0x55]]
    %v2411 = vstv %s2410
    %v2412 = vmul.f32 %v2132, %v2411
    %v2413 = vmul.f32 %v2133, %v2411
    %v2414 = vadd.f32 %v2408, %v2412
    %v2415 = vadd.f32 %v2409, %v2413
    %s2416 = sld [smem:[#allocation11 + $0x56]]
    %v2417 = vstv %s2416
    %v2418 = vmul.f32 %v2194, %v2417
    %v2419 = vmul.f32 %v2195, %v2417
    %v2420 = vadd.f32 %v2414, %v2418
    %v2421 = vadd.f32 %v2415, %v2419
    %s2422 = sld [smem:[#allocation11 + $0x57]]
    %v2423 = vstv %s2422
    %v2424 = vmul.f32 %v2256, %v2423
    %v2425 = vmul.f32 %v2257, %v2423
    %v2426 = vadd.f32 %v2420, %v2424
    %v2427 = vadd.f32 %v2421, %v2425
    %s2428 = sld [smem:[#allocation12 + $0xa]]
    %v2429 = vstv %s2428
    %v2430 = vadd.f32 %v2426, %v2429
    %v2431 = vadd.f32 %v2427, %v2429
    %vm2432 = vcmp.gt.f32.partialorder %v2430, 0.0
    %vm2433 = vcmp.gt.f32.partialorder %v2431, 0.0
    %v2434 = vmin.f32 %v2430, 0.0
    %v2435 = vmin.f32 %v2431, 0.0
    %v2436 = vmul.f32 %v2434, 1.442695
    %v2437 = vpow.pop %v2436
    %v2438 = vmul.f32 %v2435, 1.442695
    %v2439 = vpow.pop %v2438
    %v2440 = vsub.f32 %v2437, 1.0
    %v2441 = vsub.f32 %v2439, 1.0
    %v2442 = vsel %vm2432, %v2430, %v2440
    %v2443 = vsel %vm2433, %v2431, %v2441
    %s2444 = sld [smem:[#allocation11 + $0x58]]
    %v2445 = vstv %s2444
    %v2446 = vmul.f32 %v1822, %v2445
    %v2447 = vmul.f32 %v1823, %v2445
    %s2448 = sld [smem:[#allocation11 + $0x59]]
    %v2449 = vstv %s2448
    %v2450 = vmul.f32 %v1884, %v2449
    %v2451 = vmul.f32 %v1885, %v2449
    %v2452 = vadd.f32 %v2446, %v2450
    %v2453 = vadd.f32 %v2447, %v2451
    %s2454 = sld [smem:[#allocation11 + $0x5a]]
    %v2455 = vstv %s2454
    %v2456 = vmul.f32 %v1946, %v2455
    %v2457 = vmul.f32 %v1947, %v2455
    %v2458 = vadd.f32 %v2452, %v2456
    %v2459 = vadd.f32 %v2453, %v2457
    %s2460 = sld [smem:[#allocation11 + $0x5b]]
    %v2461 = vstv %s2460
    %v2462 = vmul.f32 %v2008, %v2461
    %v2463 = vmul.f32 %v2009, %v2461
    %v2464 = vadd.f32 %v2458, %v2462
    %v2465 = vadd.f32 %v2459, %v2463
    %s2466 = sld [smem:[#allocation11 + $0x5c]]
    %v2467 = vstv %s2466
    %v2468 = vmul.f32 %v2070, %v2467
    %v2469 = vmul.f32 %v2071, %v2467
    %v2470 = vadd.f32 %v2464, %v2468
    %v2471 = vadd.f32 %v2465, %v2469
    %s2472 = sld [smem:[#allocation11 + $0x5d]]
    %v2473 = vstv %s2472
    %v2474 = vmul.f32 %v2132, %v2473
    %v2475 = vmul.f32 %v2133, %v2473
    %v2476 = vadd.f32 %v2470, %v2474
    %v2477 = vadd.f32 %v2471, %v2475
    %s2478 = sld [smem:[#allocation11 + $0x5e]]
    %v2479 = vstv %s2478
    %v2480 = vmul.f32 %v2194, %v2479
    %v2481 = vmul.f32 %v2195, %v2479
    %v2482 = vadd.f32 %v2476, %v2480
    %v2483 = vadd.f32 %v2477, %v2481
    %s2484 = sld [smem:[#allocation11 + $0x5f]]
    %v2485 = vstv %s2484
    %v2486 = vmul.f32 %v2256, %v2485
    %v2487 = vmul.f32 %v2257, %v2485
    %v2488 = vadd.f32 %v2482, %v2486
    %v2489 = vadd.f32 %v2483, %v2487
    %s2490 = sld [smem:[#allocation12 + $0xb]]
    %v2491 = vstv %s2490
    %v2492 = vadd.f32 %v2488, %v2491
    %v2493 = vadd.f32 %v2489, %v2491
    %vm2494 = vcmp.gt.f32.partialorder %v2492, 0.0
    %vm2495 = vcmp.gt.f32.partialorder %v2493, 0.0
    %v2496 = vmin.f32 %v2492, 0.0
    %v2497 = vmin.f32 %v2493, 0.0
    %v2498 = vmul.f32 %v2496, 1.442695
    %v2499 = vpow.pop %v2498
    %v2500 = vmul.f32 %v2497, 1.442695
    %v2501 = vpow.pop %v2500
    %v2502 = vsub.f32 %v2499, 1.0
    %v2503 = vsub.f32 %v2501, 1.0
    %v2504 = vsel %vm2494, %v2492, %v2502
    %v2505 = vsel %vm2495, %v2493, %v2503
    %s2506 = sld [smem:[#allocation11 + $0x60]]
    %v2507 = vstv %s2506
    %v2508 = vmul.f32 %v1822, %v2507
    %v2509 = vmul.f32 %v1823, %v2507
    %s2510 = sld [smem:[#allocation11 + $0x61]]
    %v2511 = vstv %s2510
    %v2512 = vmul.f32 %v1884, %v2511
    %v2513 = vmul.f32 %v1885, %v2511
    %v2514 = vadd.f32 %v2508, %v2512
    %v2515 = vadd.f32 %v2509, %v2513
    %s2516 = sld [smem:[#allocation11 + $0x62]]
    %v2517 = vstv %s2516
    %v2518 = vmul.f32 %v1946, %v2517
    %v2519 = vmul.f32 %v1947, %v2517
    %v2520 = vadd.f32 %v2514, %v2518
    %v2521 = vadd.f32 %v2515, %v2519
    %s2522 = sld [smem:[#allocation11 + $0x63]]
    %v2523 = vstv %s2522
    %v2524 = vmul.f32 %v2008, %v2523
    %v2525 = vmul.f32 %v2009, %v2523
    %v2526 = vadd.f32 %v2520, %v2524
    %v2527 = vadd.f32 %v2521, %v2525
    %s2528 = sld [smem:[#allocation11 + $0x64]]
    %v2529 = vstv %s2528
    %v2530 = vmul.f32 %v2070, %v2529
    %v2531 = vmul.f32 %v2071, %v2529
    %v2532 = vadd.f32 %v2526, %v2530
    %v2533 = vadd.f32 %v2527, %v2531
    %s2534 = sld [smem:[#allocation11 + $0x65]]
    %v2535 = vstv %s2534
    %v2536 = vmul.f32 %v2132, %v2535
    %v2537 = vmul.f32 %v2133, %v2535
    %v2538 = vadd.f32 %v2532, %v2536
    %v2539 = vadd.f32 %v2533, %v2537
    %s2540 = sld [smem:[#allocation11 + $0x66]]
    %v2541 = vstv %s2540
    %v2542 = vmul.f32 %v2194, %v2541
    %v2543 = vmul.f32 %v2195, %v2541
    %v2544 = vadd.f32 %v2538, %v2542
    %v2545 = vadd.f32 %v2539, %v2543
    %s2546 = sld [smem:[#allocation11 + $0x67]]
    %v2547 = vstv %s2546
    %v2548 = vmul.f32 %v2256, %v2547
    %v2549 = vmul.f32 %v2257, %v2547
    %v2550 = vadd.f32 %v2544, %v2548
    %v2551 = vadd.f32 %v2545, %v2549
    %s2552 = sld [smem:[#allocation12 + $0xc]]
    %v2553 = vstv %s2552
    %v2554 = vadd.f32 %v2550, %v2553
    %v2555 = vadd.f32 %v2551, %v2553
    %vm2556 = vcmp.gt.f32.partialorder %v2554, 0.0
    %vm2557 = vcmp.gt.f32.partialorder %v2555, 0.0
    %v2558 = vmin.f32 %v2554, 0.0
    %v2559 = vmin.f32 %v2555, 0.0
    %v2560 = vmul.f32 %v2558, 1.442695
    %v2561 = vpow.pop %v2560
    %v2562 = vmul.f32 %v2559, 1.442695
    %v2563 = vpow.pop %v2562
    %v2564 = vsub.f32 %v2561, 1.0
    %v2565 = vsub.f32 %v2563, 1.0
    %v2566 = vsel %vm2556, %v2554, %v2564
    %v2567 = vsel %vm2557, %v2555, %v2565
    %s2568 = sld [smem:[#allocation11 + $0x68]]
    %v2569 = vstv %s2568
    %v2570 = vmul.f32 %v1822, %v2569
    %v2571 = vmul.f32 %v1823, %v2569
    %s2572 = sld [smem:[#allocation11 + $0x69]]
    %v2573 = vstv %s2572
    %v2574 = vmul.f32 %v1884, %v2573
    %v2575 = vmul.f32 %v1885, %v2573
    %v2576 = vadd.f32 %v2570, %v2574
    %v2577 = vadd.f32 %v2571, %v2575
    %s2578 = sld [smem:[#allocation11 + $0x6a]]
    %v2579 = vstv %s2578
    %v2580 = vmul.f32 %v1946, %v2579
    %v2581 = vmul.f32 %v1947, %v2579
    %v2582 = vadd.f32 %v2576, %v2580
    %v2583 = vadd.f32 %v2577, %v2581
    %s2584 = sld [smem:[#allocation11 + $0x6b]]
    %v2585 = vstv %s2584
    %v2586 = vmul.f32 %v2008, %v2585
    %v2587 = vmul.f32 %v2009, %v2585
    %v2588 = vadd.f32 %v2582, %v2586
    %v2589 = vadd.f32 %v2583, %v2587
    %s2590 = sld [smem:[#allocation11 + $0x6c]]
    %v2591 = vstv %s2590
    %v2592 = vmul.f32 %v2070, %v2591
    %v2593 = vmul.f32 %v2071, %v2591
    %v2594 = vadd.f32 %v2588, %v2592
    %v2595 = vadd.f32 %v2589, %v2593
    %s2596 = sld [smem:[#allocation11 + $0x6d]]
    %v2597 = vstv %s2596
    %v2598 = vmul.f32 %v2132, %v2597
    %v2599 = vmul.f32 %v2133, %v2597
    %v2600 = vadd.f32 %v2594, %v2598
    %v2601 = vadd.f32 %v2595, %v2599
    %s2602 = sld [smem:[#allocation11 + $0x6e]]
    %v2603 = vstv %s2602
    %v2604 = vmul.f32 %v2194, %v2603
    %v2605 = vmul.f32 %v2195, %v2603
    %v2606 = vadd.f32 %v2600, %v2604
    %v2607 = vadd.f32 %v2601, %v2605
    %s2608 = sld [smem:[#allocation11 + $0x6f]]
    %v2609 = vstv %s2608
    %v2610 = vmul.f32 %v2256, %v2609
    %v2611 = vmul.f32 %v2257, %v2609
    %v2612 = vadd.f32 %v2606, %v2610
    %v2613 = vadd.f32 %v2607, %v2611
    %s2614 = sld [smem:[#allocation12 + $0xd]]
    %v2615 = vstv %s2614
    %v2616 = vadd.f32 %v2612, %v2615
    %v2617 = vadd.f32 %v2613, %v2615
    %vm2618 = vcmp.gt.f32.partialorder %v2616, 0.0
    %vm2619 = vcmp.gt.f32.partialorder %v2617, 0.0
    %v2620 = vmin.f32 %v2616, 0.0
    %v2621 = vmin.f32 %v2617, 0.0
    %v2622 = vmul.f32 %v2620, 1.442695
    %v2623 = vpow.pop %v2622
    %v2624 = vmul.f32 %v2621, 1.442695
    %v2625 = vpow.pop %v2624
    %v2626 = vsub.f32 %v2623, 1.0
    %v2627 = vsub.f32 %v2625, 1.0
    %v2628 = vsel %vm2618, %v2616, %v2626
    %v2629 = vsel %vm2619, %v2617, %v2627
    %s2630 = sld [smem:[#allocation11 + $0x70]]
    %v2631 = vstv %s2630
    %v2632 = vmul.f32 %v1822, %v2631
    %v2633 = vmul.f32 %v1823, %v2631
    %s2634 = sld [smem:[#allocation11 + $0x71]]
    %v2635 = vstv %s2634
    %v2636 = vmul.f32 %v1884, %v2635
    %v2637 = vmul.f32 %v1885, %v2635
    %v2638 = vadd.f32 %v2632, %v2636
    %v2639 = vadd.f32 %v2633, %v2637
    %s2640 = sld [smem:[#allocation11 + $0x72]]
    %v2641 = vstv %s2640
    %v2642 = vmul.f32 %v1946, %v2641
    %v2643 = vmul.f32 %v1947, %v2641
    %v2644 = vadd.f32 %v2638, %v2642
    %v2645 = vadd.f32 %v2639, %v2643
    %s2646 = sld [smem:[#allocation11 + $0x73]]
    %v2647 = vstv %s2646
    %v2648 = vmul.f32 %v2008, %v2647
    %v2649 = vmul.f32 %v2009, %v2647
    %v2650 = vadd.f32 %v2644, %v2648
    %v2651 = vadd.f32 %v2645, %v2649
    %s2652 = sld [smem:[#allocation11 + $0x74]]
    %v2653 = vstv %s2652
    %v2654 = vmul.f32 %v2070, %v2653
    %v2655 = vmul.f32 %v2071, %v2653
    %v2656 = vadd.f32 %v2650, %v2654
    %v2657 = vadd.f32 %v2651, %v2655
    %s2658 = sld [smem:[#allocation11 + $0x75]]
    %v2659 = vstv %s2658
    %v2660 = vmul.f32 %v2132, %v2659
    %v2661 = vmul.f32 %v2133, %v2659
    %v2662 = vadd.f32 %v2656, %v2660
    %v2663 = vadd.f32 %v2657, %v2661
    %s2664 = sld [smem:[#allocation11 + $0x76]]
    %v2665 = vstv %s2664
    %v2666 = vmul.f32 %v2194, %v2665
    %v2667 = vmul.f32 %v2195, %v2665
    %v2668 = vadd.f32 %v2662, %v2666
    %v2669 = vadd.f32 %v2663, %v2667
    %s2670 = sld [smem:[#allocation11 + $0x77]]
    %v2671 = vstv %s2670
    %v2672 = vmul.f32 %v2256, %v2671
    %v2673 = vmul.f32 %v2257, %v2671
    %v2674 = vadd.f32 %v2668, %v2672
    %v2675 = vadd.f32 %v2669, %v2673
    %s2676 = sld [smem:[#allocation12 + $0xe]]
    %v2677 = vstv %s2676
    %v2678 = vadd.f32 %v2674, %v2677
    %v2679 = vadd.f32 %v2675, %v2677
    %vm2680 = vcmp.gt.f32.partialorder %v2678, 0.0
    %vm2681 = vcmp.gt.f32.partialorder %v2679, 0.0
    %v2682 = vmin.f32 %v2678, 0.0
    %v2683 = vmin.f32 %v2679, 0.0
    %v2684 = vmul.f32 %v2682, 1.442695
    %v2685 = vpow.pop %v2684
    %v2686 = vmul.f32 %v2683, 1.442695
    %v2687 = vpow.pop %v2686
    %v2688 = vsub.f32 %v2685, 1.0
    %v2689 = vsub.f32 %v2687, 1.0
    %v2690 = vsel %vm2680, %v2678, %v2688
    %v2691 = vsel %vm2681, %v2679, %v2689
    %s2692 = sld [smem:[#allocation11 + $0x78]]
    %v2693 = vstv %s2692
    %v2694 = vmul.f32 %v1822, %v2693
    %v2695 = vmul.f32 %v1823, %v2693
    %s2696 = sld [smem:[#allocation11 + $0x79]]
    %v2697 = vstv %s2696
    %v2698 = vmul.f32 %v1884, %v2697
    %v2699 = vmul.f32 %v1885, %v2697
    %v2700 = vadd.f32 %v2694, %v2698
    %v2701 = vadd.f32 %v2695, %v2699
    %s2702 = sld [smem:[#allocation11 + $0x7a]]
    %v2703 = vstv %s2702
    %v2704 = vmul.f32 %v1946, %v2703
    %v2705 = vmul.f32 %v1947, %v2703
    %v2706 = vadd.f32 %v2700, %v2704
    %v2707 = vadd.f32 %v2701, %v2705
    %s2708 = sld [smem:[#allocation11 + $0x7b]]
    %v2709 = vstv %s2708
    %v2710 = vmul.f32 %v2008, %v2709
    %v2711 = vmul.f32 %v2009, %v2709
    %v2712 = vadd.f32 %v2706, %v2710
    %v2713 = vadd.f32 %v2707, %v2711
    %s2714 = sld [smem:[#allocation11 + $0x7c]]
    %v2715 = vstv %s2714
    %v2716 = vmul.f32 %v2070, %v2715
    %v2717 = vmul.f32 %v2071, %v2715
    %v2718 = vadd.f32 %v2712, %v2716
    %v2719 = vadd.f32 %v2713, %v2717
    %s2720 = sld [smem:[#allocation11 + $0x7d]]
    %v2721 = vstv %s2720
    %v2722 = vmul.f32 %v2132, %v2721
    %v2723 = vmul.f32 %v2133, %v2721
    %v2724 = vadd.f32 %v2718, %v2722
    %v2725 = vadd.f32 %v2719, %v2723
    %s2726 = sld [smem:[#allocation11 + $0x7e]]
    %v2727 = vstv %s2726
    %v2728 = vmul.f32 %v2194, %v2727
    %v2729 = vmul.f32 %v2195, %v2727
    %v2730 = vadd.f32 %v2724, %v2728
    %v2731 = vadd.f32 %v2725, %v2729
    %s2732 = sld [smem:[#allocation11 + $0x7f]]
    %v2733 = vstv %s2732
    %v2734 = vmul.f32 %v2256, %v2733
    %v2735 = vmul.f32 %v2257, %v2733
    %v2736 = vadd.f32 %v2730, %v2734
    %v2737 = vadd.f32 %v2731, %v2735
    %s2738 = sld [smem:[#allocation12 + $0xf]]
    %v2739 = vstv %s2738
    %v2740 = vadd.f32 %v2736, %v2739
    %v2741 = vadd.f32 %v2737, %v2739
    %vm2742 = vcmp.gt.f32.partialorder %v2740, 0.0
    %vm2743 = vcmp.gt.f32.partialorder %v2741, 0.0
    %v2744 = vmin.f32 %v2740, 0.0
    %v2745 = vmin.f32 %v2741, 0.0
    %v2746 = vmul.f32 %v2744, 1.442695
    %v2747 = vpow.pop %v2746
    %v2748 = vmul.f32 %v2745, 1.442695
    %v2749 = vpow.pop %v2748
    %v2750 = vsub.f32 %v2747, 1.0
    %v2751 = vsub.f32 %v2749, 1.0
    %v2752 = vsel %vm2742, %v2740, %v2750
    %v2753 = vsel %vm2743, %v2741, %v2751
    %s2754 = sld [smem:[#allocation11 + $0x80]]
    %v2755 = vstv %s2754
    %v2756 = vmul.f32 %v2318, %v2755
    %v2757 = vmul.f32 %v2319, %v2755
    %s2758 = sld [smem:[#allocation11 + $0x81]]
    %v2759 = vstv %s2758
    %v2760 = vmul.f32 %v2380, %v2759
    %v2761 = vmul.f32 %v2381, %v2759
    %v2762 = vadd.f32 %v2756, %v2760
    %v2763 = vadd.f32 %v2757, %v2761
    %s2764 = sld [smem:[#allocation11 + $0x82]]
    %v2765 = vstv %s2764
    %v2766 = vmul.f32 %v2442, %v2765
    %v2767 = vmul.f32 %v2443, %v2765
    %v2768 = vadd.f32 %v2762, %v2766
    %v2769 = vadd.f32 %v2763, %v2767
    %s2770 = sld [smem:[#allocation11 + $0x83]]
    %v2771 = vstv %s2770
    %v2772 = vmul.f32 %v2504, %v2771
    %v2773 = vmul.f32 %v2505, %v2771
    %v2774 = vadd.f32 %v2768, %v2772
    %v2775 = vadd.f32 %v2769, %v2773
    %s2776 = sld [smem:[#allocation11 + $0x84]]
    %v2777 = vstv %s2776
    %v2778 = vmul.f32 %v2566, %v2777
    %v2779 = vmul.f32 %v2567, %v2777
    %v2780 = vadd.f32 %v2774, %v2778
    %v2781 = vadd.f32 %v2775, %v2779
    %s2782 = sld [smem:[#allocation11 + $0x85]]
    %v2783 = vstv %s2782
    %v2784 = vmul.f32 %v2628, %v2783
    %v2785 = vmul.f32 %v2629, %v2783
    %v2786 = vadd.f32 %v2780, %v2784
    %v2787 = vadd.f32 %v2781, %v2785
    %s2788 = sld [smem:[#allocation11 + $0x86]]
    %v2789 = vstv %s2788
    %v2790 = vmul.f32 %v2690, %v2789
    %v2791 = vmul.f32 %v2691, %v2789
    %v2792 = vadd.f32 %v2786, %v2790
    %v2793 = vadd.f32 %v2787, %v2791
    %s2794 = sld [smem:[#allocation11 + $0x87]]
    %v2795 = vstv %s2794
    %v2796 = vmul.f32 %v2752, %v2795
    %v2797 = vmul.f32 %v2753, %v2795
    %v2798 = vadd.f32 %v2792, %v2796
    %v2799 = vadd.f32 %v2793, %v2797
    %s2800 = sld [smem:[#allocation12 + $0x10]]
    %v2801 = vstv %s2800
    %v2802 = vadd.f32 %v2798, %v2801
    %v2803 = vadd.f32 %v2799, %v2801
    %vm2804 = vcmp.gt.f32.partialorder %v2802, 0.0
    %vm2805 = vcmp.gt.f32.partialorder %v2803, 0.0
    %v2806 = vmin.f32 %v2802, 0.0
    %v2807 = vmin.f32 %v2803, 0.0
    %v2808 = vmul.f32 %v2806, 1.442695
    %v2809 = vpow.pop %v2808
    %v2810 = vmul.f32 %v2807, 1.442695
    %v2811 = vpow.pop %v2810
    %v2812 = vsub.f32 %v2809, 1.0
    %v2813 = vsub.f32 %v2811, 1.0
    %v2814 = vsel %vm2804, %v2802, %v2812
    %v2815 = vsel %vm2805, %v2803, %v2813
    %s2816 = sld [smem:[#allocation11 + $0x88]]
    %v2817 = vstv %s2816
    %v2818 = vmul.f32 %v2318, %v2817
    %v2819 = vmul.f32 %v2319, %v2817
    %s2820 = sld [smem:[#allocation11 + $0x89]]
    %v2821 = vstv %s2820
    %v2822 = vmul.f32 %v2380, %v2821
    %v2823 = vmul.f32 %v2381, %v2821
    %v2824 = vadd.f32 %v2818, %v2822
    %v2825 = vadd.f32 %v2819, %v2823
    %s2826 = sld [smem:[#allocation11 + $0x8a]]
    %v2827 = vstv %s2826
    %v2828 = vmul.f32 %v2442, %v2827
    %v2829 = vmul.f32 %v2443, %v2827
    %v2830 = vadd.f32 %v2824, %v2828
    %v2831 = vadd.f32 %v2825, %v2829
    %s2832 = sld [smem:[#allocation11 + $0x8b]]
    %v2833 = vstv %s2832
    %v2834 = vmul.f32 %v2504, %v2833
    %v2835 = vmul.f32 %v2505, %v2833
    %v2836 = vadd.f32 %v2830, %v2834
    %v2837 = vadd.f32 %v2831, %v2835
    %s2838 = sld [smem:[#allocation11 + $0x8c]]
    %v2839 = vstv %s2838
    %v2840 = vmul.f32 %v2566, %v2839
    %v2841 = vmul.f32 %v2567, %v2839
    %v2842 = vadd.f32 %v2836, %v2840
    %v2843 = vadd.f32 %v2837, %v2841
    %s2844 = sld [smem:[#allocation11 + $0x8d]]
    %v2845 = vstv %s2844
    %v2846 = vmul.f32 %v2628, %v2845
    %v2847 = vmul.f32 %v2629, %v2845
    %v2848 = vadd.f32 %v2842, %v2846
    %v2849 = vadd.f32 %v2843, %v2847
    %s2850 = sld [smem:[#allocation11 + $0x8e]]
    %v2851 = vstv %s2850
    %v2852 = vmul.f32 %v2690, %v2851
    %v2853 = vmul.f32 %v2691, %v2851
    %v2854 = vadd.f32 %v2848, %v2852
    %v2855 = vadd.f32 %v2849, %v2853
    %s2856 = sld [smem:[#allocation11 + $0x8f]]
    %v2857 = vstv %s2856
    %v2858 = vmul.f32 %v2752, %v2857
    %v2859 = vmul.f32 %v2753, %v2857
    %v2860 = vadd.f32 %v2854, %v2858
    %v2861 = vadd.f32 %v2855, %v2859
    %s2862 = sld [smem:[#allocation12 + $0x11]]
    %v2863 = vstv %s2862
    %v2864 = vadd.f32 %v2860, %v2863
    %v2865 = vadd.f32 %v2861, %v2863
    %vm2866 = vcmp.gt.f32.partialorder %v2864, 0.0
    %vm2867 = vcmp.gt.f32.partialorder %v2865, 0.0
    %v2868 = vmin.f32 %v2864, 0.0
    %v2869 = vmin.f32 %v2865, 0.0
    %v2870 = vmul.f32 %v2868, 1.442695
    %v2871 = vpow.pop %v2870
    %v2872 = vmul.f32 %v2869, 1.442695
    %v2873 = vpow.pop %v2872
    %v2874 = vsub.f32 %v2871, 1.0
    %v2875 = vsub.f32 %v2873, 1.0
    %v2876 = vsel %vm2866, %v2864, %v2874
    %v2877 = vsel %vm2867, %v2865, %v2875
    %s2878 = sld [smem:[#allocation11 + $0x90]]
    %v2879 = vstv %s2878
    %v2880 = vmul.f32 %v2318, %v2879
    %v2881 = vmul.f32 %v2319, %v2879
    %s2882 = sld [smem:[#allocation11 + $0x91]]
    %v2883 = vstv %s2882
    %v2884 = vmul.f32 %v2380, %v2883
    %v2885 = vmul.f32 %v2381, %v2883
    %v2886 = vadd.f32 %v2880, %v2884
    %v2887 = vadd.f32 %v2881, %v2885
    %s2888 = sld [smem:[#allocation11 + $0x92]]
    %v2889 = vstv %s2888
    %v2890 = vmul.f32 %v2442, %v2889
    %v2891 = vmul.f32 %v2443, %v2889
    %v2892 = vadd.f32 %v2886, %v2890
    %v2893 = vadd.f32 %v2887, %v2891
    %s2894 = sld [smem:[#allocation11 + $0x93]]
    %v2895 = vstv %s2894
    %v2896 = vmul.f32 %v2504, %v2895
    %v2897 = vmul.f32 %v2505, %v2895
    %v2898 = vadd.f32 %v2892, %v2896
    %v2899 = vadd.f32 %v2893, %v2897
    %s2900 = sld [smem:[#allocation11 + $0x94]]
    %v2901 = vstv %s2900
    %v2902 = vmul.f32 %v2566, %v2901
    %v2903 = vmul.f32 %v2567, %v2901
    %v2904 = vadd.f32 %v2898, %v2902
    %v2905 = vadd.f32 %v2899, %v2903
    %s2906 = sld [smem:[#allocation11 + $0x95]]
    %v2907 = vstv %s2906
    %v2908 = vmul.f32 %v2628, %v2907
    %v2909 = vmul.f32 %v2629, %v2907
    %v2910 = vadd.f32 %v2904, %v2908
    %v2911 = vadd.f32 %v2905, %v2909
    %s2912 = sld [smem:[#allocation11 + $0x96]]
    %v2913 = vstv %s2912
    %v2914 = vmul.f32 %v2690, %v2913
    %v2915 = vmul.f32 %v2691, %v2913
    %v2916 = vadd.f32 %v2910, %v2914
    %v2917 = vadd.f32 %v2911, %v2915
    %s2918 = sld [smem:[#allocation11 + $0x97]]
    %v2919 = vstv %s2918
    %v2920 = vmul.f32 %v2752, %v2919
    %v2921 = vmul.f32 %v2753, %v2919
    %v2922 = vadd.f32 %v2916, %v2920
    %v2923 = vadd.f32 %v2917, %v2921
    %s2924 = sld [smem:[#allocation12 + $0x12]]
    %v2925 = vstv %s2924
    %v2926 = vadd.f32 %v2922, %v2925
    %v2927 = vadd.f32 %v2923, %v2925
    %vm2928 = vcmp.gt.f32.partialorder %v2926, 0.0
    %vm2929 = vcmp.gt.f32.partialorder %v2927, 0.0
    %v2930 = vmin.f32 %v2926, 0.0
    %v2931 = vmin.f32 %v2927, 0.0
    %v2932 = vmul.f32 %v2930, 1.442695
    %v2933 = vpow.pop %v2932
    %v2934 = vmul.f32 %v2931, 1.442695
    %v2935 = vpow.pop %v2934
    %v2936 = vsub.f32 %v2933, 1.0
    %v2937 = vsub.f32 %v2935, 1.0
    %v2938 = vsel %vm2928, %v2926, %v2936
    %v2939 = vsel %vm2929, %v2927, %v2937
    %s2940 = sld [smem:[#allocation11 + $0x98]]
    %v2941 = vstv %s2940
    %v2942 = vmul.f32 %v2318, %v2941
    %v2943 = vmul.f32 %v2319, %v2941
    %s2944 = sld [smem:[#allocation11 + $0x99]]
    %v2945 = vstv %s2944
    %v2946 = vmul.f32 %v2380, %v2945
    %v2947 = vmul.f32 %v2381, %v2945
    %v2948 = vadd.f32 %v2942, %v2946
    %v2949 = vadd.f32 %v2943, %v2947
    %s2950 = sld [smem:[#allocation11 + $0x9a]]
    %v2951 = vstv %s2950
    %v2952 = vmul.f32 %v2442, %v2951
    %v2953 = vmul.f32 %v2443, %v2951
    %v2954 = vadd.f32 %v2948, %v2952
    %v2955 = vadd.f32 %v2949, %v2953
    %s2956 = sld [smem:[#allocation11 + $0x9b]]
    %v2957 = vstv %s2956
    %v2958 = vmul.f32 %v2504, %v2957
    %v2959 = vmul.f32 %v2505, %v2957
    %v2960 = vadd.f32 %v2954, %v2958
    %v2961 = vadd.f32 %v2955, %v2959
    %s2962 = sld [smem:[#allocation11 + $0x9c]]
    %v2963 = vstv %s2962
    %v2964 = vmul.f32 %v2566, %v2963
    %v2965 = vmul.f32 %v2567, %v2963
    %v2966 = vadd.f32 %v2960, %v2964
    %v2967 = vadd.f32 %v2961, %v2965
    %s2968 = sld [smem:[#allocation11 + $0x9d]]
    %v2969 = vstv %s2968
    %v2970 = vmul.f32 %v2628, %v2969
    %v2971 = vmul.f32 %v2629, %v2969
    %v2972 = vadd.f32 %v2966, %v2970
    %v2973 = vadd.f32 %v2967, %v2971
    %s2974 = sld [smem:[#allocation11 + $0x9e]]
    %v2975 = vstv %s2974
    %v2976 = vmul.f32 %v2690, %v2975
    %v2977 = vmul.f32 %v2691, %v2975
    %v2978 = vadd.f32 %v2972, %v2976
    %v2979 = vadd.f32 %v2973, %v2977
    %s2980 = sld [smem:[#allocation11 + $0x9f]]
    %v2981 = vstv %s2980
    %v2982 = vmul.f32 %v2752, %v2981
    %v2983 = vmul.f32 %v2753, %v2981
    %v2984 = vadd.f32 %v2978, %v2982
    %v2985 = vadd.f32 %v2979, %v2983
    %s2986 = sld [smem:[#allocation12 + $0x13]]
    %v2987 = vstv %s2986
    %v2988 = vadd.f32 %v2984, %v2987
    %v2989 = vadd.f32 %v2985, %v2987
    %vm2990 = vcmp.gt.f32.partialorder %v2988, 0.0
    %vm2991 = vcmp.gt.f32.partialorder %v2989, 0.0
    %v2992 = vmin.f32 %v2988, 0.0
    %v2993 = vmin.f32 %v2989, 0.0
    %v2994 = vmul.f32 %v2992, 1.442695
    %v2995 = vpow.pop %v2994
    %v2996 = vmul.f32 %v2993, 1.442695
    %v2997 = vpow.pop %v2996
    %v2998 = vsub.f32 %v2995, 1.0
    %v2999 = vsub.f32 %v2997, 1.0
    %v3000 = vsel %vm2990, %v2988, %v2998
    %v3001 = vsel %vm2991, %v2989, %v2999
    %s3002 = sld [smem:[#allocation11 + $0xa0]]
    %v3003 = vstv %s3002
    %v3004 = vmul.f32 %v2318, %v3003
    %v3005 = vmul.f32 %v2319, %v3003
    %s3006 = sld [smem:[#allocation11 + $0xa1]]
    %v3007 = vstv %s3006
    %v3008 = vmul.f32 %v2380, %v3007
    %v3009 = vmul.f32 %v2381, %v3007
    %v3010 = vadd.f32 %v3004, %v3008
    %v3011 = vadd.f32 %v3005, %v3009
    %s3012 = sld [smem:[#allocation11 + $0xa2]]
    %v3013 = vstv %s3012
    %v3014 = vmul.f32 %v2442, %v3013
    %v3015 = vmul.f32 %v2443, %v3013
    %v3016 = vadd.f32 %v3010, %v3014
    %v3017 = vadd.f32 %v3011, %v3015
    %s3018 = sld [smem:[#allocation11 + $0xa3]]
    %v3019 = vstv %s3018
    %v3020 = vmul.f32 %v2504, %v3019
    %v3021 = vmul.f32 %v2505, %v3019
    %v3022 = vadd.f32 %v3016, %v3020
    %v3023 = vadd.f32 %v3017, %v3021
    %s3024 = sld [smem:[#allocation11 + $0xa4]]
    %v3025 = vstv %s3024
    %v3026 = vmul.f32 %v2566, %v3025
    %v3027 = vmul.f32 %v2567, %v3025
    %v3028 = vadd.f32 %v3022, %v3026
    %v3029 = vadd.f32 %v3023, %v3027
    %s3030 = sld [smem:[#allocation11 + $0xa5]]
    %v3031 = vstv %s3030
    %v3032 = vmul.f32 %v2628, %v3031
    %v3033 = vmul.f32 %v2629, %v3031
    %v3034 = vadd.f32 %v3028, %v3032
    %v3035 = vadd.f32 %v3029, %v3033
    %s3036 = sld [smem:[#allocation11 + $0xa6]]
    %v3037 = vstv %s3036
    %v3038 = vmul.f32 %v2690, %v3037
    %v3039 = vmul.f32 %v2691, %v3037
    %v3040 = vadd.f32 %v3034, %v3038
    %v3041 = vadd.f32 %v3035, %v3039
    %s3042 = sld [smem:[#allocation11 + $0xa7]]
    %v3043 = vstv %s3042
    %v3044 = vmul.f32 %v2752, %v3043
    %v3045 = vmul.f32 %v2753, %v3043
    %v3046 = vadd.f32 %v3040, %v3044
    %v3047 = vadd.f32 %v3041, %v3045
    %s3048 = sld [smem:[#allocation12 + $0x14]]
    %v3049 = vstv %s3048
    %v3050 = vadd.f32 %v3046, %v3049
    %v3051 = vadd.f32 %v3047, %v3049
    %vm3052 = vcmp.gt.f32.partialorder %v3050, 0.0
    %vm3053 = vcmp.gt.f32.partialorder %v3051, 0.0
    %v3054 = vmin.f32 %v3050, 0.0
    %v3055 = vmin.f32 %v3051, 0.0
    %v3056 = vmul.f32 %v3054, 1.442695
    %v3057 = vpow.pop %v3056
    %v3058 = vmul.f32 %v3055, 1.442695
    %v3059 = vpow.pop %v3058
    %v3060 = vsub.f32 %v3057, 1.0
    %v3061 = vsub.f32 %v3059, 1.0
    %v3062 = vsel %vm3052, %v3050, %v3060
    %v3063 = vsel %vm3053, %v3051, %v3061
    %s3064 = sld [smem:[#allocation11 + $0xa8]]
    %v3065 = vstv %s3064
    %v3066 = vmul.f32 %v2318, %v3065
    %v3067 = vmul.f32 %v2319, %v3065
    %s3068 = sld [smem:[#allocation11 + $0xa9]]
    %v3069 = vstv %s3068
    %v3070 = vmul.f32 %v2380, %v3069
    %v3071 = vmul.f32 %v2381, %v3069
    %v3072 = vadd.f32 %v3066, %v3070
    %v3073 = vadd.f32 %v3067, %v3071
    %s3074 = sld [smem:[#allocation11 + $0xaa]]
    %v3075 = vstv %s3074
    %v3076 = vmul.f32 %v2442, %v3075
    %v3077 = vmul.f32 %v2443, %v3075
    %v3078 = vadd.f32 %v3072, %v3076
    %v3079 = vadd.f32 %v3073, %v3077
    %s3080 = sld [smem:[#allocation11 + $0xab]]
    %v3081 = vstv %s3080
    %v3082 = vmul.f32 %v2504, %v3081
    %v3083 = vmul.f32 %v2505, %v3081
    %v3084 = vadd.f32 %v3078, %v3082
    %v3085 = vadd.f32 %v3079, %v3083
    %s3086 = sld [smem:[#allocation11 + $0xac]]
    %v3087 = vstv %s3086
    %v3088 = vmul.f32 %v2566, %v3087
    %v3089 = vmul.f32 %v2567, %v3087
    %v3090 = vadd.f32 %v3084, %v3088
    %v3091 = vadd.f32 %v3085, %v3089
    %s3092 = sld [smem:[#allocation11 + $0xad]]
    %v3093 = vstv %s3092
    %v3094 = vmul.f32 %v2628, %v3093
    %v3095 = vmul.f32 %v2629, %v3093
    %v3096 = vadd.f32 %v3090, %v3094
    %v3097 = vadd.f32 %v3091, %v3095
    %s3098 = sld [smem:[#allocation11 + $0xae]]
    %v3099 = vstv %s3098
    %v3100 = vmul.f32 %v2690, %v3099
    %v3101 = vmul.f32 %v2691, %v3099
    %v3102 = vadd.f32 %v3096, %v3100
    %v3103 = vadd.f32 %v3097, %v3101
    %s3104 = sld [smem:[#allocation11 + $0xaf]]
    %v3105 = vstv %s3104
    %v3106 = vmul.f32 %v2752, %v3105
    %v3107 = vmul.f32 %v2753, %v3105
    %v3108 = vadd.f32 %v3102, %v3106
    %v3109 = vadd.f32 %v3103, %v3107
    %s3110 = sld [smem:[#allocation12 + $0x15]]
    %v3111 = vstv %s3110
    %v3112 = vadd.f32 %v3108, %v3111
    %v3113 = vadd.f32 %v3109, %v3111
    %vm3114 = vcmp.gt.f32.partialorder %v3112, 0.0
    %vm3115 = vcmp.gt.f32.partialorder %v3113, 0.0
    %v3116 = vmin.f32 %v3112, 0.0
    %v3117 = vmin.f32 %v3113, 0.0
    %v3118 = vmul.f32 %v3116, 1.442695
    %v3119 = vpow.pop %v3118
    %v3120 = vmul.f32 %v3117, 1.442695
    %v3121 = vpow.pop %v3120
    %v3122 = vsub.f32 %v3119, 1.0
    %v3123 = vsub.f32 %v3121, 1.0
    %v3124 = vsel %vm3114, %v3112, %v3122
    %v3125 = vsel %vm3115, %v3113, %v3123
    %s3126 = sld [smem:[#allocation11 + $0xb0]]
    %v3127 = vstv %s3126
    %v3128 = vmul.f32 %v2318, %v3127
    %v3129 = vmul.f32 %v2319, %v3127
    %s3130 = sld [smem:[#allocation11 + $0xb1]]
    %v3131 = vstv %s3130
    %v3132 = vmul.f32 %v2380, %v3131
    %v3133 = vmul.f32 %v2381, %v3131
    %v3134 = vadd.f32 %v3128, %v3132
    %v3135 = vadd.f32 %v3129, %v3133
    %s3136 = sld [smem:[#allocation11 + $0xb2]]
    %v3137 = vstv %s3136
    %v3138 = vmul.f32 %v2442, %v3137
    %v3139 = vmul.f32 %v2443, %v3137
    %v3140 = vadd.f32 %v3134, %v3138
    %v3141 = vadd.f32 %v3135, %v3139
    %s3142 = sld [smem:[#allocation11 + $0xb3]]
    %v3143 = vstv %s3142
    %v3144 = vmul.f32 %v2504, %v3143
    %v3145 = vmul.f32 %v2505, %v3143
    %v3146 = vadd.f32 %v3140, %v3144
    %v3147 = vadd.f32 %v3141, %v3145
    %s3148 = sld [smem:[#allocation11 + $0xb4]]
    %v3149 = vstv %s3148
    %v3150 = vmul.f32 %v2566, %v3149
    %v3151 = vmul.f32 %v2567, %v3149
    %v3152 = vadd.f32 %v3146, %v3150
    %v3153 = vadd.f32 %v3147, %v3151
    %s3154 = sld [smem:[#allocation11 + $0xb5]]
    %v3155 = vstv %s3154
    %v3156 = vmul.f32 %v2628, %v3155
    %v3157 = vmul.f32 %v2629, %v3155
    %v3158 = vadd.f32 %v3152, %v3156
    %v3159 = vadd.f32 %v3153, %v3157
    %s3160 = sld [smem:[#allocation11 + $0xb6]]
    %v3161 = vstv %s3160
    %v3162 = vmul.f32 %v2690, %v3161
    %v3163 = vmul.f32 %v2691, %v3161
    %v3164 = vadd.f32 %v3158, %v3162
    %v3165 = vadd.f32 %v3159, %v3163
    %s3166 = sld [smem:[#allocation11 + $0xb7]]
    %v3167 = vstv %s3166
    %v3168 = vmul.f32 %v2752, %v3167
    %v3169 = vmul.f32 %v2753, %v3167
    %v3170 = vadd.f32 %v3164, %v3168
    %v3171 = vadd.f32 %v3165, %v3169
    %s3172 = sld [smem:[#allocation12 + $0x16]]
    %v3173 = vstv %s3172
    %v3174 = vadd.f32 %v3170, %v3173
    %v3175 = vadd.f32 %v3171, %v3173
    %vm3176 = vcmp.gt.f32.partialorder %v3174, 0.0
    %vm3177 = vcmp.gt.f32.partialorder %v3175, 0.0
    %v3178 = vmin.f32 %v3174, 0.0
    %v3179 = vmin.f32 %v3175, 0.0
    %v3180 = vmul.f32 %v3178, 1.442695
    %v3181 = vpow.pop %v3180
    %v3182 = vmul.f32 %v3179, 1.442695
    %v3183 = vpow.pop %v3182
    %v3184 = vsub.f32 %v3181, 1.0
    %v3185 = vsub.f32 %v3183, 1.0
    %v3186 = vsel %vm3176, %v3174, %v3184
    %v3187 = vsel %vm3177, %v3175, %v3185
    %s3188 = sld [smem:[#allocation11 + $0xb8]]
    %v3189 = vstv %s3188
    %v3190 = vmul.f32 %v2318, %v3189
    %v3191 = vmul.f32 %v2319, %v3189
    %s3192 = sld [smem:[#allocation11 + $0xb9]]
    %v3193 = vstv %s3192
    %v3194 = vmul.f32 %v2380, %v3193
    %v3195 = vmul.f32 %v2381, %v3193
    %v3196 = vadd.f32 %v3190, %v3194
    %v3197 = vadd.f32 %v3191, %v3195
    %s3198 = sld [smem:[#allocation11 + $0xba]]
    %v3199 = vstv %s3198
    %v3200 = vmul.f32 %v2442, %v3199
    %v3201 = vmul.f32 %v2443, %v3199
    %v3202 = vadd.f32 %v3196, %v3200
    %v3203 = vadd.f32 %v3197, %v3201
    %s3204 = sld [smem:[#allocation11 + $0xbb]]
    %v3205 = vstv %s3204
    %v3206 = vmul.f32 %v2504, %v3205
    %v3207 = vmul.f32 %v2505, %v3205
    %v3208 = vadd.f32 %v3202, %v3206
    %v3209 = vadd.f32 %v3203, %v3207
    %s3210 = sld [smem:[#allocation11 + $0xbc]]
    %v3211 = vstv %s3210
    %v3212 = vmul.f32 %v2566, %v3211
    %v3213 = vmul.f32 %v2567, %v3211
    %v3214 = vadd.f32 %v3208, %v3212
    %v3215 = vadd.f32 %v3209, %v3213
    %s3216 = sld [smem:[#allocation11 + $0xbd]]
    %v3217 = vstv %s3216
    %v3218 = vmul.f32 %v2628, %v3217
    %v3219 = vmul.f32 %v2629, %v3217
    %v3220 = vadd.f32 %v3214, %v3218
    %v3221 = vadd.f32 %v3215, %v3219
    %s3222 = sld [smem:[#allocation11 + $0xbe]]
    %v3223 = vstv %s3222
    %v3224 = vmul.f32 %v2690, %v3223
    %v3225 = vmul.f32 %v2691, %v3223
    %v3226 = vadd.f32 %v3220, %v3224
    %v3227 = vadd.f32 %v3221, %v3225
    %s3228 = sld [smem:[#allocation11 + $0xbf]]
    %v3229 = vstv %s3228
    %v3230 = vmul.f32 %v2752, %v3229
    %v3231 = vmul.f32 %v2753, %v3229
    %v3232 = vadd.f32 %v3226, %v3230
    %v3233 = vadd.f32 %v3227, %v3231
    %s3234 = sld [smem:[#allocation12 + $0x17]]
    %v3235 = vstv %s3234
    %v3236 = vadd.f32 %v3232, %v3235
    %v3237 = vadd.f32 %v3233, %v3235
    %vm3238 = vcmp.gt.f32.partialorder %v3236, 0.0
    %vm3239 = vcmp.gt.f32.partialorder %v3237, 0.0
    %v3240 = vmin.f32 %v3236, 0.0
    %v3241 = vmin.f32 %v3237, 0.0
    %v3242 = vmul.f32 %v3240, 1.442695
    %v3243 = vpow.pop %v3242
    %v3244 = vmul.f32 %v3241, 1.442695
    %v3245 = vpow.pop %v3244
    %v3246 = vsub.f32 %v3243, 1.0
    %v3247 = vsub.f32 %v3245, 1.0
    %v3248 = vsel %vm3238, %v3236, %v3246
    %v3249 = vsel %vm3239, %v3237, %v3247
    %s3250 = sld [smem:[#allocation11 + $0xc0]]
    %v3251 = vstv %s3250
    %v3252 = vmul.f32 %v2814, %v3251
    %v3253 = vmul.f32 %v2815, %v3251
    %s3254 = sld [smem:[#allocation11 + $0xc1]]
    %v3255 = vstv %s3254
    %v3256 = vmul.f32 %v2876, %v3255
    %v3257 = vmul.f32 %v2877, %v3255
    %v3258 = vadd.f32 %v3252, %v3256
    %v3259 = vadd.f32 %v3253, %v3257
    %s3260 = sld [smem:[#allocation11 + $0xc2]]
    %v3261 = vstv %s3260
    %v3262 = vmul.f32 %v2938, %v3261
    %v3263 = vmul.f32 %v2939, %v3261
    %v3264 = vadd.f32 %v3258, %v3262
    %v3265 = vadd.f32 %v3259, %v3263
    %s3266 = sld [smem:[#allocation11 + $0xc3]]
    %v3267 = vstv %s3266
    %v3268 = vmul.f32 %v3000, %v3267
    %v3269 = vmul.f32 %v3001, %v3267
    %v3270 = vadd.f32 %v3264, %v3268
    %v3271 = vadd.f32 %v3265, %v3269
    %s3272 = sld [smem:[#allocation11 + $0xc4]]
    %v3273 = vstv %s3272
    %v3274 = vmul.f32 %v3062, %v3273
    %v3275 = vmul.f32 %v3063, %v3273
    %v3276 = vadd.f32 %v3270, %v3274
    %v3277 = vadd.f32 %v3271, %v3275
    %s3278 = sld [smem:[#allocation11 + $0xc5]]
    %v3279 = vstv %s3278
    %v3280 = vmul.f32 %v3124, %v3279
    %v3281 = vmul.f32 %v3125, %v3279
    %v3282 = vadd.f32 %v3276, %v3280
    %v3283 = vadd.f32 %v3277, %v3281
    %s3284 = sld [smem:[#allocation11 + $0xc6]]
    %v3285 = vstv %s3284
    %v3286 = vmul.f32 %v3186, %v3285
    %v3287 = vmul.f32 %v3187, %v3285
    %v3288 = vadd.f32 %v3282, %v3286
    %v3289 = vadd.f32 %v3283, %v3287
    %s3290 = sld [smem:[#allocation11 + $0xc7]]
    %v3291 = vstv %s3290
    %v3292 = vmul.f32 %v3248, %v3291
    %v3293 = vmul.f32 %v3249, %v3291
    %v3294 = vadd.f32 %v3288, %v3292
    %v3295 = vadd.f32 %v3289, %v3293
    %s3296 = sld [smem:[#allocation12 + $0x18]]
    %v3297 = vstv %s3296
    %v3298 = vadd.f32 %v3294, %v3297
    %v3299 = vadd.f32 %v3295, %v3297
    %vm3300 = vcmp.gt.f32.partialorder %v3298, 0.0
    %vm3301 = vcmp.gt.f32.partialorder %v3299, 0.0
    %v3302 = vmin.f32 %v3298, 0.0
    %v3303 = vmin.f32 %v3299, 0.0
    %v3304 = vmul.f32 %v3302, 1.442695
    %v3305 = vpow.pop %v3304
    %v3306 = vmul.f32 %v3303, 1.442695
    %v3307 = vpow.pop %v3306
    %v3308 = vsub.f32 %v3305, 1.0
    %v3309 = vsub.f32 %v3307, 1.0
    %v3310 = vsel %vm3300, %v3298, %v3308
    %v3311 = vsel %vm3301, %v3299, %v3309
    %s3312 = sld [smem:[#allocation11 + $0xc8]]
    %v3313 = vstv %s3312
    %v3314 = vmul.f32 %v2814, %v3313
    %v3315 = vmul.f32 %v2815, %v3313
    %s3316 = sld [smem:[#allocation11 + $0xc9]]
    %v3317 = vstv %s3316
    %v3318 = vmul.f32 %v2876, %v3317
    %v3319 = vmul.f32 %v2877, %v3317
    %v3320 = vadd.f32 %v3314, %v3318
    %v3321 = vadd.f32 %v3315, %v3319
    %s3322 = sld [smem:[#allocation11 + $0xca]]
    %v3323 = vstv %s3322
    %v3324 = vmul.f32 %v2938, %v3323
    %v3325 = vmul.f32 %v2939, %v3323
    %v3326 = vadd.f32 %v3320, %v3324
    %v3327 = vadd.f32 %v3321, %v3325
    %s3328 = sld [smem:[#allocation11 + $0xcb]]
    %v3329 = vstv %s3328
    %v3330 = vmul.f32 %v3000, %v3329
    %v3331 = vmul.f32 %v3001, %v3329
    %v3332 = vadd.f32 %v3326, %v3330
    %v3333 = vadd.f32 %v3327, %v3331
    %s3334 = sld [smem:[#allocation11 + $0xcc]]
    %v3335 = vstv %s3334
    %v3336 = vmul.f32 %v3062, %v3335
    %v3337 = vmul.f32 %v3063, %v3335
    %v3338 = vadd.f32 %v3332, %v3336
    %v3339 = vadd.f32 %v3333, %v3337
    %s3340 = sld [smem:[#allocation11 + $0xcd]]
    %v3341 = vstv %s3340
    %v3342 = vmul.f32 %v3124, %v3341
    %v3343 = vmul.f32 %v3125, %v3341
    %v3344 = vadd.f32 %v3338, %v3342
    %v3345 = vadd.f32 %v3339, %v3343
    %s3346 = sld [smem:[#allocation11 + $0xce]]
    %v3347 = vstv %s3346
    %v3348 = vmul.f32 %v3186, %v3347
    %v3349 = vmul.f32 %v3187, %v3347
    %v3350 = vadd.f32 %v3344, %v3348
    %v3351 = vadd.f32 %v3345, %v3349
    %s3352 = sld [smem:[#allocation11 + $0xcf]]
    %v3353 = vstv %s3352
    %v3354 = vmul.f32 %v3248, %v3353
    %v3355 = vmul.f32 %v3249, %v3353
    %v3356 = vadd.f32 %v3350, %v3354
    %v3357 = vadd.f32 %v3351, %v3355
    %s3358 = sld [smem:[#allocation12 + $0x19]]
    %v3359 = vstv %s3358
    %v3360 = vadd.f32 %v3356, %v3359
    %v3361 = vadd.f32 %v3357, %v3359
    %vm3362 = vcmp.gt.f32.partialorder %v3360, 0.0
    %vm3363 = vcmp.gt.f32.partialorder %v3361, 0.0
    %v3364 = vmin.f32 %v3360, 0.0
    %v3365 = vmin.f32 %v3361, 0.0
    %v3366 = vmul.f32 %v3364, 1.442695
    %v3367 = vpow.pop %v3366
    %v3368 = vmul.f32 %v3365, 1.442695
    %v3369 = vpow.pop %v3368
    %v3370 = vsub.f32 %v3367, 1.0
    %v3371 = vsub.f32 %v3369, 1.0
    %v3372 = vsel %vm3362, %v3360, %v3370
    %v3373 = vsel %vm3363, %v3361, %v3371
    %s3374 = sld [smem:[#allocation11 + $0xd0]]
    %v3375 = vstv %s3374
    %v3376 = vmul.f32 %v2814, %v3375
    %v3377 = vmul.f32 %v2815, %v3375
    %s3378 = sld [smem:[#allocation11 + $0xd1]]
    %v3379 = vstv %s3378
    %v3380 = vmul.f32 %v2876, %v3379
    %v3381 = vmul.f32 %v2877, %v3379
    %v3382 = vadd.f32 %v3376, %v3380
    %v3383 = vadd.f32 %v3377, %v3381
    %s3384 = sld [smem:[#allocation11 + $0xd2]]
    %v3385 = vstv %s3384
    %v3386 = vmul.f32 %v2938, %v3385
    %v3387 = vmul.f32 %v2939, %v3385
    %v3388 = vadd.f32 %v3382, %v3386
    %v3389 = vadd.f32 %v3383, %v3387
    %s3390 = sld [smem:[#allocation11 + $0xd3]]
    %v3391 = vstv %s3390
    %v3392 = vmul.f32 %v3000, %v3391
    %v3393 = vmul.f32 %v3001, %v3391
    %v3394 = vadd.f32 %v3388, %v3392
    %v3395 = vadd.f32 %v3389, %v3393
    %s3396 = sld [smem:[#allocation11 + $0xd4]]
    %v3397 = vstv %s3396
    %v3398 = vmul.f32 %v3062, %v3397
    %v3399 = vmul.f32 %v3063, %v3397
    %v3400 = vadd.f32 %v3394, %v3398
    %v3401 = vadd.f32 %v3395, %v3399
    %s3402 = sld [smem:[#allocation11 + $0xd5]]
    %v3403 = vstv %s3402
    %v3404 = vmul.f32 %v3124, %v3403
    %v3405 = vmul.f32 %v3125, %v3403
    %v3406 = vadd.f32 %v3400, %v3404
    %v3407 = vadd.f32 %v3401, %v3405
    %s3408 = sld [smem:[#allocation11 + $0xd6]]
    %v3409 = vstv %s3408
    %v3410 = vmul.f32 %v3186, %v3409
    %v3411 = vmul.f32 %v3187, %v3409
    %v3412 = vadd.f32 %v3406, %v3410
    %v3413 = vadd.f32 %v3407, %v3411
    %s3414 = sld [smem:[#allocation11 + $0xd7]]
    %v3415 = vstv %s3414
    %v3416 = vmul.f32 %v3248, %v3415
    %v3417 = vmul.f32 %v3249, %v3415
    %v3418 = vadd.f32 %v3412, %v3416
    %v3419 = vadd.f32 %v3413, %v3417
    %s3420 = sld [smem:[#allocation12 + $0x1a]]
    %v3421 = vstv %s3420
    %v3422 = vadd.f32 %v3418, %v3421
    %v3423 = vadd.f32 %v3419, %v3421
    %vm3424 = vcmp.gt.f32.partialorder %v3422, 0.0
    %vm3425 = vcmp.gt.f32.partialorder %v3423, 0.0
    %v3426 = vmin.f32 %v3422, 0.0
    %v3427 = vmin.f32 %v3423, 0.0
    %v3428 = vmul.f32 %v3426, 1.442695
    %v3429 = vpow.pop %v3428
    %v3430 = vmul.f32 %v3427, 1.442695
    %v3431 = vpow.pop %v3430
    %v3432 = vsub.f32 %v3429, 1.0
    %v3433 = vsub.f32 %v3431, 1.0
    %v3434 = vsel %vm3424, %v3422, %v3432
    %v3435 = vsel %vm3425, %v3423, %v3433
    %s3436 = sld [smem:[#allocation11 + $0xd8]]
    %v3437 = vstv %s3436
    %v3438 = vmul.f32 %v2814, %v3437
    %v3439 = vmul.f32 %v2815, %v3437
    %s3440 = sld [smem:[#allocation11 + $0xd9]]
    %v3441 = vstv %s3440
    %v3442 = vmul.f32 %v2876, %v3441
    %v3443 = vmul.f32 %v2877, %v3441
    %v3444 = vadd.f32 %v3438, %v3442
    %v3445 = vadd.f32 %v3439, %v3443
    %s3446 = sld [smem:[#allocation11 + $0xda]]
    %v3447 = vstv %s3446
    %v3448 = vmul.f32 %v2938, %v3447
    %v3449 = vmul.f32 %v2939, %v3447
    %v3450 = vadd.f32 %v3444, %v3448
    %v3451 = vadd.f32 %v3445, %v3449
    %s3452 = sld [smem:[#allocation11 + $0xdb]]
    %v3453 = vstv %s3452
    %v3454 = vmul.f32 %v3000, %v3453
    %v3455 = vmul.f32 %v3001, %v3453
    %v3456 = vadd.f32 %v3450, %v3454
    %v3457 = vadd.f32 %v3451, %v3455
    %s3458 = sld [smem:[#allocation11 + $0xdc]]
    %v3459 = vstv %s3458
    %v3460 = vmul.f32 %v3062, %v3459
    %v3461 = vmul.f32 %v3063, %v3459
    %v3462 = vadd.f32 %v3456, %v3460
    %v3463 = vadd.f32 %v3457, %v3461
    %s3464 = sld [smem:[#allocation11 + $0xdd]]
    %v3465 = vstv %s3464
    %v3466 = vmul.f32 %v3124, %v3465
    %v3467 = vmul.f32 %v3125, %v3465
    %v3468 = vadd.f32 %v3462, %v3466
    %v3469 = vadd.f32 %v3463, %v3467
    %s3470 = sld [smem:[#allocation11 + $0xde]]
    %v3471 = vstv %s3470
    %v3472 = vmul.f32 %v3186, %v3471
    %v3473 = vmul.f32 %v3187, %v3471
    %v3474 = vadd.f32 %v3468, %v3472
    %v3475 = vadd.f32 %v3469, %v3473
    %s3476 = sld [smem:[#allocation11 + $0xdf]]
    %v3477 = vstv %s3476
    %v3478 = vmul.f32 %v3248, %v3477
    %v3479 = vmul.f32 %v3249, %v3477
    %v3480 = vadd.f32 %v3474, %v3478
    %v3481 = vadd.f32 %v3475, %v3479
    %s3482 = sld [smem:[#allocation12 + $0x1b]]
    %v3483 = vstv %s3482
    %v3484 = vadd.f32 %v3480, %v3483
    %v3485 = vadd.f32 %v3481, %v3483
    %vm3486 = vcmp.gt.f32.partialorder %v3484, 0.0
    %vm3487 = vcmp.gt.f32.partialorder %v3485, 0.0
    %v3488 = vmin.f32 %v3484, 0.0
    %v3489 = vmin.f32 %v3485, 0.0
    %v3490 = vmul.f32 %v3488, 1.442695
    %v3491 = vpow.pop %v3490
    %v3492 = vmul.f32 %v3489, 1.442695
    %v3493 = vpow.pop %v3492
    %v3494 = vsub.f32 %v3491, 1.0
    %v3495 = vsub.f32 %v3493, 1.0
    %v3496 = vsel %vm3486, %v3484, %v3494
    %v3497 = vsel %vm3487, %v3485, %v3495
    %s3498 = sld [smem:[#allocation11 + $0xe0]]
    %v3499 = vstv %s3498
    %v3500 = vmul.f32 %v2814, %v3499
    %v3501 = vmul.f32 %v2815, %v3499
    %s3502 = sld [smem:[#allocation11 + $0xe1]]
    %v3503 = vstv %s3502
    %v3504 = vmul.f32 %v2876, %v3503
    %v3505 = vmul.f32 %v2877, %v3503
    %v3506 = vadd.f32 %v3500, %v3504
    %v3507 = vadd.f32 %v3501, %v3505
    %s3508 = sld [smem:[#allocation11 + $0xe2]]
    %v3509 = vstv %s3508
    %v3510 = vmul.f32 %v2938, %v3509
    %v3511 = vmul.f32 %v2939, %v3509
    %v3512 = vadd.f32 %v3506, %v3510
    %v3513 = vadd.f32 %v3507, %v3511
    %s3514 = sld [smem:[#allocation11 + $0xe3]]
    %v3515 = vstv %s3514
    %v3516 = vmul.f32 %v3000, %v3515
    %v3517 = vmul.f32 %v3001, %v3515
    %v3518 = vadd.f32 %v3512, %v3516
    %v3519 = vadd.f32 %v3513, %v3517
    %s3520 = sld [smem:[#allocation11 + $0xe4]]
    %v3521 = vstv %s3520
    %v3522 = vmul.f32 %v3062, %v3521
    %v3523 = vmul.f32 %v3063, %v3521
    %v3524 = vadd.f32 %v3518, %v3522
    %v3525 = vadd.f32 %v3519, %v3523
    %s3526 = sld [smem:[#allocation11 + $0xe5]]
    %v3527 = vstv %s3526
    %v3528 = vmul.f32 %v3124, %v3527
    %v3529 = vmul.f32 %v3125, %v3527
    %v3530 = vadd.f32 %v3524, %v3528
    %v3531 = vadd.f32 %v3525, %v3529
    %s3532 = sld [smem:[#allocation11 + $0xe6]]
    %v3533 = vstv %s3532
    %v3534 = vmul.f32 %v3186, %v3533
    %v3535 = vmul.f32 %v3187, %v3533
    %v3536 = vadd.f32 %v3530, %v3534
    %v3537 = vadd.f32 %v3531, %v3535
    %s3538 = sld [smem:[#allocation11 + $0xe7]]
    %v3539 = vstv %s3538
    %v3540 = vmul.f32 %v3248, %v3539
    %v3541 = vmul.f32 %v3249, %v3539
    %v3542 = vadd.f32 %v3536, %v3540
    %v3543 = vadd.f32 %v3537, %v3541
    %s3544 = sld [smem:[#allocation12 + $0x1c]]
    %v3545 = vstv %s3544
    %v3546 = vadd.f32 %v3542, %v3545
    %v3547 = vadd.f32 %v3543, %v3545
    %vm3548 = vcmp.gt.f32.partialorder %v3546, 0.0
    %vm3549 = vcmp.gt.f32.partialorder %v3547, 0.0
    %v3550 = vmin.f32 %v3546, 0.0
    %v3551 = vmin.f32 %v3547, 0.0
    %v3552 = vmul.f32 %v3550, 1.442695
    %v3553 = vpow.pop %v3552
    %v3554 = vmul.f32 %v3551, 1.442695
    %v3555 = vpow.pop %v3554
    %v3556 = vsub.f32 %v3553, 1.0
    %v3557 = vsub.f32 %v3555, 1.0
    %v3558 = vsel %vm3548, %v3546, %v3556
    %v3559 = vsel %vm3549, %v3547, %v3557
    %s3560 = sld [smem:[#allocation11 + $0xe8]]
    %v3561 = vstv %s3560
    %v3562 = vmul.f32 %v2814, %v3561
    %v3563 = vmul.f32 %v2815, %v3561
    %s3564 = sld [smem:[#allocation11 + $0xe9]]
    %v3565 = vstv %s3564
    %v3566 = vmul.f32 %v2876, %v3565
    %v3567 = vmul.f32 %v2877, %v3565
    %v3568 = vadd.f32 %v3562, %v3566
    %v3569 = vadd.f32 %v3563, %v3567
    %s3570 = sld [smem:[#allocation11 + $0xea]]
    %v3571 = vstv %s3570
    %v3572 = vmul.f32 %v2938, %v3571
    %v3573 = vmul.f32 %v2939, %v3571
    %v3574 = vadd.f32 %v3568, %v3572
    %v3575 = vadd.f32 %v3569, %v3573
    %s3576 = sld [smem:[#allocation11 + $0xeb]]
    %v3577 = vstv %s3576
    %v3578 = vmul.f32 %v3000, %v3577
    %v3579 = vmul.f32 %v3001, %v3577
    %v3580 = vadd.f32 %v3574, %v3578
    %v3581 = vadd.f32 %v3575, %v3579
    %s3582 = sld [smem:[#allocation11 + $0xec]]
    %v3583 = vstv %s3582
    %v3584 = vmul.f32 %v3062, %v3583
    %v3585 = vmul.f32 %v3063, %v3583
    %v3586 = vadd.f32 %v3580, %v3584
    %v3587 = vadd.f32 %v3581, %v3585
    %s3588 = sld [smem:[#allocation11 + $0xed]]
    %v3589 = vstv %s3588
    %v3590 = vmul.f32 %v3124, %v3589
    %v3591 = vmul.f32 %v3125, %v3589
    %v3592 = vadd.f32 %v3586, %v3590
    %v3593 = vadd.f32 %v3587, %v3591
    %s3594 = sld [smem:[#allocation11 + $0xee]]
    %v3595 = vstv %s3594
    %v3596 = vmul.f32 %v3186, %v3595
    %v3597 = vmul.f32 %v3187, %v3595
    %v3598 = vadd.f32 %v3592, %v3596
    %v3599 = vadd.f32 %v3593, %v3597
    %s3600 = sld [smem:[#allocation11 + $0xef]]
    %v3601 = vstv %s3600
    %v3602 = vmul.f32 %v3248, %v3601
    %v3603 = vmul.f32 %v3249, %v3601
    %v3604 = vadd.f32 %v3598, %v3602
    %v3605 = vadd.f32 %v3599, %v3603
    %s3606 = sld [smem:[#allocation12 + $0x1d]]
    %v3607 = vstv %s3606
    %v3608 = vadd.f32 %v3604, %v3607
    %v3609 = vadd.f32 %v3605, %v3607
    %vm3610 = vcmp.gt.f32.partialorder %v3608, 0.0
    %vm3611 = vcmp.gt.f32.partialorder %v3609, 0.0
    %v3612 = vmin.f32 %v3608, 0.0
    %v3613 = vmin.f32 %v3609, 0.0
    %v3614 = vmul.f32 %v3612, 1.442695
    %v3615 = vpow.pop %v3614
    %v3616 = vmul.f32 %v3613, 1.442695
    %v3617 = vpow.pop %v3616
    %v3618 = vsub.f32 %v3615, 1.0
    %v3619 = vsub.f32 %v3617, 1.0
    %v3620 = vsel %vm3610, %v3608, %v3618
    %v3621 = vsel %vm3611, %v3609, %v3619
    %s3622 = sld [smem:[#allocation11 + $0xf0]]
    %v3623 = vstv %s3622
    %v3624 = vmul.f32 %v2814, %v3623
    %v3625 = vmul.f32 %v2815, %v3623
    %s3626 = sld [smem:[#allocation11 + $0xf1]]
    %v3627 = vstv %s3626
    %v3628 = vmul.f32 %v2876, %v3627
    %v3629 = vmul.f32 %v2877, %v3627
    %v3630 = vadd.f32 %v3624, %v3628
    %v3631 = vadd.f32 %v3625, %v3629
    %s3632 = sld [smem:[#allocation11 + $0xf2]]
    %v3633 = vstv %s3632
    %v3634 = vmul.f32 %v2938, %v3633
    %v3635 = vmul.f32 %v2939, %v3633
    %v3636 = vadd.f32 %v3630, %v3634
    %v3637 = vadd.f32 %v3631, %v3635
    %s3638 = sld [smem:[#allocation11 + $0xf3]]
    %v3639 = vstv %s3638
    %v3640 = vmul.f32 %v3000, %v3639
    %v3641 = vmul.f32 %v3001, %v3639
    %v3642 = vadd.f32 %v3636, %v3640
    %v3643 = vadd.f32 %v3637, %v3641
    %s3644 = sld [smem:[#allocation11 + $0xf4]]
    %v3645 = vstv %s3644
    %v3646 = vmul.f32 %v3062, %v3645
    %v3647 = vmul.f32 %v3063, %v3645
    %v3648 = vadd.f32 %v3642, %v3646
    %v3649 = vadd.f32 %v3643, %v3647
    %s3650 = sld [smem:[#allocation11 + $0xf5]]
    %v3651 = vstv %s3650
    %v3652 = vmul.f32 %v3124, %v3651
    %v3653 = vmul.f32 %v3125, %v3651
    %v3654 = vadd.f32 %v3648, %v3652
    %v3655 = vadd.f32 %v3649, %v3653
    %s3656 = sld [smem:[#allocation11 + $0xf6]]
    %v3657 = vstv %s3656
    %v3658 = vmul.f32 %v3186, %v3657
    %v3659 = vmul.f32 %v3187, %v3657
    %v3660 = vadd.f32 %v3654, %v3658
    %v3661 = vadd.f32 %v3655, %v3659
    %s3662 = sld [smem:[#allocation11 + $0xf7]]
    %v3663 = vstv %s3662
    %v3664 = vmul.f32 %v3248, %v3663
    %v3665 = vmul.f32 %v3249, %v3663
    %v3666 = vadd.f32 %v3660, %v3664
    %v3667 = vadd.f32 %v3661, %v3665
    %s3668 = sld [smem:[#allocation12 + $0x1e]]
    %v3669 = vstv %s3668
    %v3670 = vadd.f32 %v3666, %v3669
    %v3671 = vadd.f32 %v3667, %v3669
    %vm3672 = vcmp.gt.f32.partialorder %v3670, 0.0
    %vm3673 = vcmp.gt.f32.partialorder %v3671, 0.0
    %v3674 = vmin.f32 %v3670, 0.0
    %v3675 = vmin.f32 %v3671, 0.0
    %v3676 = vmul.f32 %v3674, 1.442695
    %v3677 = vpow.pop %v3676
    %v3678 = vmul.f32 %v3675, 1.442695
    %v3679 = vpow.pop %v3678
    %v3680 = vsub.f32 %v3677, 1.0
    %v3681 = vsub.f32 %v3679, 1.0
    %v3682 = vsel %vm3672, %v3670, %v3680
    %v3683 = vsel %vm3673, %v3671, %v3681
    %s3684 = sld [smem:[#allocation11 + $0xf8]]
    %v3685 = vstv %s3684
    %v3686 = vmul.f32 %v2814, %v3685
    %v3687 = vmul.f32 %v2815, %v3685
    %s3688 = sld [smem:[#allocation11 + $0xf9]]
    %v3689 = vstv %s3688
    %v3690 = vmul.f32 %v2876, %v3689
    %v3691 = vmul.f32 %v2877, %v3689
    %v3692 = vadd.f32 %v3686, %v3690
    %v3693 = vadd.f32 %v3687, %v3691
    %s3694 = sld [smem:[#allocation11 + $0xfa]]
    %v3695 = vstv %s3694
    %v3696 = vmul.f32 %v2938, %v3695
    %v3697 = vmul.f32 %v2939, %v3695
    %v3698 = vadd.f32 %v3692, %v3696
    %v3699 = vadd.f32 %v3693, %v3697
    %s3700 = sld [smem:[#allocation11 + $0xfb]]
    %v3701 = vstv %s3700
    %v3702 = vmul.f32 %v3000, %v3701
    %v3703 = vmul.f32 %v3001, %v3701
    %v3704 = vadd.f32 %v3698, %v3702
    %v3705 = vadd.f32 %v3699, %v3703
    %s3706 = sld [smem:[#allocation11 + $0xfc]]
    %v3707 = vstv %s3706
    %v3708 = vmul.f32 %v3062, %v3707
    %v3709 = vmul.f32 %v3063, %v3707
    %v3710 = vadd.f32 %v3704, %v3708
    %v3711 = vadd.f32 %v3705, %v3709
    %s3712 = sld [smem:[#allocation11 + $0xfd]]
    %v3713 = vstv %s3712
    %v3714 = vmul.f32 %v3124, %v3713
    %v3715 = vmul.f32 %v3125, %v3713
    %v3716 = vadd.f32 %v3710, %v3714
    %v3717 = vadd.f32 %v3711, %v3715
    %s3718 = sld [smem:[#allocation11 + $0xfe]]
    %v3719 = vstv %s3718
    %v3720 = vmul.f32 %v3186, %v3719
    %v3721 = vmul.f32 %v3187, %v3719
    %v3722 = vadd.f32 %v3716, %v3720
    %v3723 = vadd.f32 %v3717, %v3721
    %s3724 = sld [smem:[#allocation11 + $0xff]]
    %v3725 = vstv %s3724
    %v3726 = vmul.f32 %v3248, %v3725
    %v3727 = vmul.f32 %v3249, %v3725
    %v3728 = vadd.f32 %v3722, %v3726
    %v3729 = vadd.f32 %v3723, %v3727
    %s3730 = sld [smem:[#allocation12 + $0x1f]]
    %v3731 = vstv %s3730
    %v3732 = vadd.f32 %v3728, %v3731
    %v3733 = vadd.f32 %v3729, %v3731
    %vm3734 = vcmp.gt.f32.partialorder %v3732, 0.0
    %vm3735 = vcmp.gt.f32.partialorder %v3733, 0.0
    %v3736 = vmin.f32 %v3732, 0.0
    %v3737 = vmin.f32 %v3733, 0.0
    %v3738 = vmul.f32 %v3736, 1.442695
    %v3739 = vpow.pop %v3738
    %v3740 = vmul.f32 %v3737, 1.442695
    %v3741 = vpow.pop %v3740
    %v3742 = vsub.f32 %v3739, 1.0
    %v3743 = vsub.f32 %v3741, 1.0
    %v3744 = vsel %vm3734, %v3732, %v3742
    %v3745 = vsel %vm3735, %v3733, %v3743
    %s3746 = sld [smem:[#allocation11 + $0x100]]
    %v3747 = vstv %s3746
    %v3748 = vmul.f32 %v3310, %v3747
    %v3749 = vmul.f32 %v3311, %v3747
    %s3750 = sld [smem:[#allocation11 + $0x101]]
    %v3751 = vstv %s3750
    %v3752 = vmul.f32 %v3372, %v3751
    %v3753 = vmul.f32 %v3373, %v3751
    %v3754 = vadd.f32 %v3748, %v3752
    %v3755 = vadd.f32 %v3749, %v3753
    %s3756 = sld [smem:[#allocation11 + $0x102]]
    %v3757 = vstv %s3756
    %v3758 = vmul.f32 %v3434, %v3757
    %v3759 = vmul.f32 %v3435, %v3757
    %v3760 = vadd.f32 %v3754, %v3758
    %v3761 = vadd.f32 %v3755, %v3759
    %s3762 = sld [smem:[#allocation11 + $0x103]]
    %v3763 = vstv %s3762
    %v3764 = vmul.f32 %v3496, %v3763
    %v3765 = vmul.f32 %v3497, %v3763
    %v3766 = vadd.f32 %v3760, %v3764
    %v3767 = vadd.f32 %v3761, %v3765
    %s3768 = sld [smem:[#allocation11 + $0x104]]
    %v3769 = vstv %s3768
    %v3770 = vmul.f32 %v3558, %v3769
    %v3771 = vmul.f32 %v3559, %v3769
    %v3772 = vadd.f32 %v3766, %v3770
    %v3773 = vadd.f32 %v3767, %v3771
    %s3774 = sld [smem:[#allocation11 + $0x105]]
    %v3775 = vstv %s3774
    %v3776 = vmul.f32 %v3620, %v3775
    %v3777 = vmul.f32 %v3621, %v3775
    %v3778 = vadd.f32 %v3772, %v3776
    %v3779 = vadd.f32 %v3773, %v3777
    %s3780 = sld [smem:[#allocation11 + $0x106]]
    %v3781 = vstv %s3780
    %v3782 = vmul.f32 %v3682, %v3781
    %v3783 = vmul.f32 %v3683, %v3781
    %v3784 = vadd.f32 %v3778, %v3782
    %v3785 = vadd.f32 %v3779, %v3783
    %s3786 = sld [smem:[#allocation11 + $0x107]]
    %v3787 = vstv %s3786
    %v3788 = vmul.f32 %v3744, %v3787
    %v3789 = vmul.f32 %v3745, %v3787
    %v3790 = vadd.f32 %v3784, %v3788
    %v3791 = vadd.f32 %v3785, %v3789
    %s3792 = sld [smem:[#allocation12 + $0x20]]
    %v3793 = vstv %s3792
    %v3794 = vadd.f32 %v3790, %v3793
    %v3795 = vadd.f32 %v3791, %v3793
    %vm3796 = vcmp.gt.f32.partialorder %v3794, 0.0
    %vm3797 = vcmp.gt.f32.partialorder %v3795, 0.0
    %v3798 = vmin.f32 %v3794, 0.0
    %v3799 = vmin.f32 %v3795, 0.0
    %v3800 = vmul.f32 %v3798, 1.442695
    %v3801 = vpow.pop %v3800
    %v3802 = vmul.f32 %v3799, 1.442695
    %v3803 = vpow.pop %v3802
    %v3804 = vsub.f32 %v3801, 1.0
    %v3805 = vsub.f32 %v3803, 1.0
    %v3806 = vsel %vm3796, %v3794, %v3804
    %v3807 = vsel %vm3797, %v3795, %v3805
    %s3808 = sld [smem:[#allocation11 + $0x108]]
    %v3809 = vstv %s3808
    %v3810 = vmul.f32 %v3310, %v3809
    %v3811 = vmul.f32 %v3311, %v3809
    %s3812 = sld [smem:[#allocation11 + $0x109]]
    %v3813 = vstv %s3812
    %v3814 = vmul.f32 %v3372, %v3813
    %v3815 = vmul.f32 %v3373, %v3813
    %v3816 = vadd.f32 %v3810, %v3814
    %v3817 = vadd.f32 %v3811, %v3815
    %s3818 = sld [smem:[#allocation11 + $0x10a]]
    %v3819 = vstv %s3818
    %v3820 = vmul.f32 %v3434, %v3819
    %v3821 = vmul.f32 %v3435, %v3819
    %v3822 = vadd.f32 %v3816, %v3820
    %v3823 = vadd.f32 %v3817, %v3821
    %s3824 = sld [smem:[#allocation11 + $0x10b]]
    %v3825 = vstv %s3824
    %v3826 = vmul.f32 %v3496, %v3825
    %v3827 = vmul.f32 %v3497, %v3825
    %v3828 = vadd.f32 %v3822, %v3826
    %v3829 = vadd.f32 %v3823, %v3827
    %s3830 = sld [smem:[#allocation11 + $0x10c]]
    %v3831 = vstv %s3830
    %v3832 = vmul.f32 %v3558, %v3831
    %v3833 = vmul.f32 %v3559, %v3831
    %v3834 = vadd.f32 %v3828, %v3832
    %v3835 = vadd.f32 %v3829, %v3833
    %s3836 = sld [smem:[#allocation11 + $0x10d]]
    %v3837 = vstv %s3836
    %v3838 = vmul.f32 %v3620, %v3837
    %v3839 = vmul.f32 %v3621, %v3837
    %v3840 = vadd.f32 %v3834, %v3838
    %v3841 = vadd.f32 %v3835, %v3839
    %s3842 = sld [smem:[#allocation11 + $0x10e]]
    %v3843 = vstv %s3842
    %v3844 = vmul.f32 %v3682, %v3843
    %v3845 = vmul.f32 %v3683, %v3843
    %v3846 = vadd.f32 %v3840, %v3844
    %v3847 = vadd.f32 %v3841, %v3845
    %s3848 = sld [smem:[#allocation11 + $0x10f]]
    %v3849 = vstv %s3848
    %v3850 = vmul.f32 %v3744, %v3849
    %v3851 = vmul.f32 %v3745, %v3849
    %v3852 = vadd.f32 %v3846, %v3850
    %v3853 = vadd.f32 %v3847, %v3851
    %s3854 = sld [smem:[#allocation12 + $0x21]]
    %v3855 = vstv %s3854
    %v3856 = vadd.f32 %v3852, %v3855
    %v3857 = vadd.f32 %v3853, %v3855
    %vm3858 = vcmp.gt.f32.partialorder %v3856, 0.0
    %vm3859 = vcmp.gt.f32.partialorder %v3857, 0.0
    %v3860 = vmin.f32 %v3856, 0.0
    %v3861 = vmin.f32 %v3857, 0.0
    %v3862 = vmul.f32 %v3860, 1.442695
    %v3863 = vpow.pop %v3862
    %v3864 = vmul.f32 %v3861, 1.442695
    %v3865 = vpow.pop %v3864
    %v3866 = vsub.f32 %v3863, 1.0
    %v3867 = vsub.f32 %v3865, 1.0
    %v3868 = vsel %vm3858, %v3856, %v3866
    %v3869 = vsel %vm3859, %v3857, %v3867
    %s3870 = sld [smem:[#allocation11 + $0x110]]
    %v3871 = vstv %s3870
    %v3872 = vmul.f32 %v3310, %v3871
    %v3873 = vmul.f32 %v3311, %v3871
    %s3874 = sld [smem:[#allocation11 + $0x111]]
    %v3875 = vstv %s3874
    %v3876 = vmul.f32 %v3372, %v3875
    %v3877 = vmul.f32 %v3373, %v3875
    %v3878 = vadd.f32 %v3872, %v3876
    %v3879 = vadd.f32 %v3873, %v3877
    %s3880 = sld [smem:[#allocation11 + $0x112]]
    %v3881 = vstv %s3880
    %v3882 = vmul.f32 %v3434, %v3881
    %v3883 = vmul.f32 %v3435, %v3881
    %v3884 = vadd.f32 %v3878, %v3882
    %v3885 = vadd.f32 %v3879, %v3883
    %s3886 = sld [smem:[#allocation11 + $0x113]]
    %v3887 = vstv %s3886
    %v3888 = vmul.f32 %v3496, %v3887
    %v3889 = vmul.f32 %v3497, %v3887
    %v3890 = vadd.f32 %v3884, %v3888
    %v3891 = vadd.f32 %v3885, %v3889
    %s3892 = sld [smem:[#allocation11 + $0x114]]
    %v3893 = vstv %s3892
    %v3894 = vmul.f32 %v3558, %v3893
    %v3895 = vmul.f32 %v3559, %v3893
    %v3896 = vadd.f32 %v3890, %v3894
    %v3897 = vadd.f32 %v3891, %v3895
    %s3898 = sld [smem:[#allocation11 + $0x115]]
    %v3899 = vstv %s3898
    %v3900 = vmul.f32 %v3620, %v3899
    %v3901 = vmul.f32 %v3621, %v3899
    %v3902 = vadd.f32 %v3896, %v3900
    %v3903 = vadd.f32 %v3897, %v3901
    %s3904 = sld [smem:[#allocation11 + $0x116]]
    %v3905 = vstv %s3904
    %v3906 = vmul.f32 %v3682, %v3905
    %v3907 = vmul.f32 %v3683, %v3905
    %v3908 = vadd.f32 %v3902, %v3906
    %v3909 = vadd.f32 %v3903, %v3907
    %s3910 = sld [smem:[#allocation11 + $0x117]]
    %v3911 = vstv %s3910
    %v3912 = vmul.f32 %v3744, %v3911
    %v3913 = vmul.f32 %v3745, %v3911
    %v3914 = vadd.f32 %v3908, %v3912
    %v3915 = vadd.f32 %v3909, %v3913
    %s3916 = sld [smem:[#allocation12 + $0x22]]
    %v3917 = vstv %s3916
    %v3918 = vadd.f32 %v3914, %v3917
    %v3919 = vadd.f32 %v3915, %v3917
    %vm3920 = vcmp.gt.f32.partialorder %v3918, 0.0
    %vm3921 = vcmp.gt.f32.partialorder %v3919, 0.0
    %v3922 = vmin.f32 %v3918, 0.0
    %v3923 = vmin.f32 %v3919, 0.0
    %v3924 = vmul.f32 %v3922, 1.442695
    %v3925 = vpow.pop %v3924
    %v3926 = vmul.f32 %v3923, 1.442695
    %v3927 = vpow.pop %v3926
    %v3928 = vsub.f32 %v3925, 1.0
    %v3929 = vsub.f32 %v3927, 1.0
    %v3930 = vsel %vm3920, %v3918, %v3928
    %v3931 = vsel %vm3921, %v3919, %v3929
    %s3932 = sld [smem:[#allocation11 + $0x118]]
    %v3933 = vstv %s3932
    %v3934 = vmul.f32 %v3310, %v3933
    %v3935 = vmul.f32 %v3311, %v3933
    %s3936 = sld [smem:[#allocation11 + $0x119]]
    %v3937 = vstv %s3936
    %v3938 = vmul.f32 %v3372, %v3937
    %v3939 = vmul.f32 %v3373, %v3937
    %v3940 = vadd.f32 %v3934, %v3938
    %v3941 = vadd.f32 %v3935, %v3939
    %s3942 = sld [smem:[#allocation11 + $0x11a]]
    %v3943 = vstv %s3942
    %v3944 = vmul.f32 %v3434, %v3943
    %v3945 = vmul.f32 %v3435, %v3943
    %v3946 = vadd.f32 %v3940, %v3944
    %v3947 = vadd.f32 %v3941, %v3945
    %s3948 = sld [smem:[#allocation11 + $0x11b]]
    %v3949 = vstv %s3948
    %v3950 = vmul.f32 %v3496, %v3949
    %v3951 = vmul.f32 %v3497, %v3949
    %v3952 = vadd.f32 %v3946, %v3950
    %v3953 = vadd.f32 %v3947, %v3951
    %s3954 = sld [smem:[#allocation11 + $0x11c]]
    %v3955 = vstv %s3954
    %v3956 = vmul.f32 %v3558, %v3955
    %v3957 = vmul.f32 %v3559, %v3955
    %v3958 = vadd.f32 %v3952, %v3956
    %v3959 = vadd.f32 %v3953, %v3957
    %s3960 = sld [smem:[#allocation11 + $0x11d]]
    %v3961 = vstv %s3960
    %v3962 = vmul.f32 %v3620, %v3961
    %v3963 = vmul.f32 %v3621, %v3961
    %v3964 = vadd.f32 %v3958, %v3962
    %v3965 = vadd.f32 %v3959, %v3963
    %s3966 = sld [smem:[#allocation11 + $0x11e]]
    %v3967 = vstv %s3966
    %v3968 = vmul.f32 %v3682, %v3967
    %v3969 = vmul.f32 %v3683, %v3967
    %v3970 = vadd.f32 %v3964, %v3968
    %v3971 = vadd.f32 %v3965, %v3969
    %s3972 = sld [smem:[#allocation11 + $0x11f]]
    %v3973 = vstv %s3972
    %v3974 = vmul.f32 %v3744, %v3973
    %v3975 = vmul.f32 %v3745, %v3973
    %v3976 = vadd.f32 %v3970, %v3974
    %v3977 = vadd.f32 %v3971, %v3975
    %s3978 = sld [smem:[#allocation12 + $0x23]]
    %v3979 = vstv %s3978
    %v3980 = vadd.f32 %v3976, %v3979
    %v3981 = vadd.f32 %v3977, %v3979
    %vm3982 = vcmp.gt.f32.partialorder %v3980, 0.0
    %vm3983 = vcmp.gt.f32.partialorder %v3981, 0.0
    %v3984 = vmin.f32 %v3980, 0.0
    %v3985 = vmin.f32 %v3981, 0.0
    %v3986 = vmul.f32 %v3984, 1.442695
    %v3987 = vpow.pop %v3986
    %v3988 = vmul.f32 %v3985, 1.442695
    %v3989 = vpow.pop %v3988
    %v3990 = vsub.f32 %v3987, 1.0
    %v3991 = vsub.f32 %v3989, 1.0
    %v3992 = vsel %vm3982, %v3980, %v3990
    %v3993 = vsel %vm3983, %v3981, %v3991
    %s3994 = sld [smem:[#allocation11 + $0x120]]
    %v3995 = vstv %s3994
    %v3996 = vmul.f32 %v3310, %v3995
    %v3997 = vmul.f32 %v3311, %v3995
    %s3998 = sld [smem:[#allocation11 + $0x121]]
    %v3999 = vstv %s3998
    %v4000 = vmul.f32 %v3372, %v3999
    %v4001 = vmul.f32 %v3373, %v3999
    %v4002 = vadd.f32 %v3996, %v4000
    %v4003 = vadd.f32 %v3997, %v4001
    %s4004 = sld [smem:[#allocation11 + $0x122]]
    %v4005 = vstv %s4004
    %v4006 = vmul.f32 %v3434, %v4005
    %v4007 = vmul.f32 %v3435, %v4005
    %v4008 = vadd.f32 %v4002, %v4006
    %v4009 = vadd.f32 %v4003, %v4007
    %s4010 = sld [smem:[#allocation11 + $0x123]]
    %v4011 = vstv %s4010
    %v4012 = vmul.f32 %v3496, %v4011
    %v4013 = vmul.f32 %v3497, %v4011
    %v4014 = vadd.f32 %v4008, %v4012
    %v4015 = vadd.f32 %v4009, %v4013
    %s4016 = sld [smem:[#allocation11 + $0x124]]
    %v4017 = vstv %s4016
    %v4018 = vmul.f32 %v3558, %v4017
    %v4019 = vmul.f32 %v3559, %v4017
    %v4020 = vadd.f32 %v4014, %v4018
    %v4021 = vadd.f32 %v4015, %v4019
    %s4022 = sld [smem:[#allocation11 + $0x125]]
    %v4023 = vstv %s4022
    %v4024 = vmul.f32 %v3620, %v4023
    %v4025 = vmul.f32 %v3621, %v4023
    %v4026 = vadd.f32 %v4020, %v4024
    %v4027 = vadd.f32 %v4021, %v4025
    %s4028 = sld [smem:[#allocation11 + $0x126]]
    %v4029 = vstv %s4028
    %v4030 = vmul.f32 %v3682, %v4029
    %v4031 = vmul.f32 %v3683, %v4029
    %v4032 = vadd.f32 %v4026, %v4030
    %v4033 = vadd.f32 %v4027, %v4031
    %s4034 = sld [smem:[#allocation11 + $0x127]]
    %v4035 = vstv %s4034
    %v4036 = vmul.f32 %v3744, %v4035
    %v4037 = vmul.f32 %v3745, %v4035
    %v4038 = vadd.f32 %v4032, %v4036
    %v4039 = vadd.f32 %v4033, %v4037
    %s4040 = sld [smem:[#allocation12 + $0x24]]
    %v4041 = vstv %s4040
    %v4042 = vadd.f32 %v4038, %v4041
    %v4043 = vadd.f32 %v4039, %v4041
    %vm4044 = vcmp.gt.f32.partialorder %v4042, 0.0
    %vm4045 = vcmp.gt.f32.partialorder %v4043, 0.0
    %v4046 = vmin.f32 %v4042, 0.0
    %v4047 = vmin.f32 %v4043, 0.0
    %v4048 = vmul.f32 %v4046, 1.442695
    %v4049 = vpow.pop %v4048
    %v4050 = vmul.f32 %v4047, 1.442695
    %v4051 = vpow.pop %v4050
    %v4052 = vsub.f32 %v4049, 1.0
    %v4053 = vsub.f32 %v4051, 1.0
    %v4054 = vsel %vm4044, %v4042, %v4052
    %v4055 = vsel %vm4045, %v4043, %v4053
    %s4056 = sld [smem:[#allocation11 + $0x128]]
    %v4057 = vstv %s4056
    %v4058 = vmul.f32 %v3310, %v4057
    %v4059 = vmul.f32 %v3311, %v4057
    %s4060 = sld [smem:[#allocation11 + $0x129]]
    %v4061 = vstv %s4060
    %v4062 = vmul.f32 %v3372, %v4061
    %v4063 = vmul.f32 %v3373, %v4061
    %v4064 = vadd.f32 %v4058, %v4062
    %v4065 = vadd.f32 %v4059, %v4063
    %s4066 = sld [smem:[#allocation11 + $0x12a]]
    %v4067 = vstv %s4066
    %v4068 = vmul.f32 %v3434, %v4067
    %v4069 = vmul.f32 %v3435, %v4067
    %v4070 = vadd.f32 %v4064, %v4068
    %v4071 = vadd.f32 %v4065, %v4069
    %s4072 = sld [smem:[#allocation11 + $0x12b]]
    %v4073 = vstv %s4072
    %v4074 = vmul.f32 %v3496, %v4073
    %v4075 = vmul.f32 %v3497, %v4073
    %v4076 = vadd.f32 %v4070, %v4074
    %v4077 = vadd.f32 %v4071, %v4075
    %s4078 = sld [smem:[#allocation11 + $0x12c]]
    %v4079 = vstv %s4078
    %v4080 = vmul.f32 %v3558, %v4079
    %v4081 = vmul.f32 %v3559, %v4079
    %v4082 = vadd.f32 %v4076, %v4080
    %v4083 = vadd.f32 %v4077, %v4081
    %s4084 = sld [smem:[#allocation11 + $0x12d]]
    %v4085 = vstv %s4084
    %v4086 = vmul.f32 %v3620, %v4085
    %v4087 = vmul.f32 %v3621, %v4085
    %v4088 = vadd.f32 %v4082, %v4086
    %v4089 = vadd.f32 %v4083, %v4087
    %s4090 = sld [smem:[#allocation11 + $0x12e]]
    %v4091 = vstv %s4090
    %v4092 = vmul.f32 %v3682, %v4091
    %v4093 = vmul.f32 %v3683, %v4091
    %v4094 = vadd.f32 %v4088, %v4092
    %v4095 = vadd.f32 %v4089, %v4093
    %s4096 = sld [smem:[#allocation11 + $0x12f]]
    %v4097 = vstv %s4096
    %v4098 = vmul.f32 %v3744, %v4097
    %v4099 = vmul.f32 %v3745, %v4097
    %v4100 = vadd.f32 %v4094, %v4098
    %v4101 = vadd.f32 %v4095, %v4099
    %s4102 = sld [smem:[#allocation12 + $0x25]]
    %v4103 = vstv %s4102
    %v4104 = vadd.f32 %v4100, %v4103
    %v4105 = vadd.f32 %v4101, %v4103
    %vm4106 = vcmp.gt.f32.partialorder %v4104, 0.0
    %vm4107 = vcmp.gt.f32.partialorder %v4105, 0.0
    %v4108 = vmin.f32 %v4104, 0.0
    %v4109 = vmin.f32 %v4105, 0.0
    %v4110 = vmul.f32 %v4108, 1.442695
    %v4111 = vpow.pop %v4110
    %v4112 = vmul.f32 %v4109, 1.442695
    %v4113 = vpow.pop %v4112
    %v4114 = vsub.f32 %v4111, 1.0
    %v4115 = vsub.f32 %v4113, 1.0
    %v4116 = vsel %vm4106, %v4104, %v4114
    %v4117 = vsel %vm4107, %v4105, %v4115
    %s4118 = sld [smem:[#allocation11 + $0x130]]
    %v4119 = vstv %s4118
    %v4120 = vmul.f32 %v3310, %v4119
    %v4121 = vmul.f32 %v3311, %v4119
    %s4122 = sld [smem:[#allocation11 + $0x131]]
    %v4123 = vstv %s4122
    %v4124 = vmul.f32 %v3372, %v4123
    %v4125 = vmul.f32 %v3373, %v4123
    %v4126 = vadd.f32 %v4120, %v4124
    %v4127 = vadd.f32 %v4121, %v4125
    %s4128 = sld [smem:[#allocation11 + $0x132]]
    %v4129 = vstv %s4128
    %v4130 = vmul.f32 %v3434, %v4129
    %v4131 = vmul.f32 %v3435, %v4129
    %v4132 = vadd.f32 %v4126, %v4130
    %v4133 = vadd.f32 %v4127, %v4131
    %s4134 = sld [smem:[#allocation11 + $0x133]]
    %v4135 = vstv %s4134
    %v4136 = vmul.f32 %v3496, %v4135
    %v4137 = vmul.f32 %v3497, %v4135
    %v4138 = vadd.f32 %v4132, %v4136
    %v4139 = vadd.f32 %v4133, %v4137
    %s4140 = sld [smem:[#allocation11 + $0x134]]
    %v4141 = vstv %s4140
    %v4142 = vmul.f32 %v3558, %v4141
    %v4143 = vmul.f32 %v3559, %v4141
    %v4144 = vadd.f32 %v4138, %v4142
    %v4145 = vadd.f32 %v4139, %v4143
    %s4146 = sld [smem:[#allocation11 + $0x135]]
    %v4147 = vstv %s4146
    %v4148 = vmul.f32 %v3620, %v4147
    %v4149 = vmul.f32 %v3621, %v4147
    %v4150 = vadd.f32 %v4144, %v4148
    %v4151 = vadd.f32 %v4145, %v4149
    %s4152 = sld [smem:[#allocation11 + $0x136]]
    %v4153 = vstv %s4152
    %v4154 = vmul.f32 %v3682, %v4153
    %v4155 = vmul.f32 %v3683, %v4153
    %v4156 = vadd.f32 %v4150, %v4154
    %v4157 = vadd.f32 %v4151, %v4155
    %s4158 = sld [smem:[#allocation11 + $0x137]]
    %v4159 = vstv %s4158
    %v4160 = vmul.f32 %v3744, %v4159
    %v4161 = vmul.f32 %v3745, %v4159
    %v4162 = vadd.f32 %v4156, %v4160
    %v4163 = vadd.f32 %v4157, %v4161
    %s4164 = sld [smem:[#allocation12 + $0x26]]
    %v4165 = vstv %s4164
    %v4166 = vadd.f32 %v4162, %v4165
    %v4167 = vadd.f32 %v4163, %v4165
    %vm4168 = vcmp.gt.f32.partialorder %v4166, 0.0
    %vm4169 = vcmp.gt.f32.partialorder %v4167, 0.0
    %v4170 = vmin.f32 %v4166, 0.0
    %v4171 = vmin.f32 %v4167, 0.0
    %v4172 = vmul.f32 %v4170, 1.442695
    %v4173 = vpow.pop %v4172
    %v4174 = vmul.f32 %v4171, 1.442695
    %v4175 = vpow.pop %v4174
    %v4176 = vsub.f32 %v4173, 1.0
    %v4177 = vsub.f32 %v4175, 1.0
    %v4178 = vsel %vm4168, %v4166, %v4176
    %v4179 = vsel %vm4169, %v4167, %v4177
    %s4180 = sld [smem:[#allocation11 + $0x138]]
    %v4181 = vstv %s4180
    %v4182 = vmul.f32 %v3310, %v4181
    %v4183 = vmul.f32 %v3311, %v4181
    %s4184 = sld [smem:[#allocation11 + $0x139]]
    %v4185 = vstv %s4184
    %v4186 = vmul.f32 %v3372, %v4185
    %v4187 = vmul.f32 %v3373, %v4185
    %v4188 = vadd.f32 %v4182, %v4186
    %v4189 = vadd.f32 %v4183, %v4187
    %s4190 = sld [smem:[#allocation11 + $0x13a]]
    %v4191 = vstv %s4190
    %v4192 = vmul.f32 %v3434, %v4191
    %v4193 = vmul.f32 %v3435, %v4191
    %v4194 = vadd.f32 %v4188, %v4192
    %v4195 = vadd.f32 %v4189, %v4193
    %s4196 = sld [smem:[#allocation11 + $0x13b]]
    %v4197 = vstv %s4196
    %v4198 = vmul.f32 %v3496, %v4197
    %v4199 = vmul.f32 %v3497, %v4197
    %v4200 = vadd.f32 %v4194, %v4198
    %v4201 = vadd.f32 %v4195, %v4199
    %s4202 = sld [smem:[#allocation11 + $0x13c]]
    %v4203 = vstv %s4202
    %v4204 = vmul.f32 %v3558, %v4203
    %v4205 = vmul.f32 %v3559, %v4203
    %v4206 = vadd.f32 %v4200, %v4204
    %v4207 = vadd.f32 %v4201, %v4205
    %s4208 = sld [smem:[#allocation11 + $0x13d]]
    %v4209 = vstv %s4208
    %v4210 = vmul.f32 %v3620, %v4209
    %v4211 = vmul.f32 %v3621, %v4209
    %v4212 = vadd.f32 %v4206, %v4210
    %v4213 = vadd.f32 %v4207, %v4211
    %s4214 = sld [smem:[#allocation11 + $0x13e]]
    %v4215 = vstv %s4214
    %v4216 = vmul.f32 %v3682, %v4215
    %v4217 = vmul.f32 %v3683, %v4215
    %v4218 = vadd.f32 %v4212, %v4216
    %v4219 = vadd.f32 %v4213, %v4217
    %s4220 = sld [smem:[#allocation11 + $0x13f]]
    %v4221 = vstv %s4220
    %v4222 = vmul.f32 %v3744, %v4221
    %v4223 = vmul.f32 %v3745, %v4221
    %v4224 = vadd.f32 %v4218, %v4222
    %v4225 = vadd.f32 %v4219, %v4223
    %s4226 = sld [smem:[#allocation12 + $0x27]]
    %v4227 = vstv %s4226
    %v4228 = vadd.f32 %v4224, %v4227
    %v4229 = vadd.f32 %v4225, %v4227
    %vm4230 = vcmp.gt.f32.partialorder %v4228, 0.0
    %vm4231 = vcmp.gt.f32.partialorder %v4229, 0.0
    %v4232 = vmin.f32 %v4228, 0.0
    %v4233 = vmin.f32 %v4229, 0.0
    %v4234 = vmul.f32 %v4232, 1.442695
    %v4235 = vpow.pop %v4234
    %v4236 = vmul.f32 %v4233, 1.442695
    %v4237 = vpow.pop %v4236
    %v4238 = vsub.f32 %v4235, 1.0
    %v4239 = vsub.f32 %v4237, 1.0
    %v4240 = vsel %vm4230, %v4228, %v4238
    %v4241 = vsel %vm4231, %v4229, %v4239
    %s4242 = sld [smem:[#allocation14]]
    %v4243 = vstv %s4242
    %v4244 = vmul.f32 %v3806, %v4243
    %v4245 = vmul.f32 %v3807, %v4243
    %s4246 = sld [smem:[#allocation14 + $0x1]]
    %v4247 = vstv %s4246
    %v4248 = vmul.f32 %v3868, %v4247
    %v4249 = vmul.f32 %v3869, %v4247
    %v4250 = vadd.f32 %v4244, %v4248
    %v4251 = vadd.f32 %v4245, %v4249
    %s4252 = sld [smem:[#allocation14 + $0x2]]
    %v4253 = vstv %s4252
    %v4254 = vmul.f32 %v3930, %v4253
    %v4255 = vmul.f32 %v3931, %v4253
    %v4256 = vadd.f32 %v4250, %v4254
    %v4257 = vadd.f32 %v4251, %v4255
    %s4258 = sld [smem:[#allocation14 + $0x3]]
    %v4259 = vstv %s4258
    %v4260 = vmul.f32 %v3992, %v4259
    %v4261 = vmul.f32 %v3993, %v4259
    %v4262 = vadd.f32 %v4256, %v4260
    %v4263 = vadd.f32 %v4257, %v4261
    %s4264 = sld [smem:[#allocation14 + $0x4]]
    %v4265 = vstv %s4264
    %v4266 = vmul.f32 %v4054, %v4265
    %v4267 = vmul.f32 %v4055, %v4265
    %v4268 = vadd.f32 %v4262, %v4266
    %v4269 = vadd.f32 %v4263, %v4267
    %s4270 = sld [smem:[#allocation14 + $0x5]]
    %v4271 = vstv %s4270
    %v4272 = vmul.f32 %v4116, %v4271
    %v4273 = vmul.f32 %v4117, %v4271
    %v4274 = vadd.f32 %v4268, %v4272
    %v4275 = vadd.f32 %v4269, %v4273
    %s4276 = sld [smem:[#allocation14 + $0x6]]
    %v4277 = vstv %s4276
    %v4278 = vmul.f32 %v4178, %v4277
    %v4279 = vmul.f32 %v4179, %v4277
    %v4280 = vadd.f32 %v4274, %v4278
    %v4281 = vadd.f32 %v4275, %v4279
    %s4282 = sld [smem:[#allocation14 + $0x7]]
    %v4283 = vstv %s4282
    %v4284 = vmul.f32 %v4240, %v4283
    %v4285 = vmul.f32 %v4241, %v4283
    %v4286 = vadd.f32 %v4280, %v4284
    %v4287 = vadd.f32 %v4281, %v4285
    %s4288 = sld [smem:[#allocation2]]
    %v4289 = vstv %s4288
    %v4290 = vadd.f32 %v4286, %v4289
    %v4291 = vadd.f32 %v4287, %v4289
    %v4294 = vcombine.low %v4290, %v4291
    %v4296 = vunpack.c.l.s4 1983009808
    %v4297 = vunpack.c.0.s8 %v4296
    %v4298 = vlaneseq
    %v4299 = vshrl.u32 %v4298, 7
    %v4300 = vsub.s32 %v4297, %v4299
    %v4301 = vrot.slane %v4294, %v4300
    %4303 = vst [vmem:[%s14] sm:$0xf] %v4301
    // Predicated region
    $region86: #{heatmap_decoder_forward.1} parent=1 // pred_check
      _
    $region87: #{heatmap_decoder_forward.1} parent=1 // pred_check_branch
      %4305 = sbr.rel (0) target = $region89
    $region88: #{heatmap_decoder_forward.1} parent=1 // pred_region
      _
    $region89: #{heatmap_decoder_forward.1} parent=1 // pred_fallthru
      _
    // Predicated region
    $region90: #{heatmap_decoder_forward.1} parent=1 // pred_check
      _
    $region91: #{heatmap_decoder_forward.1} parent=1 // pred_check_branch
      %4307 = sbr.rel (0) target = $region93
    $region92: #{heatmap_decoder_forward.1} parent=1 // pred_region
      _
    $region93: #{heatmap_decoder_forward.1} parent=1 // pred_fallthru
      _
    %4308 = vsyncpa [#allocation4], 1
    %4309 = vsyncpa [#allocation7], 1
    %4310 = vsyncpa [#allocation5], 1
    %4311 = vsyncpa [#allocation10], 1
    %4312 = vsyncpa [#allocation13], 1

</llo_original>
